<compile_context>
chip_gen: v5e
topology: v5e:2x2
jax: 0.10.0
libtpu: 0.0.40
codegen_flags: <defaults>
</compile_context>

<pallas_src>
import functools

import jax
import jax.numpy as jnp
from jax.experimental import pallas as pl
from jax.experimental.pallas import tpu as pltpu

EMBEDDING_SIZE = 400
F_IN = 79

F_PAD = 128           # lane-padded input feature dim (79 -> 128)
D_PAD = 512           # lane-padded embedding dim   (400 -> 512)
# Finite "minus infinity" for the masked max.  Exact ONLY because activations
# are tanh-bounded to [-1, 1]; if the activation ever changes, revisit this.
_NEG_FILL = 1.0e4
_VMEM_LIMIT = 64 * 1024 * 1024


def _round_up(x, m):
    return (x + m - 1) // m * m


def _pick_tile(n, candidates, cap=None):
    for c in candidates:
        if n % c == 0 and (cap is None or c <= cap):
            return c
    return 128


def _pad_to(a, shape):
    pads = [(0, s - d) for d, s in zip(a.shape, shape)]
    return jnp.pad(a, pads)


# --------------------------------------------------------------------------
# SAGEConv (mean aggregation) + tanh, tiled over (node rows, adjacency K),
# with block-sparse skipping of all-zero adjacency tiles.
#   h_out = tanh( (A @ x) @ W_l + x @ W_r + b )
# --------------------------------------------------------------------------
def sage_tanh_kernel(kidx_ref, kvalid_ref, adj_ref, xk_ref, xrow_ref,
                     wl_ref, wr_ref, b_ref, o_ref, acc_ref):
    i = pl.program_id(0)
    k = pl.program_id(1)
    nk = pl.num_programs(1)

    @pl.when(k == 0)
    def _():
        acc_ref[...] = jnp.zeros_like(acc_ref)

    # Accumulate A @ x for this row tile only when the adj tile is nonzero
    # (bf16 MXU operands, f32 accumulation).
    @pl.when(kvalid_ref[i, k] > 0)
    def _():
        acc_ref[...] += jnp.dot(adj_ref[...], xk_ref[...],
                                preferred_element_type=jnp.float32)

    @pl.when(k == nk - 1)
    def _():
        agg = acc_ref[...].astype(jnp.bfloat16)            # (tm, Fin)
        pre = (jnp.dot(agg, wl_ref[...], preferred_element_type=jnp.float32)
               + jnp.dot(xrow_ref[...], wr_ref[...],
                         preferred_element_type=jnp.float32)
               + b_ref[...])                               # f32 bias add
        o_ref[...] = jnp.tanh(pre).astype(o_ref.dtype)     # tanh in f32, store bf16


def sage_tanh(x, adj, kidx, kvalid, wl, wr, b, *, tm, tk):
    """x:(Np,Fin) bf16, adj:(Np,Np) bf16, kidx/kvalid:(Np/tm,Np/tk) int32,
    wl/wr:(Fin,Dout) bf16, b:(1,Dout) f32 -> (Np,Dout) bf16."""
    n_pad = adj.shape[0]
    f_in = x.shape[1]
    d_out = wl.shape[1]
    grid = (n_pad // tm, n_pad // tk)
    return pl.pallas_call(
        sage_tanh_kernel,
        out_shape=jax.ShapeDtypeStruct((n_pad, d_out), jnp.bfloat16),
        grid_spec=pltpu.PrefetchScalarGridSpec(
            num_scalar_prefetch=2,                 # kidx, kvalid -> SMEM
            grid=grid,
            in_specs=[
                # adj tile: data-dependent k (skipped steps revisit -> no DMA)
                pl.BlockSpec((tm, tk), lambda i, k, kid, kv: (i, kid[i, k])),
                # x rows for aggregation (follows the same k map)
                pl.BlockSpec((tk, f_in), lambda i, k, kid, kv: (kid[i, k], 0)),
                # x root rows (epilogue only, constant in k)
                pl.BlockSpec((tm, f_in), lambda i, k, kid, kv: (i, 0)),
                pl.BlockSpec((f_in, d_out), lambda i, k, kid, kv: (0, 0)),  # W_l
                pl.BlockSpec((f_in, d_out), lambda i, k, kid, kv: (0, 0)),  # W_r
                pl.BlockSpec((1, d_out), lambda i, k, kid, kv: (0, 0)),     # bias
            ],
            out_specs=pl.BlockSpec((tm, d_out), lambda i, k, kid, kv: (i, 0)),
            scratch_shapes=[pltpu.VMEM((tm, f_in), jnp.float32)],
        ),
        compiler_params=pltpu.CompilerParams(
            dimension_semantics=("parallel", "arbitrary"),
            vmem_limit_bytes=_VMEM_LIMIT,
        ),
    )(kidx, kvalid, adj, x, x, wl, wr, b)


# --------------------------------------------------------------------------
# Single-pass [gmp ; gap] pooling: one grid axis over node tiles, (G_pad, D)
# accumulators living in the output refs.  Sum pool on the MXU (one-hot
# matmul), max pool on the VPU with a small static per-graph loop.
# --------------------------------------------------------------------------
def pool_kernel(mask_ng_ref, mask_gn_ref, h_ref, max_ref, sum_ref, *, num_graphs):
    t = pl.program_id(0)

    @pl.when(t == 0)
    def _():
        max_ref[...] = jnp.full_like(max_ref, -_NEG_FILL)
        sum_ref[...] = jnp.zeros_like(sum_ref)

    h = h_ref[...]                                         # (tn, D) bf16
    # Sum pool: (G_pad, tn) @ (tn, D), accumulated in f32 (MXU).
    sum_ref[...] += jnp.dot(mask_gn_ref[...], h,
                            preferred_element_type=jnp.float32)

    # Max pool: per-graph masked max.  Activations are tanh-bounded, so a
    # finite -1e4 offset is an exact "minus infinity".
    # TODO(synk): for very large num_graphs replace the static unroll with a loop.
    h_f = h.astype(jnp.float32)
    m_f = mask_ng_ref[...]                                 # (tn, G_pad) f32
    for g in range(num_graphs):                            # static, small
        col = m_f[:, g:g + 1]                              # (tn, 1)
        masked = h_f + (col - 1.0) * _NEG_FILL
        cur = jnp.max(masked, axis=0, keepdims=True)       # (1, D)
        max_ref[g:g + 1, :] = jnp.maximum(max_ref[g:g + 1, :], cur)


def pool_max_sum(h, mask_ng, mask_gn, *, tn, num_graphs):
    """h:(Np,D) bf16, mask_ng:(Np,G_pad) f32, mask_gn:(G_pad,Np) bf16
    -> (max_pool, sum_pool), each (G_pad, D) f32."""
    n_pad, d = h.shape
    g_pad = mask_gn.shape[0]
    grid = (n_pad // tn,)
    kernel = functools.partial(pool_kernel, num_graphs=num_graphs)
    return pl.pallas_call(
        kernel,
        out_shape=(jax.ShapeDtypeStruct((g_pad, d), jnp.float32),
                   jax.ShapeDtypeStruct((g_pad, d), jnp.float32)),
        grid_spec=pltpu.PrefetchScalarGridSpec(
            num_scalar_prefetch=0,
            grid=grid,
            in_specs=[
                pl.BlockSpec((tn, g_pad), lambda t: (t, 0)),   # node-major mask (max)
                pl.BlockSpec((g_pad, tn), lambda t: (0, t)),   # graph-major mask (MXU sum)
                pl.BlockSpec((tn, d), lambda t: (t, 0)),       # h tile (read once)
            ],
            out_specs=(pl.BlockSpec((g_pad, d), lambda t: (0, 0)),
                       pl.BlockSpec((g_pad, d), lambda t: (0, 0))),
        ),
        compiler_params=pltpu.CompilerParams(
            dimension_semantics=("arbitrary",),
            vmem_limit_bytes=_VMEM_LIMIT,
        ),
    )(mask_ng, mask_gn, h)


# --------------------------------------------------------------------------
# Parameter init (deterministic, synthetic) and forward glue.
# --------------------------------------------------------------------------
def init_params(key):
    def lin(k, fan_in, fan_out):
        return (jax.random.normal(k, (fan_in, fan_out), jnp.float32)
                / jnp.sqrt(jnp.float32(fan_in)))

    ks = jax.random.split(key, 8)
    params = {}
    dims = [(F_IN, EMBEDDING_SIZE),
            (EMBEDDING_SIZE, EMBEDDING_SIZE),
            (EMBEDDING_SIZE, EMBEDDING_SIZE)]
    for i, (fi, fo) in enumerate(dims):
        k_l, k_r = jax.random.split(ks[i], 2)
        params[f"sage{i}"] = (
            lin(k_l, fi, fo),                      # W_l (aggregated neighbors, with bias)
            lin(k_r, fi, fo),                      # W_r (root features)
            jnp.zeros((1, fo), jnp.float32),       # b
        )
    params["w_out"] = lin(ks[6], 2 * EMBEDDING_SIZE, 1)   # (800, 1)
    params["b_out"] = jnp.zeros((1,), jnp.float32)
    return params


@functools.partial(jax.jit, static_argnames=("num_graphs",))
def gnn_forward(params, x, edge_index, batch_index, num_graphs):
    n = x.shape[0]
    n_pad = _round_up(max(n, 128), 128)
    # Bigger tiles cut x re-reads and per-step overhead; cap tm at n_pad//2 so
    # the parallel row-tile axis still splits across two TensorCores.
    tm = _pick_tile(n_pad, (1024, 512, 256, 128), cap=max(128, n_pad // 2))
    tk = _pick_tile(n_pad, (2048, 1024, 512, 256, 128))
    tn = _pick_tile(n_pad, (2048, 1024, 512, 256, 128))

    src, dst = edge_index[0], edge_index[1]
    # Row-normalized adjacency: A[i, j] = 1/deg_in(i) if edge j->i, else 0.
    adj = jnp.zeros((n, n), jnp.float32).at[dst, src].add(1.0)
    deg = adj.sum(axis=1, keepdims=True)
    adj = jnp.where(deg > 0, adj / jnp.maximum(deg, 1.0), 0.0)
    adj_f32 = _pad_to(adj, (n_pad, n_pad))
    adj_p = adj_f32.astype(jnp.bfloat16)

    # Block-sparsity map over (row tile, k tile): derived from the adjacency
    # itself, so skipping is exact regardless of graph ordering.
    nrt, nkt = n_pad // tm, n_pad // tk
    blk_sum = adj_f32.reshape(nrt, tm, nkt, tk).sum(axis=(1, 3))   # (nrt, nkt)
    valid = blk_sum > 0.0
    karange = jnp.arange(nkt, dtype=jnp.int32)
    kcum = jax.lax.cummax(jnp.where(valid, karange[None, :], -1), axis=1)
    first_valid = jnp.argmax(valid, axis=1).astype(jnp.int32)
    kidx = jnp.where(kcum < 0, first_valid[:, None], kcum).astype(jnp.int32)
    kvalid = valid.astype(jnp.int32)

    x_p = _pad_to(x, (n_pad, F_PAD)).astype(jnp.bfloat16)

    # Zero-pad parameters to lane-dense shapes (exact: padded rows/cols are 0).
    def pad_layer(layer, f_pad):
        wl, wr, bl = layer
        return (_pad_to(wl, (f_pad, D_PAD)).astype(jnp.bfloat16),
                _pad_to(wr, (f_pad, D_PAD)).astype(jnp.bfloat16),
                _pad_to(bl, (1, D_PAD)))

    h = x_p
    f_pads = (F_PAD, D_PAD, D_PAD)
    for li in range(3):
        wl, wr, bl = pad_layer(params[f"sage{li}"], f_pads[li])
        h = sage_tanh(h, adj_p, kidx, kvalid, wl, wr, bl, tm=tm, tk=tk)
    # TODO(synk): nn.Dropout(p=0.25) is identity in eval mode; training-mode stochastic dropout omitted.

    # Per-graph masks, lane-dense, in both layouts (node-major for the max,
    # graph-major for the MXU sum).  Counts handled in plain JAX.
    g_pad = _round_up(max(num_graphs, 8), 8)
    oh = (batch_index[None, :] == jnp.arange(num_graphs)[:, None]).astype(jnp.float32)
    counts = oh.sum(axis=1)                                    # (G,)
    oh_pad = _pad_to(oh, (g_pad, n_pad))                       # (G_pad, Np)
    mask_gn = oh_pad.astype(jnp.bfloat16)
    mask_ng = jnp.transpose(oh_pad)                            # (Np, G_pad) f32

    max_raw, sum_raw = pool_max_sum(h, mask_ng, mask_gn, tn=tn,
                                    num_graphs=num_graphs)     # (G_pad, D_PAD) each

    cnt = counts[:, None]
    mean_pool = sum_raw[:num_graphs, :EMBEDDING_SIZE] / jnp.maximum(cnt, 1.0)
    max_pool = jnp.where(cnt > 0, max_raw[:num_graphs, :EMBEDDING_SIZE], 0.0)

    # Final Linear(2*emb, 1): microscopic -> plain JAX (concat folded into split).
    w = params["w_out"]
    out = (max_pool @ w[:EMBEDDING_SIZE]
           + mean_pool @ w[EMBEDDING_SIZE:]
           + params["b_out"])
    return out                                                 # (G, 1)


def gnn_forward_ref(params, x, edge_index, batch_index, num_graphs):
    """Pure-JAX f32 reference for correctness checking."""
    n = x.shape[0]
    src, dst = edge_index[0], edge_index[1]
    adj = jnp.zeros((n, n), jnp.float32).at[dst, src].add(1.0)
    deg = adj.sum(axis=1, keepdims=True)
    adj = jnp.where(deg > 0, adj / jnp.maximum(deg, 1.0), 0.0)

    h = x
    for i in range(3):
        wl, wr, bl = params[f"sage{i}"]
        h = jnp.tanh(adj @ h @ wl + h @ wr + bl)

    onehot = (batch_index[None, :] == jnp.arange(num_graphs)[:, None]).astype(jnp.float32)
    counts = onehot.sum(axis=1, keepdims=True)
    mean_pool = (onehot @ h) / counts
    masked = jnp.where(onehot[:, :, None] > 0.0, h[None, :, :], -jnp.inf)
    max_pool = jnp.max(masked, axis=1)
    feat = jnp.concatenate([max_pool, mean_pool], axis=1)
    return feat @ params["w_out"] + params["b_out"]


if __name__ == "__main__":
    key = jax.random.PRNGKey(0)
    k_param, k_x, k_e = jax.random.split(key, 3)

    N_NODES = 300          # small synthetic graph batch (pads to 384 -> multi-tile grid)
    N_EDGES = 900
    NUM_GRAPHS = 2

    params = init_params(k_param)
    x = jax.random.normal(k_x, (N_NODES, F_IN), jnp.float32)
    edge_index = jax.random.randint(k_e, (2, N_EDGES), 0, N_NODES, dtype=jnp.int32)
    batch_index = jnp.concatenate([
        jnp.zeros((N_NODES // 2,), jnp.int32),
        jnp.ones((N_NODES - N_NODES // 2,), jnp.int32),
    ])

    out = gnn_forward(params, x, edge_index, batch_index, NUM_GRAPHS)
    out = jax.block_until_ready(out)

    ref = gnn_forward_ref(params, x, edge_index, batch_index, NUM_GRAPHS)
    assert out.shape == (NUM_GRAPHS, 1)
    # bf16 MXU operands vs. f32 reference -> modest tolerance.
    assert jnp.allclose(out, ref, atol=5e-2, rtol=5e-2), (out, ref)

    print("KERNEL_OK")
</pallas_src>

<mosaic_0001>
module attributes {stable_mosaic.version = 11 : i64} {
  func.func @sage_tanh_kernel(%arg0: i32, %arg1: i32, %arg2: memref<3x3xi32, #tpu.memory_space<smem>>, %arg3: memref<3x3xi32, #tpu.memory_space<smem>>, %arg4: memref<128x128xbf16, #tpu.memory_space<vmem>>, %arg5: memref<128x128xbf16, #tpu.memory_space<vmem>>, %arg6: memref<128x128xbf16, #tpu.memory_space<vmem>>, %arg7: memref<128x512xbf16, #tpu.memory_space<vmem>>, %arg8: memref<128x512xbf16, #tpu.memory_space<vmem>>, %arg9: memref<1x512xf32, #tpu.memory_space<vmem>>, %arg10: memref<128x512xbf16, #tpu.memory_space<vmem>>, %arg11: memref<128x128xf32, #tpu.memory_space<vmem>>) attributes {dimension_semantics = [#tpu.dimension_semantics<parallel>, #tpu.dimension_semantics<arbitrary>], iteration_bounds = array<i64: 3, 3>, scalar_prefetch = 2 : i64, scratch_operands = 1 : i64, tpu.core_type = #tpu.core_type<tc>, window_params = [{transform_indices = @transform_0, window_bounds = array<i64: 128, 128>}, {transform_indices = @transform_1, window_bounds = array<i64: 128, 128>}, {transform_indices = @transform_2, window_bounds = array<i64: 128, 128>}, {pipeline_mode = #tpu.pipeline_mode<synchronous>, transform_indices = @transform_3, window_bounds = array<i64: 128, 512>}, {pipeline_mode = #tpu.pipeline_mode<synchronous>, transform_indices = @transform_4, window_bounds = array<i64: 128, 512>}, {pipeline_mode = #tpu.pipeline_mode<synchronous>, transform_indices = @transform_5, window_bounds = array<i64: 1, 512>}, {transform_indices = @transform_6, window_bounds = array<i64: 128, 512>}]} {
    %c0_i32 = arith.constant 0 : i32
    %0 = arith.cmpi eq, %arg1, %c0_i32 : i32
    %1 = arith.extui %0 : i1 to i32
    %c0_i32_0 = arith.constant 0 : i32
    %2 = arith.cmpi ne, %1, %c0_i32_0 : i32
    scf.if %2 {
      %cst = arith.constant 0.000000e+00 : f32
      %12 = vector.broadcast %cst : f32 to vector<128x128xf32>
      %c0 = arith.constant 0 : index
      %c0_4 = arith.constant 0 : index
      %13 = vector.load %arg11[%c0, %c0_4] : memref<128x128xf32, #tpu.memory_space<vmem>>, vector<128x128xf32>
      tpu.vector_store %arg11[%c0, %c0_4], %12 {strides = array<i32>} : memref<128x128xf32, #tpu.memory_space<vmem>>, vector<128x128xf32>,
    } else {
    }
    %3 = arith.index_cast %arg0 : i32 to index
    %4 = arith.index_cast %arg1 : i32 to index
    %5 = memref.load %arg3[%3, %4] : memref<3x3xi32, #tpu.memory_space<smem>>
    %c0_i32_1 = arith.constant 0 : i32
    %6 = arith.cmpi sgt, %5, %c0_i32_1 : i32
    %7 = arith.extui %6 : i1 to i32
    %c0_i32_2 = arith.constant 0 : i32
    %8 = arith.cmpi ne, %7, %c0_i32_2 : i32
    scf.if %8 {
      %c0 = arith.constant 0 : index
      %c0_4 = arith.constant 0 : index
      %12 = vector.load %arg11[%c0, %c0_4] : memref<128x128xf32, #tpu.memory_space<vmem>>, vector<128x128xf32>
      %c0_5 = arith.constant 0 : index
      %c0_6 = arith.constant 0 : index
      %13 = vector.load %arg4[%c0_5, %c0_6] : memref<128x128xbf16, #tpu.memory_space<vmem>>, vector<128x128xbf16>
      %c0_7 = arith.constant 0 : index
      %c0_8 = arith.constant 0 : index
      %14 = vector.load %arg5[%c0_7, %c0_8] : memref<128x128xbf16, #tpu.memory_space<vmem>>, vector<128x128xbf16>
      %cst = arith.constant dense<0.000000e+00> : vector<128x128xf32>
      %15 = tpu.matmul %13, %14, %cst {dimension_numbers = #tpu.dot_dimension_numbers<[1], [0], [0], [1], [0, 0, 1, 1], [], []>} : vector<128x128xbf16>, vector<128x128xbf16>, vector<128x128xf32> -> vector<128x128xf32>
      %16 = arith.addf %12, %15 : vector<128x128xf32>
      %c0_9 = arith.constant 0 : index
      %c0_10 = arith.constant 0 : index
      %17 = vector.load %arg11[%c0_9, %c0_10] : memref<128x128xf32, #tpu.memory_space<vmem>>, vector<128x128xf32>
      tpu.vector_store %arg11[%c0_9, %c0_10], %16 {strides = array<i32>} : memref<128x128xf32, #tpu.memory_space<vmem>>, vector<128x128xf32>,
    } else {
    }
    %c2_i32 = arith.constant 2 : i32
    %9 = arith.cmpi eq, %arg1, %c2_i32 : i32
    %10 = arith.extui %9 : i1 to i32
    %c0_i32_3 = arith.constant 0 : i32
    %11 = arith.cmpi ne, %10, %c0_i32_3 : i32
    scf.if %11 {
      %c0 = arith.constant 0 : index
      %c0_4 = arith.constant 0 : index
      %12 = vector.load %arg11[%c0, %c0_4] : memref<128x128xf32, #tpu.memory_space<vmem>>, vector<128x128xf32>
      %13 = arith.truncf %12 : vector<128x128xf32> to vector<128x128xbf16>
      %c0_5 = arith.constant 0 : index
      %c0_6 = arith.constant 0 : index
      %14 = vector.load %arg7[%c0_5, %c0_6] : memref<128x512xbf16, #tpu.memory_space<vmem>>, vector<128x512xbf16>
      %cst = arith.constant dense<0.000000e+00> : vector<128x512xf32>
      %15 = tpu.matmul %13, %14, %cst {dimension_numbers = #tpu.dot_dimension_numbers<[1], [0], [0], [1], [0, 0, 1, 1], [], []>} : vector<128x128xbf16>, vector<128x512xbf16>, vector<128x512xf32> -> vector<128x512xf32>
      %c0_7 = arith.constant 0 : index
      %c0_8 = arith.constant 0 : index
      %16 = vector.load %arg6[%c0_7, %c0_8] : memref<128x128xbf16, #tpu.memory_space<vmem>>, vector<128x128xbf16>
      %c0_9 = arith.constant 0 : index
      %c0_10 = arith.constant 0 : index
      %17 = vector.load %arg8[%c0_9, %c0_10] : memref<128x512xbf16, #tpu.memory_space<vmem>>, vector<128x512xbf16>
      %cst_11 = arith.constant dense<0.000000e+00> : vector<128x512xf32>
      %18 = tpu.matmul %16, %17, %cst_11 {dimension_numbers = #tpu.dot_dimension_numbers<[1], [0], [0], [1], [0, 0, 1, 1], [], []>} : vector<128x128xbf16>, vector<128x512xbf16>, vector<128x512xf32> -> vector<128x512xf32>
      %19 = arith.addf %15, %18 : vector<128x512xf32>
      %c0_12 = arith.constant 0 : index
      %c0_13 = arith.constant 0 : index
      %20 = vector.load %arg9[%c0_12, %c0_13] : memref<1x512xf32, #tpu.memory_space<vmem>>, vector<1x512xf32>
      %21 = vector.broadcast %20 : vector<1x512xf32> to vector<128x512xf32>
      %22 = arith.addf %19, %21 : vector<128x512xf32>
      %23 = math.tanh %22 : vector<128x512xf32>
      %24 = arith.truncf %23 : vector<128x512xf32> to vector<128x512xbf16>
      %c0_14 = arith.constant 0 : index
      %c0_15 = arith.constant 0 : index
      %25 = vector.load %arg10[%c0_14, %c0_15] : memref<128x512xbf16, #tpu.memory_space<vmem>>, vector<128x512xbf16>
      tpu.vector_store %arg10[%c0_14, %c0_15], %24 {strides = array<i32>} : memref<128x512xbf16, #tpu.memory_space<vmem>>, vector<128x512xbf16>,
    } else {
    }
    return
  }
  func.func @transform_0(%arg0: i32, %arg1: i32, %arg2: memref<3x3xi32, #tpu.memory_space<smem>>, %arg3: memref<3x3xi32, #tpu.memory_space<smem>>) -> (i32, i32) {
    %0 = arith.index_cast %arg0 : i32 to index
    %1 = arith.index_cast %arg1 : i32 to index
    %2 = memref.load %arg2[%0, %1] : memref<3x3xi32, #tpu.memory_space<smem>>
    %c0_i32 = arith.constant 0 : i32
    return %arg0, %2 : i32, i32
  }
  func.func @transform_1(%arg0: i32, %arg1: i32, %arg2: memref<3x3xi32, #tpu.memory_space<smem>>, %arg3: memref<3x3xi32, #tpu.memory_space<smem>>) -> (i32, i32) {
    %0 = arith.index_cast %arg0 : i32 to index
    %1 = arith.index_cast %arg1 : i32 to index
    %2 = memref.load %arg2[%0, %1] : memref<3x3xi32, #tpu.memory_space<smem>>
    %c0_i32 = arith.constant 0 : i32
    %c0_i32_0 = arith.constant 0 : i32
    return %2, %c0_i32 : i32, i32
  }
  func.func @transform_2(%arg0: i32, %arg1: i32, %arg2: memref<3x3xi32, #tpu.memory_space<smem>>, %arg3: memref<3x3xi32, #tpu.memory_space<smem>>) -> (i32, i32) {
    %c0_i32 = arith.constant 0 : i32
    %c0_i32_0 = arith.constant 0 : i32
    return %arg0, %c0_i32 : i32, i32
  }
  func.func @transform_3(%arg0: i32, %arg1: i32, %arg2: memref<3x3xi32, #tpu.memory_space<smem>>, %arg3: memref<3x3xi32, #tpu.memory_space<smem>>) -> (i32, i32) {
    %c0_i32 = arith.constant 0 : i32
    %c0_i32_0 = arith.constant 0 : i32
    %c0_i32_1 = arith.constant 0 : i32
    return %c0_i32, %c0_i32_0 : i32, i32
  }
  func.func @transform_4(%arg0: i32, %arg1: i32, %arg2: memref<3x3xi32, #tpu.memory_space<smem>>, %arg3: memref<3x3xi32, #tpu.memory_space<smem>>) -> (i32, i32) {
    %c0_i32 = arith.constant 0 : i32
    %c0_i32_0 = arith.constant 0 : i32
    %c0_i32_1 = arith.constant 0 : i32
    return %c0_i32, %c0_i32_0 : i32, i32
  }
  func.func @transform_5(%arg0: i32, %arg1: i32, %arg2: memref<3x3xi32, #tpu.memory_space<smem>>, %arg3: memref<3x3xi32, #tpu.memory_space<smem>>) -> (i32, i32) {
    %c0_i32 = arith.constant 0 : i32
    %c0_i32_0 = arith.constant 0 : i32
    %c0_i32_1 = arith.constant 0 : i32
    return %c0_i32, %c0_i32_0 : i32, i32
  }
  func.func @transform_6(%arg0: i32, %arg1: i32, %arg2: memref<3x3xi32, #tpu.memory_space<smem>>, %arg3: memref<3x3xi32, #tpu.memory_space<smem>>) -> (i32, i32) {
    %c0_i32 = arith.constant 0 : i32
    %c0_i32_0 = arith.constant 0 : i32
    return %arg0, %c0_i32 : i32, i32
  }
}

module attributes {stable_mosaic.version = 11 : i64} {
  func.func @sage_tanh_kernel(%arg0: i32, %arg1: i32, %arg2: memref<3x3xi32, #tpu.memory_space<smem>>, %arg3: memref<3x3xi32, #tpu.memory_space<smem>>, %arg4: memref<128x128xbf16, #tpu.memory_space<vmem>>, %arg5: memref<128x512xbf16, #tpu.memory_space<vmem>>, %arg6: memref<128x512xbf16, #tpu.memory_space<vmem>>, %arg7: memref<512x512xbf16, #tpu.memory_space<vmem>>, %arg8: memref<512x512xbf16, #tpu.memory_space<vmem>>, %arg9: memref<1x512xf32, #tpu.memory_space<vmem>>, %arg10: memref<128x512xbf16, #tpu.memory_space<vmem>>, %arg11: memref<128x512xf32, #tpu.memory_space<vmem>>) attributes {dimension_semantics = [#tpu.dimension_semantics<parallel>, #tpu.dimension_semantics<arbitrary>], iteration_bounds = array<i64: 3, 3>, scalar_prefetch = 2 : i64, scratch_operands = 1 : i64, tpu.core_type = #tpu.core_type<tc>, window_params = [{transform_indices = @transform_0, window_bounds = array<i64: 128, 128>}, {transform_indices = @transform_1, window_bounds = array<i64: 128, 512>}, {transform_indices = @transform_2, window_bounds = array<i64: 128, 512>}, {pipeline_mode = #tpu.pipeline_mode<synchronous>, transform_indices = @transform_3, window_bounds = array<i64: 512, 512>}, {pipeline_mode = #tpu.pipeline_mode<synchronous>, transform_indices = @transform_4, window_bounds = array<i64: 512, 512>}, {pipeline_mode = #tpu.pipeline_mode<synchronous>, transform_indices = @transform_5, window_bounds = array<i64: 1, 512>}, {transform_indices = @transform_6, window_bounds = array<i64: 128, 512>}]} {
    %c0_i32 = arith.constant 0 : i32
    %0 = arith.cmpi eq, %arg1, %c0_i32 : i32
    %1 = arith.extui %0 : i1 to i32
    %c0_i32_0 = arith.constant 0 : i32
    %2 = arith.cmpi ne, %1, %c0_i32_0 : i32
    scf.if %2 {
      %cst = arith.constant 0.000000e+00 : f32
      %12 = vector.broadcast %cst : f32 to vector<128x512xf32>
      %c0 = arith.constant 0 : index
      %c0_4 = arith.constant 0 : index
      %13 = vector.load %arg11[%c0, %c0_4] : memref<128x512xf32, #tpu.memory_space<vmem>>, vector<128x512xf32>
      tpu.vector_store %arg11[%c0, %c0_4], %12 {strides = array<i32>} : memref<128x512xf32, #tpu.memory_space<vmem>>, vector<128x512xf32>,
    } else {
    }
    %3 = arith.index_cast %arg0 : i32 to index
    %4 = arith.index_cast %arg1 : i32 to index
    %5 = memref.load %arg3[%3, %4] : memref<3x3xi32, #tpu.memory_space<smem>>
    %c0_i32_1 = arith.constant 0 : i32
    %6 = arith.cmpi sgt, %5, %c0_i32_1 : i32
    %7 = arith.extui %6 : i1 to i32
    %c0_i32_2 = arith.constant 0 : i32
    %8 = arith.cmpi ne, %7, %c0_i32_2 : i32
    scf.if %8 {
      %c0 = arith.constant 0 : index
      %c0_4 = arith.constant 0 : index
      %12 = vector.load %arg11[%c0, %c0_4] : memref<128x512xf32, #tpu.memory_space<vmem>>, vector<128x512xf32>
      %c0_5 = arith.constant 0 : index
      %c0_6 = arith.constant 0 : index
      %13 = vector.load %arg4[%c0_5, %c0_6] : memref<128x128xbf16, #tpu.memory_space<vmem>>, vector<128x128xbf16>
      %c0_7 = arith.constant 0 : index
      %c0_8 = arith.constant 0 : index
      %14 = vector.load %arg5[%c0_7, %c0_8] : memref<128x512xbf16, #tpu.memory_space<vmem>>, vector<128x512xbf16>
      %cst = arith.constant dense<0.000000e+00> : vector<128x512xf32>
      %15 = tpu.matmul %13, %14, %cst {dimension_numbers = #tpu.dot_dimension_numbers<[1], [0], [0], [1], [0, 0, 1, 1], [], []>} : vector<128x128xbf16>, vector<128x512xbf16>, vector<128x512xf32> -> vector<128x512xf32>
      %16 = arith.addf %12, %15 : vector<128x512xf32>
      %c0_9 = arith.constant 0 : index
      %c0_10 = arith.constant 0 : index
      %17 = vector.load %arg11[%c0_9, %c0_10] : memref<128x512xf32, #tpu.memory_space<vmem>>, vector<128x512xf32>
      tpu.vector_store %arg11[%c0_9, %c0_10], %16 {strides = array<i32>} : memref<128x512xf32, #tpu.memory_space<vmem>>, vector<128x512xf32>,
    } else {
    }
    %c2_i32 = arith.constant 2 : i32
    %9 = arith.cmpi eq, %arg1, %c2_i32 : i32
    %10 = arith.extui %9 : i1 to i32
    %c0_i32_3 = arith.constant 0 : i32
    %11 = arith.cmpi ne, %10, %c0_i32_3 : i32
    scf.if %11 {
      %c0 = arith.constant 0 : index
      %c0_4 = arith.constant 0 : index
      %12 = vector.load %arg11[%c0, %c0_4] : memref<128x512xf32, #tpu.memory_space<vmem>>, vector<128x512xf32>
      %13 = arith.truncf %12 : vector<128x512xf32> to vector<128x512xbf16>
      %c0_5 = arith.constant 0 : index
      %c0_6 = arith.constant 0 : index
      %14 = vector.load %arg7[%c0_5, %c0_6] : memref<512x512xbf16, #tpu.memory_space<vmem>>, vector<512x512xbf16>
      %cst = arith.constant dense<0.000000e+00> : vector<128x512xf32>
      %15 = tpu.matmul %13, %14, %cst {dimension_numbers = #tpu.dot_dimension_numbers<[1], [0], [0], [1], [0, 0, 1, 1], [], []>} : vector<128x512xbf16>, vector<512x512xbf16>, vector<128x512xf32> -> vector<128x512xf32>
      %c0_7 = arith.constant 0 : index
      %c0_8 = arith.constant 0 : index
      %16 = vector.load %arg6[%c0_7, %c0_8] : memref<128x512xbf16, #tpu.memory_space<vmem>>, vector<128x512xbf16>
      %c0_9 = arith.constant 0 : index
      %c0_10 = arith.constant 0 : index
      %17 = vector.load %arg8[%c0_9, %c0_10] : memref<512x512xbf16, #tpu.memory_space<vmem>>, vector<512x512xbf16>
      %cst_11 = arith.constant dense<0.000000e+00> : vector<128x512xf32>
      %18 = tpu.matmul %16, %17, %cst_11 {dimension_numbers = #tpu.dot_dimension_numbers<[1], [0], [0], [1], [0, 0, 1, 1], [], []>} : vector<128x512xbf16>, vector<512x512xbf16>, vector<128x512xf32> -> vector<128x512xf32>
      %19 = arith.addf %15, %18 : vector<128x512xf32>
      %c0_12 = arith.constant 0 : index
      %c0_13 = arith.constant 0 : index
      %20 = vector.load %arg9[%c0_12, %c0_13] : memref<1x512xf32, #tpu.memory_space<vmem>>, vector<1x512xf32>
      %21 = vector.broadcast %20 : vector<1x512xf32> to vector<128x512xf32>
      %22 = arith.addf %19, %21 : vector<128x512xf32>
      %23 = math.tanh %22 : vector<128x512xf32>
      %24 = arith.truncf %23 : vector<128x512xf32> to vector<128x512xbf16>
      %c0_14 = arith.constant 0 : index
      %c0_15 = arith.constant 0 : index
      %25 = vector.load %arg10[%c0_14, %c0_15] : memref<128x512xbf16, #tpu.memory_space<vmem>>, vector<128x512xbf16>
      tpu.vector_store %arg10[%c0_14, %c0_15], %24 {strides = array<i32>} : memref<128x512xbf16, #tpu.memory_space<vmem>>, vector<128x512xbf16>,
    } else {
    }
    return
  }
  func.func @transform_0(%arg0: i32, %arg1: i32, %arg2: memref<3x3xi32, #tpu.memory_space<smem>>, %arg3: memref<3x3xi32, #tpu.memory_space<smem>>) -> (i32, i32) {
    %0 = arith.index_cast %arg0 : i32 to index
    %1 = arith.index_cast %arg1 : i32 to index
    %2 = memref.load %arg2[%0, %1] : memref<3x3xi32, #tpu.memory_space<smem>>
    %c0_i32 = arith.constant 0 : i32
    return %arg0, %2 : i32, i32
  }
  func.func @transform_1(%arg0: i32, %arg1: i32, %arg2: memref<3x3xi32, #tpu.memory_space<smem>>, %arg3: memref<3x3xi32, #tpu.memory_space<smem>>) -> (i32, i32) {
    %0 = arith.index_cast %arg0 : i32 to index
    %1 = arith.index_cast %arg1 : i32 to index
    %2 = memref.load %arg2[%0, %1] : memref<3x3xi32, #tpu.memory_space<smem>>
    %c0_i32 = arith.constant 0 : i32
    %c0_i32_0 = arith.constant 0 : i32
    return %2, %c0_i32 : i32, i32
  }
  func.func @transform_2(%arg0: i32, %arg1: i32, %arg2: memref<3x3xi32, #tpu.memory_space<smem>>, %arg3: memref<3x3xi32, #tpu.memory_space<smem>>) -> (i32, i32) {
    %c0_i32 = arith.constant 0 : i32
    %c0_i32_0 = arith.constant 0 : i32
    return %arg0, %c0_i32 : i32, i32
  }
  func.func @transform_3(%arg0: i32, %arg1: i32, %arg2: memref<3x3xi32, #tpu.memory_space<smem>>, %arg3: memref<3x3xi32, #tpu.memory_space<smem>>) -> (i32, i32) {
    %c0_i32 = arith.constant 0 : i32
    %c0_i32_0 = arith.constant 0 : i32
    %c0_i32_1 = arith.constant 0 : i32
    return %c0_i32, %c0_i32_0 : i32, i32
  }
  func.func @transform_4(%arg0: i32, %arg1: i32, %arg2: memref<3x3xi32, #tpu.memory_space<smem>>, %arg3: memref<3x3xi32, #tpu.memory_space<smem>>) -> (i32, i32) {
    %c0_i32 = arith.constant 0 : i32
    %c0_i32_0 = arith.constant 0 : i32
    %c0_i32_1 = arith.constant 0 : i32
    return %c0_i32, %c0_i32_0 : i32, i32
  }
  func.func @transform_5(%arg0: i32, %arg1: i32, %arg2: memref<3x3xi32, #tpu.memory_space<smem>>, %arg3: memref<3x3xi32, #tpu.memory_space<smem>>) -> (i32, i32) {
    %c0_i32 = arith.constant 0 : i32
    %c0_i32_0 = arith.constant 0 : i32
    %c0_i32_1 = arith.constant 0 : i32
    return %c0_i32, %c0_i32_0 : i32, i32
  }
  func.func @transform_6(%arg0: i32, %arg1: i32, %arg2: memref<3x3xi32, #tpu.memory_space<smem>>, %arg3: memref<3x3xi32, #tpu.memory_space<smem>>) -> (i32, i32) {
    %c0_i32 = arith.constant 0 : i32
    %c0_i32_0 = arith.constant 0 : i32
    return %arg0, %c0_i32 : i32, i32
  }
}

module attributes {stable_mosaic.version = 11 : i64} {
  func.func @pool_kernel(%arg0: i32, %arg1: memref<128x8xf32, #tpu.memory_space<vmem>>, %arg2: memref<8x128xbf16, #tpu.memory_space<vmem>>, %arg3: memref<128x512xbf16, #tpu.memory_space<vmem>>, %arg4: memref<8x512xf32, #tpu.memory_space<vmem>>, %arg5: memref<8x512xf32, #tpu.memory_space<vmem>>) attributes {dimension_semantics = [#tpu.dimension_semantics<arbitrary>], iteration_bounds = array<i64: 3>, scalar_prefetch = 0 : i64, scratch_operands = 0 : i64, tpu.core_type = #tpu.core_type<tc>, window_params = [{transform_indices = @transform_0, window_bounds = array<i64: 128, 8>}, {transform_indices = @transform_1, window_bounds = array<i64: 8, 128>}, {transform_indices = @transform_2, window_bounds = array<i64: 128, 512>}, {pipeline_mode = #tpu.pipeline_mode<synchronous>, transform_indices = @transform_3, window_bounds = array<i64: 8, 512>}, {pipeline_mode = #tpu.pipeline_mode<synchronous>, transform_indices = @transform_4, window_bounds = array<i64: 8, 512>}]} {
    %c0_i32 = arith.constant 0 : i32
    %0 = arith.cmpi eq, %arg0, %c0_i32 : i32
    %1 = arith.extui %0 : i1 to i32
    %c0_i32_0 = arith.constant 0 : i32
    %2 = arith.cmpi ne, %1, %c0_i32_0 : i32
    scf.if %2 {
      %cst_23 = arith.constant -1.000000e+04 : f32
      %35 = vector.broadcast %cst_23 : f32 to vector<8x512xf32>
      %c0_24 = arith.constant 0 : index
      %c0_25 = arith.constant 0 : index
      %36 = vector.load %arg4[%c0_24, %c0_25] : memref<8x512xf32, #tpu.memory_space<vmem>>, vector<8x512xf32>
      tpu.vector_store %arg4[%c0_24, %c0_25], %35 {strides = array<i32>} : memref<8x512xf32, #tpu.memory_space<vmem>>, vector<8x512xf32>,
      %cst_26 = arith.constant 0.000000e+00 : f32
      %37 = vector.broadcast %cst_26 : f32 to vector<8x512xf32>
      %c0_27 = arith.constant 0 : index
      %c0_28 = arith.constant 0 : index
      %38 = vector.load %arg5[%c0_27, %c0_28] : memref<8x512xf32, #tpu.memory_space<vmem>>, vector<8x512xf32>
      tpu.vector_store %arg5[%c0_27, %c0_28], %37 {strides = array<i32>} : memref<8x512xf32, #tpu.memory_space<vmem>>, vector<8x512xf32>,
    } else {
    }
    %c0 = arith.constant 0 : index
    %c0_1 = arith.constant 0 : index
    %3 = vector.load %arg3[%c0, %c0_1] : memref<128x512xbf16, #tpu.memory_space<vmem>>, vector<128x512xbf16>
    %c0_2 = arith.constant 0 : index
    %c0_3 = arith.constant 0 : index
    %4 = vector.load %arg5[%c0_2, %c0_3] : memref<8x512xf32, #tpu.memory_space<vmem>>, vector<8x512xf32>
    %c0_4 = arith.constant 0 : index
    %c0_5 = arith.constant 0 : index
    %5 = vector.load %arg2[%c0_4, %c0_5] : memref<8x128xbf16, #tpu.memory_space<vmem>>, vector<8x128xbf16>
    %cst = arith.constant dense<0.000000e+00> : vector<8x512xf32>
    %6 = tpu.matmul %5, %3, %cst {dimension_numbers = #tpu.dot_dimension_numbers<[1], [0], [0], [1], [0, 0, 1, 1], [], []>} : vector<8x128xbf16>, vector<128x512xbf16>, vector<8x512xf32> -> vector<8x512xf32>
    %7 = arith.addf %4, %6 : vector<8x512xf32>
    %c0_6 = arith.constant 0 : index
    %c0_7 = arith.constant 0 : index
    %8 = vector.load %arg5[%c0_6, %c0_7] : memref<8x512xf32, #tpu.memory_space<vmem>>, vector<8x512xf32>
    tpu.vector_store %arg5[%c0_6, %c0_7], %7 {strides = array<i32>} : memref<8x512xf32, #tpu.memory_space<vmem>>, vector<8x512xf32>,
    %9 = arith.extf %3 : vector<128x512xbf16> to vector<128x512xf32>
    %c0_8 = arith.constant 0 : index
    %c0_9 = arith.constant 0 : index
    %10 = vector.load %arg1[%c0_8, %c0_9] : memref<128x8xf32, #tpu.memory_space<vmem>>, vector<128x8xf32>
    %11 = vector.extract_strided_slice %10 {offsets = [0, 0], sizes = [128, 1], strides = [1, 1]} : vector<128x8xf32> to vector<128x1xf32>
    %cst_10 = arith.constant 1.000000e+00 : f32
    %12 = vector.broadcast %cst_10 : f32 to vector<128x1xf32>
    %13 = arith.subf %11, %12 : vector<128x1xf32>
    %cst_11 = arith.constant 1.000000e+04 : f32
    %14 = vector.broadcast %cst_11 : f32 to vector<128x1xf32>
    %15 = arith.mulf %13, %14 : vector<128x1xf32>
    %16 = vector.broadcast %15 : vector<128x1xf32> to vector<128x512xf32>
    %17 = arith.addf %9, %16 : vector<128x512xf32>
    %cst_12 = arith.constant dense<0xFF800000> : vector<512xf32>
    %18 = vector.multi_reduction <maximumf>, %17, %cst_12 [0] : vector<128x512xf32> to vector<512xf32>
    %19 = vector.shape_cast %18 : vector<512xf32> to vector<1x512xf32>
    %c0_13 = arith.constant 0 : index
    %c0_14 = arith.constant 0 : index
    %20 = vector.load %arg4[%c0_13, %c0_14] : memref<8x512xf32, #tpu.memory_space<vmem>>, vector<1x512xf32>
    %21 = arith.maximumf %20, %19 : vector<1x512xf32>
    %c0_15 = arith.constant 0 : index
    %c0_16 = arith.constant 0 : index
    %22 = vector.load %arg4[%c0_15, %c0_16] : memref<8x512xf32, #tpu.memory_space<vmem>>, vector<1x512xf32>
    tpu.vector_store %arg4[%c0_15, %c0_16], %21 {strides = array<i32>} : memref<8x512xf32, #tpu.memory_space<vmem>>, vector<1x512xf32>,
    %23 = vector.extract_strided_slice %10 {offsets = [0, 1], sizes = [128, 1], strides = [1, 1]} : vector<128x8xf32> to vector<128x1xf32>
    %cst_17 = arith.constant 1.000000e+00 : f32
    %24 = vector.broadcast %cst_17 : f32 to vector<128x1xf32>
    %25 = arith.subf %23, %24 : vector<128x1xf32>
    %cst_18 = arith.constant 1.000000e+04 : f32
    %26 = vector.broadcast %cst_18 : f32 to vector<128x1xf32>
    %27 = arith.mulf %25, %26 : vector<128x1xf32>
    %28 = vector.broadcast %27 : vector<128x1xf32> to vector<128x512xf32>
    %29 = arith.addf %9, %28 : vector<128x512xf32>
    %cst_19 = arith.constant dense<0xFF800000> : vector<512xf32>
    %30 = vector.multi_reduction <maximumf>, %29, %cst_19 [0] : vector<128x512xf32> to vector<512xf32>
    %31 = vector.shape_cast %30 : vector<512xf32> to vector<1x512xf32>
    %c1 = arith.constant 1 : index
    %c0_20 = arith.constant 0 : index
    %32 = vector.load %arg4[%c1, %c0_20] : memref<8x512xf32, #tpu.memory_space<vmem>>, vector<1x512xf32>
    %33 = arith.maximumf %32, %31 : vector<1x512xf32>
    %c1_21 = arith.constant 1 : index
    %c0_22 = arith.constant 0 : index
    %34 = vector.load %arg4[%c1_21, %c0_22] : memref<8x512xf32, #tpu.memory_space<vmem>>, vector<1x512xf32>
    tpu.vector_store %arg4[%c1_21, %c0_22], %33 {strides = array<i32>} : memref<8x512xf32, #tpu.memory_space<vmem>>, vector<1x512xf32>,
    return
  }
  func.func @transform_0(%arg0: i32) -> (i32, i32) {
    %c0_i32 = arith.constant 0 : i32
    %c0_i32_0 = arith.constant 0 : i32
    return %arg0, %c0_i32 : i32, i32
  }
  func.func @transform_1(%arg0: i32) -> (i32, i32) {
    %c0_i32 = arith.constant 0 : i32
    %c0_i32_0 = arith.constant 0 : i32
    return %c0_i32, %arg0 : i32, i32
  }
  func.func @transform_2(%arg0: i32) -> (i32, i32) {
    %c0_i32 = arith.constant 0 : i32
    %c0_i32_0 = arith.constant 0 : i32
    return %arg0, %c0_i32 : i32, i32
  }
  func.func @transform_3(%arg0: i32) -> (i32, i32) {
    %c0_i32 = arith.constant 0 : i32
    %c0_i32_0 = arith.constant 0 : i32
    %c0_i32_1 = arith.constant 0 : i32
    return %c0_i32, %c0_i32_0 : i32, i32
  }
  func.func @transform_4(%arg0: i32) -> (i32, i32) {
    %c0_i32 = arith.constant 0 : i32
    %c0_i32_0 = arith.constant 0 : i32
    %c0_i32_1 = arith.constant 0 : i32
    return %c0_i32, %c0_i32_0 : i32, i32
  }
}

</mosaic_0001>

<llo_original>
// kernel: gnn_forward.4
$region0: #{gnn_forward.4}
  #allocation0 [shape = 'u32[]', space=smem, size = 0x4, offset = 0x4, fixed_abs, tag = 'smem constant byte address 0x4 - core index']
  #allocation1 [shape = 'u32[72,128]{1,0:T(1,128)}', space=vmem, size = 0x9000, scoped, tag = 'internal scratch']
  #allocation2 [shape = 'f32[128,128]{1,0:T(8,128)}', space=vmem, size = 0x10000, scoped, tag = 'scratch operand']
  #allocation3 [shape = 's32[1]{0}', space=sflag, size = 0x4, scoped, tag = 'scoped memory for gnn_forward.4']
  #allocation4 [shape = 'u8[2048]{0}', space=smem, size = 0x800, scoped, tag = 'prefetched SMEM operand 0']
  #allocation5 [shape = 'u8[2048]{0}', space=smem, size = 0x800, scoped, tag = 'prefetched SMEM operand 1']
  %s0 = inlined_call_operand.vmem [shape: s32[3,3], index: 0, kind: input, shape index: {}]
  %s1 = inlined_call_operand.vmem [shape: s32[3,3], index: 1, kind: input, shape index: {}]
  %s2 = inlined_call_operand.vmem [shape: bf16[384,384], index: 2, kind: input, shape index: {}]
  %s3 = inlined_call_operand.vmem [shape: bf16[384,128], index: 3, kind: input, shape index: {}, may-alias: {3,4}]
  %s4 = inlined_call_operand.vmem [shape: bf16[384,128], index: 4, kind: input, shape index: {}, may-alias: {3,4}]
  %s5 = inlined_call_operand.vmem [shape: bf16[128,512], index: 5, kind: input, shape index: {}]
  %s6 = inlined_call_operand.vmem [shape: bf16[128,512], index: 6, kind: input, shape index: {}]
  %s7 = inlined_call_operand.vmem [shape: f32[1,512], index: 7, kind: input, shape index: {}]
  %s8 = inlined_call_operand.vmem [shape: bf16[384,512], index: 8, kind: output, shape index: {}]
  %s9 = sld [smem:[#allocation0]]
  $region110: #{gnn_forward.4} parent=0
    _
  %s11 = ssub.s32 1, %s9
  %s12 = scalar_select 0, %s11, %s9
  %s14 = sshll.u32 %s0, 4
  %s15 = int_to_ptr.vmem [resolvable:$true] %s14
  %17 = dma.vmem_to_smem %s15, 64, [#allocation4], [#allocation3]
  %s19 = sshll.u32 %s1, 4
  %s20 = int_to_ptr.vmem [resolvable:$true] %s19
  %22 = dma.vmem_to_smem %s20, 64, [#allocation5], [#allocation3]
  %24 = dma.done [#allocation3], 128
  %25 = sfence
  $region1: #{gnn_forward.4} parent=0
    #allocation6 [shape = 'u8[65536]{0}', space=vmem, size = 0x10000, scoped, tag = 'input window, operand 2']
    loop: start=0, step=1, limit=11
    $region2: #{gnn_forward.4} parent=1 // loop_pre_header
      _
    $region3: #{gnn_forward.4} parent=1 // loop_header
      %s27 = sphi 0, %s31
      %p28 = scmp.ge.s32.totalorder %s27, 11
      %s34 = sphi 0, %s46
      %s35 = sphi 0, %s42
      %s36 = sphi 0, %s34
      %s37 = sphi 0, %s35
      %s38 = sphi 0, %s36
      %s39 = sphi 0, %s37
      %s67 = sphi 0, %s69
      %s70 = sphi 0, %s67
      %s71 = sphi 0, %s70
      %s87 = sphi 0, %s71
      %s109 = sphi 0, %s111
      %s112 = sphi 0, %s109
      %s113 = sphi 0, %s112
      %s129 = sphi 0, %s113
      %s135 = sphi 0, %s137
      %s138 = sphi 0, %s135
      %s139 = sphi 0, %s138
      %s155 = sphi 0, %s139
      %s159 = sphi 0, %s159
      %s161 = sphi 0, %s159
      %s162 = sphi 0, %s161
      %s176 = sphi 0, %s162
      %s180 = sphi 0, %s180
      %s182 = sphi 0, %s180
      %s183 = sphi 0, %s182
      %s197 = sphi 0, %s183
      %s201 = sphi 0, %s201
      %s203 = sphi 0, %s201
      %s204 = sphi 0, %s203
      %s218 = sphi 0, %s204
      %s224 = sphi 0, %s226
      %s227 = sphi 0, %s224
      %s228 = sphi 0, %s227
      %s244 = sphi 0, %s228
    $region4: #{gnn_forward.4} parent=1 // loop_header_branch
      %30 = sbr.rel (%p28) target = $region8
    $region5: #{gnn_forward.4} parent=1 // loop_body
      %s32 = ssub.s32 %s27, 1
      %s33 = ssub.s32 %s27, 2
      %s40 = sadd.s32 1, %s35
      %p41 = scmp.ge.s32.totalorder %s40, 3
      %s42 = scalar_select %p41, 0, %s40
      %s43 = sadd.s32 1, %s34
      %s44 = scalar_select %p41, %s43, %s34
      %p45 = scmp.ge.s32.totalorder %s44, 3
      %s46 = scalar_select %p45, 0, %s44
      %s47 = sshra.s32 %s35, 7
      %s48 = sand.u32 %s35, 127
      %s49 = sadd.s32 %s47, %s34
      %s50 = smul.u32 %s49, 128
      %s51 = sshra.s32 %s35, 7
      %s52 = sand.u32 %s35, 127
      %s53 = sadd.s32 %s50, %s52
      %s54 = sld [smem:[#allocation4 + %s53]]
      %s55 = sshra.s32 %s42, 7
      %s56 = sand.u32 %s42, 127
      %s57 = sadd.s32 %s55, %s46
      %s58 = smul.u32 %s57, 128
      %s59 = sshra.s32 %s42, 7
      %s60 = sand.u32 %s42, 127
      %s61 = sadd.s32 %s58, %s60
      %s62 = sld [smem:[#allocation4 + %s61]]
      %s63 = ssub.s32 %s34, %s46
      %s64 = ssub.s32 %s54, %s62
      %s65 = sor.u32 %s63, %s64
      %p66 = scmp.eq.s32.totalorder %s65, 0
      %s68 = sadd.s32 %s67, 1
      %s69 = scalar_select %p66, %s67, %s68
      %p72 = pneg %p66
      %p73 = scmp.eq.s32.totalorder %s27, 8
      %p74 = por %p72, %p73
      %p75 = scmp.ne.s32.totalorder %s67, %s70
      %p76 = scmp.eq.s32.totalorder %s27, 0
      %p77 = por %p75, %p76
      %p78 = scmp.ne.s32.totalorder %s67, %s70
      %p79 = scmp.eq.s32.totalorder %s32, 8
      %p80 = por %p78, %p79
      %p81 = scmp.ne.s32.totalorder %s70, %s71
      %p82 = scmp.eq.s32.totalorder %s32, 0
      %p83 = por %p81, %p82
      %p84 = scmp.ne.s32.totalorder %s70, %s71
      %p85 = scmp.eq.s32.totalorder %s33, 8
      %p86 = por %p84, %p85
      %p88 = scmp.ne.s32.totalorder %s71, %s87
      %p89 = scmp.eq.s32.totalorder %s33, 0
      %p90 = por %p88, %p89
      %s91 = sshra.s32 %s35, 7
      %s92 = sand.u32 %s35, 127
      %s93 = sadd.s32 %s91, %s34
      %s94 = smul.u32 %s93, 128
      %s95 = sshra.s32 %s35, 7
      %s96 = sand.u32 %s35, 127
      %s97 = sadd.s32 %s94, %s96
      %s98 = sld [smem:[#allocation4 + %s97]]
      %s99 = sshra.s32 %s42, 7
      %s100 = sand.u32 %s42, 127
      %s101 = sadd.s32 %s99, %s46
      %s102 = smul.u32 %s101, 128
      %s103 = sshra.s32 %s42, 7
      %s104 = sand.u32 %s42, 127
      %s105 = sadd.s32 %s102, %s104
      %s106 = sld [smem:[#allocation4 + %s105]]
      %s107 = ssub.s32 %s98, %s106
      %p108 = scmp.eq.s32.totalorder %s107, 0
      %s110 = sadd.s32 %s109, 1
      %s111 = scalar_select %p108, %s109, %s110
      %p114 = pneg %p108
      %p115 = scmp.eq.s32.totalorder %s27, 8
      %p116 = por %p114, %p115
      %p117 = scmp.ne.s32.totalorder %s109, %s112
      %p118 = scmp.eq.s32.totalorder %s27, 0
      %p119 = por %p117, %p118
      %p120 = scmp.ne.s32.totalorder %s109, %s112
      %p121 = scmp.eq.s32.totalorder %s32, 8
      %p122 = por %p120, %p121
      %p123 = scmp.ne.s32.totalorder %s112, %s113
      %p124 = scmp.eq.s32.totalorder %s32, 0
      %p125 = por %p123, %p124
      %p126 = scmp.ne.s32.totalorder %s112, %s113
      %p127 = scmp.eq.s32.totalorder %s33, 8
      %p128 = por %p126, %p127
      %p130 = scmp.ne.s32.totalorder %s113, %s129
      %p131 = scmp.eq.s32.totalorder %s33, 0
      %p132 = por %p130, %p131
      %s133 = ssub.s32 %s34, %s46
      %p134 = scmp.eq.s32.totalorder %s133, 0
      %s136 = sadd.s32 %s135, 1
      %s137 = scalar_select %p134, %s135, %s136
      %p140 = pneg %p134
      %p141 = scmp.eq.s32.totalorder %s27, 8
      %p142 = por %p140, %p141
      %p143 = scmp.ne.s32.totalorder %s135, %s138
      %p144 = scmp.eq.s32.totalorder %s27, 0
      %p145 = por %p143, %p144
      %p146 = scmp.ne.s32.totalorder %s135, %s138
      %p147 = scmp.eq.s32.totalorder %s32, 8
      %p148 = por %p146, %p147
      %p149 = scmp.ne.s32.totalorder %s138, %s139
      %p150 = scmp.eq.s32.totalorder %s32, 0
      %p151 = por %p149, %p150
      %p152 = scmp.ne.s32.totalorder %s138, %s139
      %p153 = scmp.eq.s32.totalorder %s33, 8
      %p154 = por %p152, %p153
      %p156 = scmp.ne.s32.totalorder %s139, %s155
      %p157 = scmp.eq.s32.totalorder %s33, 0
      %p158 = por %p156, %p157
      %s160 = sadd.s32 %s159, 1
      %p163 = scmp.eq.s32.totalorder %s27, 8
      %p164 = scmp.ne.s32.totalorder %s159, %s161
      %p165 = scmp.eq.s32.totalorder %s27, 0
      %p166 = por %p164, %p165
      %p167 = scmp.ne.s32.totalorder %s159, %s161
      %p168 = scmp.eq.s32.totalorder %s32, 8
      %p169 = por %p167, %p168
      %p170 = scmp.ne.s32.totalorder %s161, %s162
      %p171 = scmp.eq.s32.totalorder %s32, 0
      %p172 = por %p170, %p171
      %p173 = scmp.ne.s32.totalorder %s161, %s162
      %p174 = scmp.eq.s32.totalorder %s33, 8
      %p175 = por %p173, %p174
      %p177 = scmp.ne.s32.totalorder %s162, %s176
      %p178 = scmp.eq.s32.totalorder %s33, 0
      %p179 = por %p177, %p178
      %s181 = sadd.s32 %s180, 1
      %p184 = scmp.eq.s32.totalorder %s27, 8
      %p185 = scmp.ne.s32.totalorder %s180, %s182
      %p186 = scmp.eq.s32.totalorder %s27, 0
      %p187 = por %p185, %p186
      %p188 = scmp.ne.s32.totalorder %s180, %s182
      %p189 = scmp.eq.s32.totalorder %s32, 8
      %p190 = por %p188, %p189
      %p191 = scmp.ne.s32.totalorder %s182, %s183
      %p192 = scmp.eq.s32.totalorder %s32, 0
      %p193 = por %p191, %p192
      %p194 = scmp.ne.s32.totalorder %s182, %s183
      %p195 = scmp.eq.s32.totalorder %s33, 8
      %p196 = por %p194, %p195
      %p198 = scmp.ne.s32.totalorder %s183, %s197
      %p199 = scmp.eq.s32.totalorder %s33, 0
      %p200 = por %p198, %p199
      %s202 = sadd.s32 %s201, 1
      %p205 = scmp.eq.s32.totalorder %s27, 8
      %p206 = scmp.ne.s32.totalorder %s201, %s203
      %p207 = scmp.eq.s32.totalorder %s27, 0
      %p208 = por %p206, %p207
      %p209 = scmp.ne.s32.totalorder %s201, %s203
      %p210 = scmp.eq.s32.totalorder %s32, 8
      %p211 = por %p209, %p210
      %p212 = scmp.ne.s32.totalorder %s203, %s204
      %p213 = scmp.eq.s32.totalorder %s32, 0
      %p214 = por %p212, %p213
      %p215 = scmp.ne.s32.totalorder %s203, %s204
      %p216 = scmp.eq.s32.totalorder %s33, 8
      %p217 = por %p215, %p216
      %p219 = scmp.ne.s32.totalorder %s204, %s218
      %p220 = scmp.eq.s32.totalorder %s33, 0
      %p221 = por %p219, %p220
      %s222 = ssub.s32 %s34, %s46
      %p223 = scmp.eq.s32.totalorder %s222, 0
      %s225 = sadd.s32 %s224, 1
      %s226 = scalar_select %p223, %s224, %s225
      %p229 = pneg %p223
      %p230 = scmp.eq.s32.totalorder %s27, 8
      %p231 = por %p229, %p230
      %p232 = scmp.ne.s32.totalorder %s224, %s227
      %p233 = scmp.eq.s32.totalorder %s27, 0
      %p234 = por %p232, %p233
      %p235 = scmp.ne.s32.totalorder %s224, %s227
      %p236 = scmp.eq.s32.totalorder %s32, 8
      %p237 = por %p235, %p236
      %p238 = scmp.ne.s32.totalorder %s227, %s228
      %p239 = scmp.eq.s32.totalorder %s32, 0
      %p240 = por %p238, %p239
      %p241 = scmp.ne.s32.totalorder %s227, %s228
      %p242 = scmp.eq.s32.totalorder %s33, 8
      %p243 = por %p241, %p242
      %p245 = scmp.ne.s32.totalorder %s228, %s244
      %p246 = scmp.eq.s32.totalorder %s33, 0
      %p247 = por %p245, %p246
      %p248 = scmp.le.s32.totalorder 1, %s27
      %p249 = scmp.lt.s32.totalorder %s27, 10
      %p250 = pnand %p248, %p249
      %p251 = pneg %p250
      // Predicated region
      $region9: #{gnn_forward.4} parent=5 // pred_check
        _
      $region10: #{gnn_forward.4} parent=5 // pred_check_branch
        %253 = sbr.rel (%p250) target = $region12
      $region11: #{gnn_forward.4} parent=5 // pred_region
        %s254 = ssub.s32 %s27, 1
        // Predicated region
        $region13: #{gnn_forward.4} parent=11 // pred_check
          %p255 = pneg %p172
        $region14: #{gnn_forward.4} parent=11 // pred_check_branch
          %257 = sbr.rel (%p255) target = $region16
        $region15: #{gnn_forward.4} parent=11 // pred_region
          _
        $region16: #{gnn_forward.4} parent=11 // pred_fallthru
          _
        // Predicated region
        $region17: #{gnn_forward.4} parent=11 // pred_check
          %p258 = pneg %p193
        $region18: #{gnn_forward.4} parent=11 // pred_check_branch
          %260 = sbr.rel (%p258) target = $region20
        $region19: #{gnn_forward.4} parent=11 // pred_region
          _
        $region20: #{gnn_forward.4} parent=11 // pred_fallthru
          _
        // Predicated region
        $region21: #{gnn_forward.4} parent=11 // pred_check
          %p261 = pneg %p214
        $region22: #{gnn_forward.4} parent=11 // pred_check_branch
          %263 = sbr.rel (%p261) target = $region24
        $region23: #{gnn_forward.4} parent=11 // pred_region
          _
        $region24: #{gnn_forward.4} parent=11 // pred_fallthru
          _
      $region12: #{gnn_forward.4} parent=5 // pred_fallthru
        _
      %p264 = scmp.lt.s32.totalorder %s27, 9
      // Predicated region
      $region25: #{gnn_forward.4} parent=5 // pred_check
        %p265 = pneg %p264
      $region26: #{gnn_forward.4} parent=5 // pred_check_branch
        %267 = sbr.rel (%p265) target = $region28
      $region27: #{gnn_forward.4} parent=5 // pred_region
        // Predicated region
        $region29: #{gnn_forward.4} parent=27 // pred_check
          %p268 = pneg %p77
        $region30: #{gnn_forward.4} parent=27 // pred_check_branch
          %270 = sbr.rel (%p268) target = $region32
        $region31: #{gnn_forward.4} parent=27 // pred_region
          %s271 = sand.u32 %s67, 1
          %s272 = sand.u32 %s67, 1
          %s273 = smul.addr %s272, 64
          %s274 = scalar_lea.vmem [#allocation6], %s273
          %s275 = sshra.s32 %s35, 7
          %s276 = sand.u32 %s35, 127
          %s277 = sadd.s32 %s275, %s34
          %s278 = smul.u32 %s277, 128
          %s279 = sshra.s32 %s35, 7
          %s280 = sand.u32 %s35, 127
          %s281 = sadd.s32 %s278, %s280
          %s282 = sld [smem:[#allocation4 + %s281]]
          %s283 = smul.u32 16, %s34
          %s284 = smul.addr %s283, 3
          %s285 = sadd.s32 %s282, %s284
          %s286 = smul.addr %s285, 4
          %s287 = scalar_lea.vmem %s2, %s286
          // Predicated region
          $region33: #{gnn_forward.4} parent=31 // pred_check
            _
          $region34: #{gnn_forward.4} parent=31 // pred_check_branch
            %289 = sbr.rel (0) target = $region36
          $region35: #{gnn_forward.4} parent=31 // pred_region
            // Predicated region
            $region37: #{gnn_forward.4} parent=35 // pred_check
              _
            $region38: #{gnn_forward.4} parent=35 // pred_check_branch
              %291 = sbr.rel target = $region40
            $region39: #{gnn_forward.4} parent=35 // pred_region
              // Predicated region
              $region52: #{gnn_forward.4} parent=39 // pred_check
                _
              $region53: #{gnn_forward.4} parent=39 // pred_check_branch
                %337 = sbr.rel (0) target = $region55
              $region54: #{gnn_forward.4} parent=39 // pred_region
                loop: start=0, step=1, limit=1
                $region56: #{gnn_forward.4} parent=54 // loop_pre_header
                  _
                $region57: #{gnn_forward.4} parent=54 // loop_header
                  %s339 = sphi 0, %s343
                  %p340 = scmp.ge.s32.totalorder %s339, 1
                  %s344 = sphi %s287, %s287
                  %s345 = sphi %s274, %s274
                $region58: #{gnn_forward.4} parent=54 // loop_header_branch
                  %342 = sbr.rel (%p340) target = $region62
                $region59: #{gnn_forward.4} parent=54 // loop_body
                  _
                $region60: #{gnn_forward.4} parent=54 // loop_footer
                  %s343 = sadd.s32 1, %s339
                $region61: #{gnn_forward.4} parent=54 // loop_footer_branch
                  %338 = sbr.rel target = $region57
                $region62: #{gnn_forward.4} parent=54 // loop_exit
                  _
                %s347 = ssub.s32 16, 1
                loop: start=0, step=1, limit=1
                $region63: #{gnn_forward.4} parent=54 // loop_pre_header
                  _
                $region64: #{gnn_forward.4} parent=54 // loop_header
                  %s349 = sphi 0, %s353
                  %p350 = scmp.ge.s32.totalorder %s349, 1
                  %s354 = sphi %s287, %s287
                  %s355 = sphi %s274, %s274
                $region65: #{gnn_forward.4} parent=54 // loop_header_branch
                  %352 = sbr.rel (%p350) target = $region69
                $region66: #{gnn_forward.4} parent=54 // loop_body
                  %v356 = vld [vmem:[%s354] sm:%s347]
                  %357 = vst [vmem:[%s355] sm:%s347] %v356
                  %v358 = vld [vmem:[%s354 + $0xc] sm:%s347]
                  %359 = vst [vmem:[%s355 + $0x4] sm:%s347] %v358
                  %v360 = vld [vmem:[%s354 + $0x18] sm:%s347]
                  %361 = vst [vmem:[%s355 + $0x8] sm:%s347] %v360
                  %v362 = vld [vmem:[%s354 + $0x24] sm:%s347]
                  %363 = vst [vmem:[%s355 + $0xc] sm:%s347] %v362
                  %v364 = vld [vmem:[%s354 + $0x30] sm:%s347]
                  %365 = vst [vmem:[%s355 + $0x10] sm:%s347] %v364
                  %v366 = vld [vmem:[%s354 + $0x3c] sm:%s347]
                  %367 = vst [vmem:[%s355 + $0x14] sm:%s347] %v366
                  %v368 = vld [vmem:[%s354 + $0x48] sm:%s347]
                  %369 = vst [vmem:[%s355 + $0x18] sm:%s347] %v368
                  %v370 = vld [vmem:[%s354 + $0x54] sm:%s347]
                  %371 = vst [vmem:[%s355 + $0x1c] sm:%s347] %v370
                  %v372 = vld [vmem:[%s354 + $0x60] sm:%s347]
                  %373 = vst [vmem:[%s355 + $0x20] sm:%s347] %v372
                  %v374 = vld [vmem:[%s354 + $0x6c] sm:%s347]
                  %375 = vst [vmem:[%s355 + $0x24] sm:%s347] %v374
                  %v376 = vld [vmem:[%s354 + $0x78] sm:%s347]
                  %377 = vst [vmem:[%s355 + $0x28] sm:%s347] %v376
                  %v378 = vld [vmem:[%s354 + $0x84] sm:%s347]
                  %379 = vst [vmem:[%s355 + $0x2c] sm:%s347] %v378
                  %v380 = vld [vmem:[%s354 + $0x90] sm:%s347]
                  %381 = vst [vmem:[%s355 + $0x30] sm:%s347] %v380
                  %v382 = vld [vmem:[%s354 + $0x9c] sm:%s347]
                  %383 = vst [vmem:[%s355 + $0x34] sm:%s347] %v382
                  %v384 = vld [vmem:[%s354 + $0xa8] sm:%s347]
                  %385 = vst [vmem:[%s355 + $0x38] sm:%s347] %v384
                  %v386 = vld [vmem:[%s354 + $0xb4] sm:%s347]
                  %387 = vst [vmem:[%s355 + $0x3c] sm:%s347] %v386
                $region67: #{gnn_forward.4} parent=54 // loop_footer
                  %s353 = sadd.s32 1, %s349
                $region68: #{gnn_forward.4} parent=54 // loop_footer_branch
                  %348 = sbr.rel target = $region64
                $region69: #{gnn_forward.4} parent=54 // loop_exit
                  _
              $region55: #{gnn_forward.4} parent=39 // pred_fallthru
                _
            $region40: #{gnn_forward.4} parent=35 // pred_fallthru
              _
            // Predicated region
            $region41: #{gnn_forward.4} parent=35 // pred_check
              _
            $region42: #{gnn_forward.4} parent=35 // pred_check_branch
              %293 = sbr.rel (0) target = $region44
            $region43: #{gnn_forward.4} parent=35 // pred_region
              %s295 = ssub.s32 16, 1
              loop: start=0, step=1, limit=1
              $region45: #{gnn_forward.4} parent=43 // loop_pre_header
                _
              $region46: #{gnn_forward.4} parent=43 // loop_header
                %s297 = sphi 0, %s301
                %p298 = scmp.ge.s32.totalorder %s297, 1
                %s302 = sphi %s287, %s287
                %s303 = sphi %s274, %s274
              $region47: #{gnn_forward.4} parent=43 // loop_header_branch
                %300 = sbr.rel (%p298) target = $region51
              $region48: #{gnn_forward.4} parent=43 // loop_body
                %v304 = vld [vmem:[%s302] sm:%s295]
                %305 = vst [vmem:[%s303] sm:%s295] %v304
                %v306 = vld [vmem:[%s302 + $0xc] sm:%s295]
                %307 = vst [vmem:[%s303 + $0x4] sm:%s295] %v306
                %v308 = vld [vmem:[%s302 + $0x18] sm:%s295]
                %309 = vst [vmem:[%s303 + $0x8] sm:%s295] %v308
                %v310 = vld [vmem:[%s302 + $0x24] sm:%s295]
                %311 = vst [vmem:[%s303 + $0xc] sm:%s295] %v310
                %v312 = vld [vmem:[%s302 + $0x30] sm:%s295]
                %313 = vst [vmem:[%s303 + $0x10] sm:%s295] %v312
                %v314 = vld [vmem:[%s302 + $0x3c] sm:%s295]
                %315 = vst [vmem:[%s303 + $0x14] sm:%s295] %v314
                %v316 = vld [vmem:[%s302 + $0x48] sm:%s295]
                %317 = vst [vmem:[%s303 + $0x18] sm:%s295] %v316
                %v318 = vld [vmem:[%s302 + $0x54] sm:%s295]
                %319 = vst [vmem:[%s303 + $0x1c] sm:%s295] %v318
                %v320 = vld [vmem:[%s302 + $0x60] sm:%s295]
                %321 = vst [vmem:[%s303 + $0x20] sm:%s295] %v320
                %v322 = vld [vmem:[%s302 + $0x6c] sm:%s295]
                %323 = vst [vmem:[%s303 + $0x24] sm:%s295] %v322
                %v324 = vld [vmem:[%s302 + $0x78] sm:%s295]
                %325 = vst [vmem:[%s303 + $0x28] sm:%s295] %v324
                %v326 = vld [vmem:[%s302 + $0x84] sm:%s295]
                %327 = vst [vmem:[%s303 + $0x2c] sm:%s295] %v326
                %v328 = vld [vmem:[%s302 + $0x90] sm:%s295]
                %329 = vst [vmem:[%s303 + $0x30] sm:%s295] %v328
                %v330 = vld [vmem:[%s302 + $0x9c] sm:%s295]
                %331 = vst [vmem:[%s303 + $0x34] sm:%s295] %v330
                %v332 = vld [vmem:[%s302 + $0xa8] sm:%s295]
                %333 = vst [vmem:[%s303 + $0x38] sm:%s295] %v332
                %v334 = vld [vmem:[%s302 + $0xb4] sm:%s295]
                %335 = vst [vmem:[%s303 + $0x3c] sm:%s295] %v334
              $region49: #{gnn_forward.4} parent=43 // loop_footer
                %s301 = sadd.s32 1, %s297
              $region50: #{gnn_forward.4} parent=43 // loop_footer_branch
                %296 = sbr.rel target = $region46
              $region51: #{gnn_forward.4} parent=43 // loop_exit
                _
            $region44: #{gnn_forward.4} parent=35 // pred_fallthru
              _
          $region36: #{gnn_forward.4} parent=31 // pred_fallthru
            _
          %388 = vnop
        $region32: #{gnn_forward.4} parent=27 // pred_fallthru
          _
        // Predicated region
        $region70: #{gnn_forward.4} parent=27 // pred_check
          %p389 = pneg %p119
        $region71: #{gnn_forward.4} parent=27 // pred_check_branch
          %391 = sbr.rel (%p389) target = $region73
        $region72: #{gnn_forward.4} parent=27 // pred_region
          %s392 = sshra.s32 %s35, 7
          %s393 = sand.u32 %s35, 127
          %s394 = sadd.s32 %s392, %s34
          %s395 = smul.u32 %s394, 128
          %s396 = sshra.s32 %s35, 7
          %s397 = sand.u32 %s35, 127
          %s398 = sadd.s32 %s395, %s397
          %s399 = sld [smem:[#allocation4 + %s398]]
          %s400 = smul.u32 16, %s399
          %p401 = scmp.lt.s32.totalorder %s400, 47
          %s402 = scalar_select %p401, %s400, 47
          %s403 = smul.addr %s402, 4
          %s404 = scalar_lea.vmem %s3, %s403
          %s405 = sshra.s32 %s35, 7
          %s406 = sand.u32 %s35, 127
          %s407 = sadd.s32 %s405, %s34
          %s408 = smul.u32 %s407, 128
          %s409 = sshra.s32 %s35, 7
          %s410 = sand.u32 %s35, 127
          %s411 = sadd.s32 %s408, %s410
          %s412 = sld [smem:[#allocation4 + %s411]]
          %s413 = smul.u32 16, %s412
        $region73: #{gnn_forward.4} parent=27 // pred_fallthru
          _
        // Predicated region
        $region74: #{gnn_forward.4} parent=27 // pred_check
          %p414 = pneg %p145
        $region75: #{gnn_forward.4} parent=27 // pred_check_branch
          %416 = sbr.rel (%p414) target = $region77
        $region76: #{gnn_forward.4} parent=27 // pred_region
          %s417 = smul.u32 16, %s34
          %p418 = scmp.lt.s32.totalorder %s417, 47
          %s419 = scalar_select %p418, %s417, 47
          %s420 = smul.addr %s419, 4
          %s421 = scalar_lea.vmem %s4, %s420
          %s422 = smul.u32 16, %s34
        $region77: #{gnn_forward.4} parent=27 // pred_fallthru
          _
      $region28: #{gnn_forward.4} parent=5 // pred_fallthru
        _
      %p423 = scmp.le.s32.totalorder 1, %s27
      %p424 = scmp.lt.s32.totalorder %s27, 10
      %p425 = pnand %p423, %p424
      %p426 = pneg %p425
      // Predicated region
      $region78: #{gnn_forward.4} parent=5 // pred_check
        _
      $region79: #{gnn_forward.4} parent=5 // pred_check_branch
        %428 = sbr.rel (%p425) target = $region81
      $region80: #{gnn_forward.4} parent=5 // pred_region
        %s429 = ssub.s32 %s27, 1
        %s430 = sand.u32 %s70, 1
        %s431 = sand.u32 %s70, 1
        %s432 = smul.addr %s431, 64
        %s433 = scalar_lea.vmem [#allocation6], %s432
        // Predicated region
        $region82: #{gnn_forward.4} parent=80 // pred_check
          %p434 = pneg %p83
        $region83: #{gnn_forward.4} parent=80 // pred_check_branch
          %436 = sbr.rel (%p434) target = $region85
        $region84: #{gnn_forward.4} parent=80 // pred_region
          _
        $region85: #{gnn_forward.4} parent=80 // pred_fallthru
          _
        %s437 = sand.u32 %s70, 1
        %s438 = sand.u32 %s70, 1
        %s439 = smul.addr %s438, 64
        %s440 = scalar_lea.vmem [#allocation6], %s439
        %p441 = pneg %p83
        %p442 = pneg %p80
        %s443 = sshra.s32 %s37, 7
        %s444 = sand.u32 %s37, 127
        %s445 = sadd.s32 %s443, %s36
        %s446 = smul.u32 %s445, 128
        %s447 = sshra.s32 %s37, 7
        %s448 = sand.u32 %s37, 127
        %s449 = sadd.s32 %s446, %s448
        %s450 = sld [smem:[#allocation4 + %s449]]
        %s451 = smul.u32 16, %s450
        %p452 = scmp.lt.s32.totalorder %s451, 47
        %s453 = scalar_select %p452, %s451, 47
        %s454 = smul.addr %s453, 4
        %s455 = scalar_lea.vmem %s3, %s454
        %p456 = pneg %p125
        %p457 = pneg %p122
        %s458 = smul.u32 16, %s36
        %p459 = scmp.lt.s32.totalorder %s458, 47
        %s460 = scalar_select %p459, %s458, 47
        %s461 = smul.addr %s460, 4
        %s462 = scalar_lea.vmem %s4, %s461
        %p463 = pneg %p151
        %p464 = pneg %p148
        %p465 = pneg %p172
        %p466 = pneg %p169
        %p467 = pneg %p193
        %p468 = pneg %p190
        %p469 = pneg %p214
        %p470 = pneg %p211
        %p471 = pneg %p240
        %p472 = pneg %p237
        %s473 = smul.u32 16, %s36
        %p474 = scmp.lt.s32.totalorder %s473, 47
        %s475 = scalar_select %p474, %s473, 47
        %s476 = smul.addr %s475, 4
        %s477 = smul.addr %s476, 4
        %s478 = scalar_lea.vmem %s8, %s477
        %s479 = sshra.s32 %s37, 7
        %s480 = sand.u32 %s37, 127
        %s481 = sadd.s32 %s479, %s36
        %s482 = smul.u32 %s481, 128
        %s483 = sshra.s32 %s37, 7
        %s484 = sand.u32 %s37, 127
        %s485 = sadd.s32 %s482, %s484
        %s486 = sld [smem:[#allocation4 + %s485]]
        %s487 = smul.u32 16, %s36
        %s488 = sshra.s32 %s37, 7
        %s489 = sand.u32 %s37, 127
        %s490 = sadd.s32 %s488, %s36
        %s491 = smul.u32 %s490, 128
        %s492 = sshra.s32 %s37, 7
        %s493 = sand.u32 %s37, 127
        %s494 = sadd.s32 %s491, %s493
        %s495 = sld [smem:[#allocation4 + %s494]]
        %s496 = smul.u32 16, %s495
        %p497 = scmp.lt.s32.totalorder %s496, 47
        %s498 = scalar_select %p497, %s496, 47
        %s499 = smul.addr %s498, 4
        %s500 = scalar_lea.vmem %s3, %s499
        %s501 = sshra.s32 %s37, 7
        %s502 = sand.u32 %s37, 127
        %s503 = sadd.s32 %s501, %s36
        %s504 = smul.u32 %s503, 128
        %s505 = sshra.s32 %s37, 7
        %s506 = sand.u32 %s37, 127
        %s507 = sadd.s32 %s504, %s506
        %s508 = sld [smem:[#allocation4 + %s507]]
        %s509 = smul.u32 16, %s508
        %s510 = smul.u32 16, %s36
        %p511 = scmp.lt.s32.totalorder %s510, 47
        %s512 = scalar_select %p511, %s510, 47
        %s513 = smul.addr %s512, 4
        %s514 = scalar_lea.vmem %s4, %s513
        %s515 = smul.u32 16, %s36
        %s516 = smul.u32 16, %s36
        %p517 = scmp.lt.s32.totalorder %s516, 47
        %s518 = scalar_select %p517, %s516, 47
        %s519 = smul.addr %s518, 4
        %s520 = smul.addr %s519, 4
        %s521 = scalar_lea.vmem %s8, %s520
        %s522 = smul.u32 16, %s36
        %p523 = scmp.eq.s32.totalorder %s37, 0
        // Predicated region
        $region86: #{gnn_forward.4} parent=80 // pred_check
          %p524 = pneg %p523
        $region87: #{gnn_forward.4} parent=80 // pred_check_branch
          %526 = sbr.rel (%p524) target = $region89
        $region88: #{gnn_forward.4} parent=80 // pred_region
          %527 = vst [vmem:[#allocation2] sm:$0xff] 0.0
          %528 = vst [vmem:[#allocation2 + $0x8] sm:$0xff] 0.0
          %529 = vst [vmem:[#allocation2 + $0x10] sm:$0xff] 0.0
          %530 = vst [vmem:[#allocation2 + $0x18] sm:$0xff] 0.0
          %531 = vst [vmem:[#allocation2 + $0x20] sm:$0xff] 0.0
          %532 = vst [vmem:[#allocation2 + $0x28] sm:$0xff] 0.0
          %533 = vst [vmem:[#allocation2 + $0x30] sm:$0xff] 0.0
          %534 = vst [vmem:[#allocation2 + $0x38] sm:$0xff] 0.0
          %535 = vst [vmem:[#allocation2 + $0x40] sm:$0xff] 0.0
          %536 = vst [vmem:[#allocation2 + $0x48] sm:$0xff] 0.0
          %537 = vst [vmem:[#allocation2 + $0x50] sm:$0xff] 0.0
          %538 = vst [vmem:[#allocation2 + $0x58] sm:$0xff] 0.0
          %539 = vst [vmem:[#allocation2 + $0x60] sm:$0xff] 0.0
          %540 = vst [vmem:[#allocation2 + $0x68] sm:$0xff] 0.0
          %541 = vst [vmem:[#allocation2 + $0x70] sm:$0xff] 0.0
          %542 = vst [vmem:[#allocation2 + $0x78] sm:$0xff] 0.0
        $region89: #{gnn_forward.4} parent=80 // pred_fallthru
          _
        %s543 = sshra.s32 %s37, 7
        %s544 = sand.u32 %s37, 127
        %s545 = sadd.s32 %s543, %s36
        %s546 = smul.u32 %s545, 128
        %s547 = sshra.s32 %s37, 7
        %s548 = sand.u32 %s37, 127
        %s549 = sadd.s32 %s546, %s548
        %s550 = sld [smem:[#allocation5 + %s549]]
        %p551 = scmp.gt.s32.totalorder %s550, 0
        // Predicated region
        $region90: #{gnn_forward.4} parent=80 // pred_check
          %p552 = pneg %p551
        $region91: #{gnn_forward.4} parent=80 // pred_check_branch
          %554 = sbr.rel (%p552) target = $region93
        $region92: #{gnn_forward.4} parent=80 // pred_region
          %v555 = vld [vmem:[#allocation2] sm:$0xff]
          %v556 = vld [vmem:[#allocation2 + $0x8] sm:$0xff]
          %v557 = vld [vmem:[#allocation2 + $0x10] sm:$0xff]
          %v558 = vld [vmem:[#allocation2 + $0x18] sm:$0xff]
          %v559 = vld [vmem:[#allocation2 + $0x20] sm:$0xff]
          %v560 = vld [vmem:[#allocation2 + $0x28] sm:$0xff]
          %v561 = vld [vmem:[#allocation2 + $0x30] sm:$0xff]
          %v562 = vld [vmem:[#allocation2 + $0x38] sm:$0xff]
          %v563 = vld [vmem:[#allocation2 + $0x40] sm:$0xff]
          %v564 = vld [vmem:[#allocation2 + $0x48] sm:$0xff]
          %v565 = vld [vmem:[#allocation2 + $0x50] sm:$0xff]
          %v566 = vld [vmem:[#allocation2 + $0x58] sm:$0xff]
          %v567 = vld [vmem:[#allocation2 + $0x60] sm:$0xff]
          %v568 = vld [vmem:[#allocation2 + $0x68] sm:$0xff]
          %v569 = vld [vmem:[#allocation2 + $0x70] sm:$0xff]
          %v570 = vld [vmem:[#allocation2 + $0x78] sm:$0xff]
          %v571 = vld [vmem:[%s433] sm:$0xf]
          %v572 = vld [vmem:[%s433 + $0x4] sm:$0xf]
          %v573 = vld [vmem:[%s433 + $0x8] sm:$0xf]
          %v574 = vld [vmem:[%s433 + $0xc] sm:$0xf]
          %v575 = vld [vmem:[%s433 + $0x10] sm:$0xf]
          %v576 = vld [vmem:[%s433 + $0x14] sm:$0xf]
          %v577 = vld [vmem:[%s433 + $0x18] sm:$0xf]
          %v578 = vld [vmem:[%s433 + $0x1c] sm:$0xf]
          %v579 = vld [vmem:[%s433 + $0x20] sm:$0xf]
          %v580 = vld [vmem:[%s433 + $0x24] sm:$0xf]
          %v581 = vld [vmem:[%s433 + $0x28] sm:$0xf]
          %v582 = vld [vmem:[%s433 + $0x2c] sm:$0xf]
          %v583 = vld [vmem:[%s433 + $0x30] sm:$0xf]
          %v584 = vld [vmem:[%s433 + $0x34] sm:$0xf]
          %v585 = vld [vmem:[%s433 + $0x38] sm:$0xf]
          %v586 = vld [vmem:[%s433 + $0x3c] sm:$0xf]
          %v587 = vld [vmem:[%s500] sm:$0xf]
          %v588 = vld [vmem:[%s500 + $0x4] sm:$0xf]
          %v589 = vld [vmem:[%s500 + $0x8] sm:$0xf]
          %v590 = vld [vmem:[%s500 + $0xc] sm:$0xf]
          %v591 = vld [vmem:[%s500 + $0x10] sm:$0xf]
          %v592 = vld [vmem:[%s500 + $0x14] sm:$0xf]
          %v593 = vld [vmem:[%s500 + $0x18] sm:$0xf]
          %v594 = vld [vmem:[%s500 + $0x1c] sm:$0xf]
          %v595 = vld [vmem:[%s500 + $0x20] sm:$0xf]
          %v596 = vld [vmem:[%s500 + $0x24] sm:$0xf]
          %v597 = vld [vmem:[%s500 + $0x28] sm:$0xf]
          %v598 = vld [vmem:[%s500 + $0x2c] sm:$0xf]
          %v599 = vld [vmem:[%s500 + $0x30] sm:$0xf]
          %v600 = vld [vmem:[%s500 + $0x34] sm:$0xf]
          %v601 = vld [vmem:[%s500 + $0x38] sm:$0xf]
          %v602 = vld [vmem:[%s500 + $0x3c] sm:$0xf]
          %v619 = vunpack.c.l.b16 %v571
          %v620 = vunpack.c.l.b16 %v572
          %v621 = vunpack.c.l.b16 %v573
          %v622 = vunpack.c.l.b16 %v574
          %v623 = vunpack.c.l.b16 %v575
          %v624 = vunpack.c.l.b16 %v576
          %v625 = vunpack.c.l.b16 %v577
          %v626 = vunpack.c.l.b16 %v578
          %v627 = vunpack.c.l.b16 %v579
          %v628 = vunpack.c.l.b16 %v580
          %v629 = vunpack.c.l.b16 %v581
          %v630 = vunpack.c.l.b16 %v582
          %v631 = vunpack.c.l.b16 %v583
          %v632 = vunpack.c.l.b16 %v584
          %v633 = vunpack.c.l.b16 %v585
          %v634 = vunpack.c.l.b16 %v586
          %v635 = vpack.c.b16 %v620, %v619
          %v636 = vpack.c.b16 %v622, %v621
          %v637 = vpack.c.b16 %v624, %v623
          %v638 = vpack.c.b16 %v626, %v625
          %v639 = vpack.c.b16 %v628, %v627
          %v640 = vpack.c.b16 %v630, %v629
          %v641 = vpack.c.b16 %v632, %v631
          %v642 = vpack.c.b16 %v634, %v633
          %v667 = vunpack.c.l.b16 %v587
          %v668 = vunpack.c.l.b16 %v588
          %v669 = vunpack.c.l.b16 %v589
          %v670 = vunpack.c.l.b16 %v590
          %v671 = vunpack.c.l.b16 %v591
          %v672 = vunpack.c.l.b16 %v592
          %v673 = vunpack.c.l.b16 %v593
          %v674 = vunpack.c.l.b16 %v594
          %v675 = vunpack.c.l.b16 %v595
          %v676 = vunpack.c.l.b16 %v596
          %v677 = vunpack.c.l.b16 %v597
          %v678 = vunpack.c.l.b16 %v598
          %v679 = vunpack.c.l.b16 %v599
          %v680 = vunpack.c.l.b16 %v600
          %v681 = vunpack.c.l.b16 %v601
          %v682 = vunpack.c.l.b16 %v602
          %v683 = vpack.c.b16 %v668, %v667
          %v684 = vpack.c.b16 %v670, %v669
          %v685 = vpack.c.b16 %v672, %v671
          %v686 = vpack.c.b16 %v674, %v673
          %v687 = vpack.c.b16 %v676, %v675
          %v688 = vpack.c.b16 %v678, %v677
          %v689 = vpack.c.b16 %v680, %v679
          %v690 = vpack.c.b16 %v682, %v681
          %699 = vmatpush.bf16.msra.mxu0 %v690
          %700 = vmatpush.bf16.msra.mxu0 %v689
          %701 = vmatpush.bf16.msra.mxu0 %v688
          %702 = vmatpush.bf16.msra.mxu0 %v687
          %703 = vmatpush.bf16.msra.mxu0 %v686
          %704 = vmatpush.bf16.msra.mxu0 %v685
          %705 = vmatpush.bf16.msra.mxu0 %v684
          %706 = vmatpush.bf16.msra.mxu0 %v683
          %707 = vmatmul.bf16.gmra.mxu0 %v635
          %v708 = vpop.f32.mrf.mxu0
          %v709 = vadd.f32 0.0, %v708
          %v710 = vpop.f32.mrf.mxu0
          %v711 = vadd.f32 0.0, %v710
          %712 = vmatmul.bf16.gmra.mxu0 %v636
          %v713 = vpop.f32.mrf.mxu0
          %v714 = vadd.f32 0.0, %v713
          %v715 = vpop.f32.mrf.mxu0
          %v716 = vadd.f32 0.0, %v715
          %717 = vmatmul.bf16.gmra.mxu0 %v637
          %v718 = vpop.f32.mrf.mxu0
          %v719 = vadd.f32 0.0, %v718
          %v720 = vpop.f32.mrf.mxu0
          %v721 = vadd.f32 0.0, %v720
          %722 = vmatmul.bf16.gmra.mxu0 %v638
          %v723 = vpop.f32.mrf.mxu0
          %v724 = vadd.f32 0.0, %v723
          %v725 = vpop.f32.mrf.mxu0
          %v726 = vadd.f32 0.0, %v725
          %727 = vmatmul.bf16.gmra.mxu0 %v639
          %v728 = vpop.f32.mrf.mxu0
          %v729 = vadd.f32 0.0, %v728
          %v730 = vpop.f32.mrf.mxu0
          %v731 = vadd.f32 0.0, %v730
          %732 = vmatmul.bf16.gmra.mxu0 %v640
          %v733 = vpop.f32.mrf.mxu0
          %v734 = vadd.f32 0.0, %v733
          %v735 = vpop.f32.mrf.mxu0
          %v736 = vadd.f32 0.0, %v735
          %737 = vmatmul.bf16.gmra.mxu0 %v641
          %v738 = vpop.f32.mrf.mxu0
          %v739 = vadd.f32 0.0, %v738
          %v740 = vpop.f32.mrf.mxu0
          %v741 = vadd.f32 0.0, %v740
          %742 = vmatmul.bf16.gmra.mxu0 %v642
          %v743 = vpop.f32.mrf.mxu0
          %v744 = vadd.f32 0.0, %v743
          %v745 = vpop.f32.mrf.mxu0
          %v746 = vadd.f32 0.0, %v745
          %747 = vdwg.mxu0
          %v748 = vadd.f32 %v555, %v709
          %v749 = vadd.f32 %v556, %v711
          %v750 = vadd.f32 %v557, %v714
          %v751 = vadd.f32 %v558, %v716
          %v752 = vadd.f32 %v559, %v719
          %v753 = vadd.f32 %v560, %v721
          %v754 = vadd.f32 %v561, %v724
          %v755 = vadd.f32 %v562, %v726
          %v756 = vadd.f32 %v563, %v729
          %v757 = vadd.f32 %v564, %v731
          %v758 = vadd.f32 %v565, %v734
          %v759 = vadd.f32 %v566, %v736
          %v760 = vadd.f32 %v567, %v739
          %v761 = vadd.f32 %v568, %v741
          %v762 = vadd.f32 %v569, %v744
          %v763 = vadd.f32 %v570, %v746
          %764 = vst [vmem:[#allocation2] sm:$0xff] %v748
          %765 = vst [vmem:[#allocation2 + $0x8] sm:$0xff] %v749
          %766 = vst [vmem:[#allocation2 + $0x10] sm:$0xff] %v750
          %767 = vst [vmem:[#allocation2 + $0x18] sm:$0xff] %v751
          %768 = vst [vmem:[#allocation2 + $0x20] sm:$0xff] %v752
          %769 = vst [vmem:[#allocation2 + $0x28] sm:$0xff] %v753
          %770 = vst [vmem:[#allocation2 + $0x30] sm:$0xff] %v754
          %771 = vst [vmem:[#allocation2 + $0x38] sm:$0xff] %v755
          %772 = vst [vmem:[#allocation2 + $0x40] sm:$0xff] %v756
          %773 = vst [vmem:[#allocation2 + $0x48] sm:$0xff] %v757
          %774 = vst [vmem:[#allocation2 + $0x50] sm:$0xff] %v758
          %775 = vst [vmem:[#allocation2 + $0x58] sm:$0xff] %v759
          %776 = vst [vmem:[#allocation2 + $0x60] sm:$0xff] %v760
          %777 = vst [vmem:[#allocation2 + $0x68] sm:$0xff] %v761
          %778 = vst [vmem:[#allocation2 + $0x70] sm:$0xff] %v762
          %779 = vst [vmem:[#allocation2 + $0x78] sm:$0xff] %v763
        $region93: #{gnn_forward.4} parent=80 // pred_fallthru
          _
        %p780 = scmp.eq.s32.totalorder %s37, 2
        // Predicated region
        $region94: #{gnn_forward.4} parent=80 // pred_check
          %p781 = pneg %p780
        $region95: #{gnn_forward.4} parent=80 // pred_check_branch
          %783 = sbr.rel (%p781) target = $region97
        $region96: #{gnn_forward.4} parent=80 // pred_region
          %v784 = vld [vmem:[#allocation2] sm:$0xff]
          %v785 = vld [vmem:[#allocation2 + $0x8] sm:$0xff]
          %v786 = vld [vmem:[#allocation2 + $0x10] sm:$0xff]
          %v787 = vld [vmem:[#allocation2 + $0x18] sm:$0xff]
          %v788 = vld [vmem:[#allocation2 + $0x20] sm:$0xff]
          %v789 = vld [vmem:[#allocation2 + $0x28] sm:$0xff]
          %v790 = vld [vmem:[#allocation2 + $0x30] sm:$0xff]
          %v791 = vld [vmem:[#allocation2 + $0x38] sm:$0xff]
          %v792 = vld [vmem:[#allocation2 + $0x40] sm:$0xff]
          %v793 = vld [vmem:[#allocation2 + $0x48] sm:$0xff]
          %v794 = vld [vmem:[#allocation2 + $0x50] sm:$0xff]
          %v795 = vld [vmem:[#allocation2 + $0x58] sm:$0xff]
          %v796 = vld [vmem:[#allocation2 + $0x60] sm:$0xff]
          %v797 = vld [vmem:[#allocation2 + $0x68] sm:$0xff]
          %v798 = vld [vmem:[#allocation2 + $0x70] sm:$0xff]
          %v799 = vld [vmem:[#allocation2 + $0x78] sm:$0xff]
          %v800 = vpack.c.bf16 %v785, %v784
          %v801 = vpack.c.bf16 %v787, %v786
          %v802 = vpack.c.bf16 %v789, %v788
          %v803 = vpack.c.bf16 %v791, %v790
          %v804 = vpack.c.bf16 %v793, %v792
          %v805 = vpack.c.bf16 %v795, %v794
          %v806 = vpack.c.bf16 %v797, %v796
          %v807 = vpack.c.bf16 %v799, %v798
          %v808 = vld [vmem:[%s5] sm:$0xff]
          %v809 = vld [vmem:[%s5 + $0x8] sm:$0xff]
          %v810 = vld [vmem:[%s5 + $0x10] sm:$0xff]
          %v811 = vld [vmem:[%s5 + $0x18] sm:$0xff]
          %v812 = vld [vmem:[%s5 + $0x20] sm:$0xff]
          %v813 = vld [vmem:[%s5 + $0x28] sm:$0xff]
          %v814 = vld [vmem:[%s5 + $0x30] sm:$0xff]
          %v815 = vld [vmem:[%s5 + $0x38] sm:$0xff]
          %v816 = vld [vmem:[%s5 + $0x40] sm:$0xff]
          %v817 = vld [vmem:[%s5 + $0x48] sm:$0xff]
          %v818 = vld [vmem:[%s5 + $0x50] sm:$0xff]
          %v819 = vld [vmem:[%s5 + $0x58] sm:$0xff]
          %v820 = vld [vmem:[%s5 + $0x60] sm:$0xff]
          %v821 = vld [vmem:[%s5 + $0x68] sm:$0xff]
          %v822 = vld [vmem:[%s5 + $0x70] sm:$0xff]
          %v823 = vld [vmem:[%s5 + $0x78] sm:$0xff]
          %v824 = vld [vmem:[%s5 + $0x80] sm:$0xff]
          %v825 = vld [vmem:[%s5 + $0x88] sm:$0xff]
          %v826 = vld [vmem:[%s5 + $0x90] sm:$0xff]
          %v827 = vld [vmem:[%s5 + $0x98] sm:$0xff]
          %v828 = vld [vmem:[%s5 + $0xa0] sm:$0xff]
          %v829 = vld [vmem:[%s5 + $0xa8] sm:$0xff]
          %v830 = vld [vmem:[%s5 + $0xb0] sm:$0xff]
          %v831 = vld [vmem:[%s5 + $0xb8] sm:$0xff]
          %v832 = vld [vmem:[%s5 + $0xc0] sm:$0xff]
          %v833 = vld [vmem:[%s5 + $0xc8] sm:$0xff]
          %v834 = vld [vmem:[%s5 + $0xd0] sm:$0xff]
          %v835 = vld [vmem:[%s5 + $0xd8] sm:$0xff]
          %v836 = vld [vmem:[%s5 + $0xe0] sm:$0xff]
          %v837 = vld [vmem:[%s5 + $0xe8] sm:$0xff]
          %v838 = vld [vmem:[%s5 + $0xf0] sm:$0xff]
          %v839 = vld [vmem:[%s5 + $0xf8] sm:$0xff]
          %v840 = vld [vmem:[%s514] sm:$0xf]
          %v841 = vld [vmem:[%s514 + $0x4] sm:$0xf]
          %v842 = vld [vmem:[%s514 + $0x8] sm:$0xf]
          %v843 = vld [vmem:[%s514 + $0xc] sm:$0xf]
          %v844 = vld [vmem:[%s514 + $0x10] sm:$0xf]
          %v845 = vld [vmem:[%s514 + $0x14] sm:$0xf]
          %v846 = vld [vmem:[%s514 + $0x18] sm:$0xf]
          %v847 = vld [vmem:[%s514 + $0x1c] sm:$0xf]
          %v848 = vld [vmem:[%s514 + $0x20] sm:$0xf]
          %v849 = vld [vmem:[%s514 + $0x24] sm:$0xf]
          %v850 = vld [vmem:[%s514 + $0x28] sm:$0xf]
          %v851 = vld [vmem:[%s514 + $0x2c] sm:$0xf]
          %v852 = vld [vmem:[%s514 + $0x30] sm:$0xf]
          %v853 = vld [vmem:[%s514 + $0x34] sm:$0xf]
          %v854 = vld [vmem:[%s514 + $0x38] sm:$0xf]
          %v855 = vld [vmem:[%s514 + $0x3c] sm:$0xf]
          %v856 = vld [vmem:[%s6] sm:$0xff]
          %v857 = vld [vmem:[%s6 + $0x8] sm:$0xff]
          %v858 = vld [vmem:[%s6 + $0x10] sm:$0xff]
          %v859 = vld [vmem:[%s6 + $0x18] sm:$0xff]
          %v860 = vld [vmem:[%s6 + $0x20] sm:$0xff]
          %v861 = vld [vmem:[%s6 + $0x28] sm:$0xff]
          %v862 = vld [vmem:[%s6 + $0x30] sm:$0xff]
          %v863 = vld [vmem:[%s6 + $0x38] sm:$0xff]
          %v864 = vld [vmem:[%s6 + $0x40] sm:$0xff]
          %v865 = vld [vmem:[%s6 + $0x48] sm:$0xff]
          %v866 = vld [vmem:[%s6 + $0x50] sm:$0xff]
          %v867 = vld [vmem:[%s6 + $0x58] sm:$0xff]
          %v868 = vld [vmem:[%s6 + $0x60] sm:$0xff]
          %v869 = vld [vmem:[%s6 + $0x68] sm:$0xff]
          %v870 = vld [vmem:[%s6 + $0x70] sm:$0xff]
          %v871 = vld [vmem:[%s6 + $0x78] sm:$0xff]
          %v872 = vld [vmem:[%s6 + $0x80] sm:$0xff]
          %v873 = vld [vmem:[%s6 + $0x88] sm:$0xff]
          %v874 = vld [vmem:[%s6 + $0x90] sm:$0xff]
          %v875 = vld [vmem:[%s6 + $0x98] sm:$0xff]
          %v876 = vld [vmem:[%s6 + $0xa0] sm:$0xff]
          %v877 = vld [vmem:[%s6 + $0xa8] sm:$0xff]
          %v878 = vld [vmem:[%s6 + $0xb0] sm:$0xff]
          %v879 = vld [vmem:[%s6 + $0xb8] sm:$0xff]
          %v880 = vld [vmem:[%s6 + $0xc0] sm:$0xff]
          %v881 = vld [vmem:[%s6 + $0xc8] sm:$0xff]
          %v882 = vld [vmem:[%s6 + $0xd0] sm:$0xff]
          %v883 = vld [vmem:[%s6 + $0xd8] sm:$0xff]
          %v884 = vld [vmem:[%s6 + $0xe0] sm:$0xff]
          %v885 = vld [vmem:[%s6 + $0xe8] sm:$0xff]
          %v886 = vld [vmem:[%s6 + $0xf0] sm:$0xff]
          %v887 = vld [vmem:[%s6 + $0xf8] sm:$0xff]
          %v904 = vunpack.c.l.b16 %v840
          %v905 = vunpack.c.l.b16 %v841
          %v906 = vunpack.c.l.b16 %v842
          %v907 = vunpack.c.l.b16 %v843
          %v908 = vunpack.c.l.b16 %v844
          %v909 = vunpack.c.l.b16 %v845
          %v910 = vunpack.c.l.b16 %v846
          %v911 = vunpack.c.l.b16 %v847
          %v912 = vunpack.c.l.b16 %v848
          %v913 = vunpack.c.l.b16 %v849
          %v914 = vunpack.c.l.b16 %v850
          %v915 = vunpack.c.l.b16 %v851
          %v916 = vunpack.c.l.b16 %v852
          %v917 = vunpack.c.l.b16 %v853
          %v918 = vunpack.c.l.b16 %v854
          %v919 = vunpack.c.l.b16 %v855
          %v920 = vpack.c.b16 %v905, %v904
          %v921 = vpack.c.b16 %v907, %v906
          %v922 = vpack.c.b16 %v909, %v908
          %v923 = vpack.c.b16 %v911, %v910
          %v924 = vpack.c.b16 %v913, %v912
          %v925 = vpack.c.b16 %v915, %v914
          %v926 = vpack.c.b16 %v917, %v916
          %v927 = vpack.c.b16 %v919, %v918
          %v968 = vunpack.c.l.b16 %v856
          %v969 = vunpack.c.h.b16 %v856
          %v970 = vunpack.c.l.b16 %v857
          %v971 = vunpack.c.h.b16 %v857
          %v972 = vunpack.c.l.b16 %v858
          %v973 = vunpack.c.h.b16 %v858
          %v974 = vunpack.c.l.b16 %v859
          %v975 = vunpack.c.h.b16 %v859
          %v976 = vunpack.c.l.b16 %v860
          %v977 = vunpack.c.h.b16 %v860
          %v978 = vunpack.c.l.b16 %v861
          %v979 = vunpack.c.h.b16 %v861
          %v980 = vunpack.c.l.b16 %v862
          %v981 = vunpack.c.h.b16 %v862
          %v982 = vunpack.c.l.b16 %v863
          %v983 = vunpack.c.h.b16 %v863
          %v984 = vunpack.c.l.b16 %v864
          %v985 = vunpack.c.h.b16 %v864
          %v986 = vunpack.c.l.b16 %v865
          %v987 = vunpack.c.h.b16 %v865
          %v988 = vunpack.c.l.b16 %v866
          %v989 = vunpack.c.h.b16 %v866
          %v990 = vunpack.c.l.b16 %v867
          %v991 = vunpack.c.h.b16 %v867
          %v992 = vunpack.c.l.b16 %v868
          %v993 = vunpack.c.h.b16 %v868
          %v994 = vunpack.c.l.b16 %v869
          %v995 = vunpack.c.h.b16 %v869
          %v996 = vunpack.c.l.b16 %v870
          %v997 = vunpack.c.h.b16 %v870
          %v998 = vunpack.c.l.b16 %v871
          %v999 = vunpack.c.h.b16 %v871
          %v1000 = vunpack.c.l.b16 %v872
          %v1001 = vunpack.c.h.b16 %v872
          %v1002 = vunpack.c.l.b16 %v873
          %v1003 = vunpack.c.h.b16 %v873
          %v1004 = vunpack.c.l.b16 %v874
          %v1005 = vunpack.c.h.b16 %v874
          %v1006 = vunpack.c.l.b16 %v875
          %v1007 = vunpack.c.h.b16 %v875
          %v1008 = vunpack.c.l.b16 %v876
          %v1009 = vunpack.c.h.b16 %v876
          %v1010 = vunpack.c.l.b16 %v877
          %v1011 = vunpack.c.h.b16 %v877
          %v1012 = vunpack.c.l.b16 %v878
          %v1013 = vunpack.c.h.b16 %v878
          %v1014 = vunpack.c.l.b16 %v879
          %v1015 = vunpack.c.h.b16 %v879
          %v1016 = vunpack.c.l.b16 %v880
          %v1017 = vunpack.c.h.b16 %v880
          %v1018 = vunpack.c.l.b16 %v881
          %v1019 = vunpack.c.h.b16 %v881
          %v1020 = vunpack.c.l.b16 %v882
          %v1021 = vunpack.c.h.b16 %v882
          %v1022 = vunpack.c.l.b16 %v883
          %v1023 = vunpack.c.h.b16 %v883
          %v1024 = vunpack.c.l.b16 %v884
          %v1025 = vunpack.c.h.b16 %v884
          %v1026 = vunpack.c.l.b16 %v885
          %v1027 = vunpack.c.h.b16 %v885
          %v1028 = vunpack.c.l.b16 %v886
          %v1029 = vunpack.c.h.b16 %v886
          %v1030 = vunpack.c.l.b16 %v887
          %v1031 = vunpack.c.h.b16 %v887
          %v1032 = vpack.c.b16 %v972, %v968
          %v1033 = vpack.c.b16 %v973, %v969
          %v1034 = vpack.c.b16 %v974, %v970
          %v1035 = vpack.c.b16 %v975, %v971
          %v1036 = vpack.c.b16 %v980, %v976
          %v1037 = vpack.c.b16 %v981, %v977
          %v1038 = vpack.c.b16 %v982, %v978
          %v1039 = vpack.c.b16 %v983, %v979
          %v1040 = vpack.c.b16 %v988, %v984
          %v1041 = vpack.c.b16 %v989, %v985
          %v1042 = vpack.c.b16 %v990, %v986
          %v1043 = vpack.c.b16 %v991, %v987
          %v1044 = vpack.c.b16 %v996, %v992
          %v1045 = vpack.c.b16 %v997, %v993
          %v1046 = vpack.c.b16 %v998, %v994
          %v1047 = vpack.c.b16 %v999, %v995
          %v1048 = vpack.c.b16 %v1004, %v1000
          %v1049 = vpack.c.b16 %v1005, %v1001
          %v1050 = vpack.c.b16 %v1006, %v1002
          %v1051 = vpack.c.b16 %v1007, %v1003
          %v1052 = vpack.c.b16 %v1012, %v1008
          %v1053 = vpack.c.b16 %v1013, %v1009
          %v1054 = vpack.c.b16 %v1014, %v1010
          %v1055 = vpack.c.b16 %v1015, %v1011
          %v1056 = vpack.c.b16 %v1020, %v1016
          %v1057 = vpack.c.b16 %v1021, %v1017
          %v1058 = vpack.c.b16 %v1022, %v1018
          %v1059 = vpack.c.b16 %v1023, %v1019
          %v1060 = vpack.c.b16 %v1028, %v1024
          %v1061 = vpack.c.b16 %v1029, %v1025
          %v1062 = vpack.c.b16 %v1030, %v1026
          %v1063 = vpack.c.b16 %v1031, %v1027
          %1096 = vmatpush.bf16.msra.mxu0 %v1060
          %1097 = vmatpush.bf16.msra.mxu0 %v1056
          %1098 = vmatpush.bf16.msra.mxu0 %v1052
          %1099 = vmatpush.bf16.msra.mxu0 %v1048
          %1100 = vmatpush.bf16.msra.mxu0 %v1044
          %1101 = vmatpush.bf16.msra.mxu0 %v1040
          %1102 = vmatpush.bf16.msra.mxu0 %v1036
          %1103 = vmatpush.bf16.msra.mxu0 %v1032
          %1104 = vmatmul.bf16.gmra.mxu0 %v920
          %v1105 = vpop.f32.mrf.mxu0
          %v1106 = vadd.f32 0.0, %v1105
          %v1107 = vpop.f32.mrf.mxu0
          %v1108 = vadd.f32 0.0, %v1107
          %1109 = vmatmul.bf16.gmra.mxu0 %v921
          %v1110 = vpop.f32.mrf.mxu0
          %v1111 = vadd.f32 0.0, %v1110
          %v1112 = vpop.f32.mrf.mxu0
          %v1113 = vadd.f32 0.0, %v1112
          %1114 = vmatmul.bf16.gmra.mxu0 %v922
          %v1115 = vpop.f32.mrf.mxu0
          %v1116 = vadd.f32 0.0, %v1115
          %v1117 = vpop.f32.mrf.mxu0
          %v1118 = vadd.f32 0.0, %v1117
          %1119 = vmatmul.bf16.gmra.mxu0 %v923
          %v1120 = vpop.f32.mrf.mxu0
          %v1121 = vadd.f32 0.0, %v1120
          %v1122 = vpop.f32.mrf.mxu0
          %v1123 = vadd.f32 0.0, %v1122
          %1124 = vmatmul.bf16.gmra.mxu0 %v924
          %v1125 = vpop.f32.mrf.mxu0
          %v1126 = vadd.f32 0.0, %v1125
          %v1127 = vpop.f32.mrf.mxu0
          %v1128 = vadd.f32 0.0, %v1127
          %1129 = vmatmul.bf16.gmra.mxu0 %v925
          %v1130 = vpop.f32.mrf.mxu0
          %v1131 = vadd.f32 0.0, %v1130
          %v1132 = vpop.f32.mrf.mxu0
          %v1133 = vadd.f32 0.0, %v1132
          %1134 = vmatmul.bf16.gmra.mxu0 %v926
          %v1135 = vpop.f32.mrf.mxu0
          %v1136 = vadd.f32 0.0, %v1135
          %v1137 = vpop.f32.mrf.mxu0
          %v1138 = vadd.f32 0.0, %v1137
          %1139 = vmatmul.bf16.gmra.mxu0 %v927
          %v1140 = vpop.f32.mrf.mxu0
          %v1141 = vadd.f32 0.0, %v1140
          %v1142 = vpop.f32.mrf.mxu0
          %v1143 = vadd.f32 0.0, %v1142
          %1144 = vdwg.mxu0
          %1145 = vmatpush.bf16.msra.mxu0 %v1061
          %1146 = vmatpush.bf16.msra.mxu0 %v1057
          %1147 = vmatpush.bf16.msra.mxu0 %v1053
          %1148 = vmatpush.bf16.msra.mxu0 %v1049
          %1149 = vmatpush.bf16.msra.mxu0 %v1045
          %1150 = vmatpush.bf16.msra.mxu0 %v1041
          %1151 = vmatpush.bf16.msra.mxu0 %v1037
          %1152 = vmatpush.bf16.msra.mxu0 %v1033
          %1153 = vmatmul.bf16.gmra.mxu0 %v920
          %v1154 = vpop.f32.mrf.mxu0
          %v1155 = vadd.f32 0.0, %v1154
          %v1156 = vpop.f32.mrf.mxu0
          %v1157 = vadd.f32 0.0, %v1156
          %1158 = vmatmul.bf16.gmra.mxu0 %v921
          %v1159 = vpop.f32.mrf.mxu0
          %v1160 = vadd.f32 0.0, %v1159
          %v1161 = vpop.f32.mrf.mxu0
          %v1162 = vadd.f32 0.0, %v1161
          %1163 = vmatmul.bf16.gmra.mxu0 %v922
          %v1164 = vpop.f32.mrf.mxu0
          %v1165 = vadd.f32 0.0, %v1164
          %v1166 = vpop.f32.mrf.mxu0
          %v1167 = vadd.f32 0.0, %v1166
          %1168 = vmatmul.bf16.gmra.mxu0 %v923
          %v1169 = vpop.f32.mrf.mxu0
          %v1170 = vadd.f32 0.0, %v1169
          %v1171 = vpop.f32.mrf.mxu0
          %v1172 = vadd.f32 0.0, %v1171
          %1173 = vmatmul.bf16.gmra.mxu0 %v924
          %v1174 = vpop.f32.mrf.mxu0
          %v1175 = vadd.f32 0.0, %v1174
          %v1176 = vpop.f32.mrf.mxu0
          %v1177 = vadd.f32 0.0, %v1176
          %1178 = vmatmul.bf16.gmra.mxu0 %v925
          %v1179 = vpop.f32.mrf.mxu0
          %v1180 = vadd.f32 0.0, %v1179
          %v1181 = vpop.f32.mrf.mxu0
          %v1182 = vadd.f32 0.0, %v1181
          %1183 = vmatmul.bf16.gmra.mxu0 %v926
          %v1184 = vpop.f32.mrf.mxu0
          %v1185 = vadd.f32 0.0, %v1184
          %v1186 = vpop.f32.mrf.mxu0
          %v1187 = vadd.f32 0.0, %v1186
          %1188 = vmatmul.bf16.gmra.mxu0 %v927
          %v1189 = vpop.f32.mrf.mxu0
          %v1190 = vadd.f32 0.0, %v1189
          %v1191 = vpop.f32.mrf.mxu0
          %v1192 = vadd.f32 0.0, %v1191
          %1193 = vdwg.mxu0
          %1194 = vmatpush.bf16.msra.mxu0 %v1062
          %1195 = vmatpush.bf16.msra.mxu0 %v1058
          %1196 = vmatpush.bf16.msra.mxu0 %v1054
          %1197 = vmatpush.bf16.msra.mxu0 %v1050
          %1198 = vmatpush.bf16.msra.mxu0 %v1046
          %1199 = vmatpush.bf16.msra.mxu0 %v1042
          %1200 = vmatpush.bf16.msra.mxu0 %v1038
          %1201 = vmatpush.bf16.msra.mxu0 %v1034
          %1202 = vmatmul.bf16.gmra.mxu0 %v920
          %v1203 = vpop.f32.mrf.mxu0
          %v1204 = vadd.f32 0.0, %v1203
          %v1205 = vpop.f32.mrf.mxu0
          %v1206 = vadd.f32 0.0, %v1205
          %1207 = vmatmul.bf16.gmra.mxu0 %v921
          %v1208 = vpop.f32.mrf.mxu0
          %v1209 = vadd.f32 0.0, %v1208
          %v1210 = vpop.f32.mrf.mxu0
          %v1211 = vadd.f32 0.0, %v1210
          %1212 = vmatmul.bf16.gmra.mxu0 %v922
          %v1213 = vpop.f32.mrf.mxu0
          %v1214 = vadd.f32 0.0, %v1213
          %v1215 = vpop.f32.mrf.mxu0
          %v1216 = vadd.f32 0.0, %v1215
          %1217 = vmatmul.bf16.gmra.mxu0 %v923
          %v1218 = vpop.f32.mrf.mxu0
          %v1219 = vadd.f32 0.0, %v1218
          %v1220 = vpop.f32.mrf.mxu0
          %v1221 = vadd.f32 0.0, %v1220
          %1222 = vmatmul.bf16.gmra.mxu0 %v924
          %v1223 = vpop.f32.mrf.mxu0
          %v1224 = vadd.f32 0.0, %v1223
          %v1225 = vpop.f32.mrf.mxu0
          %v1226 = vadd.f32 0.0, %v1225
          %1227 = vmatmul.bf16.gmra.mxu0 %v925
          %v1228 = vpop.f32.mrf.mxu0
          %v1229 = vadd.f32 0.0, %v1228
          %v1230 = vpop.f32.mrf.mxu0
          %v1231 = vadd.f32 0.0, %v1230
          %1232 = vmatmul.bf16.gmra.mxu0 %v926
          %v1233 = vpop.f32.mrf.mxu0
          %v1234 = vadd.f32 0.0, %v1233
          %v1235 = vpop.f32.mrf.mxu0
          %v1236 = vadd.f32 0.0, %v1235
          %1237 = vmatmul.bf16.gmra.mxu0 %v927
          %v1238 = vpop.f32.mrf.mxu0
          %v1239 = vadd.f32 0.0, %v1238
          %v1240 = vpop.f32.mrf.mxu0
          %v1241 = vadd.f32 0.0, %v1240
          %1242 = vdwg.mxu0
          %1243 = vmatpush.bf16.msra.mxu0 %v1063
          %1244 = vmatpush.bf16.msra.mxu0 %v1059
          %1245 = vmatpush.bf16.msra.mxu0 %v1055
          %1246 = vmatpush.bf16.msra.mxu0 %v1051
          %1247 = vmatpush.bf16.msra.mxu0 %v1047
          %1248 = vmatpush.bf16.msra.mxu0 %v1043
          %1249 = vmatpush.bf16.msra.mxu0 %v1039
          %1250 = vmatpush.bf16.msra.mxu0 %v1035
          %1251 = vmatmul.bf16.gmra.mxu0 %v920
          %v1252 = vpop.f32.mrf.mxu0
          %v1253 = vadd.f32 0.0, %v1252
          %v1254 = vpop.f32.mrf.mxu0
          %v1255 = vadd.f32 0.0, %v1254
          %1256 = vmatmul.bf16.gmra.mxu0 %v921
          %v1257 = vpop.f32.mrf.mxu0
          %v1258 = vadd.f32 0.0, %v1257
          %v1259 = vpop.f32.mrf.mxu0
          %v1260 = vadd.f32 0.0, %v1259
          %1261 = vmatmul.bf16.gmra.mxu0 %v922
          %v1262 = vpop.f32.mrf.mxu0
          %v1263 = vadd.f32 0.0, %v1262
          %v1264 = vpop.f32.mrf.mxu0
          %v1265 = vadd.f32 0.0, %v1264
          %1266 = vmatmul.bf16.gmra.mxu0 %v923
          %v1267 = vpop.f32.mrf.mxu0
          %v1268 = vadd.f32 0.0, %v1267
          %v1269 = vpop.f32.mrf.mxu0
          %v1270 = vadd.f32 0.0, %v1269
          %1271 = vmatmul.bf16.gmra.mxu0 %v924
          %v1272 = vpop.f32.mrf.mxu0
          %v1273 = vadd.f32 0.0, %v1272
          %v1274 = vpop.f32.mrf.mxu0
          %v1275 = vadd.f32 0.0, %v1274
          %1276 = vmatmul.bf16.gmra.mxu0 %v925
          %v1277 = vpop.f32.mrf.mxu0
          %v1278 = vadd.f32 0.0, %v1277
          %v1279 = vpop.f32.mrf.mxu0
          %v1280 = vadd.f32 0.0, %v1279
          %1281 = vmatmul.bf16.gmra.mxu0 %v926
          %v1282 = vpop.f32.mrf.mxu0
          %v1283 = vadd.f32 0.0, %v1282
          %v1284 = vpop.f32.mrf.mxu0
          %v1285 = vadd.f32 0.0, %v1284
          %1286 = vmatmul.bf16.gmra.mxu0 %v927
          %v1287 = vpop.f32.mrf.mxu0
          %v1288 = vadd.f32 0.0, %v1287
          %v1289 = vpop.f32.mrf.mxu0
          %v1290 = vadd.f32 0.0, %v1289
          %1291 = vdwg.mxu0
          %v1324 = vunpack.c.l.b16 %v808
          %v1325 = vunpack.c.h.b16 %v808
          %v1326 = vunpack.c.l.b16 %v809
          %v1327 = vunpack.c.h.b16 %v809
          %v1328 = vunpack.c.l.b16 %v810
          %v1329 = vunpack.c.h.b16 %v810
          %v1330 = vunpack.c.l.b16 %v811
          %v1331 = vunpack.c.h.b16 %v811
          %v1332 = vunpack.c.l.b16 %v812
          %v1333 = vunpack.c.h.b16 %v812
          %v1334 = vunpack.c.l.b16 %v813
          %v1335 = vunpack.c.h.b16 %v813
          %v1336 = vunpack.c.l.b16 %v814
          %v1337 = vunpack.c.h.b16 %v814
          %v1338 = vunpack.c.l.b16 %v815
          %v1339 = vunpack.c.h.b16 %v815
          %v1340 = vunpack.c.l.b16 %v816
          %v1341 = vunpack.c.h.b16 %v816
          %v1342 = vunpack.c.l.b16 %v817
          %v1343 = vunpack.c.h.b16 %v817
          %v1344 = vunpack.c.l.b16 %v818
          %v1345 = vunpack.c.h.b16 %v818
          %v1346 = vunpack.c.l.b16 %v819
          %v1347 = vunpack.c.h.b16 %v819
          %v1348 = vunpack.c.l.b16 %v820
          %v1349 = vunpack.c.h.b16 %v820
          %v1350 = vunpack.c.l.b16 %v821
          %v1351 = vunpack.c.h.b16 %v821
          %v1352 = vunpack.c.l.b16 %v822
          %v1353 = vunpack.c.h.b16 %v822
          %v1354 = vunpack.c.l.b16 %v823
          %v1355 = vunpack.c.h.b16 %v823
          %v1356 = vunpack.c.l.b16 %v824
          %v1357 = vunpack.c.h.b16 %v824
          %v1358 = vunpack.c.l.b16 %v825
          %v1359 = vunpack.c.h.b16 %v825
          %v1360 = vunpack.c.l.b16 %v826
          %v1361 = vunpack.c.h.b16 %v826
          %v1362 = vunpack.c.l.b16 %v827
          %v1363 = vunpack.c.h.b16 %v827
          %v1364 = vunpack.c.l.b16 %v828
          %v1365 = vunpack.c.h.b16 %v828
          %v1366 = vunpack.c.l.b16 %v829
          %v1367 = vunpack.c.h.b16 %v829
          %v1368 = vunpack.c.l.b16 %v830
          %v1369 = vunpack.c.h.b16 %v830
          %v1370 = vunpack.c.l.b16 %v831
          %v1371 = vunpack.c.h.b16 %v831
          %v1372 = vunpack.c.l.b16 %v832
          %v1373 = vunpack.c.h.b16 %v832
          %v1374 = vunpack.c.l.b16 %v833
          %v1375 = vunpack.c.h.b16 %v833
          %v1376 = vunpack.c.l.b16 %v834
          %v1377 = vunpack.c.h.b16 %v834
          %v1378 = vunpack.c.l.b16 %v835
          %v1379 = vunpack.c.h.b16 %v835
          %v1380 = vunpack.c.l.b16 %v836
          %v1381 = vunpack.c.h.b16 %v836
          %v1382 = vunpack.c.l.b16 %v837
          %v1383 = vunpack.c.h.b16 %v837
          %v1384 = vunpack.c.l.b16 %v838
          %v1385 = vunpack.c.h.b16 %v838
          %v1386 = vunpack.c.l.b16 %v839
          %v1387 = vunpack.c.h.b16 %v839
          %v1388 = vpack.c.b16 %v1328, %v1324
          %v1389 = vpack.c.b16 %v1329, %v1325
          %v1390 = vpack.c.b16 %v1330, %v1326
          %v1391 = vpack.c.b16 %v1331, %v1327
          %v1392 = vpack.c.b16 %v1336, %v1332
          %v1393 = vpack.c.b16 %v1337, %v1333
          %v1394 = vpack.c.b16 %v1338, %v1334
          %v1395 = vpack.c.b16 %v1339, %v1335
          %v1396 = vpack.c.b16 %v1344, %v1340
          %v1397 = vpack.c.b16 %v1345, %v1341
          %v1398 = vpack.c.b16 %v1346, %v1342
          %v1399 = vpack.c.b16 %v1347, %v1343
          %v1400 = vpack.c.b16 %v1352, %v1348
          %v1401 = vpack.c.b16 %v1353, %v1349
          %v1402 = vpack.c.b16 %v1354, %v1350
          %v1403 = vpack.c.b16 %v1355, %v1351
          %v1404 = vpack.c.b16 %v1360, %v1356
          %v1405 = vpack.c.b16 %v1361, %v1357
          %v1406 = vpack.c.b16 %v1362, %v1358
          %v1407 = vpack.c.b16 %v1363, %v1359
          %v1408 = vpack.c.b16 %v1368, %v1364
          %v1409 = vpack.c.b16 %v1369, %v1365
          %v1410 = vpack.c.b16 %v1370, %v1366
          %v1411 = vpack.c.b16 %v1371, %v1367
          %v1412 = vpack.c.b16 %v1376, %v1372
          %v1413 = vpack.c.b16 %v1377, %v1373
          %v1414 = vpack.c.b16 %v1378, %v1374
          %v1415 = vpack.c.b16 %v1379, %v1375
          %v1416 = vpack.c.b16 %v1384, %v1380
          %v1417 = vpack.c.b16 %v1385, %v1381
          %v1418 = vpack.c.b16 %v1386, %v1382
          %v1419 = vpack.c.b16 %v1387, %v1383
          %1452 = vmatpush.bf16.msra.mxu0 %v1416
          %1453 = vmatpush.bf16.msra.mxu0 %v1412
          %1454 = vmatpush.bf16.msra.mxu0 %v1408
          %1455 = vmatpush.bf16.msra.mxu0 %v1404
          %1456 = vmatpush.bf16.msra.mxu0 %v1400
          %1457 = vmatpush.bf16.msra.mxu0 %v1396
          %1458 = vmatpush.bf16.msra.mxu0 %v1392
          %1459 = vmatpush.bf16.msra.mxu0 %v1388
          %1460 = vmatmul.bf16.gmra.mxu0 %v800
          %v1461 = vpop.f32.mrf.mxu0
          %v1462 = vadd.f32 %v1106, %v1461
          %v1463 = vpop.f32.mrf.mxu0
          %v1464 = vadd.f32 %v1108, %v1463
          %1465 = vmatmul.bf16.gmra.mxu0 %v801
          %v1466 = vpop.f32.mrf.mxu0
          %v1467 = vadd.f32 %v1111, %v1466
          %v1468 = vpop.f32.mrf.mxu0
          %v1469 = vadd.f32 %v1113, %v1468
          %1470 = vmatmul.bf16.gmra.mxu0 %v802
          %v1471 = vpop.f32.mrf.mxu0
          %v1472 = vadd.f32 %v1116, %v1471
          %v1473 = vpop.f32.mrf.mxu0
          %v1474 = vadd.f32 %v1118, %v1473
          %1475 = vmatmul.bf16.gmra.mxu0 %v803
          %v1476 = vpop.f32.mrf.mxu0
          %v1477 = vadd.f32 %v1121, %v1476
          %v1478 = vpop.f32.mrf.mxu0
          %v1479 = vadd.f32 %v1123, %v1478
          %1480 = vmatmul.bf16.gmra.mxu0 %v804
          %v1481 = vpop.f32.mrf.mxu0
          %v1482 = vadd.f32 %v1126, %v1481
          %v1483 = vpop.f32.mrf.mxu0
          %v1484 = vadd.f32 %v1128, %v1483
          %1485 = vmatmul.bf16.gmra.mxu0 %v805
          %v1486 = vpop.f32.mrf.mxu0
          %v1487 = vadd.f32 %v1131, %v1486
          %v1488 = vpop.f32.mrf.mxu0
          %v1489 = vadd.f32 %v1133, %v1488
          %1490 = vmatmul.bf16.gmra.mxu0 %v806
          %v1491 = vpop.f32.mrf.mxu0
          %v1492 = vadd.f32 %v1136, %v1491
          %v1493 = vpop.f32.mrf.mxu0
          %v1494 = vadd.f32 %v1138, %v1493
          %1495 = vmatmul.bf16.gmra.mxu0 %v807
          %v1496 = vpop.f32.mrf.mxu0
          %v1497 = vadd.f32 %v1141, %v1496
          %v1498 = vpop.f32.mrf.mxu0
          %v1499 = vadd.f32 %v1143, %v1498
          %1500 = vdwg.mxu0
          %1501 = vmatpush.bf16.msra.mxu0 %v1417
          %1502 = vmatpush.bf16.msra.mxu0 %v1413
          %1503 = vmatpush.bf16.msra.mxu0 %v1409
          %1504 = vmatpush.bf16.msra.mxu0 %v1405
          %1505 = vmatpush.bf16.msra.mxu0 %v1401
          %1506 = vmatpush.bf16.msra.mxu0 %v1397
          %1507 = vmatpush.bf16.msra.mxu0 %v1393
          %1508 = vmatpush.bf16.msra.mxu0 %v1389
          %1509 = vmatmul.bf16.gmra.mxu0 %v800
          %v1510 = vpop.f32.mrf.mxu0
          %v1511 = vadd.f32 %v1155, %v1510
          %v1512 = vpop.f32.mrf.mxu0
          %v1513 = vadd.f32 %v1157, %v1512
          %1514 = vmatmul.bf16.gmra.mxu0 %v801
          %v1515 = vpop.f32.mrf.mxu0
          %v1516 = vadd.f32 %v1160, %v1515
          %v1517 = vpop.f32.mrf.mxu0
          %v1518 = vadd.f32 %v1162, %v1517
          %1519 = vmatmul.bf16.gmra.mxu0 %v802
          %v1520 = vpop.f32.mrf.mxu0
          %v1521 = vadd.f32 %v1165, %v1520
          %v1522 = vpop.f32.mrf.mxu0
          %v1523 = vadd.f32 %v1167, %v1522
          %1524 = vmatmul.bf16.gmra.mxu0 %v803
          %v1525 = vpop.f32.mrf.mxu0
          %v1526 = vadd.f32 %v1170, %v1525
          %v1527 = vpop.f32.mrf.mxu0
          %v1528 = vadd.f32 %v1172, %v1527
          %1529 = vmatmul.bf16.gmra.mxu0 %v804
          %v1530 = vpop.f32.mrf.mxu0
          %v1531 = vadd.f32 %v1175, %v1530
          %v1532 = vpop.f32.mrf.mxu0
          %v1533 = vadd.f32 %v1177, %v1532
          %1534 = vmatmul.bf16.gmra.mxu0 %v805
          %v1535 = vpop.f32.mrf.mxu0
          %v1536 = vadd.f32 %v1180, %v1535
          %v1537 = vpop.f32.mrf.mxu0
          %v1538 = vadd.f32 %v1182, %v1537
          %1539 = vmatmul.bf16.gmra.mxu0 %v806
          %v1540 = vpop.f32.mrf.mxu0
          %v1541 = vadd.f32 %v1185, %v1540
          %v1542 = vpop.f32.mrf.mxu0
          %v1543 = vadd.f32 %v1187, %v1542
          %1544 = vmatmul.bf16.gmra.mxu0 %v807
          %v1545 = vpop.f32.mrf.mxu0
          %v1546 = vadd.f32 %v1190, %v1545
          %v1547 = vpop.f32.mrf.mxu0
          %v1548 = vadd.f32 %v1192, %v1547
          %1549 = vdwg.mxu0
          %1550 = vmatpush.bf16.msra.mxu0 %v1418
          %1551 = vmatpush.bf16.msra.mxu0 %v1414
          %1552 = vmatpush.bf16.msra.mxu0 %v1410
          %1553 = vmatpush.bf16.msra.mxu0 %v1406
          %1554 = vmatpush.bf16.msra.mxu0 %v1402
          %1555 = vmatpush.bf16.msra.mxu0 %v1398
          %1556 = vmatpush.bf16.msra.mxu0 %v1394
          %1557 = vmatpush.bf16.msra.mxu0 %v1390
          %1558 = vmatmul.bf16.gmra.mxu0 %v800
          %v1559 = vpop.f32.mrf.mxu0
          %v1560 = vadd.f32 %v1204, %v1559
          %v1561 = vpop.f32.mrf.mxu0
          %v1562 = vadd.f32 %v1206, %v1561
          %1563 = vmatmul.bf16.gmra.mxu0 %v801
          %v1564 = vpop.f32.mrf.mxu0
          %v1565 = vadd.f32 %v1209, %v1564
          %v1566 = vpop.f32.mrf.mxu0
          %v1567 = vadd.f32 %v1211, %v1566
          %1568 = vmatmul.bf16.gmra.mxu0 %v802
          %v1569 = vpop.f32.mrf.mxu0
          %v1570 = vadd.f32 %v1214, %v1569
          %v1571 = vpop.f32.mrf.mxu0
          %v1572 = vadd.f32 %v1216, %v1571
          %1573 = vmatmul.bf16.gmra.mxu0 %v803
          %v1574 = vpop.f32.mrf.mxu0
          %v1575 = vadd.f32 %v1219, %v1574
          %v1576 = vpop.f32.mrf.mxu0
          %v1577 = vadd.f32 %v1221, %v1576
          %1578 = vmatmul.bf16.gmra.mxu0 %v804
          %v1579 = vpop.f32.mrf.mxu0
          %v1580 = vadd.f32 %v1224, %v1579
          %v1581 = vpop.f32.mrf.mxu0
          %v1582 = vadd.f32 %v1226, %v1581
          %1583 = vmatmul.bf16.gmra.mxu0 %v805
          %v1584 = vpop.f32.mrf.mxu0
          %v1585 = vadd.f32 %v1229, %v1584
          %v1586 = vpop.f32.mrf.mxu0
          %v1587 = vadd.f32 %v1231, %v1586
          %1588 = vmatmul.bf16.gmra.mxu0 %v806
          %v1589 = vpop.f32.mrf.mxu0
          %v1590 = vadd.f32 %v1234, %v1589
          %v1591 = vpop.f32.mrf.mxu0
          %v1592 = vadd.f32 %v1236, %v1591
          %1593 = vmatmul.bf16.gmra.mxu0 %v807
          %v1594 = vpop.f32.mrf.mxu0
          %v1595 = vadd.f32 %v1239, %v1594
          %v1596 = vpop.f32.mrf.mxu0
          %v1597 = vadd.f32 %v1241, %v1596
          %1598 = vdwg.mxu0
          %1599 = vmatpush.bf16.msra.mxu0 %v1419
          %1600 = vmatpush.bf16.msra.mxu0 %v1415
          %1601 = vmatpush.bf16.msra.mxu0 %v1411
          %1602 = vmatpush.bf16.msra.mxu0 %v1407
          %1603 = vmatpush.bf16.msra.mxu0 %v1403
          %1604 = vmatpush.bf16.msra.mxu0 %v1399
          %1605 = vmatpush.bf16.msra.mxu0 %v1395
          %1606 = vmatpush.bf16.msra.mxu0 %v1391
          %1607 = vmatmul.bf16.gmra.mxu0 %v800
          %v1608 = vpop.f32.mrf.mxu0
          %v1609 = vadd.f32 %v1253, %v1608
          %v1610 = vpop.f32.mrf.mxu0
          %v1611 = vadd.f32 %v1255, %v1610
          %1612 = vmatmul.bf16.gmra.mxu0 %v801
          %v1613 = vpop.f32.mrf.mxu0
          %v1614 = vadd.f32 %v1258, %v1613
          %v1615 = vpop.f32.mrf.mxu0
          %v1616 = vadd.f32 %v1260, %v1615
          %1617 = vmatmul.bf16.gmra.mxu0 %v802
          %v1618 = vpop.f32.mrf.mxu0
          %v1619 = vadd.f32 %v1263, %v1618
          %v1620 = vpop.f32.mrf.mxu0
          %v1621 = vadd.f32 %v1265, %v1620
          %1622 = vmatmul.bf16.gmra.mxu0 %v803
          %v1623 = vpop.f32.mrf.mxu0
          %v1624 = vadd.f32 %v1268, %v1623
          %v1625 = vpop.f32.mrf.mxu0
          %v1626 = vadd.f32 %v1270, %v1625
          %1627 = vmatmul.bf16.gmra.mxu0 %v804
          %v1628 = vpop.f32.mrf.mxu0
          %v1629 = vadd.f32 %v1273, %v1628
          %v1630 = vpop.f32.mrf.mxu0
          %v1631 = vadd.f32 %v1275, %v1630
          %1632 = vmatmul.bf16.gmra.mxu0 %v805
          %v1633 = vpop.f32.mrf.mxu0
          %v1634 = vadd.f32 %v1278, %v1633
          %v1635 = vpop.f32.mrf.mxu0
          %v1636 = vadd.f32 %v1280, %v1635
          %1637 = vmatmul.bf16.gmra.mxu0 %v806
          %v1638 = vpop.f32.mrf.mxu0
          %v1639 = vadd.f32 %v1283, %v1638
          %v1640 = vpop.f32.mrf.mxu0
          %v1641 = vadd.f32 %v1285, %v1640
          %1642 = vmatmul.bf16.gmra.mxu0 %v807
          %v1643 = vpop.f32.mrf.mxu0
          %v1644 = vadd.f32 %v1288, %v1643
          %v1645 = vpop.f32.mrf.mxu0
          %v1646 = vadd.f32 %v1290, %v1645
          %1647 = vdwg.mxu0
          %v1648 = vld [vmem:[%s7] sm:$0xf]
          %v1650 = vperm.slane %v1648, 0
          %v1651 = vperm.slane %v1648, 1
          %v1652 = vperm.slane %v1648, 2
          %v1653 = vperm.slane %v1648, 3
          %v1658 = vadd.f32 %v1462, %v1650
          %v1659 = vadd.f32 %v1511, %v1651
          %v1660 = vadd.f32 %v1560, %v1652
          %v1661 = vadd.f32 %v1609, %v1653
          %v1662 = vadd.f32 %v1464, %v1650
          %v1663 = vadd.f32 %v1513, %v1651
          %v1664 = vadd.f32 %v1562, %v1652
          %v1665 = vadd.f32 %v1611, %v1653
          %v1666 = vadd.f32 %v1467, %v1650
          %v1667 = vadd.f32 %v1516, %v1651
          %v1668 = vadd.f32 %v1565, %v1652
          %v1669 = vadd.f32 %v1614, %v1653
          %v1670 = vadd.f32 %v1469, %v1650
          %v1671 = vadd.f32 %v1518, %v1651
          %v1672 = vadd.f32 %v1567, %v1652
          %v1673 = vadd.f32 %v1616, %v1653
          %v1674 = vadd.f32 %v1472, %v1650
          %v1675 = vadd.f32 %v1521, %v1651
          %v1676 = vadd.f32 %v1570, %v1652
          %v1677 = vadd.f32 %v1619, %v1653
          %v1678 = vadd.f32 %v1474, %v1650
          %v1679 = vadd.f32 %v1523, %v1651
          %v1680 = vadd.f32 %v1572, %v1652
          %v1681 = vadd.f32 %v1621, %v1653
          %v1682 = vadd.f32 %v1477, %v1650
          %v1683 = vadd.f32 %v1526, %v1651
          %v1684 = vadd.f32 %v1575, %v1652
          %v1685 = vadd.f32 %v1624, %v1653
          %v1686 = vadd.f32 %v1479, %v1650
          %v1687 = vadd.f32 %v1528, %v1651
          %v1688 = vadd.f32 %v1577, %v1652
          %v1689 = vadd.f32 %v1626, %v1653
          %v1690 = vadd.f32 %v1482, %v1650
          %v1691 = vadd.f32 %v1531, %v1651
          %v1692 = vadd.f32 %v1580, %v1652
          %v1693 = vadd.f32 %v1629, %v1653
          %v1694 = vadd.f32 %v1484, %v1650
          %v1695 = vadd.f32 %v1533, %v1651
          %v1696 = vadd.f32 %v1582, %v1652
          %v1697 = vadd.f32 %v1631, %v1653
          %v1698 = vadd.f32 %v1487, %v1650
          %v1699 = vadd.f32 %v1536, %v1651
          %v1700 = vadd.f32 %v1585, %v1652
          %v1701 = vadd.f32 %v1634, %v1653
          %v1702 = vadd.f32 %v1489, %v1650
          %v1703 = vadd.f32 %v1538, %v1651
          %v1704 = vadd.f32 %v1587, %v1652
          %v1705 = vadd.f32 %v1636, %v1653
          %v1706 = vadd.f32 %v1492, %v1650
          %v1707 = vadd.f32 %v1541, %v1651
          %v1708 = vadd.f32 %v1590, %v1652
          %v1709 = vadd.f32 %v1639, %v1653
          %v1710 = vadd.f32 %v1494, %v1650
          %v1711 = vadd.f32 %v1543, %v1651
          %v1712 = vadd.f32 %v1592, %v1652
          %v1713 = vadd.f32 %v1641, %v1653
          %v1714 = vadd.f32 %v1497, %v1650
          %v1715 = vadd.f32 %v1546, %v1651
          %v1716 = vadd.f32 %v1595, %v1652
          %v1717 = vadd.f32 %v1644, %v1653
          %v1718 = vadd.f32 %v1499, %v1650
          %v1719 = vadd.f32 %v1548, %v1651
          %v1720 = vadd.f32 %v1597, %v1652
          %v1721 = vadd.f32 %v1646, %v1653
          %v1722 = vtanh.pop %v1658
          %v1723 = vtanh.pop %v1659
          %v1724 = vtanh.pop %v1660
          %v1725 = vtanh.pop %v1661
          %v1726 = vtanh.pop %v1662
          %v1727 = vtanh.pop %v1663
          %v1728 = vtanh.pop %v1664
          %v1729 = vtanh.pop %v1665
          %v1730 = vtanh.pop %v1666
          %v1731 = vtanh.pop %v1667
          %v1732 = vtanh.pop %v1668
          %v1733 = vtanh.pop %v1669
          %v1734 = vtanh.pop %v1670
          %v1735 = vtanh.pop %v1671
          %v1736 = vtanh.pop %v1672
          %v1737 = vtanh.pop %v1673
          %v1738 = vtanh.pop %v1674
          %v1739 = vtanh.pop %v1675
          %v1740 = vtanh.pop %v1676
          %v1741 = vtanh.pop %v1677
          %v1742 = vtanh.pop %v1678
          %v1743 = vtanh.pop %v1679
          %v1744 = vtanh.pop %v1680
          %v1745 = vtanh.pop %v1681
          %v1746 = vtanh.pop %v1682
          %v1747 = vtanh.pop %v1683
          %v1748 = vtanh.pop %v1684
          %v1749 = vtanh.pop %v1685
          %v1750 = vtanh.pop %v1686
          %v1751 = vtanh.pop %v1687
          %v1752 = vtanh.pop %v1688
          %v1753 = vtanh.pop %v1689
          %v1754 = vtanh.pop %v1690
          %v1755 = vtanh.pop %v1691
          %v1756 = vtanh.pop %v1692
          %v1757 = vtanh.pop %v1693
          %v1758 = vtanh.pop %v1694
          %v1759 = vtanh.pop %v1695
          %v1760 = vtanh.pop %v1696
          %v1761 = vtanh.pop %v1697
          %v1762 = vtanh.pop %v1698
          %v1763 = vtanh.pop %v1699
          %v1764 = vtanh.pop %v1700
          %v1765 = vtanh.pop %v1701
          %v1766 = vtanh.pop %v1702
          %v1767 = vtanh.pop %v1703
          %v1768 = vtanh.pop %v1704
          %v1769 = vtanh.pop %v1705
          %v1770 = vtanh.pop %v1706
          %v1771 = vtanh.pop %v1707
          %v1772 = vtanh.pop %v1708
          %v1773 = vtanh.pop %v1709
          %v1774 = vtanh.pop %v1710
          %v1775 = vtanh.pop %v1711
          %v1776 = vtanh.pop %v1712
          %v1777 = vtanh.pop %v1713
          %v1778 = vtanh.pop %v1714
          %v1779 = vtanh.pop %v1715
          %v1780 = vtanh.pop %v1716
          %v1781 = vtanh.pop %v1717
          %v1782 = vtanh.pop %v1718
          %v1783 = vtanh.pop %v1719
          %v1784 = vtanh.pop %v1720
          %v1785 = vtanh.pop %v1721
          %v1786 = vpack.c.bf16 %v1723, %v1722
          %v1787 = vpack.c.bf16 %v1725, %v1724
          %v1788 = vpack.c.bf16 %v1727, %v1726
          %v1789 = vpack.c.bf16 %v1729, %v1728
          %v1790 = vpack.c.bf16 %v1731, %v1730
          %v1791 = vpack.c.bf16 %v1733, %v1732
          %v1792 = vpack.c.bf16 %v1735, %v1734
          %v1793 = vpack.c.bf16 %v1737, %v1736
          %v1794 = vpack.c.bf16 %v1739, %v1738
          %v1795 = vpack.c.bf16 %v1741, %v1740
          %v1796 = vpack.c.bf16 %v1743, %v1742
          %v1797 = vpack.c.bf16 %v1745, %v1744
          %v1798 = vpack.c.bf16 %v1747, %v1746
          %v1799 = vpack.c.bf16 %v1749, %v1748
          %v1800 = vpack.c.bf16 %v1751, %v1750
          %v1801 = vpack.c.bf16 %v1753, %v1752
          %v1802 = vpack.c.bf16 %v1755, %v1754
          %v1803 = vpack.c.bf16 %v1757, %v1756
          %v1804 = vpack.c.bf16 %v1759, %v1758
          %v1805 = vpack.c.bf16 %v1761, %v1760
          %v1806 = vpack.c.bf16 %v1763, %v1762
          %v1807 = vpack.c.bf16 %v1765, %v1764
          %v1808 = vpack.c.bf16 %v1767, %v1766
          %v1809 = vpack.c.bf16 %v1769, %v1768
          %v1810 = vpack.c.bf16 %v1771, %v1770
          %v1811 = vpack.c.bf16 %v1773, %v1772
          %v1812 = vpack.c.bf16 %v1775, %v1774
          %v1813 = vpack.c.bf16 %v1777, %v1776
          %v1814 = vpack.c.bf16 %v1779, %v1778
          %v1815 = vpack.c.bf16 %v1781, %v1780
          %v1816 = vpack.c.bf16 %v1783, %v1782
          %v1817 = vpack.c.bf16 %v1785, %v1784
          %1818 = vst [vmem:[%s521] sm:$0xff] %v1786
          %1819 = vst [vmem:[%s521 + $0x8] sm:$0xff] %v1787
          %1820 = vst [vmem:[%s521 + $0x10] sm:$0xff] %v1788
          %1821 = vst [vmem:[%s521 + $0x18] sm:$0xff] %v1789
          %1822 = vst [vmem:[%s521 + $0x20] sm:$0xff] %v1790
          %1823 = vst [vmem:[%s521 + $0x28] sm:$0xff] %v1791
          %1824 = vst [vmem:[%s521 + $0x30] sm:$0xff] %v1792
          %1825 = vst [vmem:[%s521 + $0x38] sm:$0xff] %v1793
          %1826 = vst [vmem:[%s521 + $0x40] sm:$0xff] %v1794
          %1827 = vst [vmem:[%s521 + $0x48] sm:$0xff] %v1795
          %1828 = vst [vmem:[%s521 + $0x50] sm:$0xff] %v1796
          %1829 = vst [vmem:[%s521 + $0x58] sm:$0xff] %v1797
          %1830 = vst [vmem:[%s521 + $0x60] sm:$0xff] %v1798
          %1831 = vst [vmem:[%s521 + $0x68] sm:$0xff] %v1799
          %1832 = vst [vmem:[%s521 + $0x70] sm:$0xff] %v1800
          %1833 = vst [vmem:[%s521 + $0x78] sm:$0xff] %v1801
          %1834 = vst [vmem:[%s521 + $0x80] sm:$0xff] %v1802
          %1835 = vst [vmem:[%s521 + $0x88] sm:$0xff] %v1803
          %1836 = vst [vmem:[%s521 + $0x90] sm:$0xff] %v1804
          %1837 = vst [vmem:[%s521 + $0x98] sm:$0xff] %v1805
          %1838 = vst [vmem:[%s521 + $0xa0] sm:$0xff] %v1806
          %1839 = vst [vmem:[%s521 + $0xa8] sm:$0xff] %v1807
          %1840 = vst [vmem:[%s521 + $0xb0] sm:$0xff] %v1808
          %1841 = vst [vmem:[%s521 + $0xb8] sm:$0xff] %v1809
          %1842 = vst [vmem:[%s521 + $0xc0] sm:$0xff] %v1810
          %1843 = vst [vmem:[%s521 + $0xc8] sm:$0xff] %v1811
          %1844 = vst [vmem:[%s521 + $0xd0] sm:$0xff] %v1812
          %1845 = vst [vmem:[%s521 + $0xd8] sm:$0xff] %v1813
          %1846 = vst [vmem:[%s521 + $0xe0] sm:$0xff] %v1814
          %1847 = vst [vmem:[%s521 + $0xe8] sm:$0xff] %v1815
          %1848 = vst [vmem:[%s521 + $0xf0] sm:$0xff] %v1816
          %1849 = vst [vmem:[%s521 + $0xf8] sm:$0xff] %v1817
        $region97: #{gnn_forward.4} parent=80 // pred_fallthru
          _
        %s1850 = smul.u32 16, %s36
        %p1851 = scmp.lt.s32.totalorder %s1850, 47
        %s1852 = scalar_select %p1851, %s1850, 47
        %s1853 = smul.addr %s1852, 4
        %s1854 = smul.addr %s1853, 4
        %s1855 = scalar_lea.vmem %s8, %s1854
        // Predicated region
        $region98: #{gnn_forward.4} parent=80 // pred_check
          %p1856 = pneg %p237
        $region99: #{gnn_forward.4} parent=80 // pred_check_branch
          %1858 = sbr.rel (%p1856) target = $region101
        $region100: #{gnn_forward.4} parent=80 // pred_region
          %s1859 = smul.u32 16, %s36
        $region101: #{gnn_forward.4} parent=80 // pred_fallthru
          _
      $region81: #{gnn_forward.4} parent=5 // pred_fallthru
        _
      %p1860 = scmp.le.s32.totalorder 2, %s27
      // Predicated region
      $region102: #{gnn_forward.4} parent=5 // pred_check
        %p1861 = pneg %p1860
      $region103: #{gnn_forward.4} parent=5 // pred_check_branch
        %1863 = sbr.rel (%p1861) target = $region105
      $region104: #{gnn_forward.4} parent=5 // pred_region
        %s1864 = ssub.s32 %s27, 2
        // Predicated region
        $region106: #{gnn_forward.4} parent=104 // pred_check
          %p1865 = pneg %p243
        $region107: #{gnn_forward.4} parent=104 // pred_check_branch
          %1867 = sbr.rel (%p1865) target = $region109
        $region108: #{gnn_forward.4} parent=104 // pred_region
          %s1868 = smul.u32 16, %s38
          %p1869 = scmp.lt.s32.totalorder %s1868, 47
          %s1870 = scalar_select %p1869, %s1868, 47
          %s1871 = smul.addr %s1870, 4
          %s1872 = smul.addr %s1871, 4
          %s1873 = scalar_lea.vmem %s8, %s1872
        $region109: #{gnn_forward.4} parent=104 // pred_fallthru
          _
      $region105: #{gnn_forward.4} parent=5 // pred_fallthru
        _
    $region6: #{gnn_forward.4} parent=1 // loop_footer
      %s31 = sadd.s32 1, %s27
    $region7: #{gnn_forward.4} parent=1 // loop_footer_branch
      %26 = sbr.rel target = $region3
    $region8: #{gnn_forward.4} parent=1 // loop_exit
      _

// kernel: gnn_forward.7
$region0: #{gnn_forward.7}
  #allocation0 [shape = 'u32[]', space=smem, size = 0x4, offset = 0x4, fixed_abs, tag = 'smem constant byte address 0x4 - core index']
  #allocation1 [shape = 'u32[72,128]{1,0:T(1,128)}', space=vmem, size = 0x9000, scoped, tag = 'internal scratch']
  %s0 = inlined_call_operand.vmem [shape: f32[384,8], index: 0, kind: input, shape index: {}]
  %s1 = inlined_call_operand.vmem [shape: bf16[8,384], index: 1, kind: input, shape index: {}]
  %s2 = inlined_call_operand.vmem [shape: bf16[384,512], index: 2, kind: input, shape index: {}]
  %s3 = inlined_call_operand.vmem [shape: f32[8,512], index: 3, kind: output, shape index: {0}]
  %s4 = inlined_call_operand.vmem [shape: f32[8,512], index: 4, kind: output, shape index: {1}]
  %5 = xla_tuple %s3, %s4
  %s6 = sld [smem:[#allocation0]]
  $region57: #{gnn_forward.7} parent=0
    _
  %s8 = ssub.s32 1, %s6
  %s9 = scalar_select 0, %s8, %s6
  loop: start=0, step=1, limit=5
  $region2: #{gnn_forward.7} parent=0 // loop_pre_header
    _
  $region3: #{gnn_forward.7} parent=0 // loop_header
    %s11 = sphi 0, %s15
    %p12 = scmp.ge.s32.totalorder %s11, 5
    %s21 = sphi 0, %s23
    %s24 = sphi 0, %s21
    %s25 = sphi 0, %s24
    %s41 = sphi 0, %s25
    %s47 = sphi 0, %s49
    %s50 = sphi 0, %s47
    %s51 = sphi 0, %s50
    %s67 = sphi 0, %s51
    %s73 = sphi 0, %s75
    %s76 = sphi 0, %s73
    %s77 = sphi 0, %s76
    %s93 = sphi 0, %s77
    %s97 = sphi 0, %s97
    %s99 = sphi 0, %s97
    %s100 = sphi 0, %s99
    %s114 = sphi 0, %s100
    %s118 = sphi 0, %s118
    %s120 = sphi 0, %s118
    %s121 = sphi 0, %s120
    %s135 = sphi 0, %s121
  $region4: #{gnn_forward.7} parent=0 // loop_header_branch
    %14 = sbr.rel (%p12) target = $region8
  $region5: #{gnn_forward.7} parent=0 // loop_body
    %s16 = ssub.s32 %s11, 1
    %s17 = ssub.s32 %s11, 2
    %s18 = sadd.s32 %s11, 1
    %s19 = ssub.s32 %s11, %s18
    %p20 = scmp.eq.s32.totalorder %s19, 0
    %s22 = sadd.s32 %s21, 1
    %s23 = scalar_select %p20, %s21, %s22
    %p26 = pneg %p20
    %p27 = scmp.eq.s32.totalorder %s11, 2
    %p28 = por %p26, %p27
    %p29 = scmp.ne.s32.totalorder %s21, %s24
    %p30 = scmp.eq.s32.totalorder %s11, 0
    %p31 = por %p29, %p30
    %p32 = scmp.ne.s32.totalorder %s21, %s24
    %p33 = scmp.eq.s32.totalorder %s16, 2
    %p34 = por %p32, %p33
    %p35 = scmp.ne.s32.totalorder %s24, %s25
    %p36 = scmp.eq.s32.totalorder %s16, 0
    %p37 = por %p35, %p36
    %p38 = scmp.ne.s32.totalorder %s24, %s25
    %p39 = scmp.eq.s32.totalorder %s17, 2
    %p40 = por %p38, %p39
    %p42 = scmp.ne.s32.totalorder %s25, %s41
    %p43 = scmp.eq.s32.totalorder %s17, 0
    %p44 = por %p42, %p43
    %s45 = ssub.s32 %s11, %s18
    %p46 = scmp.eq.s32.totalorder %s45, 0
    %s48 = sadd.s32 %s47, 1
    %s49 = scalar_select %p46, %s47, %s48
    %p52 = pneg %p46
    %p53 = scmp.eq.s32.totalorder %s11, 2
    %p54 = por %p52, %p53
    %p55 = scmp.ne.s32.totalorder %s47, %s50
    %p56 = scmp.eq.s32.totalorder %s11, 0
    %p57 = por %p55, %p56
    %p58 = scmp.ne.s32.totalorder %s47, %s50
    %p59 = scmp.eq.s32.totalorder %s16, 2
    %p60 = por %p58, %p59
    %p61 = scmp.ne.s32.totalorder %s50, %s51
    %p62 = scmp.eq.s32.totalorder %s16, 0
    %p63 = por %p61, %p62
    %p64 = scmp.ne.s32.totalorder %s50, %s51
    %p65 = scmp.eq.s32.totalorder %s17, 2
    %p66 = por %p64, %p65
    %p68 = scmp.ne.s32.totalorder %s51, %s67
    %p69 = scmp.eq.s32.totalorder %s17, 0
    %p70 = por %p68, %p69
    %s71 = ssub.s32 %s11, %s18
    %p72 = scmp.eq.s32.totalorder %s71, 0
    %s74 = sadd.s32 %s73, 1
    %s75 = scalar_select %p72, %s73, %s74
    %p78 = pneg %p72
    %p79 = scmp.eq.s32.totalorder %s11, 2
    %p80 = por %p78, %p79
    %p81 = scmp.ne.s32.totalorder %s73, %s76
    %p82 = scmp.eq.s32.totalorder %s11, 0
    %p83 = por %p81, %p82
    %p84 = scmp.ne.s32.totalorder %s73, %s76
    %p85 = scmp.eq.s32.totalorder %s16, 2
    %p86 = por %p84, %p85
    %p87 = scmp.ne.s32.totalorder %s76, %s77
    %p88 = scmp.eq.s32.totalorder %s16, 0
    %p89 = por %p87, %p88
    %p90 = scmp.ne.s32.totalorder %s76, %s77
    %p91 = scmp.eq.s32.totalorder %s17, 2
    %p92 = por %p90, %p91
    %p94 = scmp.ne.s32.totalorder %s77, %s93
    %p95 = scmp.eq.s32.totalorder %s17, 0
    %p96 = por %p94, %p95
    %s98 = sadd.s32 %s97, 1
    %p101 = scmp.eq.s32.totalorder %s11, 2
    %p102 = scmp.ne.s32.totalorder %s97, %s99
    %p103 = scmp.eq.s32.totalorder %s11, 0
    %p104 = por %p102, %p103
    %p105 = scmp.ne.s32.totalorder %s97, %s99
    %p106 = scmp.eq.s32.totalorder %s16, 2
    %p107 = por %p105, %p106
    %p108 = scmp.ne.s32.totalorder %s99, %s100
    %p109 = scmp.eq.s32.totalorder %s16, 0
    %p110 = por %p108, %p109
    %p111 = scmp.ne.s32.totalorder %s99, %s100
    %p112 = scmp.eq.s32.totalorder %s17, 2
    %p113 = por %p111, %p112
    %p115 = scmp.ne.s32.totalorder %s100, %s114
    %p116 = scmp.eq.s32.totalorder %s17, 0
    %p117 = por %p115, %p116
    %s119 = sadd.s32 %s118, 1
    %p122 = scmp.eq.s32.totalorder %s11, 2
    %p123 = scmp.ne.s32.totalorder %s118, %s120
    %p124 = scmp.eq.s32.totalorder %s11, 0
    %p125 = por %p123, %p124
    %p126 = scmp.ne.s32.totalorder %s118, %s120
    %p127 = scmp.eq.s32.totalorder %s16, 2
    %p128 = por %p126, %p127
    %p129 = scmp.ne.s32.totalorder %s120, %s121
    %p130 = scmp.eq.s32.totalorder %s16, 0
    %p131 = por %p129, %p130
    %p132 = scmp.ne.s32.totalorder %s120, %s121
    %p133 = scmp.eq.s32.totalorder %s17, 2
    %p134 = por %p132, %p133
    %p136 = scmp.ne.s32.totalorder %s121, %s135
    %p137 = scmp.eq.s32.totalorder %s17, 0
    %p138 = por %p136, %p137
    %p139 = scmp.le.s32.totalorder 1, %s11
    %p140 = scmp.lt.s32.totalorder %s11, 4
    %p141 = pnand %p139, %p140
    %p142 = pneg %p141
    // Predicated region
    $region9: #{gnn_forward.7} parent=5 // pred_check
      _
    $region10: #{gnn_forward.7} parent=5 // pred_check_branch
      %144 = sbr.rel (%p141) target = $region12
    $region11: #{gnn_forward.7} parent=5 // pred_region
      %s145 = ssub.s32 %s11, 1
    $region12: #{gnn_forward.7} parent=5 // pred_fallthru
      _
    %p146 = scmp.lt.s32.totalorder %s11, 3
    // Predicated region
    $region13: #{gnn_forward.7} parent=5 // pred_check
      %p147 = pneg %p146
    $region14: #{gnn_forward.7} parent=5 // pred_check_branch
      %149 = sbr.rel (%p147) target = $region16
    $region15: #{gnn_forward.7} parent=5 // pred_region
      // Predicated region
      $region17: #{gnn_forward.7} parent=15 // pred_check
        %p150 = pneg %p31
      $region18: #{gnn_forward.7} parent=15 // pred_check_branch
        %152 = sbr.rel (%p150) target = $region20
      $region19: #{gnn_forward.7} parent=15 // pred_region
        %s153 = smul.u32 16, %s11
        %p154 = scmp.lt.s32.totalorder %s153, 47
        %s155 = scalar_select %p154, %s153, 47
        %s156 = smul.addr %s155, 8
        %s157 = scalar_lea.vmem %s0, %s156
        %s158 = smul.u32 16, %s11
      $region20: #{gnn_forward.7} parent=15 // pred_fallthru
        _
      // Predicated region
      $region21: #{gnn_forward.7} parent=15 // pred_check
        %p159 = pneg %p57
      $region22: #{gnn_forward.7} parent=15 // pred_check_branch
        %161 = sbr.rel (%p159) target = $region24
      $region23: #{gnn_forward.7} parent=15 // pred_region
        %p162 = scmp.lt.s32.totalorder %s11, 2
        %s163 = scalar_select %p162, %s11, 2
        %s164 = smul.addr %s163, 4
        %s165 = scalar_lea.vmem %s1, %s164
      $region24: #{gnn_forward.7} parent=15 // pred_fallthru
        _
      // Predicated region
      $region25: #{gnn_forward.7} parent=15 // pred_check
        %p166 = pneg %p83
      $region26: #{gnn_forward.7} parent=15 // pred_check_branch
        %168 = sbr.rel (%p166) target = $region28
      $region27: #{gnn_forward.7} parent=15 // pred_region
        %s169 = smul.u32 16, %s11
        %p170 = scmp.lt.s32.totalorder %s169, 47
        %s171 = scalar_select %p170, %s169, 47
        %s172 = smul.addr %s171, 4
        %s173 = smul.addr %s172, 4
        %s174 = scalar_lea.vmem %s2, %s173
        %s175 = smul.u32 16, %s11
      $region28: #{gnn_forward.7} parent=15 // pred_fallthru
        _
    $region16: #{gnn_forward.7} parent=5 // pred_fallthru
      _
    %p176 = scmp.le.s32.totalorder 1, %s11
    %p177 = scmp.lt.s32.totalorder %s11, 4
    %p178 = pnand %p176, %p177
    %p179 = pneg %p178
    // Predicated region
    $region29: #{gnn_forward.7} parent=5 // pred_check
      _
    $region30: #{gnn_forward.7} parent=5 // pred_check_branch
      %181 = sbr.rel (%p178) target = $region32
    $region31: #{gnn_forward.7} parent=5 // pred_region
      %s182 = ssub.s32 %s11, 1
      %s183 = smul.u32 16, %s16
      %p184 = scmp.lt.s32.totalorder %s183, 47
      %s185 = scalar_select %p184, %s183, 47
      %s186 = smul.addr %s185, 8
      %s187 = scalar_lea.vmem %s0, %s186
      %p188 = pneg %p37
      %p189 = pneg %p34
      %p190 = scmp.lt.s32.totalorder %s16, 2
      %s191 = scalar_select %p190, %s16, 2
      %s192 = smul.addr %s191, 4
      %s193 = scalar_lea.vmem %s1, %s192
      %p194 = pneg %p63
      %p195 = pneg %p60
      %s196 = smul.u32 16, %s16
      %p197 = scmp.lt.s32.totalorder %s196, 47
      %s198 = scalar_select %p197, %s196, 47
      %s199 = smul.addr %s198, 4
      %s200 = smul.addr %s199, 4
      %s201 = scalar_lea.vmem %s2, %s200
      %p202 = pneg %p89
      %p203 = pneg %p86
      %p204 = pneg %p110
      %p205 = pneg %p107
      %p206 = pneg %p131
      %p207 = pneg %p128
      %s208 = smul.u32 16, %s16
      %p209 = scmp.lt.s32.totalorder %s208, 47
      %s210 = scalar_select %p209, %s208, 47
      %s211 = smul.addr %s210, 8
      %s212 = scalar_lea.vmem %s0, %s211
      %s213 = smul.u32 16, %s16
      %p214 = scmp.lt.s32.totalorder %s16, 2
      %s215 = scalar_select %p214, %s16, 2
      %s216 = smul.addr %s215, 4
      %s217 = scalar_lea.vmem %s1, %s216
      %s218 = smul.u32 16, %s16
      %p219 = scmp.lt.s32.totalorder %s218, 47
      %s220 = scalar_select %p219, %s218, 47
      %s221 = smul.addr %s220, 4
      %s222 = smul.addr %s221, 4
      %s223 = scalar_lea.vmem %s2, %s222
      %s224 = smul.u32 16, %s16
      %p225 = scmp.eq.s32.totalorder %s16, 0
      // Predicated region
      $region33: #{gnn_forward.7} parent=31 // pred_check
        %p226 = pneg %p225
      $region34: #{gnn_forward.7} parent=31 // pred_check_branch
        %228 = sbr.rel (%p226) target = $region36
      $region35: #{gnn_forward.7} parent=31 // pred_region
        %229 = vst [vmem:[%s3] sm:$0xff] -10000.0
        %230 = vst [vmem:[%s3 + $0x8] sm:$0xff] -10000.0
        %231 = vst [vmem:[%s3 + $0x10] sm:$0xff] -10000.0
        %232 = vst [vmem:[%s3 + $0x18] sm:$0xff] -10000.0
        %233 = vst [vmem:[%s4] sm:$0xff] 0.0
        %234 = vst [vmem:[%s4 + $0x8] sm:$0xff] 0.0
        %235 = vst [vmem:[%s4 + $0x10] sm:$0xff] 0.0
        %236 = vst [vmem:[%s4 + $0x18] sm:$0xff] 0.0
      $region36: #{gnn_forward.7} parent=31 // pred_fallthru
        _
      %v237 = vld [vmem:[%s223] sm:$0xff]
      %v238 = vld [vmem:[%s223 + $0x8] sm:$0xff]
      %v239 = vld [vmem:[%s223 + $0x10] sm:$0xff]
      %v240 = vld [vmem:[%s223 + $0x18] sm:$0xff]
      %v241 = vld [vmem:[%s223 + $0x20] sm:$0xff]
      %v242 = vld [vmem:[%s223 + $0x28] sm:$0xff]
      %v243 = vld [vmem:[%s223 + $0x30] sm:$0xff]
      %v244 = vld [vmem:[%s223 + $0x38] sm:$0xff]
      %v245 = vld [vmem:[%s223 + $0x40] sm:$0xff]
      %v246 = vld [vmem:[%s223 + $0x48] sm:$0xff]
      %v247 = vld [vmem:[%s223 + $0x50] sm:$0xff]
      %v248 = vld [vmem:[%s223 + $0x58] sm:$0xff]
      %v249 = vld [vmem:[%s223 + $0x60] sm:$0xff]
      %v250 = vld [vmem:[%s223 + $0x68] sm:$0xff]
      %v251 = vld [vmem:[%s223 + $0x70] sm:$0xff]
      %v252 = vld [vmem:[%s223 + $0x78] sm:$0xff]
      %v253 = vld [vmem:[%s223 + $0x80] sm:$0xff]
      %v254 = vld [vmem:[%s223 + $0x88] sm:$0xff]
      %v255 = vld [vmem:[%s223 + $0x90] sm:$0xff]
      %v256 = vld [vmem:[%s223 + $0x98] sm:$0xff]
      %v257 = vld [vmem:[%s223 + $0xa0] sm:$0xff]
      %v258 = vld [vmem:[%s223 + $0xa8] sm:$0xff]
      %v259 = vld [vmem:[%s223 + $0xb0] sm:$0xff]
      %v260 = vld [vmem:[%s223 + $0xb8] sm:$0xff]
      %v261 = vld [vmem:[%s223 + $0xc0] sm:$0xff]
      %v262 = vld [vmem:[%s223 + $0xc8] sm:$0xff]
      %v263 = vld [vmem:[%s223 + $0xd0] sm:$0xff]
      %v264 = vld [vmem:[%s223 + $0xd8] sm:$0xff]
      %v265 = vld [vmem:[%s223 + $0xe0] sm:$0xff]
      %v266 = vld [vmem:[%s223 + $0xe8] sm:$0xff]
      %v267 = vld [vmem:[%s223 + $0xf0] sm:$0xff]
      %v268 = vld [vmem:[%s223 + $0xf8] sm:$0xff]
      %v269 = vld [vmem:[%s4] sm:$0xff]
      %v270 = vld [vmem:[%s4 + $0x8] sm:$0xff]
      %v271 = vld [vmem:[%s4 + $0x10] sm:$0xff]
      %v272 = vld [vmem:[%s4 + $0x18] sm:$0xff]
      %v273 = vld [vmem:[%s217] sm:$0xf]
      %v306 = vunpack.c.l.b16 %v237
      %v307 = vunpack.c.h.b16 %v237
      %v308 = vunpack.c.l.b16 %v238
      %v309 = vunpack.c.h.b16 %v238
      %v310 = vunpack.c.l.b16 %v239
      %v311 = vunpack.c.h.b16 %v239
      %v312 = vunpack.c.l.b16 %v240
      %v313 = vunpack.c.h.b16 %v240
      %v314 = vunpack.c.l.b16 %v241
      %v315 = vunpack.c.h.b16 %v241
      %v316 = vunpack.c.l.b16 %v242
      %v317 = vunpack.c.h.b16 %v242
      %v318 = vunpack.c.l.b16 %v243
      %v319 = vunpack.c.h.b16 %v243
      %v320 = vunpack.c.l.b16 %v244
      %v321 = vunpack.c.h.b16 %v244
      %v322 = vunpack.c.l.b16 %v245
      %v323 = vunpack.c.h.b16 %v245
      %v324 = vunpack.c.l.b16 %v246
      %v325 = vunpack.c.h.b16 %v246
      %v326 = vunpack.c.l.b16 %v247
      %v327 = vunpack.c.h.b16 %v247
      %v328 = vunpack.c.l.b16 %v248
      %v329 = vunpack.c.h.b16 %v248
      %v330 = vunpack.c.l.b16 %v249
      %v331 = vunpack.c.h.b16 %v249
      %v332 = vunpack.c.l.b16 %v250
      %v333 = vunpack.c.h.b16 %v250
      %v334 = vunpack.c.l.b16 %v251
      %v335 = vunpack.c.h.b16 %v251
      %v336 = vunpack.c.l.b16 %v252
      %v337 = vunpack.c.h.b16 %v252
      %v338 = vunpack.c.l.b16 %v253
      %v339 = vunpack.c.h.b16 %v253
      %v340 = vunpack.c.l.b16 %v254
      %v341 = vunpack.c.h.b16 %v254
      %v342 = vunpack.c.l.b16 %v255
      %v343 = vunpack.c.h.b16 %v255
      %v344 = vunpack.c.l.b16 %v256
      %v345 = vunpack.c.h.b16 %v256
      %v346 = vunpack.c.l.b16 %v257
      %v347 = vunpack.c.h.b16 %v257
      %v348 = vunpack.c.l.b16 %v258
      %v349 = vunpack.c.h.b16 %v258
      %v350 = vunpack.c.l.b16 %v259
      %v351 = vunpack.c.h.b16 %v259
      %v352 = vunpack.c.l.b16 %v260
      %v353 = vunpack.c.h.b16 %v260
      %v354 = vunpack.c.l.b16 %v261
      %v355 = vunpack.c.h.b16 %v261
      %v356 = vunpack.c.l.b16 %v262
      %v357 = vunpack.c.h.b16 %v262
      %v358 = vunpack.c.l.b16 %v263
      %v359 = vunpack.c.h.b16 %v263
      %v360 = vunpack.c.l.b16 %v264
      %v361 = vunpack.c.h.b16 %v264
      %v362 = vunpack.c.l.b16 %v265
      %v363 = vunpack.c.h.b16 %v265
      %v364 = vunpack.c.l.b16 %v266
      %v365 = vunpack.c.h.b16 %v266
      %v366 = vunpack.c.l.b16 %v267
      %v367 = vunpack.c.h.b16 %v267
      %v368 = vunpack.c.l.b16 %v268
      %v369 = vunpack.c.h.b16 %v268
      %v370 = vpack.c.b16 %v310, %v306
      %v371 = vpack.c.b16 %v311, %v307
      %v372 = vpack.c.b16 %v312, %v308
      %v373 = vpack.c.b16 %v313, %v309
      %v374 = vpack.c.b16 %v318, %v314
      %v375 = vpack.c.b16 %v319, %v315
      %v376 = vpack.c.b16 %v320, %v316
      %v377 = vpack.c.b16 %v321, %v317
      %v378 = vpack.c.b16 %v326, %v322
      %v379 = vpack.c.b16 %v327, %v323
      %v380 = vpack.c.b16 %v328, %v324
      %v381 = vpack.c.b16 %v329, %v325
      %v382 = vpack.c.b16 %v334, %v330
      %v383 = vpack.c.b16 %v335, %v331
      %v384 = vpack.c.b16 %v336, %v332
      %v385 = vpack.c.b16 %v337, %v333
      %v386 = vpack.c.b16 %v342, %v338
      %v387 = vpack.c.b16 %v343, %v339
      %v388 = vpack.c.b16 %v344, %v340
      %v389 = vpack.c.b16 %v345, %v341
      %v390 = vpack.c.b16 %v350, %v346
      %v391 = vpack.c.b16 %v351, %v347
      %v392 = vpack.c.b16 %v352, %v348
      %v393 = vpack.c.b16 %v353, %v349
      %v394 = vpack.c.b16 %v358, %v354
      %v395 = vpack.c.b16 %v359, %v355
      %v396 = vpack.c.b16 %v360, %v356
      %v397 = vpack.c.b16 %v361, %v357
      %v398 = vpack.c.b16 %v366, %v362
      %v399 = vpack.c.b16 %v367, %v363
      %v400 = vpack.c.b16 %v368, %v364
      %v401 = vpack.c.b16 %v369, %v365
      %434 = vmatpush.bf16.msra.mxu0 %v398
      %435 = vmatpush.bf16.msra.mxu0 %v394
      %436 = vmatpush.bf16.msra.mxu0 %v390
      %437 = vmatpush.bf16.msra.mxu0 %v386
      %438 = vmatpush.bf16.msra.mxu0 %v382
      %439 = vmatpush.bf16.msra.mxu0 %v378
      %440 = vmatpush.bf16.msra.mxu0 %v374
      %441 = vmatpush.bf16.msra.mxu0 %v370
      %442 = vmatmul.bf16.gmra.mxu0 %v273
      %v443 = vpop.f32.mrf.mxu0
      %v444 = vadd.f32 0.0, %v443
      %v445 = vpop.f32.mrf.mxu0
      %446 = vdwg.mxu0
      %447 = vmatpush.bf16.msra.mxu0 %v399
      %448 = vmatpush.bf16.msra.mxu0 %v395
      %449 = vmatpush.bf16.msra.mxu0 %v391
      %450 = vmatpush.bf16.msra.mxu0 %v387
      %451 = vmatpush.bf16.msra.mxu0 %v383
      %452 = vmatpush.bf16.msra.mxu0 %v379
      %453 = vmatpush.bf16.msra.mxu0 %v375
      %454 = vmatpush.bf16.msra.mxu0 %v371
      %455 = vmatmul.bf16.gmra.mxu0 %v273
      %v456 = vpop.f32.mrf.mxu0
      %v457 = vadd.f32 0.0, %v456
      %v458 = vpop.f32.mrf.mxu0
      %459 = vdwg.mxu0
      %460 = vmatpush.bf16.msra.mxu0 %v400
      %461 = vmatpush.bf16.msra.mxu0 %v396
      %462 = vmatpush.bf16.msra.mxu0 %v392
      %463 = vmatpush.bf16.msra.mxu0 %v388
      %464 = vmatpush.bf16.msra.mxu0 %v384
      %465 = vmatpush.bf16.msra.mxu0 %v380
      %466 = vmatpush.bf16.msra.mxu0 %v376
      %467 = vmatpush.bf16.msra.mxu0 %v372
      %468 = vmatmul.bf16.gmra.mxu0 %v273
      %v469 = vpop.f32.mrf.mxu0
      %v470 = vadd.f32 0.0, %v469
      %v471 = vpop.f32.mrf.mxu0
      %472 = vdwg.mxu0
      %473 = vmatpush.bf16.msra.mxu0 %v401
      %474 = vmatpush.bf16.msra.mxu0 %v397
      %475 = vmatpush.bf16.msra.mxu0 %v393
      %476 = vmatpush.bf16.msra.mxu0 %v389
      %477 = vmatpush.bf16.msra.mxu0 %v385
      %478 = vmatpush.bf16.msra.mxu0 %v381
      %479 = vmatpush.bf16.msra.mxu0 %v377
      %480 = vmatpush.bf16.msra.mxu0 %v373
      %481 = vmatmul.bf16.gmra.mxu0 %v273
      %v482 = vpop.f32.mrf.mxu0
      %v483 = vadd.f32 0.0, %v482
      %v484 = vpop.f32.mrf.mxu0
      %485 = vdwg.mxu0
      %v486 = vadd.f32 %v269, %v444
      %v487 = vadd.f32 %v270, %v457
      %v488 = vadd.f32 %v271, %v470
      %v489 = vadd.f32 %v272, %v483
      %490 = vst [vmem:[%s4] sm:$0xff] %v486
      %491 = vst [vmem:[%s4 + $0x8] sm:$0xff] %v487
      %492 = vst [vmem:[%s4 + $0x10] sm:$0xff] %v488
      %493 = vst [vmem:[%s4 + $0x18] sm:$0xff] %v489
      %v494 = vunpack.c.l.bf16 %v237
      %v495 = vunpack.c.h.bf16 %v237
      %v496 = vunpack.c.l.bf16 %v238
      %v497 = vunpack.c.h.bf16 %v238
      %v498 = vunpack.c.l.bf16 %v239
      %v499 = vunpack.c.h.bf16 %v239
      %v500 = vunpack.c.l.bf16 %v240
      %v501 = vunpack.c.h.bf16 %v240
      %v502 = vunpack.c.l.bf16 %v241
      %v503 = vunpack.c.h.bf16 %v241
      %v504 = vunpack.c.l.bf16 %v242
      %v505 = vunpack.c.h.bf16 %v242
      %v506 = vunpack.c.l.bf16 %v243
      %v507 = vunpack.c.h.bf16 %v243
      %v508 = vunpack.c.l.bf16 %v244
      %v509 = vunpack.c.h.bf16 %v244
      %v510 = vunpack.c.l.bf16 %v245
      %v511 = vunpack.c.h.bf16 %v245
      %v512 = vunpack.c.l.bf16 %v246
      %v513 = vunpack.c.h.bf16 %v246
      %v514 = vunpack.c.l.bf16 %v247
      %v515 = vunpack.c.h.bf16 %v247
      %v516 = vunpack.c.l.bf16 %v248
      %v517 = vunpack.c.h.bf16 %v248
      %v518 = vunpack.c.l.bf16 %v249
      %v519 = vunpack.c.h.bf16 %v249
      %v520 = vunpack.c.l.bf16 %v250
      %v521 = vunpack.c.h.bf16 %v250
      %v522 = vunpack.c.l.bf16 %v251
      %v523 = vunpack.c.h.bf16 %v251
      %v524 = vunpack.c.l.bf16 %v252
      %v525 = vunpack.c.h.bf16 %v252
      %v526 = vunpack.c.l.bf16 %v253
      %v527 = vunpack.c.h.bf16 %v253
      %v528 = vunpack.c.l.bf16 %v254
      %v529 = vunpack.c.h.bf16 %v254
      %v530 = vunpack.c.l.bf16 %v255
      %v531 = vunpack.c.h.bf16 %v255
      %v532 = vunpack.c.l.bf16 %v256
      %v533 = vunpack.c.h.bf16 %v256
      %v534 = vunpack.c.l.bf16 %v257
      %v535 = vunpack.c.h.bf16 %v257
      %v536 = vunpack.c.l.bf16 %v258
      %v537 = vunpack.c.h.bf16 %v258
      %v538 = vunpack.c.l.bf16 %v259
      %v539 = vunpack.c.h.bf16 %v259
      %v540 = vunpack.c.l.bf16 %v260
      %v541 = vunpack.c.h.bf16 %v260
      %v542 = vunpack.c.l.bf16 %v261
      %v543 = vunpack.c.h.bf16 %v261
      %v544 = vunpack.c.l.bf16 %v262
      %v545 = vunpack.c.h.bf16 %v262
      %v546 = vunpack.c.l.bf16 %v263
      %v547 = vunpack.c.h.bf16 %v263
      %v548 = vunpack.c.l.bf16 %v264
      %v549 = vunpack.c.h.bf16 %v264
      %v550 = vunpack.c.l.bf16 %v265
      %v551 = vunpack.c.h.bf16 %v265
      %v552 = vunpack.c.l.bf16 %v266
      %v553 = vunpack.c.h.bf16 %v266
      %v554 = vunpack.c.l.bf16 %v267
      %v555 = vunpack.c.h.bf16 %v267
      %v556 = vunpack.c.l.bf16 %v268
      %v557 = vunpack.c.h.bf16 %v268
      %v558 = vld [vmem:[%s212] sm:$0xff]
      %v559 = vld [vmem:[%s212 + $0x8] sm:$0xff]
      %v560 = vld [vmem:[%s212 + $0x10] sm:$0xff]
      %v561 = vld [vmem:[%s212 + $0x18] sm:$0xff]
      %v562 = vld [vmem:[%s212 + $0x20] sm:$0xff]
      %v563 = vld [vmem:[%s212 + $0x28] sm:$0xff]
      %v564 = vld [vmem:[%s212 + $0x30] sm:$0xff]
      %v565 = vld [vmem:[%s212 + $0x38] sm:$0xff]
      %v566 = vld [vmem:[%s212 + $0x40] sm:$0xff]
      %v567 = vld [vmem:[%s212 + $0x48] sm:$0xff]
      %v568 = vld [vmem:[%s212 + $0x50] sm:$0xff]
      %v569 = vld [vmem:[%s212 + $0x58] sm:$0xff]
      %v570 = vld [vmem:[%s212 + $0x60] sm:$0xff]
      %v571 = vld [vmem:[%s212 + $0x68] sm:$0xff]
      %v572 = vld [vmem:[%s212 + $0x70] sm:$0xff]
      %v573 = vld [vmem:[%s212 + $0x78] sm:$0xff]
      %v574 = vsub.f32 %v558, 1.0
      %v575 = vsub.f32 %v559, 1.0
      %v576 = vsub.f32 %v560, 1.0
      %v577 = vsub.f32 %v561, 1.0
      %v578 = vsub.f32 %v562, 1.0
      %v579 = vsub.f32 %v563, 1.0
      %v580 = vsub.f32 %v564, 1.0
      %v581 = vsub.f32 %v565, 1.0
      %v582 = vsub.f32 %v566, 1.0
      %v583 = vsub.f32 %v567, 1.0
      %v584 = vsub.f32 %v568, 1.0
      %v585 = vsub.f32 %v569, 1.0
      %v586 = vsub.f32 %v570, 1.0
      %v587 = vsub.f32 %v571, 1.0
      %v588 = vsub.f32 %v572, 1.0
      %v589 = vsub.f32 %v573, 1.0
      %v590 = vmul.f32 %v574, 10000.0
      %v591 = vmul.f32 %v575, 10000.0
      %v592 = vmul.f32 %v576, 10000.0
      %v593 = vmul.f32 %v577, 10000.0
      %v594 = vmul.f32 %v578, 10000.0
      %v595 = vmul.f32 %v579, 10000.0
      %v596 = vmul.f32 %v580, 10000.0
      %v597 = vmul.f32 %v581, 10000.0
      %v598 = vmul.f32 %v582, 10000.0
      %v599 = vmul.f32 %v583, 10000.0
      %v600 = vmul.f32 %v584, 10000.0
      %v601 = vmul.f32 %v585, 10000.0
      %v602 = vmul.f32 %v586, 10000.0
      %v603 = vmul.f32 %v587, 10000.0
      %v604 = vmul.f32 %v588, 10000.0
      %v605 = vmul.f32 %v589, 10000.0
      %607 = vset.pattern.permute.xlu0 0
      %608 = vperm.xlu0 %607, %v590
      %v609 = vpop.permute.xlu0 %608
      %612 = vset.pattern.permute.xlu0 0
      %613 = vperm.xlu0 %612, %v591
      %v614 = vpop.permute.xlu0 %613
      %617 = vset.pattern.permute.xlu0 0
      %618 = vperm.xlu0 %617, %v592
      %v619 = vpop.permute.xlu0 %618
      %622 = vset.pattern.permute.xlu0 0
      %623 = vperm.xlu0 %622, %v593
      %v624 = vpop.permute.xlu0 %623
      %627 = vset.pattern.permute.xlu0 0
      %628 = vperm.xlu0 %627, %v594
      %v629 = vpop.permute.xlu0 %628
      %632 = vset.pattern.permute.xlu0 0
      %633 = vperm.xlu0 %632, %v595
      %v634 = vpop.permute.xlu0 %633
      %637 = vset.pattern.permute.xlu0 0
      %638 = vperm.xlu0 %637, %v596
      %v639 = vpop.permute.xlu0 %638
      %642 = vset.pattern.permute.xlu0 0
      %643 = vperm.xlu0 %642, %v597
      %v644 = vpop.permute.xlu0 %643
      %647 = vset.pattern.permute.xlu0 0
      %648 = vperm.xlu0 %647, %v598
      %v649 = vpop.permute.xlu0 %648
      %652 = vset.pattern.permute.xlu0 0
      %653 = vperm.xlu0 %652, %v599
      %v654 = vpop.permute.xlu0 %653
      %657 = vset.pattern.permute.xlu0 0
      %658 = vperm.xlu0 %657, %v600
      %v659 = vpop.permute.xlu0 %658
      %662 = vset.pattern.permute.xlu0 0
      %663 = vperm.xlu0 %662, %v601
      %v664 = vpop.permute.xlu0 %663
      %667 = vset.pattern.permute.xlu0 0
      %668 = vperm.xlu0 %667, %v602
      %v669 = vpop.permute.xlu0 %668
      %672 = vset.pattern.permute.xlu0 0
      %673 = vperm.xlu0 %672, %v603
      %v674 = vpop.permute.xlu0 %673
      %677 = vset.pattern.permute.xlu0 0
      %678 = vperm.xlu0 %677, %v604
      %v679 = vpop.permute.xlu0 %678
      %682 = vset.pattern.permute.xlu0 0
      %683 = vperm.xlu0 %682, %v605
      %v684 = vpop.permute.xlu0 %683
      %v686 = vadd.f32 %v494, %v609
      %v687 = vadd.f32 %v495, %v609
      %v688 = vadd.f32 %v496, %v609
      %v689 = vadd.f32 %v497, %v609
      %v690 = vadd.f32 %v498, %v614
      %v691 = vadd.f32 %v499, %v614
      %v692 = vadd.f32 %v500, %v614
      %v693 = vadd.f32 %v501, %v614
      %v694 = vadd.f32 %v502, %v619
      %v695 = vadd.f32 %v503, %v619
      %v696 = vadd.f32 %v504, %v619
      %v697 = vadd.f32 %v505, %v619
      %v698 = vadd.f32 %v506, %v624
      %v699 = vadd.f32 %v507, %v624
      %v700 = vadd.f32 %v508, %v624
      %v701 = vadd.f32 %v509, %v624
      %v702 = vadd.f32 %v510, %v629
      %v703 = vadd.f32 %v511, %v629
      %v704 = vadd.f32 %v512, %v629
      %v705 = vadd.f32 %v513, %v629
      %v706 = vadd.f32 %v514, %v634
      %v707 = vadd.f32 %v515, %v634
      %v708 = vadd.f32 %v516, %v634
      %v709 = vadd.f32 %v517, %v634
      %v710 = vadd.f32 %v518, %v639
      %v711 = vadd.f32 %v519, %v639
      %v712 = vadd.f32 %v520, %v639
      %v713 = vadd.f32 %v521, %v639
      %v714 = vadd.f32 %v522, %v644
      %v715 = vadd.f32 %v523, %v644
      %v716 = vadd.f32 %v524, %v644
      %v717 = vadd.f32 %v525, %v644
      %v718 = vadd.f32 %v526, %v649
      %v719 = vadd.f32 %v527, %v649
      %v720 = vadd.f32 %v528, %v649
      %v721 = vadd.f32 %v529, %v649
      %v722 = vadd.f32 %v530, %v654
      %v723 = vadd.f32 %v531, %v654
      %v724 = vadd.f32 %v532, %v654
      %v725 = vadd.f32 %v533, %v654
      %v726 = vadd.f32 %v534, %v659
      %v727 = vadd.f32 %v535, %v659
      %v728 = vadd.f32 %v536, %v659
      %v729 = vadd.f32 %v537, %v659
      %v730 = vadd.f32 %v538, %v664
      %v731 = vadd.f32 %v539, %v664
      %v732 = vadd.f32 %v540, %v664
      %v733 = vadd.f32 %v541, %v664
      %v734 = vadd.f32 %v542, %v669
      %v735 = vadd.f32 %v543, %v669
      %v736 = vadd.f32 %v544, %v669
      %v737 = vadd.f32 %v545, %v669
      %v738 = vadd.f32 %v546, %v674
      %v739 = vadd.f32 %v547, %v674
      %v740 = vadd.f32 %v548, %v674
      %v741 = vadd.f32 %v549, %v674
      %v742 = vadd.f32 %v550, %v679
      %v743 = vadd.f32 %v551, %v679
      %v744 = vadd.f32 %v552, %v679
      %v745 = vadd.f32 %v553, %v679
      %v746 = vadd.f32 %v554, %v684
      %v747 = vadd.f32 %v555, %v684
      %v748 = vadd.f32 %v556, %v684
      %v749 = vadd.f32 %v557, %v684
      %v750 = vmax.f32 %v686, %v690
      %v751 = vmax.f32 %v750, %v694
      %v752 = vmax.f32 %v751, %v698
      %v753 = vmax.f32 %v752, %v702
      %v754 = vmax.f32 %v753, %v706
      %v755 = vmax.f32 %v754, %v710
      %v756 = vmax.f32 %v755, %v714
      %v757 = vmax.f32 %v756, %v718
      %v758 = vmax.f32 %v757, %v722
      %v759 = vmax.f32 %v758, %v726
      %v760 = vmax.f32 %v759, %v730
      %v761 = vmax.f32 %v760, %v734
      %v762 = vmax.f32 %v761, %v738
      %v763 = vmax.f32 %v762, %v742
      %v764 = vmax.f32 %v763, %v746
      %v765 = vrot.slane %v764, 4
      %v766 = vmax.f32 %v764, %v765
      %v767 = vrot.slane %v766, 2
      %v768 = vmax.f32 %v766, %v767
      %v769 = vrot.slane %v768, 1
      %v770 = vmax.f32 %v768, %v769
      %v771 = vmax.f32 %v687, %v691
      %v772 = vmax.f32 %v771, %v695
      %v773 = vmax.f32 %v772, %v699
      %v774 = vmax.f32 %v773, %v703
      %v775 = vmax.f32 %v774, %v707
      %v776 = vmax.f32 %v775, %v711
      %v777 = vmax.f32 %v776, %v715
      %v778 = vmax.f32 %v777, %v719
      %v779 = vmax.f32 %v778, %v723
      %v780 = vmax.f32 %v779, %v727
      %v781 = vmax.f32 %v780, %v731
      %v782 = vmax.f32 %v781, %v735
      %v783 = vmax.f32 %v782, %v739
      %v784 = vmax.f32 %v783, %v743
      %v785 = vmax.f32 %v784, %v747
      %v786 = vrot.slane %v785, 4
      %v787 = vmax.f32 %v785, %v786
      %v788 = vrot.slane %v787, 2
      %v789 = vmax.f32 %v787, %v788
      %v790 = vrot.slane %v789, 1
      %v791 = vmax.f32 %v789, %v790
      %v792 = vmax.f32 %v688, %v692
      %v793 = vmax.f32 %v792, %v696
      %v794 = vmax.f32 %v793, %v700
      %v795 = vmax.f32 %v794, %v704
      %v796 = vmax.f32 %v795, %v708
      %v797 = vmax.f32 %v796, %v712
      %v798 = vmax.f32 %v797, %v716
      %v799 = vmax.f32 %v798, %v720
      %v800 = vmax.f32 %v799, %v724
      %v801 = vmax.f32 %v800, %v728
      %v802 = vmax.f32 %v801, %v732
      %v803 = vmax.f32 %v802, %v736
      %v804 = vmax.f32 %v803, %v740
      %v805 = vmax.f32 %v804, %v744
      %v806 = vmax.f32 %v805, %v748
      %v807 = vrot.slane %v806, 4
      %v808 = vmax.f32 %v806, %v807
      %v809 = vrot.slane %v808, 2
      %v810 = vmax.f32 %v808, %v809
      %v811 = vrot.slane %v810, 1
      %v812 = vmax.f32 %v810, %v811
      %v813 = vmax.f32 %v689, %v693
      %v814 = vmax.f32 %v813, %v697
      %v815 = vmax.f32 %v814, %v701
      %v816 = vmax.f32 %v815, %v705
      %v817 = vmax.f32 %v816, %v709
      %v818 = vmax.f32 %v817, %v713
      %v819 = vmax.f32 %v818, %v717
      %v820 = vmax.f32 %v819, %v721
      %v821 = vmax.f32 %v820, %v725
      %v822 = vmax.f32 %v821, %v729
      %v823 = vmax.f32 %v822, %v733
      %v824 = vmax.f32 %v823, %v737
      %v825 = vmax.f32 %v824, %v741
      %v826 = vmax.f32 %v825, %v745
      %v827 = vmax.f32 %v826, %v749
      %v828 = vrot.slane %v827, 4
      %v829 = vmax.f32 %v827, %v828
      %v830 = vrot.slane %v829, 2
      %v831 = vmax.f32 %v829, %v830
      %v832 = vrot.slane %v831, 1
      %v833 = vmax.f32 %v831, %v832
      %v834 = vld [vmem:[%s3] ss:$8 sm:$0xf]
      %v839 = vrot.slane %v791, 7
      %v840 = vrot.slane %v812, 6
      %v841 = vrot.slane %v833, 5
      %vm842 = vcmask 1040384
      %v843 = vsel %vm842, %v770, %v839
      %vm844 = vcmask 1042434
      %v845 = vsel %vm844, %v840, %v841
      %vm846 = vcmask 1041408
      %v847 = vsel %vm846, %v843, %v845
      %v849 = vmax.f32 %v834, %v847
      %v850 = vlaneseq
      %vm851 = vcmp.ge.s32.totalorder %v850, 0
      %vm852 = vcmp.lt.s32.totalorder %v850, 512
      %vm853 = vmand %vm851, %vm852
      %854 = vst.msk [vmem:[%s3] ss:$8 sm:$0xf] %vm853, %v849
      %855 = vst.msk [vmem:[%s3] ss:$8 sm:$0x0] %vm853, %v849
      %856 = vset.pattern.permute.xlu0 1
      %857 = vperm.xlu0 %856, %v590
      %v858 = vpop.permute.xlu0 %857
      %860 = vset.pattern.permute.xlu0 1
      %861 = vperm.xlu0 %860, %v591
      %v862 = vpop.permute.xlu0 %861
      %864 = vset.pattern.permute.xlu0 1
      %865 = vperm.xlu0 %864, %v592
      %v866 = vpop.permute.xlu0 %865
      %868 = vset.pattern.permute.xlu0 1
      %869 = vperm.xlu0 %868, %v593
      %v870 = vpop.permute.xlu0 %869
      %872 = vset.pattern.permute.xlu0 1
      %873 = vperm.xlu0 %872, %v594
      %v874 = vpop.permute.xlu0 %873
      %876 = vset.pattern.permute.xlu0 1
      %877 = vperm.xlu0 %876, %v595
      %v878 = vpop.permute.xlu0 %877
      %880 = vset.pattern.permute.xlu0 1
      %881 = vperm.xlu0 %880, %v596
      %v882 = vpop.permute.xlu0 %881
      %884 = vset.pattern.permute.xlu0 1
      %885 = vperm.xlu0 %884, %v597
      %v886 = vpop.permute.xlu0 %885
      %888 = vset.pattern.permute.xlu0 1
      %889 = vperm.xlu0 %888, %v598
      %v890 = vpop.permute.xlu0 %889
      %892 = vset.pattern.permute.xlu0 1
      %893 = vperm.xlu0 %892, %v599
      %v894 = vpop.permute.xlu0 %893
      %896 = vset.pattern.permute.xlu0 1
      %897 = vperm.xlu0 %896, %v600
      %v898 = vpop.permute.xlu0 %897
      %900 = vset.pattern.permute.xlu0 1
      %901 = vperm.xlu0 %900, %v601
      %v902 = vpop.permute.xlu0 %901
      %904 = vset.pattern.permute.xlu0 1
      %905 = vperm.xlu0 %904, %v602
      %v906 = vpop.permute.xlu0 %905
      %908 = vset.pattern.permute.xlu0 1
      %909 = vperm.xlu0 %908, %v603
      %v910 = vpop.permute.xlu0 %909
      %912 = vset.pattern.permute.xlu0 1
      %913 = vperm.xlu0 %912, %v604
      %v914 = vpop.permute.xlu0 %913
      %916 = vset.pattern.permute.xlu0 1
      %917 = vperm.xlu0 %916, %v605
      %v918 = vpop.permute.xlu0 %917
      %v920 = vadd.f32 %v494, %v858
      %v921 = vadd.f32 %v495, %v858
      %v922 = vadd.f32 %v496, %v858
      %v923 = vadd.f32 %v497, %v858
      %v924 = vadd.f32 %v498, %v862
      %v925 = vadd.f32 %v499, %v862
      %v926 = vadd.f32 %v500, %v862
      %v927 = vadd.f32 %v501, %v862
      %v928 = vadd.f32 %v502, %v866
      %v929 = vadd.f32 %v503, %v866
      %v930 = vadd.f32 %v504, %v866
      %v931 = vadd.f32 %v505, %v866
      %v932 = vadd.f32 %v506, %v870
      %v933 = vadd.f32 %v507, %v870
      %v934 = vadd.f32 %v508, %v870
      %v935 = vadd.f32 %v509, %v870
      %v936 = vadd.f32 %v510, %v874
      %v937 = vadd.f32 %v511, %v874
      %v938 = vadd.f32 %v512, %v874
      %v939 = vadd.f32 %v513, %v874
      %v940 = vadd.f32 %v514, %v878
      %v941 = vadd.f32 %v515, %v878
      %v942 = vadd.f32 %v516, %v878
      %v943 = vadd.f32 %v517, %v878
      %v944 = vadd.f32 %v518, %v882
      %v945 = vadd.f32 %v519, %v882
      %v946 = vadd.f32 %v520, %v882
      %v947 = vadd.f32 %v521, %v882
      %v948 = vadd.f32 %v522, %v886
      %v949 = vadd.f32 %v523, %v886
      %v950 = vadd.f32 %v524, %v886
      %v951 = vadd.f32 %v525, %v886
      %v952 = vadd.f32 %v526, %v890
      %v953 = vadd.f32 %v527, %v890
      %v954 = vadd.f32 %v528, %v890
      %v955 = vadd.f32 %v529, %v890
      %v956 = vadd.f32 %v530, %v894
      %v957 = vadd.f32 %v531, %v894
      %v958 = vadd.f32 %v532, %v894
      %v959 = vadd.f32 %v533, %v894
      %v960 = vadd.f32 %v534, %v898
      %v961 = vadd.f32 %v535, %v898
      %v962 = vadd.f32 %v536, %v898
      %v963 = vadd.f32 %v537, %v898
      %v964 = vadd.f32 %v538, %v902
      %v965 = vadd.f32 %v539, %v902
      %v966 = vadd.f32 %v540, %v902
      %v967 = vadd.f32 %v541, %v902
      %v968 = vadd.f32 %v542, %v906
      %v969 = vadd.f32 %v543, %v906
      %v970 = vadd.f32 %v544, %v906
      %v971 = vadd.f32 %v545, %v906
      %v972 = vadd.f32 %v546, %v910
      %v973 = vadd.f32 %v547, %v910
      %v974 = vadd.f32 %v548, %v910
      %v975 = vadd.f32 %v549, %v910
      %v976 = vadd.f32 %v550, %v914
      %v977 = vadd.f32 %v551, %v914
      %v978 = vadd.f32 %v552, %v914
      %v979 = vadd.f32 %v553, %v914
      %v980 = vadd.f32 %v554, %v918
      %v981 = vadd.f32 %v555, %v918
      %v982 = vadd.f32 %v556, %v918
      %v983 = vadd.f32 %v557, %v918
      %v984 = vmax.f32 %v920, %v924
      %v985 = vmax.f32 %v984, %v928
      %v986 = vmax.f32 %v985, %v932
      %v987 = vmax.f32 %v986, %v936
      %v988 = vmax.f32 %v987, %v940
      %v989 = vmax.f32 %v988, %v944
      %v990 = vmax.f32 %v989, %v948
      %v991 = vmax.f32 %v990, %v952
      %v992 = vmax.f32 %v991, %v956
      %v993 = vmax.f32 %v992, %v960
      %v994 = vmax.f32 %v993, %v964
      %v995 = vmax.f32 %v994, %v968
      %v996 = vmax.f32 %v995, %v972
      %v997 = vmax.f32 %v996, %v976
      %v998 = vmax.f32 %v997, %v980
      %v999 = vrot.slane %v998, 4
      %v1000 = vmax.f32 %v998, %v999
      %v1001 = vrot.slane %v1000, 2
      %v1002 = vmax.f32 %v1000, %v1001
      %v1003 = vrot.slane %v1002, 1
      %v1004 = vmax.f32 %v1002, %v1003
      %v1005 = vmax.f32 %v921, %v925
      %v1006 = vmax.f32 %v1005, %v929
      %v1007 = vmax.f32 %v1006, %v933
      %v1008 = vmax.f32 %v1007, %v937
      %v1009 = vmax.f32 %v1008, %v941
      %v1010 = vmax.f32 %v1009, %v945
      %v1011 = vmax.f32 %v1010, %v949
      %v1012 = vmax.f32 %v1011, %v953
      %v1013 = vmax.f32 %v1012, %v957
      %v1014 = vmax.f32 %v1013, %v961
      %v1015 = vmax.f32 %v1014, %v965
      %v1016 = vmax.f32 %v1015, %v969
      %v1017 = vmax.f32 %v1016, %v973
      %v1018 = vmax.f32 %v1017, %v977
      %v1019 = vmax.f32 %v1018, %v981
      %v1020 = vrot.slane %v1019, 4
      %v1021 = vmax.f32 %v1019, %v1020
      %v1022 = vrot.slane %v1021, 2
      %v1023 = vmax.f32 %v1021, %v1022
      %v1024 = vrot.slane %v1023, 1
      %v1025 = vmax.f32 %v1023, %v1024
      %v1026 = vmax.f32 %v922, %v926
      %v1027 = vmax.f32 %v1026, %v930
      %v1028 = vmax.f32 %v1027, %v934
      %v1029 = vmax.f32 %v1028, %v938
      %v1030 = vmax.f32 %v1029, %v942
      %v1031 = vmax.f32 %v1030, %v946
      %v1032 = vmax.f32 %v1031, %v950
      %v1033 = vmax.f32 %v1032, %v954
      %v1034 = vmax.f32 %v1033, %v958
      %v1035 = vmax.f32 %v1034, %v962
      %v1036 = vmax.f32 %v1035, %v966
      %v1037 = vmax.f32 %v1036, %v970
      %v1038 = vmax.f32 %v1037, %v974
      %v1039 = vmax.f32 %v1038, %v978
      %v1040 = vmax.f32 %v1039, %v982
      %v1041 = vrot.slane %v1040, 4
      %v1042 = vmax.f32 %v1040, %v1041
      %v1043 = vrot.slane %v1042, 2
      %v1044 = vmax.f32 %v1042, %v1043
      %v1045 = vrot.slane %v1044, 1
      %v1046 = vmax.f32 %v1044, %v1045
      %v1047 = vmax.f32 %v923, %v927
      %v1048 = vmax.f32 %v1047, %v931
      %v1049 = vmax.f32 %v1048, %v935
      %v1050 = vmax.f32 %v1049, %v939
      %v1051 = vmax.f32 %v1050, %v943
      %v1052 = vmax.f32 %v1051, %v947
      %v1053 = vmax.f32 %v1052, %v951
      %v1054 = vmax.f32 %v1053, %v955
      %v1055 = vmax.f32 %v1054, %v959
      %v1056 = vmax.f32 %v1055, %v963
      %v1057 = vmax.f32 %v1056, %v967
      %v1058 = vmax.f32 %v1057, %v971
      %v1059 = vmax.f32 %v1058, %v975
      %v1060 = vmax.f32 %v1059, %v979
      %v1061 = vmax.f32 %v1060, %v983
      %v1062 = vrot.slane %v1061, 4
      %v1063 = vmax.f32 %v1061, %v1062
      %v1064 = vrot.slane %v1063, 2
      %v1065 = vmax.f32 %v1063, %v1064
      %v1066 = vrot.slane %v1065, 1
      %v1067 = vmax.f32 %v1065, %v1066
      %s1068 = scalar_lea.vmem %s3, 1
      %v1069 = vld [vmem:[%s1068] ss:$8 sm:$0xf]
      %v1074 = vrot.slane %v1025, 7
      %v1075 = vrot.slane %v1046, 6
      %v1076 = vrot.slane %v1067, 5
      %v1077 = vsel %vm842, %v1004, %v1074
      %v1078 = vsel %vm844, %v1075, %v1076
      %v1079 = vsel %vm846, %v1077, %v1078
      %v1081 = vmax.f32 %v1069, %v1079
      %1082 = vst.msk [vmem:[%s1068] ss:$8 sm:$0xf] %vm853, %v1081
      %1083 = vst.msk [vmem:[%s1068] ss:$8 sm:$0x0] %vm853, %v1081
      // Predicated region
      $region37: #{gnn_forward.7} parent=31 // pred_check
        %p1084 = pneg %p107
      $region38: #{gnn_forward.7} parent=31 // pred_check_branch
        %1086 = sbr.rel (%p1084) target = $region40
      $region39: #{gnn_forward.7} parent=31 // pred_region
        _
      $region40: #{gnn_forward.7} parent=31 // pred_fallthru
        _
      // Predicated region
      $region41: #{gnn_forward.7} parent=31 // pred_check
        %p1087 = pneg %p128
      $region42: #{gnn_forward.7} parent=31 // pred_check_branch
        %1089 = sbr.rel (%p1087) target = $region44
      $region43: #{gnn_forward.7} parent=31 // pred_region
        _
      $region44: #{gnn_forward.7} parent=31 // pred_fallthru
        _
      // Predicated region
      $region45: #{gnn_forward.7} parent=31 // pred_check
        %p1090 = pneg %p107
      $region46: #{gnn_forward.7} parent=31 // pred_check_branch
        %1092 = sbr.rel (%p1090) target = $region48
      $region47: #{gnn_forward.7} parent=31 // pred_region
        _
      $region48: #{gnn_forward.7} parent=31 // pred_fallthru
        _
      // Predicated region
      $region49: #{gnn_forward.7} parent=31 // pred_check
        %p1093 = pneg %p128
      $region50: #{gnn_forward.7} parent=31 // pred_check_branch
        %1095 = sbr.rel (%p1093) target = $region52
      $region51: #{gnn_forward.7} parent=31 // pred_region
        _
      $region52: #{gnn_forward.7} parent=31 // pred_fallthru
        _
    $region32: #{gnn_forward.7} parent=5 // pred_fallthru
      _
    %p1096 = scmp.le.s32.totalorder 2, %s11
    // Predicated region
    $region53: #{gnn_forward.7} parent=5 // pred_check
      %p1097 = pneg %p1096
    $region54: #{gnn_forward.7} parent=5 // pred_check_branch
      %1099 = sbr.rel (%p1097) target = $region56
    $region55: #{gnn_forward.7} parent=5 // pred_region
      %s1100 = ssub.s32 %s11, 2
    $region56: #{gnn_forward.7} parent=5 // pred_fallthru
      _
  $region6: #{gnn_forward.7} parent=0 // loop_footer
    %s15 = sadd.s32 1, %s11
  $region7: #{gnn_forward.7} parent=0 // loop_footer_branch
    %10 = sbr.rel target = $region3
  $region8: #{gnn_forward.7} parent=0 // loop_exit
    _

// kernel: gnn_forward.5
$region0: #{gnn_forward.5}
  #allocation0 [shape = 'u32[]', space=smem, size = 0x4, offset = 0x4, fixed_abs, tag = 'smem constant byte address 0x4 - core index']
  #allocation1 [shape = 'u32[72,128]{1,0:T(1,128)}', space=vmem, size = 0x9000, scoped, tag = 'internal scratch']
  #allocation2 [shape = 'f32[128,512]{1,0:T(8,128)}', space=vmem, size = 0x40000, scoped, tag = 'scratch operand']
  #allocation3 [shape = 's32[1]{0}', space=sflag, size = 0x4, scoped, tag = 'scoped memory for gnn_forward.5']
  #allocation4 [shape = 'u8[2048]{0}', space=smem, size = 0x800, scoped, tag = 'prefetched SMEM operand 0']
  #allocation5 [shape = 'u8[2048]{0}', space=smem, size = 0x800, scoped, tag = 'prefetched SMEM operand 1']
  %s0 = inlined_call_operand.vmem [shape: s32[3,3], index: 0, kind: input, shape index: {}]
  %s1 = inlined_call_operand.vmem [shape: s32[3,3], index: 1, kind: input, shape index: {}]
  %s2 = inlined_call_operand.vmem [shape: bf16[384,384], index: 2, kind: input, shape index: {}]
  %s3 = inlined_call_operand.vmem [shape: bf16[384,512], index: 3, kind: input, shape index: {}, may-alias: {3,4}]
  %s4 = inlined_call_operand.vmem [shape: bf16[384,512], index: 4, kind: input, shape index: {}, may-alias: {3,4}]
  %s5 = inlined_call_operand.vmem [shape: bf16[512,512], index: 5, kind: input, shape index: {}]
  %s6 = inlined_call_operand.vmem [shape: bf16[512,512], index: 6, kind: input, shape index: {}]
  %s7 = inlined_call_operand.vmem [shape: f32[1,512], index: 7, kind: input, shape index: {}]
  %s8 = inlined_call_operand.vmem [shape: bf16[384,512], index: 8, kind: output, shape index: {}]
  %s9 = sld [smem:[#allocation0]]
  $region110: #{gnn_forward.5} parent=0
    _
  %s11 = ssub.s32 1, %s9
  %s12 = scalar_select 0, %s11, %s9
  %s14 = sshll.u32 %s0, 4
  %s15 = int_to_ptr.vmem [resolvable:$true] %s14
  %17 = dma.vmem_to_smem %s15, 64, [#allocation4], [#allocation3]
  %s19 = sshll.u32 %s1, 4
  %s20 = int_to_ptr.vmem [resolvable:$true] %s19
  %22 = dma.vmem_to_smem %s20, 64, [#allocation5], [#allocation3]
  %24 = dma.done [#allocation3], 128
  %25 = sfence
  $region1: #{gnn_forward.5} parent=0
    #allocation6 [shape = 'u8[65536]{0}', space=vmem, size = 0x10000, scoped, tag = 'input window, operand 2']
    loop: start=0, step=1, limit=11
    $region2: #{gnn_forward.5} parent=1 // loop_pre_header
      _
    $region3: #{gnn_forward.5} parent=1 // loop_header
      %s27 = sphi 0, %s31
      %p28 = scmp.ge.s32.totalorder %s27, 11
      %s34 = sphi 0, %s46
      %s35 = sphi 0, %s42
      %s36 = sphi 0, %s34
      %s37 = sphi 0, %s35
      %s38 = sphi 0, %s36
      %s39 = sphi 0, %s37
      %s67 = sphi 0, %s69
      %s70 = sphi 0, %s67
      %s71 = sphi 0, %s70
      %s87 = sphi 0, %s71
      %s109 = sphi 0, %s111
      %s112 = sphi 0, %s109
      %s113 = sphi 0, %s112
      %s129 = sphi 0, %s113
      %s135 = sphi 0, %s137
      %s138 = sphi 0, %s135
      %s139 = sphi 0, %s138
      %s155 = sphi 0, %s139
      %s159 = sphi 0, %s159
      %s161 = sphi 0, %s159
      %s162 = sphi 0, %s161
      %s176 = sphi 0, %s162
      %s180 = sphi 0, %s180
      %s182 = sphi 0, %s180
      %s183 = sphi 0, %s182
      %s197 = sphi 0, %s183
      %s201 = sphi 0, %s201
      %s203 = sphi 0, %s201
      %s204 = sphi 0, %s203
      %s218 = sphi 0, %s204
      %s224 = sphi 0, %s226
      %s227 = sphi 0, %s224
      %s228 = sphi 0, %s227
      %s244 = sphi 0, %s228
    $region4: #{gnn_forward.5} parent=1 // loop_header_branch
      %30 = sbr.rel (%p28) target = $region8
    $region5: #{gnn_forward.5} parent=1 // loop_body
      %s32 = ssub.s32 %s27, 1
      %s33 = ssub.s32 %s27, 2
      %s40 = sadd.s32 1, %s35
      %p41 = scmp.ge.s32.totalorder %s40, 3
      %s42 = scalar_select %p41, 0, %s40
      %s43 = sadd.s32 1, %s34
      %s44 = scalar_select %p41, %s43, %s34
      %p45 = scmp.ge.s32.totalorder %s44, 3
      %s46 = scalar_select %p45, 0, %s44
      %s47 = sshra.s32 %s35, 7
      %s48 = sand.u32 %s35, 127
      %s49 = sadd.s32 %s47, %s34
      %s50 = smul.u32 %s49, 128
      %s51 = sshra.s32 %s35, 7
      %s52 = sand.u32 %s35, 127
      %s53 = sadd.s32 %s50, %s52
      %s54 = sld [smem:[#allocation4 + %s53]]
      %s55 = sshra.s32 %s42, 7
      %s56 = sand.u32 %s42, 127
      %s57 = sadd.s32 %s55, %s46
      %s58 = smul.u32 %s57, 128
      %s59 = sshra.s32 %s42, 7
      %s60 = sand.u32 %s42, 127
      %s61 = sadd.s32 %s58, %s60
      %s62 = sld [smem:[#allocation4 + %s61]]
      %s63 = ssub.s32 %s34, %s46
      %s64 = ssub.s32 %s54, %s62
      %s65 = sor.u32 %s63, %s64
      %p66 = scmp.eq.s32.totalorder %s65, 0
      %s68 = sadd.s32 %s67, 1
      %s69 = scalar_select %p66, %s67, %s68
      %p72 = pneg %p66
      %p73 = scmp.eq.s32.totalorder %s27, 8
      %p74 = por %p72, %p73
      %p75 = scmp.ne.s32.totalorder %s67, %s70
      %p76 = scmp.eq.s32.totalorder %s27, 0
      %p77 = por %p75, %p76
      %p78 = scmp.ne.s32.totalorder %s67, %s70
      %p79 = scmp.eq.s32.totalorder %s32, 8
      %p80 = por %p78, %p79
      %p81 = scmp.ne.s32.totalorder %s70, %s71
      %p82 = scmp.eq.s32.totalorder %s32, 0
      %p83 = por %p81, %p82
      %p84 = scmp.ne.s32.totalorder %s70, %s71
      %p85 = scmp.eq.s32.totalorder %s33, 8
      %p86 = por %p84, %p85
      %p88 = scmp.ne.s32.totalorder %s71, %s87
      %p89 = scmp.eq.s32.totalorder %s33, 0
      %p90 = por %p88, %p89
      %s91 = sshra.s32 %s35, 7
      %s92 = sand.u32 %s35, 127
      %s93 = sadd.s32 %s91, %s34
      %s94 = smul.u32 %s93, 128
      %s95 = sshra.s32 %s35, 7
      %s96 = sand.u32 %s35, 127
      %s97 = sadd.s32 %s94, %s96
      %s98 = sld [smem:[#allocation4 + %s97]]
      %s99 = sshra.s32 %s42, 7
      %s100 = sand.u32 %s42, 127
      %s101 = sadd.s32 %s99, %s46
      %s102 = smul.u32 %s101, 128
      %s103 = sshra.s32 %s42, 7
      %s104 = sand.u32 %s42, 127
      %s105 = sadd.s32 %s102, %s104
      %s106 = sld [smem:[#allocation4 + %s105]]
      %s107 = ssub.s32 %s98, %s106
      %p108 = scmp.eq.s32.totalorder %s107, 0
      %s110 = sadd.s32 %s109, 1
      %s111 = scalar_select %p108, %s109, %s110
      %p114 = pneg %p108
      %p115 = scmp.eq.s32.totalorder %s27, 8
      %p116 = por %p114, %p115
      %p117 = scmp.ne.s32.totalorder %s109, %s112
      %p118 = scmp.eq.s32.totalorder %s27, 0
      %p119 = por %p117, %p118
      %p120 = scmp.ne.s32.totalorder %s109, %s112
      %p121 = scmp.eq.s32.totalorder %s32, 8
      %p122 = por %p120, %p121
      %p123 = scmp.ne.s32.totalorder %s112, %s113
      %p124 = scmp.eq.s32.totalorder %s32, 0
      %p125 = por %p123, %p124
      %p126 = scmp.ne.s32.totalorder %s112, %s113
      %p127 = scmp.eq.s32.totalorder %s33, 8
      %p128 = por %p126, %p127
      %p130 = scmp.ne.s32.totalorder %s113, %s129
      %p131 = scmp.eq.s32.totalorder %s33, 0
      %p132 = por %p130, %p131
      %s133 = ssub.s32 %s34, %s46
      %p134 = scmp.eq.s32.totalorder %s133, 0
      %s136 = sadd.s32 %s135, 1
      %s137 = scalar_select %p134, %s135, %s136
      %p140 = pneg %p134
      %p141 = scmp.eq.s32.totalorder %s27, 8
      %p142 = por %p140, %p141
      %p143 = scmp.ne.s32.totalorder %s135, %s138
      %p144 = scmp.eq.s32.totalorder %s27, 0
      %p145 = por %p143, %p144
      %p146 = scmp.ne.s32.totalorder %s135, %s138
      %p147 = scmp.eq.s32.totalorder %s32, 8
      %p148 = por %p146, %p147
      %p149 = scmp.ne.s32.totalorder %s138, %s139
      %p150 = scmp.eq.s32.totalorder %s32, 0
      %p151 = por %p149, %p150
      %p152 = scmp.ne.s32.totalorder %s138, %s139
      %p153 = scmp.eq.s32.totalorder %s33, 8
      %p154 = por %p152, %p153
      %p156 = scmp.ne.s32.totalorder %s139, %s155
      %p157 = scmp.eq.s32.totalorder %s33, 0
      %p158 = por %p156, %p157
      %s160 = sadd.s32 %s159, 1
      %p163 = scmp.eq.s32.totalorder %s27, 8
      %p164 = scmp.ne.s32.totalorder %s159, %s161
      %p165 = scmp.eq.s32.totalorder %s27, 0
      %p166 = por %p164, %p165
      %p167 = scmp.ne.s32.totalorder %s159, %s161
      %p168 = scmp.eq.s32.totalorder %s32, 8
      %p169 = por %p167, %p168
      %p170 = scmp.ne.s32.totalorder %s161, %s162
      %p171 = scmp.eq.s32.totalorder %s32, 0
      %p172 = por %p170, %p171
      %p173 = scmp.ne.s32.totalorder %s161, %s162
      %p174 = scmp.eq.s32.totalorder %s33, 8
      %p175 = por %p173, %p174
      %p177 = scmp.ne.s32.totalorder %s162, %s176
      %p178 = scmp.eq.s32.totalorder %s33, 0
      %p179 = por %p177, %p178
      %s181 = sadd.s32 %s180, 1
      %p184 = scmp.eq.s32.totalorder %s27, 8
      %p185 = scmp.ne.s32.totalorder %s180, %s182
      %p186 = scmp.eq.s32.totalorder %s27, 0
      %p187 = por %p185, %p186
      %p188 = scmp.ne.s32.totalorder %s180, %s182
      %p189 = scmp.eq.s32.totalorder %s32, 8
      %p190 = por %p188, %p189
      %p191 = scmp.ne.s32.totalorder %s182, %s183
      %p192 = scmp.eq.s32.totalorder %s32, 0
      %p193 = por %p191, %p192
      %p194 = scmp.ne.s32.totalorder %s182, %s183
      %p195 = scmp.eq.s32.totalorder %s33, 8
      %p196 = por %p194, %p195
      %p198 = scmp.ne.s32.totalorder %s183, %s197
      %p199 = scmp.eq.s32.totalorder %s33, 0
      %p200 = por %p198, %p199
      %s202 = sadd.s32 %s201, 1
      %p205 = scmp.eq.s32.totalorder %s27, 8
      %p206 = scmp.ne.s32.totalorder %s201, %s203
      %p207 = scmp.eq.s32.totalorder %s27, 0
      %p208 = por %p206, %p207
      %p209 = scmp.ne.s32.totalorder %s201, %s203
      %p210 = scmp.eq.s32.totalorder %s32, 8
      %p211 = por %p209, %p210
      %p212 = scmp.ne.s32.totalorder %s203, %s204
      %p213 = scmp.eq.s32.totalorder %s32, 0
      %p214 = por %p212, %p213
      %p215 = scmp.ne.s32.totalorder %s203, %s204
      %p216 = scmp.eq.s32.totalorder %s33, 8
      %p217 = por %p215, %p216
      %p219 = scmp.ne.s32.totalorder %s204, %s218
      %p220 = scmp.eq.s32.totalorder %s33, 0
      %p221 = por %p219, %p220
      %s222 = ssub.s32 %s34, %s46
      %p223 = scmp.eq.s32.totalorder %s222, 0
      %s225 = sadd.s32 %s224, 1
      %s226 = scalar_select %p223, %s224, %s225
      %p229 = pneg %p223
      %p230 = scmp.eq.s32.totalorder %s27, 8
      %p231 = por %p229, %p230
      %p232 = scmp.ne.s32.totalorder %s224, %s227
      %p233 = scmp.eq.s32.totalorder %s27, 0
      %p234 = por %p232, %p233
      %p235 = scmp.ne.s32.totalorder %s224, %s227
      %p236 = scmp.eq.s32.totalorder %s32, 8
      %p237 = por %p235, %p236
      %p238 = scmp.ne.s32.totalorder %s227, %s228
      %p239 = scmp.eq.s32.totalorder %s32, 0
      %p240 = por %p238, %p239
      %p241 = scmp.ne.s32.totalorder %s227, %s228
      %p242 = scmp.eq.s32.totalorder %s33, 8
      %p243 = por %p241, %p242
      %p245 = scmp.ne.s32.totalorder %s228, %s244
      %p246 = scmp.eq.s32.totalorder %s33, 0
      %p247 = por %p245, %p246
      %p248 = scmp.le.s32.totalorder 1, %s27
      %p249 = scmp.lt.s32.totalorder %s27, 10
      %p250 = pnand %p248, %p249
      %p251 = pneg %p250
      // Predicated region
      $region9: #{gnn_forward.5} parent=5 // pred_check
        _
      $region10: #{gnn_forward.5} parent=5 // pred_check_branch
        %253 = sbr.rel (%p250) target = $region12
      $region11: #{gnn_forward.5} parent=5 // pred_region
        %s254 = ssub.s32 %s27, 1
        // Predicated region
        $region13: #{gnn_forward.5} parent=11 // pred_check
          %p255 = pneg %p172
        $region14: #{gnn_forward.5} parent=11 // pred_check_branch
          %257 = sbr.rel (%p255) target = $region16
        $region15: #{gnn_forward.5} parent=11 // pred_region
          _
        $region16: #{gnn_forward.5} parent=11 // pred_fallthru
          _
        // Predicated region
        $region17: #{gnn_forward.5} parent=11 // pred_check
          %p258 = pneg %p193
        $region18: #{gnn_forward.5} parent=11 // pred_check_branch
          %260 = sbr.rel (%p258) target = $region20
        $region19: #{gnn_forward.5} parent=11 // pred_region
          _
        $region20: #{gnn_forward.5} parent=11 // pred_fallthru
          _
        // Predicated region
        $region21: #{gnn_forward.5} parent=11 // pred_check
          %p261 = pneg %p214
        $region22: #{gnn_forward.5} parent=11 // pred_check_branch
          %263 = sbr.rel (%p261) target = $region24
        $region23: #{gnn_forward.5} parent=11 // pred_region
          _
        $region24: #{gnn_forward.5} parent=11 // pred_fallthru
          _
      $region12: #{gnn_forward.5} parent=5 // pred_fallthru
        _
      %p264 = scmp.lt.s32.totalorder %s27, 9
      // Predicated region
      $region25: #{gnn_forward.5} parent=5 // pred_check
        %p265 = pneg %p264
      $region26: #{gnn_forward.5} parent=5 // pred_check_branch
        %267 = sbr.rel (%p265) target = $region28
      $region27: #{gnn_forward.5} parent=5 // pred_region
        // Predicated region
        $region29: #{gnn_forward.5} parent=27 // pred_check
          %p268 = pneg %p77
        $region30: #{gnn_forward.5} parent=27 // pred_check_branch
          %270 = sbr.rel (%p268) target = $region32
        $region31: #{gnn_forward.5} parent=27 // pred_region
          %s271 = sand.u32 %s67, 1
          %s272 = sand.u32 %s67, 1
          %s273 = smul.addr %s272, 64
          %s274 = scalar_lea.vmem [#allocation6], %s273
          %s275 = sshra.s32 %s35, 7
          %s276 = sand.u32 %s35, 127
          %s277 = sadd.s32 %s275, %s34
          %s278 = smul.u32 %s277, 128
          %s279 = sshra.s32 %s35, 7
          %s280 = sand.u32 %s35, 127
          %s281 = sadd.s32 %s278, %s280
          %s282 = sld [smem:[#allocation4 + %s281]]
          %s283 = smul.u32 16, %s34
          %s284 = smul.addr %s283, 3
          %s285 = sadd.s32 %s282, %s284
          %s286 = smul.addr %s285, 4
          %s287 = scalar_lea.vmem %s2, %s286
          // Predicated region
          $region33: #{gnn_forward.5} parent=31 // pred_check
            _
          $region34: #{gnn_forward.5} parent=31 // pred_check_branch
            %289 = sbr.rel (0) target = $region36
          $region35: #{gnn_forward.5} parent=31 // pred_region
            // Predicated region
            $region37: #{gnn_forward.5} parent=35 // pred_check
              _
            $region38: #{gnn_forward.5} parent=35 // pred_check_branch
              %291 = sbr.rel target = $region40
            $region39: #{gnn_forward.5} parent=35 // pred_region
              // Predicated region
              $region52: #{gnn_forward.5} parent=39 // pred_check
                _
              $region53: #{gnn_forward.5} parent=39 // pred_check_branch
                %337 = sbr.rel (0) target = $region55
              $region54: #{gnn_forward.5} parent=39 // pred_region
                loop: start=0, step=1, limit=1
                $region56: #{gnn_forward.5} parent=54 // loop_pre_header
                  _
                $region57: #{gnn_forward.5} parent=54 // loop_header
                  %s339 = sphi 0, %s343
                  %p340 = scmp.ge.s32.totalorder %s339, 1
                  %s344 = sphi %s287, %s287
                  %s345 = sphi %s274, %s274
                $region58: #{gnn_forward.5} parent=54 // loop_header_branch
                  %342 = sbr.rel (%p340) target = $region62
                $region59: #{gnn_forward.5} parent=54 // loop_body
                  _
                $region60: #{gnn_forward.5} parent=54 // loop_footer
                  %s343 = sadd.s32 1, %s339
                $region61: #{gnn_forward.5} parent=54 // loop_footer_branch
                  %338 = sbr.rel target = $region57
                $region62: #{gnn_forward.5} parent=54 // loop_exit
                  _
                %s347 = ssub.s32 16, 1
                loop: start=0, step=1, limit=1
                $region63: #{gnn_forward.5} parent=54 // loop_pre_header
                  _
                $region64: #{gnn_forward.5} parent=54 // loop_header
                  %s349 = sphi 0, %s353
                  %p350 = scmp.ge.s32.totalorder %s349, 1
                  %s354 = sphi %s287, %s287
                  %s355 = sphi %s274, %s274
                $region65: #{gnn_forward.5} parent=54 // loop_header_branch
                  %352 = sbr.rel (%p350) target = $region69
                $region66: #{gnn_forward.5} parent=54 // loop_body
                  %v356 = vld [vmem:[%s354] sm:%s347]
                  %357 = vst [vmem:[%s355] sm:%s347] %v356
                  %v358 = vld [vmem:[%s354 + $0xc] sm:%s347]
                  %359 = vst [vmem:[%s355 + $0x4] sm:%s347] %v358
                  %v360 = vld [vmem:[%s354 + $0x18] sm:%s347]
                  %361 = vst [vmem:[%s355 + $0x8] sm:%s347] %v360
                  %v362 = vld [vmem:[%s354 + $0x24] sm:%s347]
                  %363 = vst [vmem:[%s355 + $0xc] sm:%s347] %v362
                  %v364 = vld [vmem:[%s354 + $0x30] sm:%s347]
                  %365 = vst [vmem:[%s355 + $0x10] sm:%s347] %v364
                  %v366 = vld [vmem:[%s354 + $0x3c] sm:%s347]
                  %367 = vst [vmem:[%s355 + $0x14] sm:%s347] %v366
                  %v368 = vld [vmem:[%s354 + $0x48] sm:%s347]
                  %369 = vst [vmem:[%s355 + $0x18] sm:%s347] %v368
                  %v370 = vld [vmem:[%s354 + $0x54] sm:%s347]
                  %371 = vst [vmem:[%s355 + $0x1c] sm:%s347] %v370
                  %v372 = vld [vmem:[%s354 + $0x60] sm:%s347]
                  %373 = vst [vmem:[%s355 + $0x20] sm:%s347] %v372
                  %v374 = vld [vmem:[%s354 + $0x6c] sm:%s347]
                  %375 = vst [vmem:[%s355 + $0x24] sm:%s347] %v374
                  %v376 = vld [vmem:[%s354 + $0x78] sm:%s347]
                  %377 = vst [vmem:[%s355 + $0x28] sm:%s347] %v376
                  %v378 = vld [vmem:[%s354 + $0x84] sm:%s347]
                  %379 = vst [vmem:[%s355 + $0x2c] sm:%s347] %v378
                  %v380 = vld [vmem:[%s354 + $0x90] sm:%s347]
                  %381 = vst [vmem:[%s355 + $0x30] sm:%s347] %v380
                  %v382 = vld [vmem:[%s354 + $0x9c] sm:%s347]
                  %383 = vst [vmem:[%s355 + $0x34] sm:%s347] %v382
                  %v384 = vld [vmem:[%s354 + $0xa8] sm:%s347]
                  %385 = vst [vmem:[%s355 + $0x38] sm:%s347] %v384
                  %v386 = vld [vmem:[%s354 + $0xb4] sm:%s347]
                  %387 = vst [vmem:[%s355 + $0x3c] sm:%s347] %v386
                $region67: #{gnn_forward.5} parent=54 // loop_footer
                  %s353 = sadd.s32 1, %s349
                $region68: #{gnn_forward.5} parent=54 // loop_footer_branch
                  %348 = sbr.rel target = $region64
                $region69: #{gnn_forward.5} parent=54 // loop_exit
                  _
              $region55: #{gnn_forward.5} parent=39 // pred_fallthru
                _
            $region40: #{gnn_forward.5} parent=35 // pred_fallthru
              _
            // Predicated region
            $region41: #{gnn_forward.5} parent=35 // pred_check
              _
            $region42: #{gnn_forward.5} parent=35 // pred_check_branch
              %293 = sbr.rel (0) target = $region44
            $region43: #{gnn_forward.5} parent=35 // pred_region
              %s295 = ssub.s32 16, 1
              loop: start=0, step=1, limit=1
              $region45: #{gnn_forward.5} parent=43 // loop_pre_header
                _
              $region46: #{gnn_forward.5} parent=43 // loop_header
                %s297 = sphi 0, %s301
                %p298 = scmp.ge.s32.totalorder %s297, 1
                %s302 = sphi %s287, %s287
                %s303 = sphi %s274, %s274
              $region47: #{gnn_forward.5} parent=43 // loop_header_branch
                %300 = sbr.rel (%p298) target = $region51
              $region48: #{gnn_forward.5} parent=43 // loop_body
                %v304 = vld [vmem:[%s302] sm:%s295]
                %305 = vst [vmem:[%s303] sm:%s295] %v304
                %v306 = vld [vmem:[%s302 + $0xc] sm:%s295]
                %307 = vst [vmem:[%s303 + $0x4] sm:%s295] %v306
                %v308 = vld [vmem:[%s302 + $0x18] sm:%s295]
                %309 = vst [vmem:[%s303 + $0x8] sm:%s295] %v308
                %v310 = vld [vmem:[%s302 + $0x24] sm:%s295]
                %311 = vst [vmem:[%s303 + $0xc] sm:%s295] %v310
                %v312 = vld [vmem:[%s302 + $0x30] sm:%s295]
                %313 = vst [vmem:[%s303 + $0x10] sm:%s295] %v312
                %v314 = vld [vmem:[%s302 + $0x3c] sm:%s295]
                %315 = vst [vmem:[%s303 + $0x14] sm:%s295] %v314
                %v316 = vld [vmem:[%s302 + $0x48] sm:%s295]
                %317 = vst [vmem:[%s303 + $0x18] sm:%s295] %v316
                %v318 = vld [vmem:[%s302 + $0x54] sm:%s295]
                %319 = vst [vmem:[%s303 + $0x1c] sm:%s295] %v318
                %v320 = vld [vmem:[%s302 + $0x60] sm:%s295]
                %321 = vst [vmem:[%s303 + $0x20] sm:%s295] %v320
                %v322 = vld [vmem:[%s302 + $0x6c] sm:%s295]
                %323 = vst [vmem:[%s303 + $0x24] sm:%s295] %v322
                %v324 = vld [vmem:[%s302 + $0x78] sm:%s295]
                %325 = vst [vmem:[%s303 + $0x28] sm:%s295] %v324
                %v326 = vld [vmem:[%s302 + $0x84] sm:%s295]
                %327 = vst [vmem:[%s303 + $0x2c] sm:%s295] %v326
                %v328 = vld [vmem:[%s302 + $0x90] sm:%s295]
                %329 = vst [vmem:[%s303 + $0x30] sm:%s295] %v328
                %v330 = vld [vmem:[%s302 + $0x9c] sm:%s295]
                %331 = vst [vmem:[%s303 + $0x34] sm:%s295] %v330
                %v332 = vld [vmem:[%s302 + $0xa8] sm:%s295]
                %333 = vst [vmem:[%s303 + $0x38] sm:%s295] %v332
                %v334 = vld [vmem:[%s302 + $0xb4] sm:%s295]
                %335 = vst [vmem:[%s303 + $0x3c] sm:%s295] %v334
              $region49: #{gnn_forward.5} parent=43 // loop_footer
                %s301 = sadd.s32 1, %s297
              $region50: #{gnn_forward.5} parent=43 // loop_footer_branch
                %296 = sbr.rel target = $region46
              $region51: #{gnn_forward.5} parent=43 // loop_exit
                _
            $region44: #{gnn_forward.5} parent=35 // pred_fallthru
              _
          $region36: #{gnn_forward.5} parent=31 // pred_fallthru
            _
          %388 = vnop
        $region32: #{gnn_forward.5} parent=27 // pred_fallthru
          _
        // Predicated region
        $region70: #{gnn_forward.5} parent=27 // pred_check
          %p389 = pneg %p119
        $region71: #{gnn_forward.5} parent=27 // pred_check_branch
          %391 = sbr.rel (%p389) target = $region73
        $region72: #{gnn_forward.5} parent=27 // pred_region
          %s392 = sshra.s32 %s35, 7
          %s393 = sand.u32 %s35, 127
          %s394 = sadd.s32 %s392, %s34
          %s395 = smul.u32 %s394, 128
          %s396 = sshra.s32 %s35, 7
          %s397 = sand.u32 %s35, 127
          %s398 = sadd.s32 %s395, %s397
          %s399 = sld [smem:[#allocation4 + %s398]]
          %s400 = smul.u32 16, %s399
          %p401 = scmp.lt.s32.totalorder %s400, 47
          %s402 = scalar_select %p401, %s400, 47
          %s403 = smul.addr %s402, 4
          %s404 = smul.addr %s403, 4
          %s405 = scalar_lea.vmem %s3, %s404
          %s406 = sshra.s32 %s35, 7
          %s407 = sand.u32 %s35, 127
          %s408 = sadd.s32 %s406, %s34
          %s409 = smul.u32 %s408, 128
          %s410 = sshra.s32 %s35, 7
          %s411 = sand.u32 %s35, 127
          %s412 = sadd.s32 %s409, %s411
          %s413 = sld [smem:[#allocation4 + %s412]]
          %s414 = smul.u32 16, %s413
        $region73: #{gnn_forward.5} parent=27 // pred_fallthru
          _
        // Predicated region
        $region74: #{gnn_forward.5} parent=27 // pred_check
          %p415 = pneg %p145
        $region75: #{gnn_forward.5} parent=27 // pred_check_branch
          %417 = sbr.rel (%p415) target = $region77
        $region76: #{gnn_forward.5} parent=27 // pred_region
          %s418 = smul.u32 16, %s34
          %p419 = scmp.lt.s32.totalorder %s418, 47
          %s420 = scalar_select %p419, %s418, 47
          %s421 = smul.addr %s420, 4
          %s422 = smul.addr %s421, 4
          %s423 = scalar_lea.vmem %s4, %s422
          %s424 = smul.u32 16, %s34
        $region77: #{gnn_forward.5} parent=27 // pred_fallthru
          _
      $region28: #{gnn_forward.5} parent=5 // pred_fallthru
        _
      %p425 = scmp.le.s32.totalorder 1, %s27
      %p426 = scmp.lt.s32.totalorder %s27, 10
      %p427 = pnand %p425, %p426
      %p428 = pneg %p427
      // Predicated region
      $region78: #{gnn_forward.5} parent=5 // pred_check
        _
      $region79: #{gnn_forward.5} parent=5 // pred_check_branch
        %430 = sbr.rel (%p427) target = $region81
      $region80: #{gnn_forward.5} parent=5 // pred_region
        %s431 = ssub.s32 %s27, 1
        %s432 = sand.u32 %s70, 1
        %s433 = sand.u32 %s70, 1
        %s434 = smul.addr %s433, 64
        %s435 = scalar_lea.vmem [#allocation6], %s434
        // Predicated region
        $region82: #{gnn_forward.5} parent=80 // pred_check
          %p436 = pneg %p83
        $region83: #{gnn_forward.5} parent=80 // pred_check_branch
          %438 = sbr.rel (%p436) target = $region85
        $region84: #{gnn_forward.5} parent=80 // pred_region
          _
        $region85: #{gnn_forward.5} parent=80 // pred_fallthru
          _
        %s439 = sand.u32 %s70, 1
        %s440 = sand.u32 %s70, 1
        %s441 = smul.addr %s440, 64
        %s442 = scalar_lea.vmem [#allocation6], %s441
        %p443 = pneg %p83
        %p444 = pneg %p80
        %s445 = sshra.s32 %s37, 7
        %s446 = sand.u32 %s37, 127
        %s447 = sadd.s32 %s445, %s36
        %s448 = smul.u32 %s447, 128
        %s449 = sshra.s32 %s37, 7
        %s450 = sand.u32 %s37, 127
        %s451 = sadd.s32 %s448, %s450
        %s452 = sld [smem:[#allocation4 + %s451]]
        %s453 = smul.u32 16, %s452
        %p454 = scmp.lt.s32.totalorder %s453, 47
        %s455 = scalar_select %p454, %s453, 47
        %s456 = smul.addr %s455, 4
        %s457 = smul.addr %s456, 4
        %s458 = scalar_lea.vmem %s3, %s457
        %p459 = pneg %p125
        %p460 = pneg %p122
        %s461 = smul.u32 16, %s36
        %p462 = scmp.lt.s32.totalorder %s461, 47
        %s463 = scalar_select %p462, %s461, 47
        %s464 = smul.addr %s463, 4
        %s465 = smul.addr %s464, 4
        %s466 = scalar_lea.vmem %s4, %s465
        %p467 = pneg %p151
        %p468 = pneg %p148
        %p469 = pneg %p172
        %p470 = pneg %p169
        %p471 = pneg %p193
        %p472 = pneg %p190
        %p473 = pneg %p214
        %p474 = pneg %p211
        %p475 = pneg %p240
        %p476 = pneg %p237
        %s477 = smul.u32 16, %s36
        %p478 = scmp.lt.s32.totalorder %s477, 47
        %s479 = scalar_select %p478, %s477, 47
        %s480 = smul.addr %s479, 4
        %s481 = smul.addr %s480, 4
        %s482 = scalar_lea.vmem %s8, %s481
        %s483 = sshra.s32 %s37, 7
        %s484 = sand.u32 %s37, 127
        %s485 = sadd.s32 %s483, %s36
        %s486 = smul.u32 %s485, 128
        %s487 = sshra.s32 %s37, 7
        %s488 = sand.u32 %s37, 127
        %s489 = sadd.s32 %s486, %s488
        %s490 = sld [smem:[#allocation4 + %s489]]
        %s491 = smul.u32 16, %s36
        %s492 = sshra.s32 %s37, 7
        %s493 = sand.u32 %s37, 127
        %s494 = sadd.s32 %s492, %s36
        %s495 = smul.u32 %s494, 128
        %s496 = sshra.s32 %s37, 7
        %s497 = sand.u32 %s37, 127
        %s498 = sadd.s32 %s495, %s497
        %s499 = sld [smem:[#allocation4 + %s498]]
        %s500 = smul.u32 16, %s499
        %p501 = scmp.lt.s32.totalorder %s500, 47
        %s502 = scalar_select %p501, %s500, 47
        %s503 = smul.addr %s502, 4
        %s504 = smul.addr %s503, 4
        %s505 = scalar_lea.vmem %s3, %s504
        %s506 = sshra.s32 %s37, 7
        %s507 = sand.u32 %s37, 127
        %s508 = sadd.s32 %s506, %s36
        %s509 = smul.u32 %s508, 128
        %s510 = sshra.s32 %s37, 7
        %s511 = sand.u32 %s37, 127
        %s512 = sadd.s32 %s509, %s511
        %s513 = sld [smem:[#allocation4 + %s512]]
        %s514 = smul.u32 16, %s513
        %s515 = smul.u32 16, %s36
        %p516 = scmp.lt.s32.totalorder %s515, 47
        %s517 = scalar_select %p516, %s515, 47
        %s518 = smul.addr %s517, 4
        %s519 = smul.addr %s518, 4
        %s520 = scalar_lea.vmem %s4, %s519
        %s521 = smul.u32 16, %s36
        %s522 = smul.u32 16, %s36
        %p523 = scmp.lt.s32.totalorder %s522, 47
        %s524 = scalar_select %p523, %s522, 47
        %s525 = smul.addr %s524, 4
        %s526 = smul.addr %s525, 4
        %s527 = scalar_lea.vmem %s8, %s526
        %s528 = smul.u32 16, %s36
        %p529 = scmp.eq.s32.totalorder %s37, 0
        // Predicated region
        $region86: #{gnn_forward.5} parent=80 // pred_check
          %p530 = pneg %p529
        $region87: #{gnn_forward.5} parent=80 // pred_check_branch
          %532 = sbr.rel (%p530) target = $region89
        $region88: #{gnn_forward.5} parent=80 // pred_region
          %533 = vst [vmem:[#allocation2] sm:$0xff] 0.0
          %534 = vst [vmem:[#allocation2 + $0x8] sm:$0xff] 0.0
          %535 = vst [vmem:[#allocation2 + $0x10] sm:$0xff] 0.0
          %536 = vst [vmem:[#allocation2 + $0x18] sm:$0xff] 0.0
          %537 = vst [vmem:[#allocation2 + $0x20] sm:$0xff] 0.0
          %538 = vst [vmem:[#allocation2 + $0x28] sm:$0xff] 0.0
          %539 = vst [vmem:[#allocation2 + $0x30] sm:$0xff] 0.0
          %540 = vst [vmem:[#allocation2 + $0x38] sm:$0xff] 0.0
          %541 = vst [vmem:[#allocation2 + $0x40] sm:$0xff] 0.0
          %542 = vst [vmem:[#allocation2 + $0x48] sm:$0xff] 0.0
          %543 = vst [vmem:[#allocation2 + $0x50] sm:$0xff] 0.0
          %544 = vst [vmem:[#allocation2 + $0x58] sm:$0xff] 0.0
          %545 = vst [vmem:[#allocation2 + $0x60] sm:$0xff] 0.0
          %546 = vst [vmem:[#allocation2 + $0x68] sm:$0xff] 0.0
          %547 = vst [vmem:[#allocation2 + $0x70] sm:$0xff] 0.0
          %548 = vst [vmem:[#allocation2 + $0x78] sm:$0xff] 0.0
          %549 = vst [vmem:[#allocation2 + $0x80] sm:$0xff] 0.0
          %550 = vst [vmem:[#allocation2 + $0x88] sm:$0xff] 0.0
          %551 = vst [vmem:[#allocation2 + $0x90] sm:$0xff] 0.0
          %552 = vst [vmem:[#allocation2 + $0x98] sm:$0xff] 0.0
          %553 = vst [vmem:[#allocation2 + $0xa0] sm:$0xff] 0.0
          %554 = vst [vmem:[#allocation2 + $0xa8] sm:$0xff] 0.0
          %555 = vst [vmem:[#allocation2 + $0xb0] sm:$0xff] 0.0
          %556 = vst [vmem:[#allocation2 + $0xb8] sm:$0xff] 0.0
          %557 = vst [vmem:[#allocation2 + $0xc0] sm:$0xff] 0.0
          %558 = vst [vmem:[#allocation2 + $0xc8] sm:$0xff] 0.0
          %559 = vst [vmem:[#allocation2 + $0xd0] sm:$0xff] 0.0
          %560 = vst [vmem:[#allocation2 + $0xd8] sm:$0xff] 0.0
          %561 = vst [vmem:[#allocation2 + $0xe0] sm:$0xff] 0.0
          %562 = vst [vmem:[#allocation2 + $0xe8] sm:$0xff] 0.0
          %563 = vst [vmem:[#allocation2 + $0xf0] sm:$0xff] 0.0
          %564 = vst [vmem:[#allocation2 + $0xf8] sm:$0xff] 0.0
          %565 = vst [vmem:[#allocation2 + $0x100] sm:$0xff] 0.0
          %566 = vst [vmem:[#allocation2 + $0x108] sm:$0xff] 0.0
          %567 = vst [vmem:[#allocation2 + $0x110] sm:$0xff] 0.0
          %568 = vst [vmem:[#allocation2 + $0x118] sm:$0xff] 0.0
          %569 = vst [vmem:[#allocation2 + $0x120] sm:$0xff] 0.0
          %570 = vst [vmem:[#allocation2 + $0x128] sm:$0xff] 0.0
          %571 = vst [vmem:[#allocation2 + $0x130] sm:$0xff] 0.0
          %572 = vst [vmem:[#allocation2 + $0x138] sm:$0xff] 0.0
          %573 = vst [vmem:[#allocation2 + $0x140] sm:$0xff] 0.0
          %574 = vst [vmem:[#allocation2 + $0x148] sm:$0xff] 0.0
          %575 = vst [vmem:[#allocation2 + $0x150] sm:$0xff] 0.0
          %576 = vst [vmem:[#allocation2 + $0x158] sm:$0xff] 0.0
          %577 = vst [vmem:[#allocation2 + $0x160] sm:$0xff] 0.0
          %578 = vst [vmem:[#allocation2 + $0x168] sm:$0xff] 0.0
          %579 = vst [vmem:[#allocation2 + $0x170] sm:$0xff] 0.0
          %580 = vst [vmem:[#allocation2 + $0x178] sm:$0xff] 0.0
          %581 = vst [vmem:[#allocation2 + $0x180] sm:$0xff] 0.0
          %582 = vst [vmem:[#allocation2 + $0x188] sm:$0xff] 0.0
          %583 = vst [vmem:[#allocation2 + $0x190] sm:$0xff] 0.0
          %584 = vst [vmem:[#allocation2 + $0x198] sm:$0xff] 0.0
          %585 = vst [vmem:[#allocation2 + $0x1a0] sm:$0xff] 0.0
          %586 = vst [vmem:[#allocation2 + $0x1a8] sm:$0xff] 0.0
          %587 = vst [vmem:[#allocation2 + $0x1b0] sm:$0xff] 0.0
          %588 = vst [vmem:[#allocation2 + $0x1b8] sm:$0xff] 0.0
          %589 = vst [vmem:[#allocation2 + $0x1c0] sm:$0xff] 0.0
          %590 = vst [vmem:[#allocation2 + $0x1c8] sm:$0xff] 0.0
          %591 = vst [vmem:[#allocation2 + $0x1d0] sm:$0xff] 0.0
          %592 = vst [vmem:[#allocation2 + $0x1d8] sm:$0xff] 0.0
          %593 = vst [vmem:[#allocation2 + $0x1e0] sm:$0xff] 0.0
          %594 = vst [vmem:[#allocation2 + $0x1e8] sm:$0xff] 0.0
          %595 = vst [vmem:[#allocation2 + $0x1f0] sm:$0xff] 0.0
          %596 = vst [vmem:[#allocation2 + $0x1f8] sm:$0xff] 0.0
        $region89: #{gnn_forward.5} parent=80 // pred_fallthru
          _
        %s597 = sshra.s32 %s37, 7
        %s598 = sand.u32 %s37, 127
        %s599 = sadd.s32 %s597, %s36
        %s600 = smul.u32 %s599, 128
        %s601 = sshra.s32 %s37, 7
        %s602 = sand.u32 %s37, 127
        %s603 = sadd.s32 %s600, %s602
        %s604 = sld [smem:[#allocation5 + %s603]]
        %p605 = scmp.gt.s32.totalorder %s604, 0
        // Predicated region
        $region90: #{gnn_forward.5} parent=80 // pred_check
          %p606 = pneg %p605
        $region91: #{gnn_forward.5} parent=80 // pred_check_branch
          %608 = sbr.rel (%p606) target = $region93
        $region92: #{gnn_forward.5} parent=80 // pred_region
          %v609 = vld [vmem:[#allocation2] sm:$0xff]
          %v610 = vld [vmem:[#allocation2 + $0x8] sm:$0xff]
          %v611 = vld [vmem:[#allocation2 + $0x10] sm:$0xff]
          %v612 = vld [vmem:[#allocation2 + $0x18] sm:$0xff]
          %v613 = vld [vmem:[#allocation2 + $0x20] sm:$0xff]
          %v614 = vld [vmem:[#allocation2 + $0x28] sm:$0xff]
          %v615 = vld [vmem:[#allocation2 + $0x30] sm:$0xff]
          %v616 = vld [vmem:[#allocation2 + $0x38] sm:$0xff]
          %v617 = vld [vmem:[#allocation2 + $0x40] sm:$0xff]
          %v618 = vld [vmem:[#allocation2 + $0x48] sm:$0xff]
          %v619 = vld [vmem:[#allocation2 + $0x50] sm:$0xff]
          %v620 = vld [vmem:[#allocation2 + $0x58] sm:$0xff]
          %v621 = vld [vmem:[#allocation2 + $0x60] sm:$0xff]
          %v622 = vld [vmem:[#allocation2 + $0x68] sm:$0xff]
          %v623 = vld [vmem:[#allocation2 + $0x70] sm:$0xff]
          %v624 = vld [vmem:[#allocation2 + $0x78] sm:$0xff]
          %v625 = vld [vmem:[#allocation2 + $0x80] sm:$0xff]
          %v626 = vld [vmem:[#allocation2 + $0x88] sm:$0xff]
          %v627 = vld [vmem:[#allocation2 + $0x90] sm:$0xff]
          %v628 = vld [vmem:[#allocation2 + $0x98] sm:$0xff]
          %v629 = vld [vmem:[#allocation2 + $0xa0] sm:$0xff]
          %v630 = vld [vmem:[#allocation2 + $0xa8] sm:$0xff]
          %v631 = vld [vmem:[#allocation2 + $0xb0] sm:$0xff]
          %v632 = vld [vmem:[#allocation2 + $0xb8] sm:$0xff]
          %v633 = vld [vmem:[#allocation2 + $0xc0] sm:$0xff]
          %v634 = vld [vmem:[#allocation2 + $0xc8] sm:$0xff]
          %v635 = vld [vmem:[#allocation2 + $0xd0] sm:$0xff]
          %v636 = vld [vmem:[#allocation2 + $0xd8] sm:$0xff]
          %v637 = vld [vmem:[#allocation2 + $0xe0] sm:$0xff]
          %v638 = vld [vmem:[#allocation2 + $0xe8] sm:$0xff]
          %v639 = vld [vmem:[#allocation2 + $0xf0] sm:$0xff]
          %v640 = vld [vmem:[#allocation2 + $0xf8] sm:$0xff]
          %v641 = vld [vmem:[#allocation2 + $0x100] sm:$0xff]
          %v642 = vld [vmem:[#allocation2 + $0x108] sm:$0xff]
          %v643 = vld [vmem:[#allocation2 + $0x110] sm:$0xff]
          %v644 = vld [vmem:[#allocation2 + $0x118] sm:$0xff]
          %v645 = vld [vmem:[#allocation2 + $0x120] sm:$0xff]
          %v646 = vld [vmem:[#allocation2 + $0x128] sm:$0xff]
          %v647 = vld [vmem:[#allocation2 + $0x130] sm:$0xff]
          %v648 = vld [vmem:[#allocation2 + $0x138] sm:$0xff]
          %v649 = vld [vmem:[#allocation2 + $0x140] sm:$0xff]
          %v650 = vld [vmem:[#allocation2 + $0x148] sm:$0xff]
          %v651 = vld [vmem:[#allocation2 + $0x150] sm:$0xff]
          %v652 = vld [vmem:[#allocation2 + $0x158] sm:$0xff]
          %v653 = vld [vmem:[#allocation2 + $0x160] sm:$0xff]
          %v654 = vld [vmem:[#allocation2 + $0x168] sm:$0xff]
          %v655 = vld [vmem:[#allocation2 + $0x170] sm:$0xff]
          %v656 = vld [vmem:[#allocation2 + $0x178] sm:$0xff]
          %v657 = vld [vmem:[#allocation2 + $0x180] sm:$0xff]
          %v658 = vld [vmem:[#allocation2 + $0x188] sm:$0xff]
          %v659 = vld [vmem:[#allocation2 + $0x190] sm:$0xff]
          %v660 = vld [vmem:[#allocation2 + $0x198] sm:$0xff]
          %v661 = vld [vmem:[#allocation2 + $0x1a0] sm:$0xff]
          %v662 = vld [vmem:[#allocation2 + $0x1a8] sm:$0xff]
          %v663 = vld [vmem:[#allocation2 + $0x1b0] sm:$0xff]
          %v664 = vld [vmem:[#allocation2 + $0x1b8] sm:$0xff]
          %v665 = vld [vmem:[#allocation2 + $0x1c0] sm:$0xff]
          %v666 = vld [vmem:[#allocation2 + $0x1c8] sm:$0xff]
          %v667 = vld [vmem:[#allocation2 + $0x1d0] sm:$0xff]
          %v668 = vld [vmem:[#allocation2 + $0x1d8] sm:$0xff]
          %v669 = vld [vmem:[#allocation2 + $0x1e0] sm:$0xff]
          %v670 = vld [vmem:[#allocation2 + $0x1e8] sm:$0xff]
          %v671 = vld [vmem:[#allocation2 + $0x1f0] sm:$0xff]
          %v672 = vld [vmem:[#allocation2 + $0x1f8] sm:$0xff]
          %v673 = vld [vmem:[%s435] sm:$0xf]
          %v674 = vld [vmem:[%s435 + $0x4] sm:$0xf]
          %v675 = vld [vmem:[%s435 + $0x8] sm:$0xf]
          %v676 = vld [vmem:[%s435 + $0xc] sm:$0xf]
          %v677 = vld [vmem:[%s435 + $0x10] sm:$0xf]
          %v678 = vld [vmem:[%s435 + $0x14] sm:$0xf]
          %v679 = vld [vmem:[%s435 + $0x18] sm:$0xf]
          %v680 = vld [vmem:[%s435 + $0x1c] sm:$0xf]
          %v681 = vld [vmem:[%s435 + $0x20] sm:$0xf]
          %v682 = vld [vmem:[%s435 + $0x24] sm:$0xf]
          %v683 = vld [vmem:[%s435 + $0x28] sm:$0xf]
          %v684 = vld [vmem:[%s435 + $0x2c] sm:$0xf]
          %v685 = vld [vmem:[%s435 + $0x30] sm:$0xf]
          %v686 = vld [vmem:[%s435 + $0x34] sm:$0xf]
          %v687 = vld [vmem:[%s435 + $0x38] sm:$0xf]
          %v688 = vld [vmem:[%s435 + $0x3c] sm:$0xf]
          %v689 = vld [vmem:[%s505] sm:$0xff]
          %v690 = vld [vmem:[%s505 + $0x8] sm:$0xff]
          %v691 = vld [vmem:[%s505 + $0x10] sm:$0xff]
          %v692 = vld [vmem:[%s505 + $0x18] sm:$0xff]
          %v693 = vld [vmem:[%s505 + $0x20] sm:$0xff]
          %v694 = vld [vmem:[%s505 + $0x28] sm:$0xff]
          %v695 = vld [vmem:[%s505 + $0x30] sm:$0xff]
          %v696 = vld [vmem:[%s505 + $0x38] sm:$0xff]
          %v697 = vld [vmem:[%s505 + $0x40] sm:$0xff]
          %v698 = vld [vmem:[%s505 + $0x48] sm:$0xff]
          %v699 = vld [vmem:[%s505 + $0x50] sm:$0xff]
          %v700 = vld [vmem:[%s505 + $0x58] sm:$0xff]
          %v701 = vld [vmem:[%s505 + $0x60] sm:$0xff]
          %v702 = vld [vmem:[%s505 + $0x68] sm:$0xff]
          %v703 = vld [vmem:[%s505 + $0x70] sm:$0xff]
          %v704 = vld [vmem:[%s505 + $0x78] sm:$0xff]
          %v705 = vld [vmem:[%s505 + $0x80] sm:$0xff]
          %v706 = vld [vmem:[%s505 + $0x88] sm:$0xff]
          %v707 = vld [vmem:[%s505 + $0x90] sm:$0xff]
          %v708 = vld [vmem:[%s505 + $0x98] sm:$0xff]
          %v709 = vld [vmem:[%s505 + $0xa0] sm:$0xff]
          %v710 = vld [vmem:[%s505 + $0xa8] sm:$0xff]
          %v711 = vld [vmem:[%s505 + $0xb0] sm:$0xff]
          %v712 = vld [vmem:[%s505 + $0xb8] sm:$0xff]
          %v713 = vld [vmem:[%s505 + $0xc0] sm:$0xff]
          %v714 = vld [vmem:[%s505 + $0xc8] sm:$0xff]
          %v715 = vld [vmem:[%s505 + $0xd0] sm:$0xff]
          %v716 = vld [vmem:[%s505 + $0xd8] sm:$0xff]
          %v717 = vld [vmem:[%s505 + $0xe0] sm:$0xff]
          %v718 = vld [vmem:[%s505 + $0xe8] sm:$0xff]
          %v719 = vld [vmem:[%s505 + $0xf0] sm:$0xff]
          %v720 = vld [vmem:[%s505 + $0xf8] sm:$0xff]
          %v737 = vunpack.c.l.b16 %v673
          %v738 = vunpack.c.l.b16 %v674
          %v739 = vunpack.c.l.b16 %v675
          %v740 = vunpack.c.l.b16 %v676
          %v741 = vunpack.c.l.b16 %v677
          %v742 = vunpack.c.l.b16 %v678
          %v743 = vunpack.c.l.b16 %v679
          %v744 = vunpack.c.l.b16 %v680
          %v745 = vunpack.c.l.b16 %v681
          %v746 = vunpack.c.l.b16 %v682
          %v747 = vunpack.c.l.b16 %v683
          %v748 = vunpack.c.l.b16 %v684
          %v749 = vunpack.c.l.b16 %v685
          %v750 = vunpack.c.l.b16 %v686
          %v751 = vunpack.c.l.b16 %v687
          %v752 = vunpack.c.l.b16 %v688
          %v753 = vpack.c.b16 %v738, %v737
          %v754 = vpack.c.b16 %v740, %v739
          %v755 = vpack.c.b16 %v742, %v741
          %v756 = vpack.c.b16 %v744, %v743
          %v757 = vpack.c.b16 %v746, %v745
          %v758 = vpack.c.b16 %v748, %v747
          %v759 = vpack.c.b16 %v750, %v749
          %v760 = vpack.c.b16 %v752, %v751
          %v801 = vunpack.c.l.b16 %v689
          %v802 = vunpack.c.h.b16 %v689
          %v803 = vunpack.c.l.b16 %v690
          %v804 = vunpack.c.h.b16 %v690
          %v805 = vunpack.c.l.b16 %v691
          %v806 = vunpack.c.h.b16 %v691
          %v807 = vunpack.c.l.b16 %v692
          %v808 = vunpack.c.h.b16 %v692
          %v809 = vunpack.c.l.b16 %v693
          %v810 = vunpack.c.h.b16 %v693
          %v811 = vunpack.c.l.b16 %v694
          %v812 = vunpack.c.h.b16 %v694
          %v813 = vunpack.c.l.b16 %v695
          %v814 = vunpack.c.h.b16 %v695
          %v815 = vunpack.c.l.b16 %v696
          %v816 = vunpack.c.h.b16 %v696
          %v817 = vunpack.c.l.b16 %v697
          %v818 = vunpack.c.h.b16 %v697
          %v819 = vunpack.c.l.b16 %v698
          %v820 = vunpack.c.h.b16 %v698
          %v821 = vunpack.c.l.b16 %v699
          %v822 = vunpack.c.h.b16 %v699
          %v823 = vunpack.c.l.b16 %v700
          %v824 = vunpack.c.h.b16 %v700
          %v825 = vunpack.c.l.b16 %v701
          %v826 = vunpack.c.h.b16 %v701
          %v827 = vunpack.c.l.b16 %v702
          %v828 = vunpack.c.h.b16 %v702
          %v829 = vunpack.c.l.b16 %v703
          %v830 = vunpack.c.h.b16 %v703
          %v831 = vunpack.c.l.b16 %v704
          %v832 = vunpack.c.h.b16 %v704
          %v833 = vunpack.c.l.b16 %v705
          %v834 = vunpack.c.h.b16 %v705
          %v835 = vunpack.c.l.b16 %v706
          %v836 = vunpack.c.h.b16 %v706
          %v837 = vunpack.c.l.b16 %v707
          %v838 = vunpack.c.h.b16 %v707
          %v839 = vunpack.c.l.b16 %v708
          %v840 = vunpack.c.h.b16 %v708
          %v841 = vunpack.c.l.b16 %v709
          %v842 = vunpack.c.h.b16 %v709
          %v843 = vunpack.c.l.b16 %v710
          %v844 = vunpack.c.h.b16 %v710
          %v845 = vunpack.c.l.b16 %v711
          %v846 = vunpack.c.h.b16 %v711
          %v847 = vunpack.c.l.b16 %v712
          %v848 = vunpack.c.h.b16 %v712
          %v849 = vunpack.c.l.b16 %v713
          %v850 = vunpack.c.h.b16 %v713
          %v851 = vunpack.c.l.b16 %v714
          %v852 = vunpack.c.h.b16 %v714
          %v853 = vunpack.c.l.b16 %v715
          %v854 = vunpack.c.h.b16 %v715
          %v855 = vunpack.c.l.b16 %v716
          %v856 = vunpack.c.h.b16 %v716
          %v857 = vunpack.c.l.b16 %v717
          %v858 = vunpack.c.h.b16 %v717
          %v859 = vunpack.c.l.b16 %v718
          %v860 = vunpack.c.h.b16 %v718
          %v861 = vunpack.c.l.b16 %v719
          %v862 = vunpack.c.h.b16 %v719
          %v863 = vunpack.c.l.b16 %v720
          %v864 = vunpack.c.h.b16 %v720
          %v865 = vpack.c.b16 %v805, %v801
          %v866 = vpack.c.b16 %v806, %v802
          %v867 = vpack.c.b16 %v807, %v803
          %v868 = vpack.c.b16 %v808, %v804
          %v869 = vpack.c.b16 %v813, %v809
          %v870 = vpack.c.b16 %v814, %v810
          %v871 = vpack.c.b16 %v815, %v811
          %v872 = vpack.c.b16 %v816, %v812
          %v873 = vpack.c.b16 %v821, %v817
          %v874 = vpack.c.b16 %v822, %v818
          %v875 = vpack.c.b16 %v823, %v819
          %v876 = vpack.c.b16 %v824, %v820
          %v877 = vpack.c.b16 %v829, %v825
          %v878 = vpack.c.b16 %v830, %v826
          %v879 = vpack.c.b16 %v831, %v827
          %v880 = vpack.c.b16 %v832, %v828
          %v881 = vpack.c.b16 %v837, %v833
          %v882 = vpack.c.b16 %v838, %v834
          %v883 = vpack.c.b16 %v839, %v835
          %v884 = vpack.c.b16 %v840, %v836
          %v885 = vpack.c.b16 %v845, %v841
          %v886 = vpack.c.b16 %v846, %v842
          %v887 = vpack.c.b16 %v847, %v843
          %v888 = vpack.c.b16 %v848, %v844
          %v889 = vpack.c.b16 %v853, %v849
          %v890 = vpack.c.b16 %v854, %v850
          %v891 = vpack.c.b16 %v855, %v851
          %v892 = vpack.c.b16 %v856, %v852
          %v893 = vpack.c.b16 %v861, %v857
          %v894 = vpack.c.b16 %v862, %v858
          %v895 = vpack.c.b16 %v863, %v859
          %v896 = vpack.c.b16 %v864, %v860
          %929 = vmatpush.bf16.msra.mxu0 %v893
          %930 = vmatpush.bf16.msra.mxu0 %v889
          %931 = vmatpush.bf16.msra.mxu0 %v885
          %932 = vmatpush.bf16.msra.mxu0 %v881
          %933 = vmatpush.bf16.msra.mxu0 %v877
          %934 = vmatpush.bf16.msra.mxu0 %v873
          %935 = vmatpush.bf16.msra.mxu0 %v869
          %936 = vmatpush.bf16.msra.mxu0 %v865
          %937 = vmatmul.bf16.gmra.mxu0 %v753
          %v938 = vpop.f32.mrf.mxu0
          %v939 = vadd.f32 0.0, %v938
          %v940 = vpop.f32.mrf.mxu0
          %v941 = vadd.f32 0.0, %v940
          %942 = vmatmul.bf16.gmra.mxu0 %v754
          %v943 = vpop.f32.mrf.mxu0
          %v944 = vadd.f32 0.0, %v943
          %v945 = vpop.f32.mrf.mxu0
          %v946 = vadd.f32 0.0, %v945
          %947 = vmatmul.bf16.gmra.mxu0 %v755
          %v948 = vpop.f32.mrf.mxu0
          %v949 = vadd.f32 0.0, %v948
          %v950 = vpop.f32.mrf.mxu0
          %v951 = vadd.f32 0.0, %v950
          %952 = vmatmul.bf16.gmra.mxu0 %v756
          %v953 = vpop.f32.mrf.mxu0
          %v954 = vadd.f32 0.0, %v953
          %v955 = vpop.f32.mrf.mxu0
          %v956 = vadd.f32 0.0, %v955
          %957 = vmatmul.bf16.gmra.mxu0 %v757
          %v958 = vpop.f32.mrf.mxu0
          %v959 = vadd.f32 0.0, %v958
          %v960 = vpop.f32.mrf.mxu0
          %v961 = vadd.f32 0.0, %v960
          %962 = vmatmul.bf16.gmra.mxu0 %v758
          %v963 = vpop.f32.mrf.mxu0
          %v964 = vadd.f32 0.0, %v963
          %v965 = vpop.f32.mrf.mxu0
          %v966 = vadd.f32 0.0, %v965
          %967 = vmatmul.bf16.gmra.mxu0 %v759
          %v968 = vpop.f32.mrf.mxu0
          %v969 = vadd.f32 0.0, %v968
          %v970 = vpop.f32.mrf.mxu0
          %v971 = vadd.f32 0.0, %v970
          %972 = vmatmul.bf16.gmra.mxu0 %v760
          %v973 = vpop.f32.mrf.mxu0
          %v974 = vadd.f32 0.0, %v973
          %v975 = vpop.f32.mrf.mxu0
          %v976 = vadd.f32 0.0, %v975
          %977 = vdwg.mxu0
          %978 = vmatpush.bf16.msra.mxu0 %v894
          %979 = vmatpush.bf16.msra.mxu0 %v890
          %980 = vmatpush.bf16.msra.mxu0 %v886
          %981 = vmatpush.bf16.msra.mxu0 %v882
          %982 = vmatpush.bf16.msra.mxu0 %v878
          %983 = vmatpush.bf16.msra.mxu0 %v874
          %984 = vmatpush.bf16.msra.mxu0 %v870
          %985 = vmatpush.bf16.msra.mxu0 %v866
          %986 = vmatmul.bf16.gmra.mxu0 %v753
          %v987 = vpop.f32.mrf.mxu0
          %v988 = vadd.f32 0.0, %v987
          %v989 = vpop.f32.mrf.mxu0
          %v990 = vadd.f32 0.0, %v989
          %991 = vmatmul.bf16.gmra.mxu0 %v754
          %v992 = vpop.f32.mrf.mxu0
          %v993 = vadd.f32 0.0, %v992
          %v994 = vpop.f32.mrf.mxu0
          %v995 = vadd.f32 0.0, %v994
          %996 = vmatmul.bf16.gmra.mxu0 %v755
          %v997 = vpop.f32.mrf.mxu0
          %v998 = vadd.f32 0.0, %v997
          %v999 = vpop.f32.mrf.mxu0
          %v1000 = vadd.f32 0.0, %v999
          %1001 = vmatmul.bf16.gmra.mxu0 %v756
          %v1002 = vpop.f32.mrf.mxu0
          %v1003 = vadd.f32 0.0, %v1002
          %v1004 = vpop.f32.mrf.mxu0
          %v1005 = vadd.f32 0.0, %v1004
          %1006 = vmatmul.bf16.gmra.mxu0 %v757
          %v1007 = vpop.f32.mrf.mxu0
          %v1008 = vadd.f32 0.0, %v1007
          %v1009 = vpop.f32.mrf.mxu0
          %v1010 = vadd.f32 0.0, %v1009
          %1011 = vmatmul.bf16.gmra.mxu0 %v758
          %v1012 = vpop.f32.mrf.mxu0
          %v1013 = vadd.f32 0.0, %v1012
          %v1014 = vpop.f32.mrf.mxu0
          %v1015 = vadd.f32 0.0, %v1014
          %1016 = vmatmul.bf16.gmra.mxu0 %v759
          %v1017 = vpop.f32.mrf.mxu0
          %v1018 = vadd.f32 0.0, %v1017
          %v1019 = vpop.f32.mrf.mxu0
          %v1020 = vadd.f32 0.0, %v1019
          %1021 = vmatmul.bf16.gmra.mxu0 %v760
          %v1022 = vpop.f32.mrf.mxu0
          %v1023 = vadd.f32 0.0, %v1022
          %v1024 = vpop.f32.mrf.mxu0
          %v1025 = vadd.f32 0.0, %v1024
          %1026 = vdwg.mxu0
          %1027 = vmatpush.bf16.msra.mxu0 %v895
          %1028 = vmatpush.bf16.msra.mxu0 %v891
          %1029 = vmatpush.bf16.msra.mxu0 %v887
          %1030 = vmatpush.bf16.msra.mxu0 %v883
          %1031 = vmatpush.bf16.msra.mxu0 %v879
          %1032 = vmatpush.bf16.msra.mxu0 %v875
          %1033 = vmatpush.bf16.msra.mxu0 %v871
          %1034 = vmatpush.bf16.msra.mxu0 %v867
          %1035 = vmatmul.bf16.gmra.mxu0 %v753
          %v1036 = vpop.f32.mrf.mxu0
          %v1037 = vadd.f32 0.0, %v1036
          %v1038 = vpop.f32.mrf.mxu0
          %v1039 = vadd.f32 0.0, %v1038
          %1040 = vmatmul.bf16.gmra.mxu0 %v754
          %v1041 = vpop.f32.mrf.mxu0
          %v1042 = vadd.f32 0.0, %v1041
          %v1043 = vpop.f32.mrf.mxu0
          %v1044 = vadd.f32 0.0, %v1043
          %1045 = vmatmul.bf16.gmra.mxu0 %v755
          %v1046 = vpop.f32.mrf.mxu0
          %v1047 = vadd.f32 0.0, %v1046
          %v1048 = vpop.f32.mrf.mxu0
          %v1049 = vadd.f32 0.0, %v1048
          %1050 = vmatmul.bf16.gmra.mxu0 %v756
          %v1051 = vpop.f32.mrf.mxu0
          %v1052 = vadd.f32 0.0, %v1051
          %v1053 = vpop.f32.mrf.mxu0
          %v1054 = vadd.f32 0.0, %v1053
          %1055 = vmatmul.bf16.gmra.mxu0 %v757
          %v1056 = vpop.f32.mrf.mxu0
          %v1057 = vadd.f32 0.0, %v1056
          %v1058 = vpop.f32.mrf.mxu0
          %v1059 = vadd.f32 0.0, %v1058
          %1060 = vmatmul.bf16.gmra.mxu0 %v758
          %v1061 = vpop.f32.mrf.mxu0
          %v1062 = vadd.f32 0.0, %v1061
          %v1063 = vpop.f32.mrf.mxu0
          %v1064 = vadd.f32 0.0, %v1063
          %1065 = vmatmul.bf16.gmra.mxu0 %v759
          %v1066 = vpop.f32.mrf.mxu0
          %v1067 = vadd.f32 0.0, %v1066
          %v1068 = vpop.f32.mrf.mxu0
          %v1069 = vadd.f32 0.0, %v1068
          %1070 = vmatmul.bf16.gmra.mxu0 %v760
          %v1071 = vpop.f32.mrf.mxu0
          %v1072 = vadd.f32 0.0, %v1071
          %v1073 = vpop.f32.mrf.mxu0
          %v1074 = vadd.f32 0.0, %v1073
          %1075 = vdwg.mxu0
          %1076 = vmatpush.bf16.msra.mxu0 %v896
          %1077 = vmatpush.bf16.msra.mxu0 %v892
          %1078 = vmatpush.bf16.msra.mxu0 %v888
          %1079 = vmatpush.bf16.msra.mxu0 %v884
          %1080 = vmatpush.bf16.msra.mxu0 %v880
          %1081 = vmatpush.bf16.msra.mxu0 %v876
          %1082 = vmatpush.bf16.msra.mxu0 %v872
          %1083 = vmatpush.bf16.msra.mxu0 %v868
          %1084 = vmatmul.bf16.gmra.mxu0 %v753
          %v1085 = vpop.f32.mrf.mxu0
          %v1086 = vadd.f32 0.0, %v1085
          %v1087 = vpop.f32.mrf.mxu0
          %v1088 = vadd.f32 0.0, %v1087
          %1089 = vmatmul.bf16.gmra.mxu0 %v754
          %v1090 = vpop.f32.mrf.mxu0
          %v1091 = vadd.f32 0.0, %v1090
          %v1092 = vpop.f32.mrf.mxu0
          %v1093 = vadd.f32 0.0, %v1092
          %1094 = vmatmul.bf16.gmra.mxu0 %v755
          %v1095 = vpop.f32.mrf.mxu0
          %v1096 = vadd.f32 0.0, %v1095
          %v1097 = vpop.f32.mrf.mxu0
          %v1098 = vadd.f32 0.0, %v1097
          %1099 = vmatmul.bf16.gmra.mxu0 %v756
          %v1100 = vpop.f32.mrf.mxu0
          %v1101 = vadd.f32 0.0, %v1100
          %v1102 = vpop.f32.mrf.mxu0
          %v1103 = vadd.f32 0.0, %v1102
          %1104 = vmatmul.bf16.gmra.mxu0 %v757
          %v1105 = vpop.f32.mrf.mxu0
          %v1106 = vadd.f32 0.0, %v1105
          %v1107 = vpop.f32.mrf.mxu0
          %v1108 = vadd.f32 0.0, %v1107
          %1109 = vmatmul.bf16.gmra.mxu0 %v758
          %v1110 = vpop.f32.mrf.mxu0
          %v1111 = vadd.f32 0.0, %v1110
          %v1112 = vpop.f32.mrf.mxu0
          %v1113 = vadd.f32 0.0, %v1112
          %1114 = vmatmul.bf16.gmra.mxu0 %v759
          %v1115 = vpop.f32.mrf.mxu0
          %v1116 = vadd.f32 0.0, %v1115
          %v1117 = vpop.f32.mrf.mxu0
          %v1118 = vadd.f32 0.0, %v1117
          %1119 = vmatmul.bf16.gmra.mxu0 %v760
          %v1120 = vpop.f32.mrf.mxu0
          %v1121 = vadd.f32 0.0, %v1120
          %v1122 = vpop.f32.mrf.mxu0
          %v1123 = vadd.f32 0.0, %v1122
          %1124 = vdwg.mxu0
          %v1125 = vadd.f32 %v609, %v939
          %v1126 = vadd.f32 %v610, %v988
          %v1127 = vadd.f32 %v611, %v1037
          %v1128 = vadd.f32 %v612, %v1086
          %v1129 = vadd.f32 %v613, %v941
          %v1130 = vadd.f32 %v614, %v990
          %v1131 = vadd.f32 %v615, %v1039
          %v1132 = vadd.f32 %v616, %v1088
          %v1133 = vadd.f32 %v617, %v944
          %v1134 = vadd.f32 %v618, %v993
          %v1135 = vadd.f32 %v619, %v1042
          %v1136 = vadd.f32 %v620, %v1091
          %v1137 = vadd.f32 %v621, %v946
          %v1138 = vadd.f32 %v622, %v995
          %v1139 = vadd.f32 %v623, %v1044
          %v1140 = vadd.f32 %v624, %v1093
          %v1141 = vadd.f32 %v625, %v949
          %v1142 = vadd.f32 %v626, %v998
          %v1143 = vadd.f32 %v627, %v1047
          %v1144 = vadd.f32 %v628, %v1096
          %v1145 = vadd.f32 %v629, %v951
          %v1146 = vadd.f32 %v630, %v1000
          %v1147 = vadd.f32 %v631, %v1049
          %v1148 = vadd.f32 %v632, %v1098
          %v1149 = vadd.f32 %v633, %v954
          %v1150 = vadd.f32 %v634, %v1003
          %v1151 = vadd.f32 %v635, %v1052
          %v1152 = vadd.f32 %v636, %v1101
          %v1153 = vadd.f32 %v637, %v956
          %v1154 = vadd.f32 %v638, %v1005
          %v1155 = vadd.f32 %v639, %v1054
          %v1156 = vadd.f32 %v640, %v1103
          %v1157 = vadd.f32 %v641, %v959
          %v1158 = vadd.f32 %v642, %v1008
          %v1159 = vadd.f32 %v643, %v1057
          %v1160 = vadd.f32 %v644, %v1106
          %v1161 = vadd.f32 %v645, %v961
          %v1162 = vadd.f32 %v646, %v1010
          %v1163 = vadd.f32 %v647, %v1059
          %v1164 = vadd.f32 %v648, %v1108
          %v1165 = vadd.f32 %v649, %v964
          %v1166 = vadd.f32 %v650, %v1013
          %v1167 = vadd.f32 %v651, %v1062
          %v1168 = vadd.f32 %v652, %v1111
          %v1169 = vadd.f32 %v653, %v966
          %v1170 = vadd.f32 %v654, %v1015
          %v1171 = vadd.f32 %v655, %v1064
          %v1172 = vadd.f32 %v656, %v1113
          %v1173 = vadd.f32 %v657, %v969
          %v1174 = vadd.f32 %v658, %v1018
          %v1175 = vadd.f32 %v659, %v1067
          %v1176 = vadd.f32 %v660, %v1116
          %v1177 = vadd.f32 %v661, %v971
          %v1178 = vadd.f32 %v662, %v1020
          %v1179 = vadd.f32 %v663, %v1069
          %v1180 = vadd.f32 %v664, %v1118
          %v1181 = vadd.f32 %v665, %v974
          %v1182 = vadd.f32 %v666, %v1023
          %v1183 = vadd.f32 %v667, %v1072
          %v1184 = vadd.f32 %v668, %v1121
          %v1185 = vadd.f32 %v669, %v976
          %v1186 = vadd.f32 %v670, %v1025
          %v1187 = vadd.f32 %v671, %v1074
          %v1188 = vadd.f32 %v672, %v1123
          %1189 = vst [vmem:[#allocation2] sm:$0xff] %v1125
          %1190 = vst [vmem:[#allocation2 + $0x8] sm:$0xff] %v1126
          %1191 = vst [vmem:[#allocation2 + $0x10] sm:$0xff] %v1127
          %1192 = vst [vmem:[#allocation2 + $0x18] sm:$0xff] %v1128
          %1193 = vst [vmem:[#allocation2 + $0x20] sm:$0xff] %v1129
          %1194 = vst [vmem:[#allocation2 + $0x28] sm:$0xff] %v1130
          %1195 = vst [vmem:[#allocation2 + $0x30] sm:$0xff] %v1131
          %1196 = vst [vmem:[#allocation2 + $0x38] sm:$0xff] %v1132
          %1197 = vst [vmem:[#allocation2 + $0x40] sm:$0xff] %v1133
          %1198 = vst [vmem:[#allocation2 + $0x48] sm:$0xff] %v1134
          %1199 = vst [vmem:[#allocation2 + $0x50] sm:$0xff] %v1135
          %1200 = vst [vmem:[#allocation2 + $0x58] sm:$0xff] %v1136
          %1201 = vst [vmem:[#allocation2 + $0x60] sm:$0xff] %v1137
          %1202 = vst [vmem:[#allocation2 + $0x68] sm:$0xff] %v1138
          %1203 = vst [vmem:[#allocation2 + $0x70] sm:$0xff] %v1139
          %1204 = vst [vmem:[#allocation2 + $0x78] sm:$0xff] %v1140
          %1205 = vst [vmem:[#allocation2 + $0x80] sm:$0xff] %v1141
          %1206 = vst [vmem:[#allocation2 + $0x88] sm:$0xff] %v1142
          %1207 = vst [vmem:[#allocation2 + $0x90] sm:$0xff] %v1143
          %1208 = vst [vmem:[#allocation2 + $0x98] sm:$0xff] %v1144
          %1209 = vst [vmem:[#allocation2 + $0xa0] sm:$0xff] %v1145
          %1210 = vst [vmem:[#allocation2 + $0xa8] sm:$0xff] %v1146
          %1211 = vst [vmem:[#allocation2 + $0xb0] sm:$0xff] %v1147
          %1212 = vst [vmem:[#allocation2 + $0xb8] sm:$0xff] %v1148
          %1213 = vst [vmem:[#allocation2 + $0xc0] sm:$0xff] %v1149
          %1214 = vst [vmem:[#allocation2 + $0xc8] sm:$0xff] %v1150
          %1215 = vst [vmem:[#allocation2 + $0xd0] sm:$0xff] %v1151
          %1216 = vst [vmem:[#allocation2 + $0xd8] sm:$0xff] %v1152
          %1217 = vst [vmem:[#allocation2 + $0xe0] sm:$0xff] %v1153
          %1218 = vst [vmem:[#allocation2 + $0xe8] sm:$0xff] %v1154
          %1219 = vst [vmem:[#allocation2 + $0xf0] sm:$0xff] %v1155
          %1220 = vst [vmem:[#allocation2 + $0xf8] sm:$0xff] %v1156
          %1221 = vst [vmem:[#allocation2 + $0x100] sm:$0xff] %v1157
          %1222 = vst [vmem:[#allocation2 + $0x108] sm:$0xff] %v1158
          %1223 = vst [vmem:[#allocation2 + $0x110] sm:$0xff] %v1159
          %1224 = vst [vmem:[#allocation2 + $0x118] sm:$0xff] %v1160
          %1225 = vst [vmem:[#allocation2 + $0x120] sm:$0xff] %v1161
          %1226 = vst [vmem:[#allocation2 + $0x128] sm:$0xff] %v1162
          %1227 = vst [vmem:[#allocation2 + $0x130] sm:$0xff] %v1163
          %1228 = vst [vmem:[#allocation2 + $0x138] sm:$0xff] %v1164
          %1229 = vst [vmem:[#allocation2 + $0x140] sm:$0xff] %v1165
          %1230 = vst [vmem:[#allocation2 + $0x148] sm:$0xff] %v1166
          %1231 = vst [vmem:[#allocation2 + $0x150] sm:$0xff] %v1167
          %1232 = vst [vmem:[#allocation2 + $0x158] sm:$0xff] %v1168
          %1233 = vst [vmem:[#allocation2 + $0x160] sm:$0xff] %v1169
          %1234 = vst [vmem:[#allocation2 + $0x168] sm:$0xff] %v1170
          %1235 = vst [vmem:[#allocation2 + $0x170] sm:$0xff] %v1171
          %1236 = vst [vmem:[#allocation2 + $0x178] sm:$0xff] %v1172
          %1237 = vst [vmem:[#allocation2 + $0x180] sm:$0xff] %v1173
          %1238 = vst [vmem:[#allocation2 + $0x188] sm:$0xff] %v1174
          %1239 = vst [vmem:[#allocation2 + $0x190] sm:$0xff] %v1175
          %1240 = vst [vmem:[#allocation2 + $0x198] sm:$0xff] %v1176
          %1241 = vst [vmem:[#allocation2 + $0x1a0] sm:$0xff] %v1177
          %1242 = vst [vmem:[#allocation2 + $0x1a8] sm:$0xff] %v1178
          %1243 = vst [vmem:[#allocation2 + $0x1b0] sm:$0xff] %v1179
          %1244 = vst [vmem:[#allocation2 + $0x1b8] sm:$0xff] %v1180
          %1245 = vst [vmem:[#allocation2 + $0x1c0] sm:$0xff] %v1181
          %1246 = vst [vmem:[#allocation2 + $0x1c8] sm:$0xff] %v1182
          %1247 = vst [vmem:[#allocation2 + $0x1d0] sm:$0xff] %v1183
          %1248 = vst [vmem:[#allocation2 + $0x1d8] sm:$0xff] %v1184
          %1249 = vst [vmem:[#allocation2 + $0x1e0] sm:$0xff] %v1185
          %1250 = vst [vmem:[#allocation2 + $0x1e8] sm:$0xff] %v1186
          %1251 = vst [vmem:[#allocation2 + $0x1f0] sm:$0xff] %v1187
          %1252 = vst [vmem:[#allocation2 + $0x1f8] sm:$0xff] %v1188
        $region93: #{gnn_forward.5} parent=80 // pred_fallthru
          _
        %p1253 = scmp.eq.s32.totalorder %s37, 2
        // Predicated region
        $region94: #{gnn_forward.5} parent=80 // pred_check
          %p1254 = pneg %p1253
        $region95: #{gnn_forward.5} parent=80 // pred_check_branch
          %1256 = sbr.rel (%p1254) target = $region97
        $region96: #{gnn_forward.5} parent=80 // pred_region
          %v1257 = vld [vmem:[#allocation2] sm:$0xff]
          %v1258 = vld [vmem:[#allocation2 + $0x8] sm:$0xff]
          %v1259 = vld [vmem:[#allocation2 + $0x10] sm:$0xff]
          %v1260 = vld [vmem:[#allocation2 + $0x18] sm:$0xff]
          %v1261 = vld [vmem:[#allocation2 + $0x20] sm:$0xff]
          %v1262 = vld [vmem:[#allocation2 + $0x28] sm:$0xff]
          %v1263 = vld [vmem:[#allocation2 + $0x30] sm:$0xff]
          %v1264 = vld [vmem:[#allocation2 + $0x38] sm:$0xff]
          %v1265 = vld [vmem:[#allocation2 + $0x40] sm:$0xff]
          %v1266 = vld [vmem:[#allocation2 + $0x48] sm:$0xff]
          %v1267 = vld [vmem:[#allocation2 + $0x50] sm:$0xff]
          %v1268 = vld [vmem:[#allocation2 + $0x58] sm:$0xff]
          %v1269 = vld [vmem:[#allocation2 + $0x60] sm:$0xff]
          %v1270 = vld [vmem:[#allocation2 + $0x68] sm:$0xff]
          %v1271 = vld [vmem:[#allocation2 + $0x70] sm:$0xff]
          %v1272 = vld [vmem:[#allocation2 + $0x78] sm:$0xff]
          %v1273 = vld [vmem:[#allocation2 + $0x80] sm:$0xff]
          %v1274 = vld [vmem:[#allocation2 + $0x88] sm:$0xff]
          %v1275 = vld [vmem:[#allocation2 + $0x90] sm:$0xff]
          %v1276 = vld [vmem:[#allocation2 + $0x98] sm:$0xff]
          %v1277 = vld [vmem:[#allocation2 + $0xa0] sm:$0xff]
          %v1278 = vld [vmem:[#allocation2 + $0xa8] sm:$0xff]
          %v1279 = vld [vmem:[#allocation2 + $0xb0] sm:$0xff]
          %v1280 = vld [vmem:[#allocation2 + $0xb8] sm:$0xff]
          %v1281 = vld [vmem:[#allocation2 + $0xc0] sm:$0xff]
          %v1282 = vld [vmem:[#allocation2 + $0xc8] sm:$0xff]
          %v1283 = vld [vmem:[#allocation2 + $0xd0] sm:$0xff]
          %v1284 = vld [vmem:[#allocation2 + $0xd8] sm:$0xff]
          %v1285 = vld [vmem:[#allocation2 + $0xe0] sm:$0xff]
          %v1286 = vld [vmem:[#allocation2 + $0xe8] sm:$0xff]
          %v1287 = vld [vmem:[#allocation2 + $0xf0] sm:$0xff]
          %v1288 = vld [vmem:[#allocation2 + $0xf8] sm:$0xff]
          %v1289 = vld [vmem:[#allocation2 + $0x100] sm:$0xff]
          %v1290 = vld [vmem:[#allocation2 + $0x108] sm:$0xff]
          %v1291 = vld [vmem:[#allocation2 + $0x110] sm:$0xff]
          %v1292 = vld [vmem:[#allocation2 + $0x118] sm:$0xff]
          %v1293 = vld [vmem:[#allocation2 + $0x120] sm:$0xff]
          %v1294 = vld [vmem:[#allocation2 + $0x128] sm:$0xff]
          %v1295 = vld [vmem:[#allocation2 + $0x130] sm:$0xff]
          %v1296 = vld [vmem:[#allocation2 + $0x138] sm:$0xff]
          %v1297 = vld [vmem:[#allocation2 + $0x140] sm:$0xff]
          %v1298 = vld [vmem:[#allocation2 + $0x148] sm:$0xff]
          %v1299 = vld [vmem:[#allocation2 + $0x150] sm:$0xff]
          %v1300 = vld [vmem:[#allocation2 + $0x158] sm:$0xff]
          %v1301 = vld [vmem:[#allocation2 + $0x160] sm:$0xff]
          %v1302 = vld [vmem:[#allocation2 + $0x168] sm:$0xff]
          %v1303 = vld [vmem:[#allocation2 + $0x170] sm:$0xff]
          %v1304 = vld [vmem:[#allocation2 + $0x178] sm:$0xff]
          %v1305 = vld [vmem:[#allocation2 + $0x180] sm:$0xff]
          %v1306 = vld [vmem:[#allocation2 + $0x188] sm:$0xff]
          %v1307 = vld [vmem:[#allocation2 + $0x190] sm:$0xff]
          %v1308 = vld [vmem:[#allocation2 + $0x198] sm:$0xff]
          %v1309 = vld [vmem:[#allocation2 + $0x1a0] sm:$0xff]
          %v1310 = vld [vmem:[#allocation2 + $0x1a8] sm:$0xff]
          %v1311 = vld [vmem:[#allocation2 + $0x1b0] sm:$0xff]
          %v1312 = vld [vmem:[#allocation2 + $0x1b8] sm:$0xff]
          %v1313 = vld [vmem:[#allocation2 + $0x1c0] sm:$0xff]
          %v1314 = vld [vmem:[#allocation2 + $0x1c8] sm:$0xff]
          %v1315 = vld [vmem:[#allocation2 + $0x1d0] sm:$0xff]
          %v1316 = vld [vmem:[#allocation2 + $0x1d8] sm:$0xff]
          %v1317 = vld [vmem:[#allocation2 + $0x1e0] sm:$0xff]
          %v1318 = vld [vmem:[#allocation2 + $0x1e8] sm:$0xff]
          %v1319 = vld [vmem:[#allocation2 + $0x1f0] sm:$0xff]
          %v1320 = vld [vmem:[#allocation2 + $0x1f8] sm:$0xff]
          %v1321 = vpack.c.bf16 %v1261, %v1257
          %v1322 = vpack.c.bf16 %v1262, %v1258
          %v1323 = vpack.c.bf16 %v1263, %v1259
          %v1324 = vpack.c.bf16 %v1264, %v1260
          %v1325 = vpack.c.bf16 %v1269, %v1265
          %v1326 = vpack.c.bf16 %v1270, %v1266
          %v1327 = vpack.c.bf16 %v1271, %v1267
          %v1328 = vpack.c.bf16 %v1272, %v1268
          %v1329 = vpack.c.bf16 %v1277, %v1273
          %v1330 = vpack.c.bf16 %v1278, %v1274
          %v1331 = vpack.c.bf16 %v1279, %v1275
          %v1332 = vpack.c.bf16 %v1280, %v1276
          %v1333 = vpack.c.bf16 %v1285, %v1281
          %v1334 = vpack.c.bf16 %v1286, %v1282
          %v1335 = vpack.c.bf16 %v1287, %v1283
          %v1336 = vpack.c.bf16 %v1288, %v1284
          %v1337 = vpack.c.bf16 %v1293, %v1289
          %v1338 = vpack.c.bf16 %v1294, %v1290
          %v1339 = vpack.c.bf16 %v1295, %v1291
          %v1340 = vpack.c.bf16 %v1296, %v1292
          %v1341 = vpack.c.bf16 %v1301, %v1297
          %v1342 = vpack.c.bf16 %v1302, %v1298
          %v1343 = vpack.c.bf16 %v1303, %v1299
          %v1344 = vpack.c.bf16 %v1304, %v1300
          %v1345 = vpack.c.bf16 %v1309, %v1305
          %v1346 = vpack.c.bf16 %v1310, %v1306
          %v1347 = vpack.c.bf16 %v1311, %v1307
          %v1348 = vpack.c.bf16 %v1312, %v1308
          %v1349 = vpack.c.bf16 %v1317, %v1313
          %v1350 = vpack.c.bf16 %v1318, %v1314
          %v1351 = vpack.c.bf16 %v1319, %v1315
          %v1352 = vpack.c.bf16 %v1320, %v1316
          %v1353 = vld [vmem:[%s5] sm:$0xff]
          %v1354 = vld [vmem:[%s5 + $0x8] sm:$0xff]
          %v1355 = vld [vmem:[%s5 + $0x10] sm:$0xff]
          %v1356 = vld [vmem:[%s5 + $0x18] sm:$0xff]
          %v1357 = vld [vmem:[%s5 + $0x20] sm:$0xff]
          %v1358 = vld [vmem:[%s5 + $0x28] sm:$0xff]
          %v1359 = vld [vmem:[%s5 + $0x30] sm:$0xff]
          %v1360 = vld [vmem:[%s5 + $0x38] sm:$0xff]
          %v1361 = vld [vmem:[%s5 + $0x40] sm:$0xff]
          %v1362 = vld [vmem:[%s5 + $0x48] sm:$0xff]
          %v1363 = vld [vmem:[%s5 + $0x50] sm:$0xff]
          %v1364 = vld [vmem:[%s5 + $0x58] sm:$0xff]
          %v1365 = vld [vmem:[%s5 + $0x60] sm:$0xff]
          %v1366 = vld [vmem:[%s5 + $0x68] sm:$0xff]
          %v1367 = vld [vmem:[%s5 + $0x70] sm:$0xff]
          %v1368 = vld [vmem:[%s5 + $0x78] sm:$0xff]
          %v1369 = vld [vmem:[%s5 + $0x80] sm:$0xff]
          %v1370 = vld [vmem:[%s5 + $0x88] sm:$0xff]
          %v1371 = vld [vmem:[%s5 + $0x90] sm:$0xff]
          %v1372 = vld [vmem:[%s5 + $0x98] sm:$0xff]
          %v1373 = vld [vmem:[%s5 + $0xa0] sm:$0xff]
          %v1374 = vld [vmem:[%s5 + $0xa8] sm:$0xff]
          %v1375 = vld [vmem:[%s5 + $0xb0] sm:$0xff]
          %v1376 = vld [vmem:[%s5 + $0xb8] sm:$0xff]
          %v1377 = vld [vmem:[%s5 + $0xc0] sm:$0xff]
          %v1378 = vld [vmem:[%s5 + $0xc8] sm:$0xff]
          %v1379 = vld [vmem:[%s5 + $0xd0] sm:$0xff]
          %v1380 = vld [vmem:[%s5 + $0xd8] sm:$0xff]
          %v1381 = vld [vmem:[%s5 + $0xe0] sm:$0xff]
          %v1382 = vld [vmem:[%s5 + $0xe8] sm:$0xff]
          %v1383 = vld [vmem:[%s5 + $0xf0] sm:$0xff]
          %v1384 = vld [vmem:[%s5 + $0xf8] sm:$0xff]
          %v1385 = vld [vmem:[%s5 + $0x100] sm:$0xff]
          %v1386 = vld [vmem:[%s5 + $0x108] sm:$0xff]
          %v1387 = vld [vmem:[%s5 + $0x110] sm:$0xff]
          %v1388 = vld [vmem:[%s5 + $0x118] sm:$0xff]
          %v1389 = vld [vmem:[%s5 + $0x120] sm:$0xff]
          %v1390 = vld [vmem:[%s5 + $0x128] sm:$0xff]
          %v1391 = vld [vmem:[%s5 + $0x130] sm:$0xff]
          %v1392 = vld [vmem:[%s5 + $0x138] sm:$0xff]
          %v1393 = vld [vmem:[%s5 + $0x140] sm:$0xff]
          %v1394 = vld [vmem:[%s5 + $0x148] sm:$0xff]
          %v1395 = vld [vmem:[%s5 + $0x150] sm:$0xff]
          %v1396 = vld [vmem:[%s5 + $0x158] sm:$0xff]
          %v1397 = vld [vmem:[%s5 + $0x160] sm:$0xff]
          %v1398 = vld [vmem:[%s5 + $0x168] sm:$0xff]
          %v1399 = vld [vmem:[%s5 + $0x170] sm:$0xff]
          %v1400 = vld [vmem:[%s5 + $0x178] sm:$0xff]
          %v1401 = vld [vmem:[%s5 + $0x180] sm:$0xff]
          %v1402 = vld [vmem:[%s5 + $0x188] sm:$0xff]
          %v1403 = vld [vmem:[%s5 + $0x190] sm:$0xff]
          %v1404 = vld [vmem:[%s5 + $0x198] sm:$0xff]
          %v1405 = vld [vmem:[%s5 + $0x1a0] sm:$0xff]
          %v1406 = vld [vmem:[%s5 + $0x1a8] sm:$0xff]
          %v1407 = vld [vmem:[%s5 + $0x1b0] sm:$0xff]
          %v1408 = vld [vmem:[%s5 + $0x1b8] sm:$0xff]
          %v1409 = vld [vmem:[%s5 + $0x1c0] sm:$0xff]
          %v1410 = vld [vmem:[%s5 + $0x1c8] sm:$0xff]
          %v1411 = vld [vmem:[%s5 + $0x1d0] sm:$0xff]
          %v1412 = vld [vmem:[%s5 + $0x1d8] sm:$0xff]
          %v1413 = vld [vmem:[%s5 + $0x1e0] sm:$0xff]
          %v1414 = vld [vmem:[%s5 + $0x1e8] sm:$0xff]
          %v1415 = vld [vmem:[%s5 + $0x1f0] sm:$0xff]
          %v1416 = vld [vmem:[%s5 + $0x1f8] sm:$0xff]
          %v1417 = vld [vmem:[%s5 + $0x200] sm:$0xff]
          %v1418 = vld [vmem:[%s5 + $0x208] sm:$0xff]
          %v1419 = vld [vmem:[%s5 + $0x210] sm:$0xff]
          %v1420 = vld [vmem:[%s5 + $0x218] sm:$0xff]
          %v1421 = vld [vmem:[%s5 + $0x220] sm:$0xff]
          %v1422 = vld [vmem:[%s5 + $0x228] sm:$0xff]
          %v1423 = vld [vmem:[%s5 + $0x230] sm:$0xff]
          %v1424 = vld [vmem:[%s5 + $0x238] sm:$0xff]
          %v1425 = vld [vmem:[%s5 + $0x240] sm:$0xff]
          %v1426 = vld [vmem:[%s5 + $0x248] sm:$0xff]
          %v1427 = vld [vmem:[%s5 + $0x250] sm:$0xff]
          %v1428 = vld [vmem:[%s5 + $0x258] sm:$0xff]
          %v1429 = vld [vmem:[%s5 + $0x260] sm:$0xff]
          %v1430 = vld [vmem:[%s5 + $0x268] sm:$0xff]
          %v1431 = vld [vmem:[%s5 + $0x270] sm:$0xff]
          %v1432 = vld [vmem:[%s5 + $0x278] sm:$0xff]
          %v1433 = vld [vmem:[%s5 + $0x280] sm:$0xff]
          %v1434 = vld [vmem:[%s5 + $0x288] sm:$0xff]
          %v1435 = vld [vmem:[%s5 + $0x290] sm:$0xff]
          %v1436 = vld [vmem:[%s5 + $0x298] sm:$0xff]
          %v1437 = vld [vmem:[%s5 + $0x2a0] sm:$0xff]
          %v1438 = vld [vmem:[%s5 + $0x2a8] sm:$0xff]
          %v1439 = vld [vmem:[%s5 + $0x2b0] sm:$0xff]
          %v1440 = vld [vmem:[%s5 + $0x2b8] sm:$0xff]
          %v1441 = vld [vmem:[%s5 + $0x2c0] sm:$0xff]
          %v1442 = vld [vmem:[%s5 + $0x2c8] sm:$0xff]
          %v1443 = vld [vmem:[%s5 + $0x2d0] sm:$0xff]
          %v1444 = vld [vmem:[%s5 + $0x2d8] sm:$0xff]
          %v1445 = vld [vmem:[%s5 + $0x2e0] sm:$0xff]
          %v1446 = vld [vmem:[%s5 + $0x2e8] sm:$0xff]
          %v1447 = vld [vmem:[%s5 + $0x2f0] sm:$0xff]
          %v1448 = vld [vmem:[%s5 + $0x2f8] sm:$0xff]
          %v1449 = vld [vmem:[%s5 + $0x300] sm:$0xff]
          %v1450 = vld [vmem:[%s5 + $0x308] sm:$0xff]
          %v1451 = vld [vmem:[%s5 + $0x310] sm:$0xff]
          %v1452 = vld [vmem:[%s5 + $0x318] sm:$0xff]
          %v1453 = vld [vmem:[%s5 + $0x320] sm:$0xff]
          %v1454 = vld [vmem:[%s5 + $0x328] sm:$0xff]
          %v1455 = vld [vmem:[%s5 + $0x330] sm:$0xff]
          %v1456 = vld [vmem:[%s5 + $0x338] sm:$0xff]
          %v1457 = vld [vmem:[%s5 + $0x340] sm:$0xff]
          %v1458 = vld [vmem:[%s5 + $0x348] sm:$0xff]
          %v1459 = vld [vmem:[%s5 + $0x350] sm:$0xff]
          %v1460 = vld [vmem:[%s5 + $0x358] sm:$0xff]
          %v1461 = vld [vmem:[%s5 + $0x360] sm:$0xff]
          %v1462 = vld [vmem:[%s5 + $0x368] sm:$0xff]
          %v1463 = vld [vmem:[%s5 + $0x370] sm:$0xff]
          %v1464 = vld [vmem:[%s5 + $0x378] sm:$0xff]
          %v1465 = vld [vmem:[%s5 + $0x380] sm:$0xff]
          %v1466 = vld [vmem:[%s5 + $0x388] sm:$0xff]
          %v1467 = vld [vmem:[%s5 + $0x390] sm:$0xff]
          %v1468 = vld [vmem:[%s5 + $0x398] sm:$0xff]
          %v1469 = vld [vmem:[%s5 + $0x3a0] sm:$0xff]
          %v1470 = vld [vmem:[%s5 + $0x3a8] sm:$0xff]
          %v1471 = vld [vmem:[%s5 + $0x3b0] sm:$0xff]
          %v1472 = vld [vmem:[%s5 + $0x3b8] sm:$0xff]
          %v1473 = vld [vmem:[%s5 + $0x3c0] sm:$0xff]
          %v1474 = vld [vmem:[%s5 + $0x3c8] sm:$0xff]
          %v1475 = vld [vmem:[%s5 + $0x3d0] sm:$0xff]
          %v1476 = vld [vmem:[%s5 + $0x3d8] sm:$0xff]
          %v1477 = vld [vmem:[%s5 + $0x3e0] sm:$0xff]
          %v1478 = vld [vmem:[%s5 + $0x3e8] sm:$0xff]
          %v1479 = vld [vmem:[%s5 + $0x3f0] sm:$0xff]
          %v1480 = vld [vmem:[%s5 + $0x3f8] sm:$0xff]
          %v1481 = vld [vmem:[%s520] sm:$0xff]
          %v1482 = vld [vmem:[%s520 + $0x8] sm:$0xff]
          %v1483 = vld [vmem:[%s520 + $0x10] sm:$0xff]
          %v1484 = vld [vmem:[%s520 + $0x18] sm:$0xff]
          %v1485 = vld [vmem:[%s520 + $0x20] sm:$0xff]
          %v1486 = vld [vmem:[%s520 + $0x28] sm:$0xff]
          %v1487 = vld [vmem:[%s520 + $0x30] sm:$0xff]
          %v1488 = vld [vmem:[%s520 + $0x38] sm:$0xff]
          %v1489 = vld [vmem:[%s520 + $0x40] sm:$0xff]
          %v1490 = vld [vmem:[%s520 + $0x48] sm:$0xff]
          %v1491 = vld [vmem:[%s520 + $0x50] sm:$0xff]
          %v1492 = vld [vmem:[%s520 + $0x58] sm:$0xff]
          %v1493 = vld [vmem:[%s520 + $0x60] sm:$0xff]
          %v1494 = vld [vmem:[%s520 + $0x68] sm:$0xff]
          %v1495 = vld [vmem:[%s520 + $0x70] sm:$0xff]
          %v1496 = vld [vmem:[%s520 + $0x78] sm:$0xff]
          %v1497 = vld [vmem:[%s520 + $0x80] sm:$0xff]
          %v1498 = vld [vmem:[%s520 + $0x88] sm:$0xff]
          %v1499 = vld [vmem:[%s520 + $0x90] sm:$0xff]
          %v1500 = vld [vmem:[%s520 + $0x98] sm:$0xff]
          %v1501 = vld [vmem:[%s520 + $0xa0] sm:$0xff]
          %v1502 = vld [vmem:[%s520 + $0xa8] sm:$0xff]
          %v1503 = vld [vmem:[%s520 + $0xb0] sm:$0xff]
          %v1504 = vld [vmem:[%s520 + $0xb8] sm:$0xff]
          %v1505 = vld [vmem:[%s520 + $0xc0] sm:$0xff]
          %v1506 = vld [vmem:[%s520 + $0xc8] sm:$0xff]
          %v1507 = vld [vmem:[%s520 + $0xd0] sm:$0xff]
          %v1508 = vld [vmem:[%s520 + $0xd8] sm:$0xff]
          %v1509 = vld [vmem:[%s520 + $0xe0] sm:$0xff]
          %v1510 = vld [vmem:[%s520 + $0xe8] sm:$0xff]
          %v1511 = vld [vmem:[%s520 + $0xf0] sm:$0xff]
          %v1512 = vld [vmem:[%s520 + $0xf8] sm:$0xff]
          %v1513 = vld [vmem:[%s6] sm:$0xff]
          %v1514 = vld [vmem:[%s6 + $0x8] sm:$0xff]
          %v1515 = vld [vmem:[%s6 + $0x10] sm:$0xff]
          %v1516 = vld [vmem:[%s6 + $0x18] sm:$0xff]
          %v1517 = vld [vmem:[%s6 + $0x20] sm:$0xff]
          %v1518 = vld [vmem:[%s6 + $0x28] sm:$0xff]
          %v1519 = vld [vmem:[%s6 + $0x30] sm:$0xff]
          %v1520 = vld [vmem:[%s6 + $0x38] sm:$0xff]
          %v1521 = vld [vmem:[%s6 + $0x40] sm:$0xff]
          %v1522 = vld [vmem:[%s6 + $0x48] sm:$0xff]
          %v1523 = vld [vmem:[%s6 + $0x50] sm:$0xff]
          %v1524 = vld [vmem:[%s6 + $0x58] sm:$0xff]
          %v1525 = vld [vmem:[%s6 + $0x60] sm:$0xff]
          %v1526 = vld [vmem:[%s6 + $0x68] sm:$0xff]
          %v1527 = vld [vmem:[%s6 + $0x70] sm:$0xff]
          %v1528 = vld [vmem:[%s6 + $0x78] sm:$0xff]
          %v1529 = vld [vmem:[%s6 + $0x80] sm:$0xff]
          %v1530 = vld [vmem:[%s6 + $0x88] sm:$0xff]
          %v1531 = vld [vmem:[%s6 + $0x90] sm:$0xff]
          %v1532 = vld [vmem:[%s6 + $0x98] sm:$0xff]
          %v1533 = vld [vmem:[%s6 + $0xa0] sm:$0xff]
          %v1534 = vld [vmem:[%s6 + $0xa8] sm:$0xff]
          %v1535 = vld [vmem:[%s6 + $0xb0] sm:$0xff]
          %v1536 = vld [vmem:[%s6 + $0xb8] sm:$0xff]
          %v1537 = vld [vmem:[%s6 + $0xc0] sm:$0xff]
          %v1538 = vld [vmem:[%s6 + $0xc8] sm:$0xff]
          %v1539 = vld [vmem:[%s6 + $0xd0] sm:$0xff]
          %v1540 = vld [vmem:[%s6 + $0xd8] sm:$0xff]
          %v1541 = vld [vmem:[%s6 + $0xe0] sm:$0xff]
          %v1542 = vld [vmem:[%s6 + $0xe8] sm:$0xff]
          %v1543 = vld [vmem:[%s6 + $0xf0] sm:$0xff]
          %v1544 = vld [vmem:[%s6 + $0xf8] sm:$0xff]
          %v1545 = vld [vmem:[%s6 + $0x100] sm:$0xff]
          %v1546 = vld [vmem:[%s6 + $0x108] sm:$0xff]
          %v1547 = vld [vmem:[%s6 + $0x110] sm:$0xff]
          %v1548 = vld [vmem:[%s6 + $0x118] sm:$0xff]
          %v1549 = vld [vmem:[%s6 + $0x120] sm:$0xff]
          %v1550 = vld [vmem:[%s6 + $0x128] sm:$0xff]
          %v1551 = vld [vmem:[%s6 + $0x130] sm:$0xff]
          %v1552 = vld [vmem:[%s6 + $0x138] sm:$0xff]
          %v1553 = vld [vmem:[%s6 + $0x140] sm:$0xff]
          %v1554 = vld [vmem:[%s6 + $0x148] sm:$0xff]
          %v1555 = vld [vmem:[%s6 + $0x150] sm:$0xff]
          %v1556 = vld [vmem:[%s6 + $0x158] sm:$0xff]
          %v1557 = vld [vmem:[%s6 + $0x160] sm:$0xff]
          %v1558 = vld [vmem:[%s6 + $0x168] sm:$0xff]
          %v1559 = vld [vmem:[%s6 + $0x170] sm:$0xff]
          %v1560 = vld [vmem:[%s6 + $0x178] sm:$0xff]
          %v1561 = vld [vmem:[%s6 + $0x180] sm:$0xff]
          %v1562 = vld [vmem:[%s6 + $0x188] sm:$0xff]
          %v1563 = vld [vmem:[%s6 + $0x190] sm:$0xff]
          %v1564 = vld [vmem:[%s6 + $0x198] sm:$0xff]
          %v1565 = vld [vmem:[%s6 + $0x1a0] sm:$0xff]
          %v1566 = vld [vmem:[%s6 + $0x1a8] sm:$0xff]
          %v1567 = vld [vmem:[%s6 + $0x1b0] sm:$0xff]
          %v1568 = vld [vmem:[%s6 + $0x1b8] sm:$0xff]
          %v1569 = vld [vmem:[%s6 + $0x1c0] sm:$0xff]
          %v1570 = vld [vmem:[%s6 + $0x1c8] sm:$0xff]
          %v1571 = vld [vmem:[%s6 + $0x1d0] sm:$0xff]
          %v1572 = vld [vmem:[%s6 + $0x1d8] sm:$0xff]
          %v1573 = vld [vmem:[%s6 + $0x1e0] sm:$0xff]
          %v1574 = vld [vmem:[%s6 + $0x1e8] sm:$0xff]
          %v1575 = vld [vmem:[%s6 + $0x1f0] sm:$0xff]
          %v1576 = vld [vmem:[%s6 + $0x1f8] sm:$0xff]
          %v1577 = vld [vmem:[%s6 + $0x200] sm:$0xff]
          %v1578 = vld [vmem:[%s6 + $0x208] sm:$0xff]
          %v1579 = vld [vmem:[%s6 + $0x210] sm:$0xff]
          %v1580 = vld [vmem:[%s6 + $0x218] sm:$0xff]
          %v1581 = vld [vmem:[%s6 + $0x220] sm:$0xff]
          %v1582 = vld [vmem:[%s6 + $0x228] sm:$0xff]
          %v1583 = vld [vmem:[%s6 + $0x230] sm:$0xff]
          %v1584 = vld [vmem:[%s6 + $0x238] sm:$0xff]
          %v1585 = vld [vmem:[%s6 + $0x240] sm:$0xff]
          %v1586 = vld [vmem:[%s6 + $0x248] sm:$0xff]
          %v1587 = vld [vmem:[%s6 + $0x250] sm:$0xff]
          %v1588 = vld [vmem:[%s6 + $0x258] sm:$0xff]
          %v1589 = vld [vmem:[%s6 + $0x260] sm:$0xff]
          %v1590 = vld [vmem:[%s6 + $0x268] sm:$0xff]
          %v1591 = vld [vmem:[%s6 + $0x270] sm:$0xff]
          %v1592 = vld [vmem:[%s6 + $0x278] sm:$0xff]
          %v1593 = vld [vmem:[%s6 + $0x280] sm:$0xff]
          %v1594 = vld [vmem:[%s6 + $0x288] sm:$0xff]
          %v1595 = vld [vmem:[%s6 + $0x290] sm:$0xff]
          %v1596 = vld [vmem:[%s6 + $0x298] sm:$0xff]
          %v1597 = vld [vmem:[%s6 + $0x2a0] sm:$0xff]
          %v1598 = vld [vmem:[%s6 + $0x2a8] sm:$0xff]
          %v1599 = vld [vmem:[%s6 + $0x2b0] sm:$0xff]
          %v1600 = vld [vmem:[%s6 + $0x2b8] sm:$0xff]
          %v1601 = vld [vmem:[%s6 + $0x2c0] sm:$0xff]
          %v1602 = vld [vmem:[%s6 + $0x2c8] sm:$0xff]
          %v1603 = vld [vmem:[%s6 + $0x2d0] sm:$0xff]
          %v1604 = vld [vmem:[%s6 + $0x2d8] sm:$0xff]
          %v1605 = vld [vmem:[%s6 + $0x2e0] sm:$0xff]
          %v1606 = vld [vmem:[%s6 + $0x2e8] sm:$0xff]
          %v1607 = vld [vmem:[%s6 + $0x2f0] sm:$0xff]
          %v1608 = vld [vmem:[%s6 + $0x2f8] sm:$0xff]
          %v1609 = vld [vmem:[%s6 + $0x300] sm:$0xff]
          %v1610 = vld [vmem:[%s6 + $0x308] sm:$0xff]
          %v1611 = vld [vmem:[%s6 + $0x310] sm:$0xff]
          %v1612 = vld [vmem:[%s6 + $0x318] sm:$0xff]
          %v1613 = vld [vmem:[%s6 + $0x320] sm:$0xff]
          %v1614 = vld [vmem:[%s6 + $0x328] sm:$0xff]
          %v1615 = vld [vmem:[%s6 + $0x330] sm:$0xff]
          %v1616 = vld [vmem:[%s6 + $0x338] sm:$0xff]
          %v1617 = vld [vmem:[%s6 + $0x340] sm:$0xff]
          %v1618 = vld [vmem:[%s6 + $0x348] sm:$0xff]
          %v1619 = vld [vmem:[%s6 + $0x350] sm:$0xff]
          %v1620 = vld [vmem:[%s6 + $0x358] sm:$0xff]
          %v1621 = vld [vmem:[%s6 + $0x360] sm:$0xff]
          %v1622 = vld [vmem:[%s6 + $0x368] sm:$0xff]
          %v1623 = vld [vmem:[%s6 + $0x370] sm:$0xff]
          %v1624 = vld [vmem:[%s6 + $0x378] sm:$0xff]
          %v1625 = vld [vmem:[%s6 + $0x380] sm:$0xff]
          %v1626 = vld [vmem:[%s6 + $0x388] sm:$0xff]
          %v1627 = vld [vmem:[%s6 + $0x390] sm:$0xff]
          %v1628 = vld [vmem:[%s6 + $0x398] sm:$0xff]
          %v1629 = vld [vmem:[%s6 + $0x3a0] sm:$0xff]
          %v1630 = vld [vmem:[%s6 + $0x3a8] sm:$0xff]
          %v1631 = vld [vmem:[%s6 + $0x3b0] sm:$0xff]
          %v1632 = vld [vmem:[%s6 + $0x3b8] sm:$0xff]
          %v1633 = vld [vmem:[%s6 + $0x3c0] sm:$0xff]
          %v1634 = vld [vmem:[%s6 + $0x3c8] sm:$0xff]
          %v1635 = vld [vmem:[%s6 + $0x3d0] sm:$0xff]
          %v1636 = vld [vmem:[%s6 + $0x3d8] sm:$0xff]
          %v1637 = vld [vmem:[%s6 + $0x3e0] sm:$0xff]
          %v1638 = vld [vmem:[%s6 + $0x3e8] sm:$0xff]
          %v1639 = vld [vmem:[%s6 + $0x3f0] sm:$0xff]
          %v1640 = vld [vmem:[%s6 + $0x3f8] sm:$0xff]
          %v1673 = vunpack.c.l.b16 %v1481
          %v1674 = vunpack.c.h.b16 %v1481
          %v1675 = vunpack.c.l.b16 %v1482
          %v1676 = vunpack.c.h.b16 %v1482
          %v1677 = vunpack.c.l.b16 %v1483
          %v1678 = vunpack.c.h.b16 %v1483
          %v1679 = vunpack.c.l.b16 %v1484
          %v1680 = vunpack.c.h.b16 %v1484
          %v1681 = vunpack.c.l.b16 %v1485
          %v1682 = vunpack.c.h.b16 %v1485
          %v1683 = vunpack.c.l.b16 %v1486
          %v1684 = vunpack.c.h.b16 %v1486
          %v1685 = vunpack.c.l.b16 %v1487
          %v1686 = vunpack.c.h.b16 %v1487
          %v1687 = vunpack.c.l.b16 %v1488
          %v1688 = vunpack.c.h.b16 %v1488
          %v1689 = vunpack.c.l.b16 %v1489
          %v1690 = vunpack.c.h.b16 %v1489
          %v1691 = vunpack.c.l.b16 %v1490
          %v1692 = vunpack.c.h.b16 %v1490
          %v1693 = vunpack.c.l.b16 %v1491
          %v1694 = vunpack.c.h.b16 %v1491
          %v1695 = vunpack.c.l.b16 %v1492
          %v1696 = vunpack.c.h.b16 %v1492
          %v1697 = vunpack.c.l.b16 %v1493
          %v1698 = vunpack.c.h.b16 %v1493
          %v1699 = vunpack.c.l.b16 %v1494
          %v1700 = vunpack.c.h.b16 %v1494
          %v1701 = vunpack.c.l.b16 %v1495
          %v1702 = vunpack.c.h.b16 %v1495
          %v1703 = vunpack.c.l.b16 %v1496
          %v1704 = vunpack.c.h.b16 %v1496
          %v1705 = vunpack.c.l.b16 %v1497
          %v1706 = vunpack.c.h.b16 %v1497
          %v1707 = vunpack.c.l.b16 %v1498
          %v1708 = vunpack.c.h.b16 %v1498
          %v1709 = vunpack.c.l.b16 %v1499
          %v1710 = vunpack.c.h.b16 %v1499
          %v1711 = vunpack.c.l.b16 %v1500
          %v1712 = vunpack.c.h.b16 %v1500
          %v1713 = vunpack.c.l.b16 %v1501
          %v1714 = vunpack.c.h.b16 %v1501
          %v1715 = vunpack.c.l.b16 %v1502
          %v1716 = vunpack.c.h.b16 %v1502
          %v1717 = vunpack.c.l.b16 %v1503
          %v1718 = vunpack.c.h.b16 %v1503
          %v1719 = vunpack.c.l.b16 %v1504
          %v1720 = vunpack.c.h.b16 %v1504
          %v1721 = vunpack.c.l.b16 %v1505
          %v1722 = vunpack.c.h.b16 %v1505
          %v1723 = vunpack.c.l.b16 %v1506
          %v1724 = vunpack.c.h.b16 %v1506
          %v1725 = vunpack.c.l.b16 %v1507
          %v1726 = vunpack.c.h.b16 %v1507
          %v1727 = vunpack.c.l.b16 %v1508
          %v1728 = vunpack.c.h.b16 %v1508
          %v1729 = vunpack.c.l.b16 %v1509
          %v1730 = vunpack.c.h.b16 %v1509
          %v1731 = vunpack.c.l.b16 %v1510
          %v1732 = vunpack.c.h.b16 %v1510
          %v1733 = vunpack.c.l.b16 %v1511
          %v1734 = vunpack.c.h.b16 %v1511
          %v1735 = vunpack.c.l.b16 %v1512
          %v1736 = vunpack.c.h.b16 %v1512
          %v1737 = vpack.c.b16 %v1677, %v1673
          %v1738 = vpack.c.b16 %v1678, %v1674
          %v1739 = vpack.c.b16 %v1679, %v1675
          %v1740 = vpack.c.b16 %v1680, %v1676
          %v1741 = vpack.c.b16 %v1685, %v1681
          %v1742 = vpack.c.b16 %v1686, %v1682
          %v1743 = vpack.c.b16 %v1687, %v1683
          %v1744 = vpack.c.b16 %v1688, %v1684
          %v1745 = vpack.c.b16 %v1693, %v1689
          %v1746 = vpack.c.b16 %v1694, %v1690
          %v1747 = vpack.c.b16 %v1695, %v1691
          %v1748 = vpack.c.b16 %v1696, %v1692
          %v1749 = vpack.c.b16 %v1701, %v1697
          %v1750 = vpack.c.b16 %v1702, %v1698
          %v1751 = vpack.c.b16 %v1703, %v1699
          %v1752 = vpack.c.b16 %v1704, %v1700
          %v1753 = vpack.c.b16 %v1709, %v1705
          %v1754 = vpack.c.b16 %v1710, %v1706
          %v1755 = vpack.c.b16 %v1711, %v1707
          %v1756 = vpack.c.b16 %v1712, %v1708
          %v1757 = vpack.c.b16 %v1717, %v1713
          %v1758 = vpack.c.b16 %v1718, %v1714
          %v1759 = vpack.c.b16 %v1719, %v1715
          %v1760 = vpack.c.b16 %v1720, %v1716
          %v1761 = vpack.c.b16 %v1725, %v1721
          %v1762 = vpack.c.b16 %v1726, %v1722
          %v1763 = vpack.c.b16 %v1727, %v1723
          %v1764 = vpack.c.b16 %v1728, %v1724
          %v1765 = vpack.c.b16 %v1733, %v1729
          %v1766 = vpack.c.b16 %v1734, %v1730
          %v1767 = vpack.c.b16 %v1735, %v1731
          %v1768 = vpack.c.b16 %v1736, %v1732
          %v1929 = vunpack.c.l.b16 %v1513
          %v1930 = vunpack.c.h.b16 %v1513
          %v1931 = vunpack.c.l.b16 %v1514
          %v1932 = vunpack.c.h.b16 %v1514
          %v1933 = vunpack.c.l.b16 %v1515
          %v1934 = vunpack.c.h.b16 %v1515
          %v1935 = vunpack.c.l.b16 %v1516
          %v1936 = vunpack.c.h.b16 %v1516
          %v1937 = vunpack.c.l.b16 %v1517
          %v1938 = vunpack.c.h.b16 %v1517
          %v1939 = vunpack.c.l.b16 %v1518
          %v1940 = vunpack.c.h.b16 %v1518
          %v1941 = vunpack.c.l.b16 %v1519
          %v1942 = vunpack.c.h.b16 %v1519
          %v1943 = vunpack.c.l.b16 %v1520
          %v1944 = vunpack.c.h.b16 %v1520
          %v1945 = vunpack.c.l.b16 %v1521
          %v1946 = vunpack.c.h.b16 %v1521
          %v1947 = vunpack.c.l.b16 %v1522
          %v1948 = vunpack.c.h.b16 %v1522
          %v1949 = vunpack.c.l.b16 %v1523
          %v1950 = vunpack.c.h.b16 %v1523
          %v1951 = vunpack.c.l.b16 %v1524
          %v1952 = vunpack.c.h.b16 %v1524
          %v1953 = vunpack.c.l.b16 %v1525
          %v1954 = vunpack.c.h.b16 %v1525
          %v1955 = vunpack.c.l.b16 %v1526
          %v1956 = vunpack.c.h.b16 %v1526
          %v1957 = vunpack.c.l.b16 %v1527
          %v1958 = vunpack.c.h.b16 %v1527
          %v1959 = vunpack.c.l.b16 %v1528
          %v1960 = vunpack.c.h.b16 %v1528
          %v1961 = vunpack.c.l.b16 %v1529
          %v1962 = vunpack.c.h.b16 %v1529
          %v1963 = vunpack.c.l.b16 %v1530
          %v1964 = vunpack.c.h.b16 %v1530
          %v1965 = vunpack.c.l.b16 %v1531
          %v1966 = vunpack.c.h.b16 %v1531
          %v1967 = vunpack.c.l.b16 %v1532
          %v1968 = vunpack.c.h.b16 %v1532
          %v1969 = vunpack.c.l.b16 %v1533
          %v1970 = vunpack.c.h.b16 %v1533
          %v1971 = vunpack.c.l.b16 %v1534
          %v1972 = vunpack.c.h.b16 %v1534
          %v1973 = vunpack.c.l.b16 %v1535
          %v1974 = vunpack.c.h.b16 %v1535
          %v1975 = vunpack.c.l.b16 %v1536
          %v1976 = vunpack.c.h.b16 %v1536
          %v1977 = vunpack.c.l.b16 %v1537
          %v1978 = vunpack.c.h.b16 %v1537
          %v1979 = vunpack.c.l.b16 %v1538
          %v1980 = vunpack.c.h.b16 %v1538
          %v1981 = vunpack.c.l.b16 %v1539
          %v1982 = vunpack.c.h.b16 %v1539
          %v1983 = vunpack.c.l.b16 %v1540
          %v1984 = vunpack.c.h.b16 %v1540
          %v1985 = vunpack.c.l.b16 %v1541
          %v1986 = vunpack.c.h.b16 %v1541
          %v1987 = vunpack.c.l.b16 %v1542
          %v1988 = vunpack.c.h.b16 %v1542
          %v1989 = vunpack.c.l.b16 %v1543
          %v1990 = vunpack.c.h.b16 %v1543
          %v1991 = vunpack.c.l.b16 %v1544
          %v1992 = vunpack.c.h.b16 %v1544
          %v1993 = vunpack.c.l.b16 %v1545
          %v1994 = vunpack.c.h.b16 %v1545
          %v1995 = vunpack.c.l.b16 %v1546
          %v1996 = vunpack.c.h.b16 %v1546
          %v1997 = vunpack.c.l.b16 %v1547
          %v1998 = vunpack.c.h.b16 %v1547
          %v1999 = vunpack.c.l.b16 %v1548
          %v2000 = vunpack.c.h.b16 %v1548
          %v2001 = vunpack.c.l.b16 %v1549
          %v2002 = vunpack.c.h.b16 %v1549
          %v2003 = vunpack.c.l.b16 %v1550
          %v2004 = vunpack.c.h.b16 %v1550
          %v2005 = vunpack.c.l.b16 %v1551
          %v2006 = vunpack.c.h.b16 %v1551
          %v2007 = vunpack.c.l.b16 %v1552
          %v2008 = vunpack.c.h.b16 %v1552
          %v2009 = vunpack.c.l.b16 %v1553
          %v2010 = vunpack.c.h.b16 %v1553
          %v2011 = vunpack.c.l.b16 %v1554
          %v2012 = vunpack.c.h.b16 %v1554
          %v2013 = vunpack.c.l.b16 %v1555
          %v2014 = vunpack.c.h.b16 %v1555
          %v2015 = vunpack.c.l.b16 %v1556
          %v2016 = vunpack.c.h.b16 %v1556
          %v2017 = vunpack.c.l.b16 %v1557
          %v2018 = vunpack.c.h.b16 %v1557
          %v2019 = vunpack.c.l.b16 %v1558
          %v2020 = vunpack.c.h.b16 %v1558
          %v2021 = vunpack.c.l.b16 %v1559
          %v2022 = vunpack.c.h.b16 %v1559
          %v2023 = vunpack.c.l.b16 %v1560
          %v2024 = vunpack.c.h.b16 %v1560
          %v2025 = vunpack.c.l.b16 %v1561
          %v2026 = vunpack.c.h.b16 %v1561
          %v2027 = vunpack.c.l.b16 %v1562
          %v2028 = vunpack.c.h.b16 %v1562
          %v2029 = vunpack.c.l.b16 %v1563
          %v2030 = vunpack.c.h.b16 %v1563
          %v2031 = vunpack.c.l.b16 %v1564
          %v2032 = vunpack.c.h.b16 %v1564
          %v2033 = vunpack.c.l.b16 %v1565
          %v2034 = vunpack.c.h.b16 %v1565
          %v2035 = vunpack.c.l.b16 %v1566
          %v2036 = vunpack.c.h.b16 %v1566
          %v2037 = vunpack.c.l.b16 %v1567
          %v2038 = vunpack.c.h.b16 %v1567
          %v2039 = vunpack.c.l.b16 %v1568
          %v2040 = vunpack.c.h.b16 %v1568
          %v2041 = vunpack.c.l.b16 %v1569
          %v2042 = vunpack.c.h.b16 %v1569
          %v2043 = vunpack.c.l.b16 %v1570
          %v2044 = vunpack.c.h.b16 %v1570
          %v2045 = vunpack.c.l.b16 %v1571
          %v2046 = vunpack.c.h.b16 %v1571
          %v2047 = vunpack.c.l.b16 %v1572
          %v2048 = vunpack.c.h.b16 %v1572
          %v2049 = vunpack.c.l.b16 %v1573
          %v2050 = vunpack.c.h.b16 %v1573
          %v2051 = vunpack.c.l.b16 %v1574
          %v2052 = vunpack.c.h.b16 %v1574
          %v2053 = vunpack.c.l.b16 %v1575
          %v2054 = vunpack.c.h.b16 %v1575
          %v2055 = vunpack.c.l.b16 %v1576
          %v2056 = vunpack.c.h.b16 %v1576
          %v2057 = vunpack.c.l.b16 %v1577
          %v2058 = vunpack.c.h.b16 %v1577
          %v2059 = vunpack.c.l.b16 %v1578
          %v2060 = vunpack.c.h.b16 %v1578
          %v2061 = vunpack.c.l.b16 %v1579
          %v2062 = vunpack.c.h.b16 %v1579
          %v2063 = vunpack.c.l.b16 %v1580
          %v2064 = vunpack.c.h.b16 %v1580
          %v2065 = vunpack.c.l.b16 %v1581
          %v2066 = vunpack.c.h.b16 %v1581
          %v2067 = vunpack.c.l.b16 %v1582
          %v2068 = vunpack.c.h.b16 %v1582
          %v2069 = vunpack.c.l.b16 %v1583
          %v2070 = vunpack.c.h.b16 %v1583
          %v2071 = vunpack.c.l.b16 %v1584
          %v2072 = vunpack.c.h.b16 %v1584
          %v2073 = vunpack.c.l.b16 %v1585
          %v2074 = vunpack.c.h.b16 %v1585
          %v2075 = vunpack.c.l.b16 %v1586
          %v2076 = vunpack.c.h.b16 %v1586
          %v2077 = vunpack.c.l.b16 %v1587
          %v2078 = vunpack.c.h.b16 %v1587
          %v2079 = vunpack.c.l.b16 %v1588
          %v2080 = vunpack.c.h.b16 %v1588
          %v2081 = vunpack.c.l.b16 %v1589
          %v2082 = vunpack.c.h.b16 %v1589
          %v2083 = vunpack.c.l.b16 %v1590
          %v2084 = vunpack.c.h.b16 %v1590
          %v2085 = vunpack.c.l.b16 %v1591
          %v2086 = vunpack.c.h.b16 %v1591
          %v2087 = vunpack.c.l.b16 %v1592
          %v2088 = vunpack.c.h.b16 %v1592
          %v2089 = vunpack.c.l.b16 %v1593
          %v2090 = vunpack.c.h.b16 %v1593
          %v2091 = vunpack.c.l.b16 %v1594
          %v2092 = vunpack.c.h.b16 %v1594
          %v2093 = vunpack.c.l.b16 %v1595
          %v2094 = vunpack.c.h.b16 %v1595
          %v2095 = vunpack.c.l.b16 %v1596
          %v2096 = vunpack.c.h.b16 %v1596
          %v2097 = vunpack.c.l.b16 %v1597
          %v2098 = vunpack.c.h.b16 %v1597
          %v2099 = vunpack.c.l.b16 %v1598
          %v2100 = vunpack.c.h.b16 %v1598
          %v2101 = vunpack.c.l.b16 %v1599
          %v2102 = vunpack.c.h.b16 %v1599
          %v2103 = vunpack.c.l.b16 %v1600
          %v2104 = vunpack.c.h.b16 %v1600
          %v2105 = vunpack.c.l.b16 %v1601
          %v2106 = vunpack.c.h.b16 %v1601
          %v2107 = vunpack.c.l.b16 %v1602
          %v2108 = vunpack.c.h.b16 %v1602
          %v2109 = vunpack.c.l.b16 %v1603
          %v2110 = vunpack.c.h.b16 %v1603
          %v2111 = vunpack.c.l.b16 %v1604
          %v2112 = vunpack.c.h.b16 %v1604
          %v2113 = vunpack.c.l.b16 %v1605
          %v2114 = vunpack.c.h.b16 %v1605
          %v2115 = vunpack.c.l.b16 %v1606
          %v2116 = vunpack.c.h.b16 %v1606
          %v2117 = vunpack.c.l.b16 %v1607
          %v2118 = vunpack.c.h.b16 %v1607
          %v2119 = vunpack.c.l.b16 %v1608
          %v2120 = vunpack.c.h.b16 %v1608
          %v2121 = vunpack.c.l.b16 %v1609
          %v2122 = vunpack.c.h.b16 %v1609
          %v2123 = vunpack.c.l.b16 %v1610
          %v2124 = vunpack.c.h.b16 %v1610
          %v2125 = vunpack.c.l.b16 %v1611
          %v2126 = vunpack.c.h.b16 %v1611
          %v2127 = vunpack.c.l.b16 %v1612
          %v2128 = vunpack.c.h.b16 %v1612
          %v2129 = vunpack.c.l.b16 %v1613
          %v2130 = vunpack.c.h.b16 %v1613
          %v2131 = vunpack.c.l.b16 %v1614
          %v2132 = vunpack.c.h.b16 %v1614
          %v2133 = vunpack.c.l.b16 %v1615
          %v2134 = vunpack.c.h.b16 %v1615
          %v2135 = vunpack.c.l.b16 %v1616
          %v2136 = vunpack.c.h.b16 %v1616
          %v2137 = vunpack.c.l.b16 %v1617
          %v2138 = vunpack.c.h.b16 %v1617
          %v2139 = vunpack.c.l.b16 %v1618
          %v2140 = vunpack.c.h.b16 %v1618
          %v2141 = vunpack.c.l.b16 %v1619
          %v2142 = vunpack.c.h.b16 %v1619
          %v2143 = vunpack.c.l.b16 %v1620
          %v2144 = vunpack.c.h.b16 %v1620
          %v2145 = vunpack.c.l.b16 %v1621
          %v2146 = vunpack.c.h.b16 %v1621
          %v2147 = vunpack.c.l.b16 %v1622
          %v2148 = vunpack.c.h.b16 %v1622
          %v2149 = vunpack.c.l.b16 %v1623
          %v2150 = vunpack.c.h.b16 %v1623
          %v2151 = vunpack.c.l.b16 %v1624
          %v2152 = vunpack.c.h.b16 %v1624
          %v2153 = vunpack.c.l.b16 %v1625
          %v2154 = vunpack.c.h.b16 %v1625
          %v2155 = vunpack.c.l.b16 %v1626
          %v2156 = vunpack.c.h.b16 %v1626
          %v2157 = vunpack.c.l.b16 %v1627
          %v2158 = vunpack.c.h.b16 %v1627
          %v2159 = vunpack.c.l.b16 %v1628
          %v2160 = vunpack.c.h.b16 %v1628
          %v2161 = vunpack.c.l.b16 %v1629
          %v2162 = vunpack.c.h.b16 %v1629
          %v2163 = vunpack.c.l.b16 %v1630
          %v2164 = vunpack.c.h.b16 %v1630
          %v2165 = vunpack.c.l.b16 %v1631
          %v2166 = vunpack.c.h.b16 %v1631
          %v2167 = vunpack.c.l.b16 %v1632
          %v2168 = vunpack.c.h.b16 %v1632
          %v2169 = vunpack.c.l.b16 %v1633
          %v2170 = vunpack.c.h.b16 %v1633
          %v2171 = vunpack.c.l.b16 %v1634
          %v2172 = vunpack.c.h.b16 %v1634
          %v2173 = vunpack.c.l.b16 %v1635
          %v2174 = vunpack.c.h.b16 %v1635
          %v2175 = vunpack.c.l.b16 %v1636
          %v2176 = vunpack.c.h.b16 %v1636
          %v2177 = vunpack.c.l.b16 %v1637
          %v2178 = vunpack.c.h.b16 %v1637
          %v2179 = vunpack.c.l.b16 %v1638
          %v2180 = vunpack.c.h.b16 %v1638
          %v2181 = vunpack.c.l.b16 %v1639
          %v2182 = vunpack.c.h.b16 %v1639
          %v2183 = vunpack.c.l.b16 %v1640
          %v2184 = vunpack.c.h.b16 %v1640
          %v2185 = vpack.c.b16 %v1933, %v1929
          %v2186 = vpack.c.b16 %v1934, %v1930
          %v2187 = vpack.c.b16 %v1935, %v1931
          %v2188 = vpack.c.b16 %v1936, %v1932
          %v2189 = vpack.c.b16 %v1941, %v1937
          %v2190 = vpack.c.b16 %v1942, %v1938
          %v2191 = vpack.c.b16 %v1943, %v1939
          %v2192 = vpack.c.b16 %v1944, %v1940
          %v2193 = vpack.c.b16 %v1949, %v1945
          %v2194 = vpack.c.b16 %v1950, %v1946
          %v2195 = vpack.c.b16 %v1951, %v1947
          %v2196 = vpack.c.b16 %v1952, %v1948
          %v2197 = vpack.c.b16 %v1957, %v1953
          %v2198 = vpack.c.b16 %v1958, %v1954
          %v2199 = vpack.c.b16 %v1959, %v1955
          %v2200 = vpack.c.b16 %v1960, %v1956
          %v2201 = vpack.c.b16 %v1965, %v1961
          %v2202 = vpack.c.b16 %v1966, %v1962
          %v2203 = vpack.c.b16 %v1967, %v1963
          %v2204 = vpack.c.b16 %v1968, %v1964
          %v2205 = vpack.c.b16 %v1973, %v1969
          %v2206 = vpack.c.b16 %v1974, %v1970
          %v2207 = vpack.c.b16 %v1975, %v1971
          %v2208 = vpack.c.b16 %v1976, %v1972
          %v2209 = vpack.c.b16 %v1981, %v1977
          %v2210 = vpack.c.b16 %v1982, %v1978
          %v2211 = vpack.c.b16 %v1983, %v1979
          %v2212 = vpack.c.b16 %v1984, %v1980
          %v2213 = vpack.c.b16 %v1989, %v1985
          %v2214 = vpack.c.b16 %v1990, %v1986
          %v2215 = vpack.c.b16 %v1991, %v1987
          %v2216 = vpack.c.b16 %v1992, %v1988
          %v2217 = vpack.c.b16 %v1997, %v1993
          %v2218 = vpack.c.b16 %v1998, %v1994
          %v2219 = vpack.c.b16 %v1999, %v1995
          %v2220 = vpack.c.b16 %v2000, %v1996
          %v2221 = vpack.c.b16 %v2005, %v2001
          %v2222 = vpack.c.b16 %v2006, %v2002
          %v2223 = vpack.c.b16 %v2007, %v2003
          %v2224 = vpack.c.b16 %v2008, %v2004
          %v2225 = vpack.c.b16 %v2013, %v2009
          %v2226 = vpack.c.b16 %v2014, %v2010
          %v2227 = vpack.c.b16 %v2015, %v2011
          %v2228 = vpack.c.b16 %v2016, %v2012
          %v2229 = vpack.c.b16 %v2021, %v2017
          %v2230 = vpack.c.b16 %v2022, %v2018
          %v2231 = vpack.c.b16 %v2023, %v2019
          %v2232 = vpack.c.b16 %v2024, %v2020
          %v2233 = vpack.c.b16 %v2029, %v2025
          %v2234 = vpack.c.b16 %v2030, %v2026
          %v2235 = vpack.c.b16 %v2031, %v2027
          %v2236 = vpack.c.b16 %v2032, %v2028
          %v2237 = vpack.c.b16 %v2037, %v2033
          %v2238 = vpack.c.b16 %v2038, %v2034
          %v2239 = vpack.c.b16 %v2039, %v2035
          %v2240 = vpack.c.b16 %v2040, %v2036
          %v2241 = vpack.c.b16 %v2045, %v2041
          %v2242 = vpack.c.b16 %v2046, %v2042
          %v2243 = vpack.c.b16 %v2047, %v2043
          %v2244 = vpack.c.b16 %v2048, %v2044
          %v2245 = vpack.c.b16 %v2053, %v2049
          %v2246 = vpack.c.b16 %v2054, %v2050
          %v2247 = vpack.c.b16 %v2055, %v2051
          %v2248 = vpack.c.b16 %v2056, %v2052
          %v2249 = vpack.c.b16 %v2061, %v2057
          %v2250 = vpack.c.b16 %v2062, %v2058
          %v2251 = vpack.c.b16 %v2063, %v2059
          %v2252 = vpack.c.b16 %v2064, %v2060
          %v2253 = vpack.c.b16 %v2069, %v2065
          %v2254 = vpack.c.b16 %v2070, %v2066
          %v2255 = vpack.c.b16 %v2071, %v2067
          %v2256 = vpack.c.b16 %v2072, %v2068
          %v2257 = vpack.c.b16 %v2077, %v2073
          %v2258 = vpack.c.b16 %v2078, %v2074
          %v2259 = vpack.c.b16 %v2079, %v2075
          %v2260 = vpack.c.b16 %v2080, %v2076
          %v2261 = vpack.c.b16 %v2085, %v2081
          %v2262 = vpack.c.b16 %v2086, %v2082
          %v2263 = vpack.c.b16 %v2087, %v2083
          %v2264 = vpack.c.b16 %v2088, %v2084
          %v2265 = vpack.c.b16 %v2093, %v2089
          %v2266 = vpack.c.b16 %v2094, %v2090
          %v2267 = vpack.c.b16 %v2095, %v2091
          %v2268 = vpack.c.b16 %v2096, %v2092
          %v2269 = vpack.c.b16 %v2101, %v2097
          %v2270 = vpack.c.b16 %v2102, %v2098
          %v2271 = vpack.c.b16 %v2103, %v2099
          %v2272 = vpack.c.b16 %v2104, %v2100
          %v2273 = vpack.c.b16 %v2109, %v2105
          %v2274 = vpack.c.b16 %v2110, %v2106
          %v2275 = vpack.c.b16 %v2111, %v2107
          %v2276 = vpack.c.b16 %v2112, %v2108
          %v2277 = vpack.c.b16 %v2117, %v2113
          %v2278 = vpack.c.b16 %v2118, %v2114
          %v2279 = vpack.c.b16 %v2119, %v2115
          %v2280 = vpack.c.b16 %v2120, %v2116
          %v2281 = vpack.c.b16 %v2125, %v2121
          %v2282 = vpack.c.b16 %v2126, %v2122
          %v2283 = vpack.c.b16 %v2127, %v2123
          %v2284 = vpack.c.b16 %v2128, %v2124
          %v2285 = vpack.c.b16 %v2133, %v2129
          %v2286 = vpack.c.b16 %v2134, %v2130
          %v2287 = vpack.c.b16 %v2135, %v2131
          %v2288 = vpack.c.b16 %v2136, %v2132
          %v2289 = vpack.c.b16 %v2141, %v2137
          %v2290 = vpack.c.b16 %v2142, %v2138
          %v2291 = vpack.c.b16 %v2143, %v2139
          %v2292 = vpack.c.b16 %v2144, %v2140
          %v2293 = vpack.c.b16 %v2149, %v2145
          %v2294 = vpack.c.b16 %v2150, %v2146
          %v2295 = vpack.c.b16 %v2151, %v2147
          %v2296 = vpack.c.b16 %v2152, %v2148
          %v2297 = vpack.c.b16 %v2157, %v2153
          %v2298 = vpack.c.b16 %v2158, %v2154
          %v2299 = vpack.c.b16 %v2159, %v2155
          %v2300 = vpack.c.b16 %v2160, %v2156
          %v2301 = vpack.c.b16 %v2165, %v2161
          %v2302 = vpack.c.b16 %v2166, %v2162
          %v2303 = vpack.c.b16 %v2167, %v2163
          %v2304 = vpack.c.b16 %v2168, %v2164
          %v2305 = vpack.c.b16 %v2173, %v2169
          %v2306 = vpack.c.b16 %v2174, %v2170
          %v2307 = vpack.c.b16 %v2175, %v2171
          %v2308 = vpack.c.b16 %v2176, %v2172
          %v2309 = vpack.c.b16 %v2181, %v2177
          %v2310 = vpack.c.b16 %v2182, %v2178
          %v2311 = vpack.c.b16 %v2183, %v2179
          %v2312 = vpack.c.b16 %v2184, %v2180
          %2441 = vmatpush.bf16.msra.mxu0 %v2213
          %2442 = vmatpush.bf16.msra.mxu0 %v2209
          %2443 = vmatpush.bf16.msra.mxu0 %v2205
          %2444 = vmatpush.bf16.msra.mxu0 %v2201
          %2445 = vmatpush.bf16.msra.mxu0 %v2197
          %2446 = vmatpush.bf16.msra.mxu0 %v2193
          %2447 = vmatpush.bf16.msra.mxu0 %v2189
          %2448 = vmatpush.bf16.msra.mxu0 %v2185
          %2449 = vmatmul.bf16.gmra.mxu0 %v1737
          %v2450 = vpop.f32.mrf.mxu0
          %v2451 = vadd.f32 0.0, %v2450
          %v2452 = vpop.f32.mrf.mxu0
          %v2453 = vadd.f32 0.0, %v2452
          %2454 = vmatmul.bf16.gmra.mxu0 %v1741
          %v2455 = vpop.f32.mrf.mxu0
          %v2456 = vadd.f32 0.0, %v2455
          %v2457 = vpop.f32.mrf.mxu0
          %v2458 = vadd.f32 0.0, %v2457
          %2459 = vmatmul.bf16.gmra.mxu0 %v1745
          %v2460 = vpop.f32.mrf.mxu0
          %v2461 = vadd.f32 0.0, %v2460
          %v2462 = vpop.f32.mrf.mxu0
          %v2463 = vadd.f32 0.0, %v2462
          %2464 = vmatmul.bf16.gmra.mxu0 %v1749
          %v2465 = vpop.f32.mrf.mxu0
          %v2466 = vadd.f32 0.0, %v2465
          %v2467 = vpop.f32.mrf.mxu0
          %v2468 = vadd.f32 0.0, %v2467
          %2469 = vmatmul.bf16.gmra.mxu0 %v1753
          %v2470 = vpop.f32.mrf.mxu0
          %v2471 = vadd.f32 0.0, %v2470
          %v2472 = vpop.f32.mrf.mxu0
          %v2473 = vadd.f32 0.0, %v2472
          %2474 = vmatmul.bf16.gmra.mxu0 %v1757
          %v2475 = vpop.f32.mrf.mxu0
          %v2476 = vadd.f32 0.0, %v2475
          %v2477 = vpop.f32.mrf.mxu0
          %v2478 = vadd.f32 0.0, %v2477
          %2479 = vmatmul.bf16.gmra.mxu0 %v1761
          %v2480 = vpop.f32.mrf.mxu0
          %v2481 = vadd.f32 0.0, %v2480
          %v2482 = vpop.f32.mrf.mxu0
          %v2483 = vadd.f32 0.0, %v2482
          %2484 = vmatmul.bf16.gmra.mxu0 %v1765
          %v2485 = vpop.f32.mrf.mxu0
          %v2486 = vadd.f32 0.0, %v2485
          %v2487 = vpop.f32.mrf.mxu0
          %v2488 = vadd.f32 0.0, %v2487
          %2489 = vdwg.mxu0
          %2490 = vmatpush.bf16.msra.mxu0 %v2245
          %2491 = vmatpush.bf16.msra.mxu0 %v2241
          %2492 = vmatpush.bf16.msra.mxu0 %v2237
          %2493 = vmatpush.bf16.msra.mxu0 %v2233
          %2494 = vmatpush.bf16.msra.mxu0 %v2229
          %2495 = vmatpush.bf16.msra.mxu0 %v2225
          %2496 = vmatpush.bf16.msra.mxu0 %v2221
          %2497 = vmatpush.bf16.msra.mxu0 %v2217
          %2498 = vmatmul.bf16.gmra.mxu0 %v1738
          %v2499 = vpop.f32.mrf.mxu0
          %v2500 = vadd.f32 %v2451, %v2499
          %v2501 = vpop.f32.mrf.mxu0
          %v2502 = vadd.f32 %v2453, %v2501
          %2503 = vmatmul.bf16.gmra.mxu0 %v1742
          %v2504 = vpop.f32.mrf.mxu0
          %v2505 = vadd.f32 %v2456, %v2504
          %v2506 = vpop.f32.mrf.mxu0
          %v2507 = vadd.f32 %v2458, %v2506
          %2508 = vmatmul.bf16.gmra.mxu0 %v1746
          %v2509 = vpop.f32.mrf.mxu0
          %v2510 = vadd.f32 %v2461, %v2509
          %v2511 = vpop.f32.mrf.mxu0
          %v2512 = vadd.f32 %v2463, %v2511
          %2513 = vmatmul.bf16.gmra.mxu0 %v1750
          %v2514 = vpop.f32.mrf.mxu0
          %v2515 = vadd.f32 %v2466, %v2514
          %v2516 = vpop.f32.mrf.mxu0
          %v2517 = vadd.f32 %v2468, %v2516
          %2518 = vmatmul.bf16.gmra.mxu0 %v1754
          %v2519 = vpop.f32.mrf.mxu0
          %v2520 = vadd.f32 %v2471, %v2519
          %v2521 = vpop.f32.mrf.mxu0
          %v2522 = vadd.f32 %v2473, %v2521
          %2523 = vmatmul.bf16.gmra.mxu0 %v1758
          %v2524 = vpop.f32.mrf.mxu0
          %v2525 = vadd.f32 %v2476, %v2524
          %v2526 = vpop.f32.mrf.mxu0
          %v2527 = vadd.f32 %v2478, %v2526
          %2528 = vmatmul.bf16.gmra.mxu0 %v1762
          %v2529 = vpop.f32.mrf.mxu0
          %v2530 = vadd.f32 %v2481, %v2529
          %v2531 = vpop.f32.mrf.mxu0
          %v2532 = vadd.f32 %v2483, %v2531
          %2533 = vmatmul.bf16.gmra.mxu0 %v1766
          %v2534 = vpop.f32.mrf.mxu0
          %v2535 = vadd.f32 %v2486, %v2534
          %v2536 = vpop.f32.mrf.mxu0
          %v2537 = vadd.f32 %v2488, %v2536
          %2538 = vdwg.mxu0
          %2539 = vmatpush.bf16.msra.mxu0 %v2277
          %2540 = vmatpush.bf16.msra.mxu0 %v2273
          %2541 = vmatpush.bf16.msra.mxu0 %v2269
          %2542 = vmatpush.bf16.msra.mxu0 %v2265
          %2543 = vmatpush.bf16.msra.mxu0 %v2261
          %2544 = vmatpush.bf16.msra.mxu0 %v2257
          %2545 = vmatpush.bf16.msra.mxu0 %v2253
          %2546 = vmatpush.bf16.msra.mxu0 %v2249
          %2547 = vmatmul.bf16.gmra.mxu0 %v1739
          %v2548 = vpop.f32.mrf.mxu0
          %v2549 = vadd.f32 %v2500, %v2548
          %v2550 = vpop.f32.mrf.mxu0
          %v2551 = vadd.f32 %v2502, %v2550
          %2552 = vmatmul.bf16.gmra.mxu0 %v1743
          %v2553 = vpop.f32.mrf.mxu0
          %v2554 = vadd.f32 %v2505, %v2553
          %v2555 = vpop.f32.mrf.mxu0
          %v2556 = vadd.f32 %v2507, %v2555
          %2557 = vmatmul.bf16.gmra.mxu0 %v1747
          %v2558 = vpop.f32.mrf.mxu0
          %v2559 = vadd.f32 %v2510, %v2558
          %v2560 = vpop.f32.mrf.mxu0
          %v2561 = vadd.f32 %v2512, %v2560
          %2562 = vmatmul.bf16.gmra.mxu0 %v1751
          %v2563 = vpop.f32.mrf.mxu0
          %v2564 = vadd.f32 %v2515, %v2563
          %v2565 = vpop.f32.mrf.mxu0
          %v2566 = vadd.f32 %v2517, %v2565
          %2567 = vmatmul.bf16.gmra.mxu0 %v1755
          %v2568 = vpop.f32.mrf.mxu0
          %v2569 = vadd.f32 %v2520, %v2568
          %v2570 = vpop.f32.mrf.mxu0
          %v2571 = vadd.f32 %v2522, %v2570
          %2572 = vmatmul.bf16.gmra.mxu0 %v1759
          %v2573 = vpop.f32.mrf.mxu0
          %v2574 = vadd.f32 %v2525, %v2573
          %v2575 = vpop.f32.mrf.mxu0
          %v2576 = vadd.f32 %v2527, %v2575
          %2577 = vmatmul.bf16.gmra.mxu0 %v1763
          %v2578 = vpop.f32.mrf.mxu0
          %v2579 = vadd.f32 %v2530, %v2578
          %v2580 = vpop.f32.mrf.mxu0
          %v2581 = vadd.f32 %v2532, %v2580
          %2582 = vmatmul.bf16.gmra.mxu0 %v1767
          %v2583 = vpop.f32.mrf.mxu0
          %v2584 = vadd.f32 %v2535, %v2583
          %v2585 = vpop.f32.mrf.mxu0
          %v2586 = vadd.f32 %v2537, %v2585
          %2587 = vdwg.mxu0
          %2588 = vmatpush.bf16.msra.mxu0 %v2309
          %2589 = vmatpush.bf16.msra.mxu0 %v2305
          %2590 = vmatpush.bf16.msra.mxu0 %v2301
          %2591 = vmatpush.bf16.msra.mxu0 %v2297
          %2592 = vmatpush.bf16.msra.mxu0 %v2293
          %2593 = vmatpush.bf16.msra.mxu0 %v2289
          %2594 = vmatpush.bf16.msra.mxu0 %v2285
          %2595 = vmatpush.bf16.msra.mxu0 %v2281
          %2596 = vmatmul.bf16.gmra.mxu0 %v1740
          %v2597 = vpop.f32.mrf.mxu0
          %v2598 = vadd.f32 %v2549, %v2597
          %v2599 = vpop.f32.mrf.mxu0
          %v2600 = vadd.f32 %v2551, %v2599
          %2601 = vmatmul.bf16.gmra.mxu0 %v1744
          %v2602 = vpop.f32.mrf.mxu0
          %v2603 = vadd.f32 %v2554, %v2602
          %v2604 = vpop.f32.mrf.mxu0
          %v2605 = vadd.f32 %v2556, %v2604
          %2606 = vmatmul.bf16.gmra.mxu0 %v1748
          %v2607 = vpop.f32.mrf.mxu0
          %v2608 = vadd.f32 %v2559, %v2607
          %v2609 = vpop.f32.mrf.mxu0
          %v2610 = vadd.f32 %v2561, %v2609
          %2611 = vmatmul.bf16.gmra.mxu0 %v1752
          %v2612 = vpop.f32.mrf.mxu0
          %v2613 = vadd.f32 %v2564, %v2612
          %v2614 = vpop.f32.mrf.mxu0
          %v2615 = vadd.f32 %v2566, %v2614
          %2616 = vmatmul.bf16.gmra.mxu0 %v1756
          %v2617 = vpop.f32.mrf.mxu0
          %v2618 = vadd.f32 %v2569, %v2617
          %v2619 = vpop.f32.mrf.mxu0
          %v2620 = vadd.f32 %v2571, %v2619
          %2621 = vmatmul.bf16.gmra.mxu0 %v1760
          %v2622 = vpop.f32.mrf.mxu0
          %v2623 = vadd.f32 %v2574, %v2622
          %v2624 = vpop.f32.mrf.mxu0
          %v2625 = vadd.f32 %v2576, %v2624
          %2626 = vmatmul.bf16.gmra.mxu0 %v1764
          %v2627 = vpop.f32.mrf.mxu0
          %v2628 = vadd.f32 %v2579, %v2627
          %v2629 = vpop.f32.mrf.mxu0
          %v2630 = vadd.f32 %v2581, %v2629
          %2631 = vmatmul.bf16.gmra.mxu0 %v1768
          %v2632 = vpop.f32.mrf.mxu0
          %v2633 = vadd.f32 %v2584, %v2632
          %v2634 = vpop.f32.mrf.mxu0
          %v2635 = vadd.f32 %v2586, %v2634
          %2636 = vdwg.mxu0
          %2637 = vmatpush.bf16.msra.mxu0 %v2214
          %2638 = vmatpush.bf16.msra.mxu0 %v2210
          %2639 = vmatpush.bf16.msra.mxu0 %v2206
          %2640 = vmatpush.bf16.msra.mxu0 %v2202
          %2641 = vmatpush.bf16.msra.mxu0 %v2198
          %2642 = vmatpush.bf16.msra.mxu0 %v2194
          %2643 = vmatpush.bf16.msra.mxu0 %v2190
          %2644 = vmatpush.bf16.msra.mxu0 %v2186
          %2645 = vmatmul.bf16.gmra.mxu0 %v1737
          %v2646 = vpop.f32.mrf.mxu0
          %v2647 = vadd.f32 0.0, %v2646
          %v2648 = vpop.f32.mrf.mxu0
          %v2649 = vadd.f32 0.0, %v2648
          %2650 = vmatmul.bf16.gmra.mxu0 %v1741
          %v2651 = vpop.f32.mrf.mxu0
          %v2652 = vadd.f32 0.0, %v2651
          %v2653 = vpop.f32.mrf.mxu0
          %v2654 = vadd.f32 0.0, %v2653
          %2655 = vmatmul.bf16.gmra.mxu0 %v1745
          %v2656 = vpop.f32.mrf.mxu0
          %v2657 = vadd.f32 0.0, %v2656
          %v2658 = vpop.f32.mrf.mxu0
          %v2659 = vadd.f32 0.0, %v2658
          %2660 = vmatmul.bf16.gmra.mxu0 %v1749
          %v2661 = vpop.f32.mrf.mxu0
          %v2662 = vadd.f32 0.0, %v2661
          %v2663 = vpop.f32.mrf.mxu0
          %v2664 = vadd.f32 0.0, %v2663
          %2665 = vmatmul.bf16.gmra.mxu0 %v1753
          %v2666 = vpop.f32.mrf.mxu0
          %v2667 = vadd.f32 0.0, %v2666
          %v2668 = vpop.f32.mrf.mxu0
          %v2669 = vadd.f32 0.0, %v2668
          %2670 = vmatmul.bf16.gmra.mxu0 %v1757
          %v2671 = vpop.f32.mrf.mxu0
          %v2672 = vadd.f32 0.0, %v2671
          %v2673 = vpop.f32.mrf.mxu0
          %v2674 = vadd.f32 0.0, %v2673
          %2675 = vmatmul.bf16.gmra.mxu0 %v1761
          %v2676 = vpop.f32.mrf.mxu0
          %v2677 = vadd.f32 0.0, %v2676
          %v2678 = vpop.f32.mrf.mxu0
          %v2679 = vadd.f32 0.0, %v2678
          %2680 = vmatmul.bf16.gmra.mxu0 %v1765
          %v2681 = vpop.f32.mrf.mxu0
          %v2682 = vadd.f32 0.0, %v2681
          %v2683 = vpop.f32.mrf.mxu0
          %v2684 = vadd.f32 0.0, %v2683
          %2685 = vdwg.mxu0
          %2686 = vmatpush.bf16.msra.mxu0 %v2246
          %2687 = vmatpush.bf16.msra.mxu0 %v2242
          %2688 = vmatpush.bf16.msra.mxu0 %v2238
          %2689 = vmatpush.bf16.msra.mxu0 %v2234
          %2690 = vmatpush.bf16.msra.mxu0 %v2230
          %2691 = vmatpush.bf16.msra.mxu0 %v2226
          %2692 = vmatpush.bf16.msra.mxu0 %v2222
          %2693 = vmatpush.bf16.msra.mxu0 %v2218
          %2694 = vmatmul.bf16.gmra.mxu0 %v1738
          %v2695 = vpop.f32.mrf.mxu0
          %v2696 = vadd.f32 %v2647, %v2695
          %v2697 = vpop.f32.mrf.mxu0
          %v2698 = vadd.f32 %v2649, %v2697
          %2699 = vmatmul.bf16.gmra.mxu0 %v1742
          %v2700 = vpop.f32.mrf.mxu0
          %v2701 = vadd.f32 %v2652, %v2700
          %v2702 = vpop.f32.mrf.mxu0
          %v2703 = vadd.f32 %v2654, %v2702
          %2704 = vmatmul.bf16.gmra.mxu0 %v1746
          %v2705 = vpop.f32.mrf.mxu0
          %v2706 = vadd.f32 %v2657, %v2705
          %v2707 = vpop.f32.mrf.mxu0
          %v2708 = vadd.f32 %v2659, %v2707
          %2709 = vmatmul.bf16.gmra.mxu0 %v1750
          %v2710 = vpop.f32.mrf.mxu0
          %v2711 = vadd.f32 %v2662, %v2710
          %v2712 = vpop.f32.mrf.mxu0
          %v2713 = vadd.f32 %v2664, %v2712
          %2714 = vmatmul.bf16.gmra.mxu0 %v1754
          %v2715 = vpop.f32.mrf.mxu0
          %v2716 = vadd.f32 %v2667, %v2715
          %v2717 = vpop.f32.mrf.mxu0
          %v2718 = vadd.f32 %v2669, %v2717
          %2719 = vmatmul.bf16.gmra.mxu0 %v1758
          %v2720 = vpop.f32.mrf.mxu0
          %v2721 = vadd.f32 %v2672, %v2720
          %v2722 = vpop.f32.mrf.mxu0
          %v2723 = vadd.f32 %v2674, %v2722
          %2724 = vmatmul.bf16.gmra.mxu0 %v1762
          %v2725 = vpop.f32.mrf.mxu0
          %v2726 = vadd.f32 %v2677, %v2725
          %v2727 = vpop.f32.mrf.mxu0
          %v2728 = vadd.f32 %v2679, %v2727
          %2729 = vmatmul.bf16.gmra.mxu0 %v1766
          %v2730 = vpop.f32.mrf.mxu0
          %v2731 = vadd.f32 %v2682, %v2730
          %v2732 = vpop.f32.mrf.mxu0
          %v2733 = vadd.f32 %v2684, %v2732
          %2734 = vdwg.mxu0
          %2735 = vmatpush.bf16.msra.mxu0 %v2278
          %2736 = vmatpush.bf16.msra.mxu0 %v2274
          %2737 = vmatpush.bf16.msra.mxu0 %v2270
          %2738 = vmatpush.bf16.msra.mxu0 %v2266
          %2739 = vmatpush.bf16.msra.mxu0 %v2262
          %2740 = vmatpush.bf16.msra.mxu0 %v2258
          %2741 = vmatpush.bf16.msra.mxu0 %v2254
          %2742 = vmatpush.bf16.msra.mxu0 %v2250
          %2743 = vmatmul.bf16.gmra.mxu0 %v1739
          %v2744 = vpop.f32.mrf.mxu0
          %v2745 = vadd.f32 %v2696, %v2744
          %v2746 = vpop.f32.mrf.mxu0
          %v2747 = vadd.f32 %v2698, %v2746
          %2748 = vmatmul.bf16.gmra.mxu0 %v1743
          %v2749 = vpop.f32.mrf.mxu0
          %v2750 = vadd.f32 %v2701, %v2749
          %v2751 = vpop.f32.mrf.mxu0
          %v2752 = vadd.f32 %v2703, %v2751
          %2753 = vmatmul.bf16.gmra.mxu0 %v1747
          %v2754 = vpop.f32.mrf.mxu0
          %v2755 = vadd.f32 %v2706, %v2754
          %v2756 = vpop.f32.mrf.mxu0
          %v2757 = vadd.f32 %v2708, %v2756
          %2758 = vmatmul.bf16.gmra.mxu0 %v1751
          %v2759 = vpop.f32.mrf.mxu0
          %v2760 = vadd.f32 %v2711, %v2759
          %v2761 = vpop.f32.mrf.mxu0
          %v2762 = vadd.f32 %v2713, %v2761
          %2763 = vmatmul.bf16.gmra.mxu0 %v1755
          %v2764 = vpop.f32.mrf.mxu0
          %v2765 = vadd.f32 %v2716, %v2764
          %v2766 = vpop.f32.mrf.mxu0
          %v2767 = vadd.f32 %v2718, %v2766
          %2768 = vmatmul.bf16.gmra.mxu0 %v1759
          %v2769 = vpop.f32.mrf.mxu0
          %v2770 = vadd.f32 %v2721, %v2769
          %v2771 = vpop.f32.mrf.mxu0
          %v2772 = vadd.f32 %v2723, %v2771
          %2773 = vmatmul.bf16.gmra.mxu0 %v1763
          %v2774 = vpop.f32.mrf.mxu0
          %v2775 = vadd.f32 %v2726, %v2774
          %v2776 = vpop.f32.mrf.mxu0
          %v2777 = vadd.f32 %v2728, %v2776
          %2778 = vmatmul.bf16.gmra.mxu0 %v1767
          %v2779 = vpop.f32.mrf.mxu0
          %v2780 = vadd.f32 %v2731, %v2779
          %v2781 = vpop.f32.mrf.mxu0
          %v2782 = vadd.f32 %v2733, %v2781
          %2783 = vdwg.mxu0
          %2784 = vmatpush.bf16.msra.mxu0 %v2310
          %2785 = vmatpush.bf16.msra.mxu0 %v2306
          %2786 = vmatpush.bf16.msra.mxu0 %v2302
          %2787 = vmatpush.bf16.msra.mxu0 %v2298
          %2788 = vmatpush.bf16.msra.mxu0 %v2294
          %2789 = vmatpush.bf16.msra.mxu0 %v2290
          %2790 = vmatpush.bf16.msra.mxu0 %v2286
          %2791 = vmatpush.bf16.msra.mxu0 %v2282
          %2792 = vmatmul.bf16.gmra.mxu0 %v1740
          %v2793 = vpop.f32.mrf.mxu0
          %v2794 = vadd.f32 %v2745, %v2793
          %v2795 = vpop.f32.mrf.mxu0
          %v2796 = vadd.f32 %v2747, %v2795
          %2797 = vmatmul.bf16.gmra.mxu0 %v1744
          %v2798 = vpop.f32.mrf.mxu0
          %v2799 = vadd.f32 %v2750, %v2798
          %v2800 = vpop.f32.mrf.mxu0
          %v2801 = vadd.f32 %v2752, %v2800
          %2802 = vmatmul.bf16.gmra.mxu0 %v1748
          %v2803 = vpop.f32.mrf.mxu0
          %v2804 = vadd.f32 %v2755, %v2803
          %v2805 = vpop.f32.mrf.mxu0
          %v2806 = vadd.f32 %v2757, %v2805
          %2807 = vmatmul.bf16.gmra.mxu0 %v1752
          %v2808 = vpop.f32.mrf.mxu0
          %v2809 = vadd.f32 %v2760, %v2808
          %v2810 = vpop.f32.mrf.mxu0
          %v2811 = vadd.f32 %v2762, %v2810
          %2812 = vmatmul.bf16.gmra.mxu0 %v1756
          %v2813 = vpop.f32.mrf.mxu0
          %v2814 = vadd.f32 %v2765, %v2813
          %v2815 = vpop.f32.mrf.mxu0
          %v2816 = vadd.f32 %v2767, %v2815
          %2817 = vmatmul.bf16.gmra.mxu0 %v1760
          %v2818 = vpop.f32.mrf.mxu0
          %v2819 = vadd.f32 %v2770, %v2818
          %v2820 = vpop.f32.mrf.mxu0
          %v2821 = vadd.f32 %v2772, %v2820
          %2822 = vmatmul.bf16.gmra.mxu0 %v1764
          %v2823 = vpop.f32.mrf.mxu0
          %v2824 = vadd.f32 %v2775, %v2823
          %v2825 = vpop.f32.mrf.mxu0
          %v2826 = vadd.f32 %v2777, %v2825
          %2827 = vmatmul.bf16.gmra.mxu0 %v1768
          %v2828 = vpop.f32.mrf.mxu0
          %v2829 = vadd.f32 %v2780, %v2828
          %v2830 = vpop.f32.mrf.mxu0
          %v2831 = vadd.f32 %v2782, %v2830
          %2832 = vdwg.mxu0
          %2833 = vmatpush.bf16.msra.mxu0 %v2215
          %2834 = vmatpush.bf16.msra.mxu0 %v2211
          %2835 = vmatpush.bf16.msra.mxu0 %v2207
          %2836 = vmatpush.bf16.msra.mxu0 %v2203
          %2837 = vmatpush.bf16.msra.mxu0 %v2199
          %2838 = vmatpush.bf16.msra.mxu0 %v2195
          %2839 = vmatpush.bf16.msra.mxu0 %v2191
          %2840 = vmatpush.bf16.msra.mxu0 %v2187
          %2841 = vmatmul.bf16.gmra.mxu0 %v1737
          %v2842 = vpop.f32.mrf.mxu0
          %v2843 = vadd.f32 0.0, %v2842
          %v2844 = vpop.f32.mrf.mxu0
          %v2845 = vadd.f32 0.0, %v2844
          %2846 = vmatmul.bf16.gmra.mxu0 %v1741
          %v2847 = vpop.f32.mrf.mxu0
          %v2848 = vadd.f32 0.0, %v2847
          %v2849 = vpop.f32.mrf.mxu0
          %v2850 = vadd.f32 0.0, %v2849
          %2851 = vmatmul.bf16.gmra.mxu0 %v1745
          %v2852 = vpop.f32.mrf.mxu0
          %v2853 = vadd.f32 0.0, %v2852
          %v2854 = vpop.f32.mrf.mxu0
          %v2855 = vadd.f32 0.0, %v2854
          %2856 = vmatmul.bf16.gmra.mxu0 %v1749
          %v2857 = vpop.f32.mrf.mxu0
          %v2858 = vadd.f32 0.0, %v2857
          %v2859 = vpop.f32.mrf.mxu0
          %v2860 = vadd.f32 0.0, %v2859
          %2861 = vmatmul.bf16.gmra.mxu0 %v1753
          %v2862 = vpop.f32.mrf.mxu0
          %v2863 = vadd.f32 0.0, %v2862
          %v2864 = vpop.f32.mrf.mxu0
          %v2865 = vadd.f32 0.0, %v2864
          %2866 = vmatmul.bf16.gmra.mxu0 %v1757
          %v2867 = vpop.f32.mrf.mxu0
          %v2868 = vadd.f32 0.0, %v2867
          %v2869 = vpop.f32.mrf.mxu0
          %v2870 = vadd.f32 0.0, %v2869
          %2871 = vmatmul.bf16.gmra.mxu0 %v1761
          %v2872 = vpop.f32.mrf.mxu0
          %v2873 = vadd.f32 0.0, %v2872
          %v2874 = vpop.f32.mrf.mxu0
          %v2875 = vadd.f32 0.0, %v2874
          %2876 = vmatmul.bf16.gmra.mxu0 %v1765
          %v2877 = vpop.f32.mrf.mxu0
          %v2878 = vadd.f32 0.0, %v2877
          %v2879 = vpop.f32.mrf.mxu0
          %v2880 = vadd.f32 0.0, %v2879
          %2881 = vdwg.mxu0
          %2882 = vmatpush.bf16.msra.mxu0 %v2247
          %2883 = vmatpush.bf16.msra.mxu0 %v2243
          %2884 = vmatpush.bf16.msra.mxu0 %v2239
          %2885 = vmatpush.bf16.msra.mxu0 %v2235
          %2886 = vmatpush.bf16.msra.mxu0 %v2231
          %2887 = vmatpush.bf16.msra.mxu0 %v2227
          %2888 = vmatpush.bf16.msra.mxu0 %v2223
          %2889 = vmatpush.bf16.msra.mxu0 %v2219
          %2890 = vmatmul.bf16.gmra.mxu0 %v1738
          %v2891 = vpop.f32.mrf.mxu0
          %v2892 = vadd.f32 %v2843, %v2891
          %v2893 = vpop.f32.mrf.mxu0
          %v2894 = vadd.f32 %v2845, %v2893
          %2895 = vmatmul.bf16.gmra.mxu0 %v1742
          %v2896 = vpop.f32.mrf.mxu0
          %v2897 = vadd.f32 %v2848, %v2896
          %v2898 = vpop.f32.mrf.mxu0
          %v2899 = vadd.f32 %v2850, %v2898
          %2900 = vmatmul.bf16.gmra.mxu0 %v1746
          %v2901 = vpop.f32.mrf.mxu0
          %v2902 = vadd.f32 %v2853, %v2901
          %v2903 = vpop.f32.mrf.mxu0
          %v2904 = vadd.f32 %v2855, %v2903
          %2905 = vmatmul.bf16.gmra.mxu0 %v1750
          %v2906 = vpop.f32.mrf.mxu0
          %v2907 = vadd.f32 %v2858, %v2906
          %v2908 = vpop.f32.mrf.mxu0
          %v2909 = vadd.f32 %v2860, %v2908
          %2910 = vmatmul.bf16.gmra.mxu0 %v1754
          %v2911 = vpop.f32.mrf.mxu0
          %v2912 = vadd.f32 %v2863, %v2911
          %v2913 = vpop.f32.mrf.mxu0
          %v2914 = vadd.f32 %v2865, %v2913
          %2915 = vmatmul.bf16.gmra.mxu0 %v1758
          %v2916 = vpop.f32.mrf.mxu0
          %v2917 = vadd.f32 %v2868, %v2916
          %v2918 = vpop.f32.mrf.mxu0
          %v2919 = vadd.f32 %v2870, %v2918
          %2920 = vmatmul.bf16.gmra.mxu0 %v1762
          %v2921 = vpop.f32.mrf.mxu0
          %v2922 = vadd.f32 %v2873, %v2921
          %v2923 = vpop.f32.mrf.mxu0
          %v2924 = vadd.f32 %v2875, %v2923
          %2925 = vmatmul.bf16.gmra.mxu0 %v1766
          %v2926 = vpop.f32.mrf.mxu0
          %v2927 = vadd.f32 %v2878, %v2926
          %v2928 = vpop.f32.mrf.mxu0
          %v2929 = vadd.f32 %v2880, %v2928
          %2930 = vdwg.mxu0
          %2931 = vmatpush.bf16.msra.mxu0 %v2279
          %2932 = vmatpush.bf16.msra.mxu0 %v2275
          %2933 = vmatpush.bf16.msra.mxu0 %v2271
          %2934 = vmatpush.bf16.msra.mxu0 %v2267
          %2935 = vmatpush.bf16.msra.mxu0 %v2263
          %2936 = vmatpush.bf16.msra.mxu0 %v2259
          %2937 = vmatpush.bf16.msra.mxu0 %v2255
          %2938 = vmatpush.bf16.msra.mxu0 %v2251
          %2939 = vmatmul.bf16.gmra.mxu0 %v1739
          %v2940 = vpop.f32.mrf.mxu0
          %v2941 = vadd.f32 %v2892, %v2940
          %v2942 = vpop.f32.mrf.mxu0
          %v2943 = vadd.f32 %v2894, %v2942
          %2944 = vmatmul.bf16.gmra.mxu0 %v1743
          %v2945 = vpop.f32.mrf.mxu0
          %v2946 = vadd.f32 %v2897, %v2945
          %v2947 = vpop.f32.mrf.mxu0
          %v2948 = vadd.f32 %v2899, %v2947
          %2949 = vmatmul.bf16.gmra.mxu0 %v1747
          %v2950 = vpop.f32.mrf.mxu0
          %v2951 = vadd.f32 %v2902, %v2950
          %v2952 = vpop.f32.mrf.mxu0
          %v2953 = vadd.f32 %v2904, %v2952
          %2954 = vmatmul.bf16.gmra.mxu0 %v1751
          %v2955 = vpop.f32.mrf.mxu0
          %v2956 = vadd.f32 %v2907, %v2955
          %v2957 = vpop.f32.mrf.mxu0
          %v2958 = vadd.f32 %v2909, %v2957
          %2959 = vmatmul.bf16.gmra.mxu0 %v1755
          %v2960 = vpop.f32.mrf.mxu0
          %v2961 = vadd.f32 %v2912, %v2960
          %v2962 = vpop.f32.mrf.mxu0
          %v2963 = vadd.f32 %v2914, %v2962
          %2964 = vmatmul.bf16.gmra.mxu0 %v1759
          %v2965 = vpop.f32.mrf.mxu0
          %v2966 = vadd.f32 %v2917, %v2965
          %v2967 = vpop.f32.mrf.mxu0
          %v2968 = vadd.f32 %v2919, %v2967
          %2969 = vmatmul.bf16.gmra.mxu0 %v1763
          %v2970 = vpop.f32.mrf.mxu0
          %v2971 = vadd.f32 %v2922, %v2970
          %v2972 = vpop.f32.mrf.mxu0
          %v2973 = vadd.f32 %v2924, %v2972
          %2974 = vmatmul.bf16.gmra.mxu0 %v1767
          %v2975 = vpop.f32.mrf.mxu0
          %v2976 = vadd.f32 %v2927, %v2975
          %v2977 = vpop.f32.mrf.mxu0
          %v2978 = vadd.f32 %v2929, %v2977
          %2979 = vdwg.mxu0
          %2980 = vmatpush.bf16.msra.mxu0 %v2311
          %2981 = vmatpush.bf16.msra.mxu0 %v2307
          %2982 = vmatpush.bf16.msra.mxu0 %v2303
          %2983 = vmatpush.bf16.msra.mxu0 %v2299
          %2984 = vmatpush.bf16.msra.mxu0 %v2295
          %2985 = vmatpush.bf16.msra.mxu0 %v2291
          %2986 = vmatpush.bf16.msra.mxu0 %v2287
          %2987 = vmatpush.bf16.msra.mxu0 %v2283
          %2988 = vmatmul.bf16.gmra.mxu0 %v1740
          %v2989 = vpop.f32.mrf.mxu0
          %v2990 = vadd.f32 %v2941, %v2989
          %v2991 = vpop.f32.mrf.mxu0
          %v2992 = vadd.f32 %v2943, %v2991
          %2993 = vmatmul.bf16.gmra.mxu0 %v1744
          %v2994 = vpop.f32.mrf.mxu0
          %v2995 = vadd.f32 %v2946, %v2994
          %v2996 = vpop.f32.mrf.mxu0
          %v2997 = vadd.f32 %v2948, %v2996
          %2998 = vmatmul.bf16.gmra.mxu0 %v1748
          %v2999 = vpop.f32.mrf.mxu0
          %v3000 = vadd.f32 %v2951, %v2999
          %v3001 = vpop.f32.mrf.mxu0
          %v3002 = vadd.f32 %v2953, %v3001
          %3003 = vmatmul.bf16.gmra.mxu0 %v1752
          %v3004 = vpop.f32.mrf.mxu0
          %v3005 = vadd.f32 %v2956, %v3004
          %v3006 = vpop.f32.mrf.mxu0
          %v3007 = vadd.f32 %v2958, %v3006
          %3008 = vmatmul.bf16.gmra.mxu0 %v1756
          %v3009 = vpop.f32.mrf.mxu0
          %v3010 = vadd.f32 %v2961, %v3009
          %v3011 = vpop.f32.mrf.mxu0
          %v3012 = vadd.f32 %v2963, %v3011
          %3013 = vmatmul.bf16.gmra.mxu0 %v1760
          %v3014 = vpop.f32.mrf.mxu0
          %v3015 = vadd.f32 %v2966, %v3014
          %v3016 = vpop.f32.mrf.mxu0
          %v3017 = vadd.f32 %v2968, %v3016
          %3018 = vmatmul.bf16.gmra.mxu0 %v1764
          %v3019 = vpop.f32.mrf.mxu0
          %v3020 = vadd.f32 %v2971, %v3019
          %v3021 = vpop.f32.mrf.mxu0
          %v3022 = vadd.f32 %v2973, %v3021
          %3023 = vmatmul.bf16.gmra.mxu0 %v1768
          %v3024 = vpop.f32.mrf.mxu0
          %v3025 = vadd.f32 %v2976, %v3024
          %v3026 = vpop.f32.mrf.mxu0
          %v3027 = vadd.f32 %v2978, %v3026
          %3028 = vdwg.mxu0
          %3029 = vmatpush.bf16.msra.mxu0 %v2216
          %3030 = vmatpush.bf16.msra.mxu0 %v2212
          %3031 = vmatpush.bf16.msra.mxu0 %v2208
          %3032 = vmatpush.bf16.msra.mxu0 %v2204
          %3033 = vmatpush.bf16.msra.mxu0 %v2200
          %3034 = vmatpush.bf16.msra.mxu0 %v2196
          %3035 = vmatpush.bf16.msra.mxu0 %v2192
          %3036 = vmatpush.bf16.msra.mxu0 %v2188
          %3037 = vmatmul.bf16.gmra.mxu0 %v1737
          %v3038 = vpop.f32.mrf.mxu0
          %v3039 = vadd.f32 0.0, %v3038
          %v3040 = vpop.f32.mrf.mxu0
          %v3041 = vadd.f32 0.0, %v3040
          %3042 = vmatmul.bf16.gmra.mxu0 %v1741
          %v3043 = vpop.f32.mrf.mxu0
          %v3044 = vadd.f32 0.0, %v3043
          %v3045 = vpop.f32.mrf.mxu0
          %v3046 = vadd.f32 0.0, %v3045
          %3047 = vmatmul.bf16.gmra.mxu0 %v1745
          %v3048 = vpop.f32.mrf.mxu0
          %v3049 = vadd.f32 0.0, %v3048
          %v3050 = vpop.f32.mrf.mxu0
          %v3051 = vadd.f32 0.0, %v3050
          %3052 = vmatmul.bf16.gmra.mxu0 %v1749
          %v3053 = vpop.f32.mrf.mxu0
          %v3054 = vadd.f32 0.0, %v3053
          %v3055 = vpop.f32.mrf.mxu0
          %v3056 = vadd.f32 0.0, %v3055
          %3057 = vmatmul.bf16.gmra.mxu0 %v1753
          %v3058 = vpop.f32.mrf.mxu0
          %v3059 = vadd.f32 0.0, %v3058
          %v3060 = vpop.f32.mrf.mxu0
          %v3061 = vadd.f32 0.0, %v3060
          %3062 = vmatmul.bf16.gmra.mxu0 %v1757
          %v3063 = vpop.f32.mrf.mxu0
          %v3064 = vadd.f32 0.0, %v3063
          %v3065 = vpop.f32.mrf.mxu0
          %v3066 = vadd.f32 0.0, %v3065
          %3067 = vmatmul.bf16.gmra.mxu0 %v1761
          %v3068 = vpop.f32.mrf.mxu0
          %v3069 = vadd.f32 0.0, %v3068
          %v3070 = vpop.f32.mrf.mxu0
          %v3071 = vadd.f32 0.0, %v3070
          %3072 = vmatmul.bf16.gmra.mxu0 %v1765
          %v3073 = vpop.f32.mrf.mxu0
          %v3074 = vadd.f32 0.0, %v3073
          %v3075 = vpop.f32.mrf.mxu0
          %v3076 = vadd.f32 0.0, %v3075
          %3077 = vdwg.mxu0
          %3078 = vmatpush.bf16.msra.mxu0 %v2248
          %3079 = vmatpush.bf16.msra.mxu0 %v2244
          %3080 = vmatpush.bf16.msra.mxu0 %v2240
          %3081 = vmatpush.bf16.msra.mxu0 %v2236
          %3082 = vmatpush.bf16.msra.mxu0 %v2232
          %3083 = vmatpush.bf16.msra.mxu0 %v2228
          %3084 = vmatpush.bf16.msra.mxu0 %v2224
          %3085 = vmatpush.bf16.msra.mxu0 %v2220
          %3086 = vmatmul.bf16.gmra.mxu0 %v1738
          %v3087 = vpop.f32.mrf.mxu0
          %v3088 = vadd.f32 %v3039, %v3087
          %v3089 = vpop.f32.mrf.mxu0
          %v3090 = vadd.f32 %v3041, %v3089
          %3091 = vmatmul.bf16.gmra.mxu0 %v1742
          %v3092 = vpop.f32.mrf.mxu0
          %v3093 = vadd.f32 %v3044, %v3092
          %v3094 = vpop.f32.mrf.mxu0
          %v3095 = vadd.f32 %v3046, %v3094
          %3096 = vmatmul.bf16.gmra.mxu0 %v1746
          %v3097 = vpop.f32.mrf.mxu0
          %v3098 = vadd.f32 %v3049, %v3097
          %v3099 = vpop.f32.mrf.mxu0
          %v3100 = vadd.f32 %v3051, %v3099
          %3101 = vmatmul.bf16.gmra.mxu0 %v1750
          %v3102 = vpop.f32.mrf.mxu0
          %v3103 = vadd.f32 %v3054, %v3102
          %v3104 = vpop.f32.mrf.mxu0
          %v3105 = vadd.f32 %v3056, %v3104
          %3106 = vmatmul.bf16.gmra.mxu0 %v1754
          %v3107 = vpop.f32.mrf.mxu0
          %v3108 = vadd.f32 %v3059, %v3107
          %v3109 = vpop.f32.mrf.mxu0
          %v3110 = vadd.f32 %v3061, %v3109
          %3111 = vmatmul.bf16.gmra.mxu0 %v1758
          %v3112 = vpop.f32.mrf.mxu0
          %v3113 = vadd.f32 %v3064, %v3112
          %v3114 = vpop.f32.mrf.mxu0
          %v3115 = vadd.f32 %v3066, %v3114
          %3116 = vmatmul.bf16.gmra.mxu0 %v1762
          %v3117 = vpop.f32.mrf.mxu0
          %v3118 = vadd.f32 %v3069, %v3117
          %v3119 = vpop.f32.mrf.mxu0
          %v3120 = vadd.f32 %v3071, %v3119
          %3121 = vmatmul.bf16.gmra.mxu0 %v1766
          %v3122 = vpop.f32.mrf.mxu0
          %v3123 = vadd.f32 %v3074, %v3122
          %v3124 = vpop.f32.mrf.mxu0
          %v3125 = vadd.f32 %v3076, %v3124
          %3126 = vdwg.mxu0
          %3127 = vmatpush.bf16.msra.mxu0 %v2280
          %3128 = vmatpush.bf16.msra.mxu0 %v2276
          %3129 = vmatpush.bf16.msra.mxu0 %v2272
          %3130 = vmatpush.bf16.msra.mxu0 %v2268
          %3131 = vmatpush.bf16.msra.mxu0 %v2264
          %3132 = vmatpush.bf16.msra.mxu0 %v2260
          %3133 = vmatpush.bf16.msra.mxu0 %v2256
          %3134 = vmatpush.bf16.msra.mxu0 %v2252
          %3135 = vmatmul.bf16.gmra.mxu0 %v1739
          %v3136 = vpop.f32.mrf.mxu0
          %v3137 = vadd.f32 %v3088, %v3136
          %v3138 = vpop.f32.mrf.mxu0
          %v3139 = vadd.f32 %v3090, %v3138
          %3140 = vmatmul.bf16.gmra.mxu0 %v1743
          %v3141 = vpop.f32.mrf.mxu0
          %v3142 = vadd.f32 %v3093, %v3141
          %v3143 = vpop.f32.mrf.mxu0
          %v3144 = vadd.f32 %v3095, %v3143
          %3145 = vmatmul.bf16.gmra.mxu0 %v1747
          %v3146 = vpop.f32.mrf.mxu0
          %v3147 = vadd.f32 %v3098, %v3146
          %v3148 = vpop.f32.mrf.mxu0
          %v3149 = vadd.f32 %v3100, %v3148
          %3150 = vmatmul.bf16.gmra.mxu0 %v1751
          %v3151 = vpop.f32.mrf.mxu0
          %v3152 = vadd.f32 %v3103, %v3151
          %v3153 = vpop.f32.mrf.mxu0
          %v3154 = vadd.f32 %v3105, %v3153
          %3155 = vmatmul.bf16.gmra.mxu0 %v1755
          %v3156 = vpop.f32.mrf.mxu0
          %v3157 = vadd.f32 %v3108, %v3156
          %v3158 = vpop.f32.mrf.mxu0
          %v3159 = vadd.f32 %v3110, %v3158
          %3160 = vmatmul.bf16.gmra.mxu0 %v1759
          %v3161 = vpop.f32.mrf.mxu0
          %v3162 = vadd.f32 %v3113, %v3161
          %v3163 = vpop.f32.mrf.mxu0
          %v3164 = vadd.f32 %v3115, %v3163
          %3165 = vmatmul.bf16.gmra.mxu0 %v1763
          %v3166 = vpop.f32.mrf.mxu0
          %v3167 = vadd.f32 %v3118, %v3166
          %v3168 = vpop.f32.mrf.mxu0
          %v3169 = vadd.f32 %v3120, %v3168
          %3170 = vmatmul.bf16.gmra.mxu0 %v1767
          %v3171 = vpop.f32.mrf.mxu0
          %v3172 = vadd.f32 %v3123, %v3171
          %v3173 = vpop.f32.mrf.mxu0
          %v3174 = vadd.f32 %v3125, %v3173
          %3175 = vdwg.mxu0
          %3176 = vmatpush.bf16.msra.mxu0 %v2312
          %3177 = vmatpush.bf16.msra.mxu0 %v2308
          %3178 = vmatpush.bf16.msra.mxu0 %v2304
          %3179 = vmatpush.bf16.msra.mxu0 %v2300
          %3180 = vmatpush.bf16.msra.mxu0 %v2296
          %3181 = vmatpush.bf16.msra.mxu0 %v2292
          %3182 = vmatpush.bf16.msra.mxu0 %v2288
          %3183 = vmatpush.bf16.msra.mxu0 %v2284
          %3184 = vmatmul.bf16.gmra.mxu0 %v1740
          %v3185 = vpop.f32.mrf.mxu0
          %v3186 = vadd.f32 %v3137, %v3185
          %v3187 = vpop.f32.mrf.mxu0
          %v3188 = vadd.f32 %v3139, %v3187
          %3189 = vmatmul.bf16.gmra.mxu0 %v1744
          %v3190 = vpop.f32.mrf.mxu0
          %v3191 = vadd.f32 %v3142, %v3190
          %v3192 = vpop.f32.mrf.mxu0
          %v3193 = vadd.f32 %v3144, %v3192
          %3194 = vmatmul.bf16.gmra.mxu0 %v1748
          %v3195 = vpop.f32.mrf.mxu0
          %v3196 = vadd.f32 %v3147, %v3195
          %v3197 = vpop.f32.mrf.mxu0
          %v3198 = vadd.f32 %v3149, %v3197
          %3199 = vmatmul.bf16.gmra.mxu0 %v1752
          %v3200 = vpop.f32.mrf.mxu0
          %v3201 = vadd.f32 %v3152, %v3200
          %v3202 = vpop.f32.mrf.mxu0
          %v3203 = vadd.f32 %v3154, %v3202
          %3204 = vmatmul.bf16.gmra.mxu0 %v1756
          %v3205 = vpop.f32.mrf.mxu0
          %v3206 = vadd.f32 %v3157, %v3205
          %v3207 = vpop.f32.mrf.mxu0
          %v3208 = vadd.f32 %v3159, %v3207
          %3209 = vmatmul.bf16.gmra.mxu0 %v1760
          %v3210 = vpop.f32.mrf.mxu0
          %v3211 = vadd.f32 %v3162, %v3210
          %v3212 = vpop.f32.mrf.mxu0
          %v3213 = vadd.f32 %v3164, %v3212
          %3214 = vmatmul.bf16.gmra.mxu0 %v1764
          %v3215 = vpop.f32.mrf.mxu0
          %v3216 = vadd.f32 %v3167, %v3215
          %v3217 = vpop.f32.mrf.mxu0
          %v3218 = vadd.f32 %v3169, %v3217
          %3219 = vmatmul.bf16.gmra.mxu0 %v1768
          %v3220 = vpop.f32.mrf.mxu0
          %v3221 = vadd.f32 %v3172, %v3220
          %v3222 = vpop.f32.mrf.mxu0
          %v3223 = vadd.f32 %v3174, %v3222
          %3224 = vdwg.mxu0
          %v3353 = vunpack.c.l.b16 %v1353
          %v3354 = vunpack.c.h.b16 %v1353
          %v3355 = vunpack.c.l.b16 %v1354
          %v3356 = vunpack.c.h.b16 %v1354
          %v3357 = vunpack.c.l.b16 %v1355
          %v3358 = vunpack.c.h.b16 %v1355
          %v3359 = vunpack.c.l.b16 %v1356
          %v3360 = vunpack.c.h.b16 %v1356
          %v3361 = vunpack.c.l.b16 %v1357
          %v3362 = vunpack.c.h.b16 %v1357
          %v3363 = vunpack.c.l.b16 %v1358
          %v3364 = vunpack.c.h.b16 %v1358
          %v3365 = vunpack.c.l.b16 %v1359
          %v3366 = vunpack.c.h.b16 %v1359
          %v3367 = vunpack.c.l.b16 %v1360
          %v3368 = vunpack.c.h.b16 %v1360
          %v3369 = vunpack.c.l.b16 %v1361
          %v3370 = vunpack.c.h.b16 %v1361
          %v3371 = vunpack.c.l.b16 %v1362
          %v3372 = vunpack.c.h.b16 %v1362
          %v3373 = vunpack.c.l.b16 %v1363
          %v3374 = vunpack.c.h.b16 %v1363
          %v3375 = vunpack.c.l.b16 %v1364
          %v3376 = vunpack.c.h.b16 %v1364
          %v3377 = vunpack.c.l.b16 %v1365
          %v3378 = vunpack.c.h.b16 %v1365
          %v3379 = vunpack.c.l.b16 %v1366
          %v3380 = vunpack.c.h.b16 %v1366
          %v3381 = vunpack.c.l.b16 %v1367
          %v3382 = vunpack.c.h.b16 %v1367
          %v3383 = vunpack.c.l.b16 %v1368
          %v3384 = vunpack.c.h.b16 %v1368
          %v3385 = vunpack.c.l.b16 %v1369
          %v3386 = vunpack.c.h.b16 %v1369
          %v3387 = vunpack.c.l.b16 %v1370
          %v3388 = vunpack.c.h.b16 %v1370
          %v3389 = vunpack.c.l.b16 %v1371
          %v3390 = vunpack.c.h.b16 %v1371
          %v3391 = vunpack.c.l.b16 %v1372
          %v3392 = vunpack.c.h.b16 %v1372
          %v3393 = vunpack.c.l.b16 %v1373
          %v3394 = vunpack.c.h.b16 %v1373
          %v3395 = vunpack.c.l.b16 %v1374
          %v3396 = vunpack.c.h.b16 %v1374
          %v3397 = vunpack.c.l.b16 %v1375
          %v3398 = vunpack.c.h.b16 %v1375
          %v3399 = vunpack.c.l.b16 %v1376
          %v3400 = vunpack.c.h.b16 %v1376
          %v3401 = vunpack.c.l.b16 %v1377
          %v3402 = vunpack.c.h.b16 %v1377
          %v3403 = vunpack.c.l.b16 %v1378
          %v3404 = vunpack.c.h.b16 %v1378
          %v3405 = vunpack.c.l.b16 %v1379
          %v3406 = vunpack.c.h.b16 %v1379
          %v3407 = vunpack.c.l.b16 %v1380
          %v3408 = vunpack.c.h.b16 %v1380
          %v3409 = vunpack.c.l.b16 %v1381
          %v3410 = vunpack.c.h.b16 %v1381
          %v3411 = vunpack.c.l.b16 %v1382
          %v3412 = vunpack.c.h.b16 %v1382
          %v3413 = vunpack.c.l.b16 %v1383
          %v3414 = vunpack.c.h.b16 %v1383
          %v3415 = vunpack.c.l.b16 %v1384
          %v3416 = vunpack.c.h.b16 %v1384
          %v3417 = vunpack.c.l.b16 %v1385
          %v3418 = vunpack.c.h.b16 %v1385
          %v3419 = vunpack.c.l.b16 %v1386
          %v3420 = vunpack.c.h.b16 %v1386
          %v3421 = vunpack.c.l.b16 %v1387
          %v3422 = vunpack.c.h.b16 %v1387
          %v3423 = vunpack.c.l.b16 %v1388
          %v3424 = vunpack.c.h.b16 %v1388
          %v3425 = vunpack.c.l.b16 %v1389
          %v3426 = vunpack.c.h.b16 %v1389
          %v3427 = vunpack.c.l.b16 %v1390
          %v3428 = vunpack.c.h.b16 %v1390
          %v3429 = vunpack.c.l.b16 %v1391
          %v3430 = vunpack.c.h.b16 %v1391
          %v3431 = vunpack.c.l.b16 %v1392
          %v3432 = vunpack.c.h.b16 %v1392
          %v3433 = vunpack.c.l.b16 %v1393
          %v3434 = vunpack.c.h.b16 %v1393
          %v3435 = vunpack.c.l.b16 %v1394
          %v3436 = vunpack.c.h.b16 %v1394
          %v3437 = vunpack.c.l.b16 %v1395
          %v3438 = vunpack.c.h.b16 %v1395
          %v3439 = vunpack.c.l.b16 %v1396
          %v3440 = vunpack.c.h.b16 %v1396
          %v3441 = vunpack.c.l.b16 %v1397
          %v3442 = vunpack.c.h.b16 %v1397
          %v3443 = vunpack.c.l.b16 %v1398
          %v3444 = vunpack.c.h.b16 %v1398
          %v3445 = vunpack.c.l.b16 %v1399
          %v3446 = vunpack.c.h.b16 %v1399
          %v3447 = vunpack.c.l.b16 %v1400
          %v3448 = vunpack.c.h.b16 %v1400
          %v3449 = vunpack.c.l.b16 %v1401
          %v3450 = vunpack.c.h.b16 %v1401
          %v3451 = vunpack.c.l.b16 %v1402
          %v3452 = vunpack.c.h.b16 %v1402
          %v3453 = vunpack.c.l.b16 %v1403
          %v3454 = vunpack.c.h.b16 %v1403
          %v3455 = vunpack.c.l.b16 %v1404
          %v3456 = vunpack.c.h.b16 %v1404
          %v3457 = vunpack.c.l.b16 %v1405
          %v3458 = vunpack.c.h.b16 %v1405
          %v3459 = vunpack.c.l.b16 %v1406
          %v3460 = vunpack.c.h.b16 %v1406
          %v3461 = vunpack.c.l.b16 %v1407
          %v3462 = vunpack.c.h.b16 %v1407
          %v3463 = vunpack.c.l.b16 %v1408
          %v3464 = vunpack.c.h.b16 %v1408
          %v3465 = vunpack.c.l.b16 %v1409
          %v3466 = vunpack.c.h.b16 %v1409
          %v3467 = vunpack.c.l.b16 %v1410
          %v3468 = vunpack.c.h.b16 %v1410
          %v3469 = vunpack.c.l.b16 %v1411
          %v3470 = vunpack.c.h.b16 %v1411
          %v3471 = vunpack.c.l.b16 %v1412
          %v3472 = vunpack.c.h.b16 %v1412
          %v3473 = vunpack.c.l.b16 %v1413
          %v3474 = vunpack.c.h.b16 %v1413
          %v3475 = vunpack.c.l.b16 %v1414
          %v3476 = vunpack.c.h.b16 %v1414
          %v3477 = vunpack.c.l.b16 %v1415
          %v3478 = vunpack.c.h.b16 %v1415
          %v3479 = vunpack.c.l.b16 %v1416
          %v3480 = vunpack.c.h.b16 %v1416
          %v3481 = vunpack.c.l.b16 %v1417
          %v3482 = vunpack.c.h.b16 %v1417
          %v3483 = vunpack.c.l.b16 %v1418
          %v3484 = vunpack.c.h.b16 %v1418
          %v3485 = vunpack.c.l.b16 %v1419
          %v3486 = vunpack.c.h.b16 %v1419
          %v3487 = vunpack.c.l.b16 %v1420
          %v3488 = vunpack.c.h.b16 %v1420
          %v3489 = vunpack.c.l.b16 %v1421
          %v3490 = vunpack.c.h.b16 %v1421
          %v3491 = vunpack.c.l.b16 %v1422
          %v3492 = vunpack.c.h.b16 %v1422
          %v3493 = vunpack.c.l.b16 %v1423
          %v3494 = vunpack.c.h.b16 %v1423
          %v3495 = vunpack.c.l.b16 %v1424
          %v3496 = vunpack.c.h.b16 %v1424
          %v3497 = vunpack.c.l.b16 %v1425
          %v3498 = vunpack.c.h.b16 %v1425
          %v3499 = vunpack.c.l.b16 %v1426
          %v3500 = vunpack.c.h.b16 %v1426
          %v3501 = vunpack.c.l.b16 %v1427
          %v3502 = vunpack.c.h.b16 %v1427
          %v3503 = vunpack.c.l.b16 %v1428
          %v3504 = vunpack.c.h.b16 %v1428
          %v3505 = vunpack.c.l.b16 %v1429
          %v3506 = vunpack.c.h.b16 %v1429
          %v3507 = vunpack.c.l.b16 %v1430
          %v3508 = vunpack.c.h.b16 %v1430
          %v3509 = vunpack.c.l.b16 %v1431
          %v3510 = vunpack.c.h.b16 %v1431
          %v3511 = vunpack.c.l.b16 %v1432
          %v3512 = vunpack.c.h.b16 %v1432
          %v3513 = vunpack.c.l.b16 %v1433
          %v3514 = vunpack.c.h.b16 %v1433
          %v3515 = vunpack.c.l.b16 %v1434
          %v3516 = vunpack.c.h.b16 %v1434
          %v3517 = vunpack.c.l.b16 %v1435
          %v3518 = vunpack.c.h.b16 %v1435
          %v3519 = vunpack.c.l.b16 %v1436
          %v3520 = vunpack.c.h.b16 %v1436
          %v3521 = vunpack.c.l.b16 %v1437
          %v3522 = vunpack.c.h.b16 %v1437
          %v3523 = vunpack.c.l.b16 %v1438
          %v3524 = vunpack.c.h.b16 %v1438
          %v3525 = vunpack.c.l.b16 %v1439
          %v3526 = vunpack.c.h.b16 %v1439
          %v3527 = vunpack.c.l.b16 %v1440
          %v3528 = vunpack.c.h.b16 %v1440
          %v3529 = vunpack.c.l.b16 %v1441
          %v3530 = vunpack.c.h.b16 %v1441
          %v3531 = vunpack.c.l.b16 %v1442
          %v3532 = vunpack.c.h.b16 %v1442
          %v3533 = vunpack.c.l.b16 %v1443
          %v3534 = vunpack.c.h.b16 %v1443
          %v3535 = vunpack.c.l.b16 %v1444
          %v3536 = vunpack.c.h.b16 %v1444
          %v3537 = vunpack.c.l.b16 %v1445
          %v3538 = vunpack.c.h.b16 %v1445
          %v3539 = vunpack.c.l.b16 %v1446
          %v3540 = vunpack.c.h.b16 %v1446
          %v3541 = vunpack.c.l.b16 %v1447
          %v3542 = vunpack.c.h.b16 %v1447
          %v3543 = vunpack.c.l.b16 %v1448
          %v3544 = vunpack.c.h.b16 %v1448
          %v3545 = vunpack.c.l.b16 %v1449
          %v3546 = vunpack.c.h.b16 %v1449
          %v3547 = vunpack.c.l.b16 %v1450
          %v3548 = vunpack.c.h.b16 %v1450
          %v3549 = vunpack.c.l.b16 %v1451
          %v3550 = vunpack.c.h.b16 %v1451
          %v3551 = vunpack.c.l.b16 %v1452
          %v3552 = vunpack.c.h.b16 %v1452
          %v3553 = vunpack.c.l.b16 %v1453
          %v3554 = vunpack.c.h.b16 %v1453
          %v3555 = vunpack.c.l.b16 %v1454
          %v3556 = vunpack.c.h.b16 %v1454
          %v3557 = vunpack.c.l.b16 %v1455
          %v3558 = vunpack.c.h.b16 %v1455
          %v3559 = vunpack.c.l.b16 %v1456
          %v3560 = vunpack.c.h.b16 %v1456
          %v3561 = vunpack.c.l.b16 %v1457
          %v3562 = vunpack.c.h.b16 %v1457
          %v3563 = vunpack.c.l.b16 %v1458
          %v3564 = vunpack.c.h.b16 %v1458
          %v3565 = vunpack.c.l.b16 %v1459
          %v3566 = vunpack.c.h.b16 %v1459
          %v3567 = vunpack.c.l.b16 %v1460
          %v3568 = vunpack.c.h.b16 %v1460
          %v3569 = vunpack.c.l.b16 %v1461
          %v3570 = vunpack.c.h.b16 %v1461
          %v3571 = vunpack.c.l.b16 %v1462
          %v3572 = vunpack.c.h.b16 %v1462
          %v3573 = vunpack.c.l.b16 %v1463
          %v3574 = vunpack.c.h.b16 %v1463
          %v3575 = vunpack.c.l.b16 %v1464
          %v3576 = vunpack.c.h.b16 %v1464
          %v3577 = vunpack.c.l.b16 %v1465
          %v3578 = vunpack.c.h.b16 %v1465
          %v3579 = vunpack.c.l.b16 %v1466
          %v3580 = vunpack.c.h.b16 %v1466
          %v3581 = vunpack.c.l.b16 %v1467
          %v3582 = vunpack.c.h.b16 %v1467
          %v3583 = vunpack.c.l.b16 %v1468
          %v3584 = vunpack.c.h.b16 %v1468
          %v3585 = vunpack.c.l.b16 %v1469
          %v3586 = vunpack.c.h.b16 %v1469
          %v3587 = vunpack.c.l.b16 %v1470
          %v3588 = vunpack.c.h.b16 %v1470
          %v3589 = vunpack.c.l.b16 %v1471
          %v3590 = vunpack.c.h.b16 %v1471
          %v3591 = vunpack.c.l.b16 %v1472
          %v3592 = vunpack.c.h.b16 %v1472
          %v3593 = vunpack.c.l.b16 %v1473
          %v3594 = vunpack.c.h.b16 %v1473
          %v3595 = vunpack.c.l.b16 %v1474
          %v3596 = vunpack.c.h.b16 %v1474
          %v3597 = vunpack.c.l.b16 %v1475
          %v3598 = vunpack.c.h.b16 %v1475
          %v3599 = vunpack.c.l.b16 %v1476
          %v3600 = vunpack.c.h.b16 %v1476
          %v3601 = vunpack.c.l.b16 %v1477
          %v3602 = vunpack.c.h.b16 %v1477
          %v3603 = vunpack.c.l.b16 %v1478
          %v3604 = vunpack.c.h.b16 %v1478
          %v3605 = vunpack.c.l.b16 %v1479
          %v3606 = vunpack.c.h.b16 %v1479
          %v3607 = vunpack.c.l.b16 %v1480
          %v3608 = vunpack.c.h.b16 %v1480
          %v3609 = vpack.c.b16 %v3357, %v3353
          %v3610 = vpack.c.b16 %v3358, %v3354
          %v3611 = vpack.c.b16 %v3359, %v3355
          %v3612 = vpack.c.b16 %v3360, %v3356
          %v3613 = vpack.c.b16 %v3365, %v3361
          %v3614 = vpack.c.b16 %v3366, %v3362
          %v3615 = vpack.c.b16 %v3367, %v3363
          %v3616 = vpack.c.b16 %v3368, %v3364
          %v3617 = vpack.c.b16 %v3373, %v3369
          %v3618 = vpack.c.b16 %v3374, %v3370
          %v3619 = vpack.c.b16 %v3375, %v3371
          %v3620 = vpack.c.b16 %v3376, %v3372
          %v3621 = vpack.c.b16 %v3381, %v3377
          %v3622 = vpack.c.b16 %v3382, %v3378
          %v3623 = vpack.c.b16 %v3383, %v3379
          %v3624 = vpack.c.b16 %v3384, %v3380
          %v3625 = vpack.c.b16 %v3389, %v3385
          %v3626 = vpack.c.b16 %v3390, %v3386
          %v3627 = vpack.c.b16 %v3391, %v3387
          %v3628 = vpack.c.b16 %v3392, %v3388
          %v3629 = vpack.c.b16 %v3397, %v3393
          %v3630 = vpack.c.b16 %v3398, %v3394
          %v3631 = vpack.c.b16 %v3399, %v3395
          %v3632 = vpack.c.b16 %v3400, %v3396
          %v3633 = vpack.c.b16 %v3405, %v3401
          %v3634 = vpack.c.b16 %v3406, %v3402
          %v3635 = vpack.c.b16 %v3407, %v3403
          %v3636 = vpack.c.b16 %v3408, %v3404
          %v3637 = vpack.c.b16 %v3413, %v3409
          %v3638 = vpack.c.b16 %v3414, %v3410
          %v3639 = vpack.c.b16 %v3415, %v3411
          %v3640 = vpack.c.b16 %v3416, %v3412
          %v3641 = vpack.c.b16 %v3421, %v3417
          %v3642 = vpack.c.b16 %v3422, %v3418
          %v3643 = vpack.c.b16 %v3423, %v3419
          %v3644 = vpack.c.b16 %v3424, %v3420
          %v3645 = vpack.c.b16 %v3429, %v3425
          %v3646 = vpack.c.b16 %v3430, %v3426
          %v3647 = vpack.c.b16 %v3431, %v3427
          %v3648 = vpack.c.b16 %v3432, %v3428
          %v3649 = vpack.c.b16 %v3437, %v3433
          %v3650 = vpack.c.b16 %v3438, %v3434
          %v3651 = vpack.c.b16 %v3439, %v3435
          %v3652 = vpack.c.b16 %v3440, %v3436
          %v3653 = vpack.c.b16 %v3445, %v3441
          %v3654 = vpack.c.b16 %v3446, %v3442
          %v3655 = vpack.c.b16 %v3447, %v3443
          %v3656 = vpack.c.b16 %v3448, %v3444
          %v3657 = vpack.c.b16 %v3453, %v3449
          %v3658 = vpack.c.b16 %v3454, %v3450
          %v3659 = vpack.c.b16 %v3455, %v3451
          %v3660 = vpack.c.b16 %v3456, %v3452
          %v3661 = vpack.c.b16 %v3461, %v3457
          %v3662 = vpack.c.b16 %v3462, %v3458
          %v3663 = vpack.c.b16 %v3463, %v3459
          %v3664 = vpack.c.b16 %v3464, %v3460
          %v3665 = vpack.c.b16 %v3469, %v3465
          %v3666 = vpack.c.b16 %v3470, %v3466
          %v3667 = vpack.c.b16 %v3471, %v3467
          %v3668 = vpack.c.b16 %v3472, %v3468
          %v3669 = vpack.c.b16 %v3477, %v3473
          %v3670 = vpack.c.b16 %v3478, %v3474
          %v3671 = vpack.c.b16 %v3479, %v3475
          %v3672 = vpack.c.b16 %v3480, %v3476
          %v3673 = vpack.c.b16 %v3485, %v3481
          %v3674 = vpack.c.b16 %v3486, %v3482
          %v3675 = vpack.c.b16 %v3487, %v3483
          %v3676 = vpack.c.b16 %v3488, %v3484
          %v3677 = vpack.c.b16 %v3493, %v3489
          %v3678 = vpack.c.b16 %v3494, %v3490
          %v3679 = vpack.c.b16 %v3495, %v3491
          %v3680 = vpack.c.b16 %v3496, %v3492
          %v3681 = vpack.c.b16 %v3501, %v3497
          %v3682 = vpack.c.b16 %v3502, %v3498
          %v3683 = vpack.c.b16 %v3503, %v3499
          %v3684 = vpack.c.b16 %v3504, %v3500
          %v3685 = vpack.c.b16 %v3509, %v3505
          %v3686 = vpack.c.b16 %v3510, %v3506
          %v3687 = vpack.c.b16 %v3511, %v3507
          %v3688 = vpack.c.b16 %v3512, %v3508
          %v3689 = vpack.c.b16 %v3517, %v3513
          %v3690 = vpack.c.b16 %v3518, %v3514
          %v3691 = vpack.c.b16 %v3519, %v3515
          %v3692 = vpack.c.b16 %v3520, %v3516
          %v3693 = vpack.c.b16 %v3525, %v3521
          %v3694 = vpack.c.b16 %v3526, %v3522
          %v3695 = vpack.c.b16 %v3527, %v3523
          %v3696 = vpack.c.b16 %v3528, %v3524
          %v3697 = vpack.c.b16 %v3533, %v3529
          %v3698 = vpack.c.b16 %v3534, %v3530
          %v3699 = vpack.c.b16 %v3535, %v3531
          %v3700 = vpack.c.b16 %v3536, %v3532
          %v3701 = vpack.c.b16 %v3541, %v3537
          %v3702 = vpack.c.b16 %v3542, %v3538
          %v3703 = vpack.c.b16 %v3543, %v3539
          %v3704 = vpack.c.b16 %v3544, %v3540
          %v3705 = vpack.c.b16 %v3549, %v3545
          %v3706 = vpack.c.b16 %v3550, %v3546
          %v3707 = vpack.c.b16 %v3551, %v3547
          %v3708 = vpack.c.b16 %v3552, %v3548
          %v3709 = vpack.c.b16 %v3557, %v3553
          %v3710 = vpack.c.b16 %v3558, %v3554
          %v3711 = vpack.c.b16 %v3559, %v3555
          %v3712 = vpack.c.b16 %v3560, %v3556
          %v3713 = vpack.c.b16 %v3565, %v3561
          %v3714 = vpack.c.b16 %v3566, %v3562
          %v3715 = vpack.c.b16 %v3567, %v3563
          %v3716 = vpack.c.b16 %v3568, %v3564
          %v3717 = vpack.c.b16 %v3573, %v3569
          %v3718 = vpack.c.b16 %v3574, %v3570
          %v3719 = vpack.c.b16 %v3575, %v3571
          %v3720 = vpack.c.b16 %v3576, %v3572
          %v3721 = vpack.c.b16 %v3581, %v3577
          %v3722 = vpack.c.b16 %v3582, %v3578
          %v3723 = vpack.c.b16 %v3583, %v3579
          %v3724 = vpack.c.b16 %v3584, %v3580
          %v3725 = vpack.c.b16 %v3589, %v3585
          %v3726 = vpack.c.b16 %v3590, %v3586
          %v3727 = vpack.c.b16 %v3591, %v3587
          %v3728 = vpack.c.b16 %v3592, %v3588
          %v3729 = vpack.c.b16 %v3597, %v3593
          %v3730 = vpack.c.b16 %v3598, %v3594
          %v3731 = vpack.c.b16 %v3599, %v3595
          %v3732 = vpack.c.b16 %v3600, %v3596
          %v3733 = vpack.c.b16 %v3605, %v3601
          %v3734 = vpack.c.b16 %v3606, %v3602
          %v3735 = vpack.c.b16 %v3607, %v3603
          %v3736 = vpack.c.b16 %v3608, %v3604
          %3865 = vmatpush.bf16.msra.mxu0 %v3637
          %3866 = vmatpush.bf16.msra.mxu0 %v3633
          %3867 = vmatpush.bf16.msra.mxu0 %v3629
          %3868 = vmatpush.bf16.msra.mxu0 %v3625
          %3869 = vmatpush.bf16.msra.mxu0 %v3621
          %3870 = vmatpush.bf16.msra.mxu0 %v3617
          %3871 = vmatpush.bf16.msra.mxu0 %v3613
          %3872 = vmatpush.bf16.msra.mxu0 %v3609
          %3873 = vmatmul.bf16.gmra.mxu0 %v1321
          %v3874 = vpop.f32.mrf.mxu0
          %v3875 = vadd.f32 %v2598, %v3874
          %v3876 = vpop.f32.mrf.mxu0
          %v3877 = vadd.f32 %v2600, %v3876
          %3878 = vmatmul.bf16.gmra.mxu0 %v1325
          %v3879 = vpop.f32.mrf.mxu0
          %v3880 = vadd.f32 %v2603, %v3879
          %v3881 = vpop.f32.mrf.mxu0
          %v3882 = vadd.f32 %v2605, %v3881
          %3883 = vmatmul.bf16.gmra.mxu0 %v1329
          %v3884 = vpop.f32.mrf.mxu0
          %v3885 = vadd.f32 %v2608, %v3884
          %v3886 = vpop.f32.mrf.mxu0
          %v3887 = vadd.f32 %v2610, %v3886
          %3888 = vmatmul.bf16.gmra.mxu0 %v1333
          %v3889 = vpop.f32.mrf.mxu0
          %v3890 = vadd.f32 %v2613, %v3889
          %v3891 = vpop.f32.mrf.mxu0
          %v3892 = vadd.f32 %v2615, %v3891
          %3893 = vmatmul.bf16.gmra.mxu0 %v1337
          %v3894 = vpop.f32.mrf.mxu0
          %v3895 = vadd.f32 %v2618, %v3894
          %v3896 = vpop.f32.mrf.mxu0
          %v3897 = vadd.f32 %v2620, %v3896
          %3898 = vmatmul.bf16.gmra.mxu0 %v1341
          %v3899 = vpop.f32.mrf.mxu0
          %v3900 = vadd.f32 %v2623, %v3899
          %v3901 = vpop.f32.mrf.mxu0
          %v3902 = vadd.f32 %v2625, %v3901
          %3903 = vmatmul.bf16.gmra.mxu0 %v1345
          %v3904 = vpop.f32.mrf.mxu0
          %v3905 = vadd.f32 %v2628, %v3904
          %v3906 = vpop.f32.mrf.mxu0
          %v3907 = vadd.f32 %v2630, %v3906
          %3908 = vmatmul.bf16.gmra.mxu0 %v1349
          %v3909 = vpop.f32.mrf.mxu0
          %v3910 = vadd.f32 %v2633, %v3909
          %v3911 = vpop.f32.mrf.mxu0
          %v3912 = vadd.f32 %v2635, %v3911
          %3913 = vdwg.mxu0
          %3914 = vmatpush.bf16.msra.mxu0 %v3669
          %3915 = vmatpush.bf16.msra.mxu0 %v3665
          %3916 = vmatpush.bf16.msra.mxu0 %v3661
          %3917 = vmatpush.bf16.msra.mxu0 %v3657
          %3918 = vmatpush.bf16.msra.mxu0 %v3653
          %3919 = vmatpush.bf16.msra.mxu0 %v3649
          %3920 = vmatpush.bf16.msra.mxu0 %v3645
          %3921 = vmatpush.bf16.msra.mxu0 %v3641
          %3922 = vmatmul.bf16.gmra.mxu0 %v1322
          %v3923 = vpop.f32.mrf.mxu0
          %v3924 = vadd.f32 %v3875, %v3923
          %v3925 = vpop.f32.mrf.mxu0
          %v3926 = vadd.f32 %v3877, %v3925
          %3927 = vmatmul.bf16.gmra.mxu0 %v1326
          %v3928 = vpop.f32.mrf.mxu0
          %v3929 = vadd.f32 %v3880, %v3928
          %v3930 = vpop.f32.mrf.mxu0
          %v3931 = vadd.f32 %v3882, %v3930
          %3932 = vmatmul.bf16.gmra.mxu0 %v1330
          %v3933 = vpop.f32.mrf.mxu0
          %v3934 = vadd.f32 %v3885, %v3933
          %v3935 = vpop.f32.mrf.mxu0
          %v3936 = vadd.f32 %v3887, %v3935
          %3937 = vmatmul.bf16.gmra.mxu0 %v1334
          %v3938 = vpop.f32.mrf.mxu0
          %v3939 = vadd.f32 %v3890, %v3938
          %v3940 = vpop.f32.mrf.mxu0
          %v3941 = vadd.f32 %v3892, %v3940
          %3942 = vmatmul.bf16.gmra.mxu0 %v1338
          %v3943 = vpop.f32.mrf.mxu0
          %v3944 = vadd.f32 %v3895, %v3943
          %v3945 = vpop.f32.mrf.mxu0
          %v3946 = vadd.f32 %v3897, %v3945
          %3947 = vmatmul.bf16.gmra.mxu0 %v1342
          %v3948 = vpop.f32.mrf.mxu0
          %v3949 = vadd.f32 %v3900, %v3948
          %v3950 = vpop.f32.mrf.mxu0
          %v3951 = vadd.f32 %v3902, %v3950
          %3952 = vmatmul.bf16.gmra.mxu0 %v1346
          %v3953 = vpop.f32.mrf.mxu0
          %v3954 = vadd.f32 %v3905, %v3953
          %v3955 = vpop.f32.mrf.mxu0
          %v3956 = vadd.f32 %v3907, %v3955
          %3957 = vmatmul.bf16.gmra.mxu0 %v1350
          %v3958 = vpop.f32.mrf.mxu0
          %v3959 = vadd.f32 %v3910, %v3958
          %v3960 = vpop.f32.mrf.mxu0
          %v3961 = vadd.f32 %v3912, %v3960
          %3962 = vdwg.mxu0
          %3963 = vmatpush.bf16.msra.mxu0 %v3701
          %3964 = vmatpush.bf16.msra.mxu0 %v3697
          %3965 = vmatpush.bf16.msra.mxu0 %v3693
          %3966 = vmatpush.bf16.msra.mxu0 %v3689
          %3967 = vmatpush.bf16.msra.mxu0 %v3685
          %3968 = vmatpush.bf16.msra.mxu0 %v3681
          %3969 = vmatpush.bf16.msra.mxu0 %v3677
          %3970 = vmatpush.bf16.msra.mxu0 %v3673
          %3971 = vmatmul.bf16.gmra.mxu0 %v1323
          %v3972 = vpop.f32.mrf.mxu0
          %v3973 = vadd.f32 %v3924, %v3972
          %v3974 = vpop.f32.mrf.mxu0
          %v3975 = vadd.f32 %v3926, %v3974
          %3976 = vmatmul.bf16.gmra.mxu0 %v1327
          %v3977 = vpop.f32.mrf.mxu0
          %v3978 = vadd.f32 %v3929, %v3977
          %v3979 = vpop.f32.mrf.mxu0
          %v3980 = vadd.f32 %v3931, %v3979
          %3981 = vmatmul.bf16.gmra.mxu0 %v1331
          %v3982 = vpop.f32.mrf.mxu0
          %v3983 = vadd.f32 %v3934, %v3982
          %v3984 = vpop.f32.mrf.mxu0
          %v3985 = vadd.f32 %v3936, %v3984
          %3986 = vmatmul.bf16.gmra.mxu0 %v1335
          %v3987 = vpop.f32.mrf.mxu0
          %v3988 = vadd.f32 %v3939, %v3987
          %v3989 = vpop.f32.mrf.mxu0
          %v3990 = vadd.f32 %v3941, %v3989
          %3991 = vmatmul.bf16.gmra.mxu0 %v1339
          %v3992 = vpop.f32.mrf.mxu0
          %v3993 = vadd.f32 %v3944, %v3992
          %v3994 = vpop.f32.mrf.mxu0
          %v3995 = vadd.f32 %v3946, %v3994
          %3996 = vmatmul.bf16.gmra.mxu0 %v1343
          %v3997 = vpop.f32.mrf.mxu0
          %v3998 = vadd.f32 %v3949, %v3997
          %v3999 = vpop.f32.mrf.mxu0
          %v4000 = vadd.f32 %v3951, %v3999
          %4001 = vmatmul.bf16.gmra.mxu0 %v1347
          %v4002 = vpop.f32.mrf.mxu0
          %v4003 = vadd.f32 %v3954, %v4002
          %v4004 = vpop.f32.mrf.mxu0
          %v4005 = vadd.f32 %v3956, %v4004
          %4006 = vmatmul.bf16.gmra.mxu0 %v1351
          %v4007 = vpop.f32.mrf.mxu0
          %v4008 = vadd.f32 %v3959, %v4007
          %v4009 = vpop.f32.mrf.mxu0
          %v4010 = vadd.f32 %v3961, %v4009
          %4011 = vdwg.mxu0
          %4012 = vmatpush.bf16.msra.mxu0 %v3733
          %4013 = vmatpush.bf16.msra.mxu0 %v3729
          %4014 = vmatpush.bf16.msra.mxu0 %v3725
          %4015 = vmatpush.bf16.msra.mxu0 %v3721
          %4016 = vmatpush.bf16.msra.mxu0 %v3717
          %4017 = vmatpush.bf16.msra.mxu0 %v3713
          %4018 = vmatpush.bf16.msra.mxu0 %v3709
          %4019 = vmatpush.bf16.msra.mxu0 %v3705
          %4020 = vmatmul.bf16.gmra.mxu0 %v1324
          %v4021 = vpop.f32.mrf.mxu0
          %v4022 = vadd.f32 %v3973, %v4021
          %v4023 = vpop.f32.mrf.mxu0
          %v4024 = vadd.f32 %v3975, %v4023
          %4025 = vmatmul.bf16.gmra.mxu0 %v1328
          %v4026 = vpop.f32.mrf.mxu0
          %v4027 = vadd.f32 %v3978, %v4026
          %v4028 = vpop.f32.mrf.mxu0
          %v4029 = vadd.f32 %v3980, %v4028
          %4030 = vmatmul.bf16.gmra.mxu0 %v1332
          %v4031 = vpop.f32.mrf.mxu0
          %v4032 = vadd.f32 %v3983, %v4031
          %v4033 = vpop.f32.mrf.mxu0
          %v4034 = vadd.f32 %v3985, %v4033
          %4035 = vmatmul.bf16.gmra.mxu0 %v1336
          %v4036 = vpop.f32.mrf.mxu0
          %v4037 = vadd.f32 %v3988, %v4036
          %v4038 = vpop.f32.mrf.mxu0
          %v4039 = vadd.f32 %v3990, %v4038
          %4040 = vmatmul.bf16.gmra.mxu0 %v1340
          %v4041 = vpop.f32.mrf.mxu0
          %v4042 = vadd.f32 %v3993, %v4041
          %v4043 = vpop.f32.mrf.mxu0
          %v4044 = vadd.f32 %v3995, %v4043
          %4045 = vmatmul.bf16.gmra.mxu0 %v1344
          %v4046 = vpop.f32.mrf.mxu0
          %v4047 = vadd.f32 %v3998, %v4046
          %v4048 = vpop.f32.mrf.mxu0
          %v4049 = vadd.f32 %v4000, %v4048
          %4050 = vmatmul.bf16.gmra.mxu0 %v1348
          %v4051 = vpop.f32.mrf.mxu0
          %v4052 = vadd.f32 %v4003, %v4051
          %v4053 = vpop.f32.mrf.mxu0
          %v4054 = vadd.f32 %v4005, %v4053
          %4055 = vmatmul.bf16.gmra.mxu0 %v1352
          %v4056 = vpop.f32.mrf.mxu0
          %v4057 = vadd.f32 %v4008, %v4056
          %v4058 = vpop.f32.mrf.mxu0
          %v4059 = vadd.f32 %v4010, %v4058
          %4060 = vdwg.mxu0
          %4061 = vmatpush.bf16.msra.mxu0 %v3638
          %4062 = vmatpush.bf16.msra.mxu0 %v3634
          %4063 = vmatpush.bf16.msra.mxu0 %v3630
          %4064 = vmatpush.bf16.msra.mxu0 %v3626
          %4065 = vmatpush.bf16.msra.mxu0 %v3622
          %4066 = vmatpush.bf16.msra.mxu0 %v3618
          %4067 = vmatpush.bf16.msra.mxu0 %v3614
          %4068 = vmatpush.bf16.msra.mxu0 %v3610
          %4069 = vmatmul.bf16.gmra.mxu0 %v1321
          %v4070 = vpop.f32.mrf.mxu0
          %v4071 = vadd.f32 %v2794, %v4070
          %v4072 = vpop.f32.mrf.mxu0
          %v4073 = vadd.f32 %v2796, %v4072
          %4074 = vmatmul.bf16.gmra.mxu0 %v1325
          %v4075 = vpop.f32.mrf.mxu0
          %v4076 = vadd.f32 %v2799, %v4075
          %v4077 = vpop.f32.mrf.mxu0
          %v4078 = vadd.f32 %v2801, %v4077
          %4079 = vmatmul.bf16.gmra.mxu0 %v1329
          %v4080 = vpop.f32.mrf.mxu0
          %v4081 = vadd.f32 %v2804, %v4080
          %v4082 = vpop.f32.mrf.mxu0
          %v4083 = vadd.f32 %v2806, %v4082
          %4084 = vmatmul.bf16.gmra.mxu0 %v1333
          %v4085 = vpop.f32.mrf.mxu0
          %v4086 = vadd.f32 %v2809, %v4085
          %v4087 = vpop.f32.mrf.mxu0
          %v4088 = vadd.f32 %v2811, %v4087
          %4089 = vmatmul.bf16.gmra.mxu0 %v1337
          %v4090 = vpop.f32.mrf.mxu0
          %v4091 = vadd.f32 %v2814, %v4090
          %v4092 = vpop.f32.mrf.mxu0
          %v4093 = vadd.f32 %v2816, %v4092
          %4094 = vmatmul.bf16.gmra.mxu0 %v1341
          %v4095 = vpop.f32.mrf.mxu0
          %v4096 = vadd.f32 %v2819, %v4095
          %v4097 = vpop.f32.mrf.mxu0
          %v4098 = vadd.f32 %v2821, %v4097
          %4099 = vmatmul.bf16.gmra.mxu0 %v1345
          %v4100 = vpop.f32.mrf.mxu0
          %v4101 = vadd.f32 %v2824, %v4100
          %v4102 = vpop.f32.mrf.mxu0
          %v4103 = vadd.f32 %v2826, %v4102
          %4104 = vmatmul.bf16.gmra.mxu0 %v1349
          %v4105 = vpop.f32.mrf.mxu0
          %v4106 = vadd.f32 %v2829, %v4105
          %v4107 = vpop.f32.mrf.mxu0
          %v4108 = vadd.f32 %v2831, %v4107
          %4109 = vdwg.mxu0
          %4110 = vmatpush.bf16.msra.mxu0 %v3670
          %4111 = vmatpush.bf16.msra.mxu0 %v3666
          %4112 = vmatpush.bf16.msra.mxu0 %v3662
          %4113 = vmatpush.bf16.msra.mxu0 %v3658
          %4114 = vmatpush.bf16.msra.mxu0 %v3654
          %4115 = vmatpush.bf16.msra.mxu0 %v3650
          %4116 = vmatpush.bf16.msra.mxu0 %v3646
          %4117 = vmatpush.bf16.msra.mxu0 %v3642
          %4118 = vmatmul.bf16.gmra.mxu0 %v1322
          %v4119 = vpop.f32.mrf.mxu0
          %v4120 = vadd.f32 %v4071, %v4119
          %v4121 = vpop.f32.mrf.mxu0
          %v4122 = vadd.f32 %v4073, %v4121
          %4123 = vmatmul.bf16.gmra.mxu0 %v1326
          %v4124 = vpop.f32.mrf.mxu0
          %v4125 = vadd.f32 %v4076, %v4124
          %v4126 = vpop.f32.mrf.mxu0
          %v4127 = vadd.f32 %v4078, %v4126
          %4128 = vmatmul.bf16.gmra.mxu0 %v1330
          %v4129 = vpop.f32.mrf.mxu0
          %v4130 = vadd.f32 %v4081, %v4129
          %v4131 = vpop.f32.mrf.mxu0
          %v4132 = vadd.f32 %v4083, %v4131
          %4133 = vmatmul.bf16.gmra.mxu0 %v1334
          %v4134 = vpop.f32.mrf.mxu0
          %v4135 = vadd.f32 %v4086, %v4134
          %v4136 = vpop.f32.mrf.mxu0
          %v4137 = vadd.f32 %v4088, %v4136
          %4138 = vmatmul.bf16.gmra.mxu0 %v1338
          %v4139 = vpop.f32.mrf.mxu0
          %v4140 = vadd.f32 %v4091, %v4139
          %v4141 = vpop.f32.mrf.mxu0
          %v4142 = vadd.f32 %v4093, %v4141
          %4143 = vmatmul.bf16.gmra.mxu0 %v1342
          %v4144 = vpop.f32.mrf.mxu0
          %v4145 = vadd.f32 %v4096, %v4144
          %v4146 = vpop.f32.mrf.mxu0
          %v4147 = vadd.f32 %v4098, %v4146
          %4148 = vmatmul.bf16.gmra.mxu0 %v1346
          %v4149 = vpop.f32.mrf.mxu0
          %v4150 = vadd.f32 %v4101, %v4149
          %v4151 = vpop.f32.mrf.mxu0
          %v4152 = vadd.f32 %v4103, %v4151
          %4153 = vmatmul.bf16.gmra.mxu0 %v1350
          %v4154 = vpop.f32.mrf.mxu0
          %v4155 = vadd.f32 %v4106, %v4154
          %v4156 = vpop.f32.mrf.mxu0
          %v4157 = vadd.f32 %v4108, %v4156
          %4158 = vdwg.mxu0
          %4159 = vmatpush.bf16.msra.mxu0 %v3702
          %4160 = vmatpush.bf16.msra.mxu0 %v3698
          %4161 = vmatpush.bf16.msra.mxu0 %v3694
          %4162 = vmatpush.bf16.msra.mxu0 %v3690
          %4163 = vmatpush.bf16.msra.mxu0 %v3686
          %4164 = vmatpush.bf16.msra.mxu0 %v3682
          %4165 = vmatpush.bf16.msra.mxu0 %v3678
          %4166 = vmatpush.bf16.msra.mxu0 %v3674
          %4167 = vmatmul.bf16.gmra.mxu0 %v1323
          %v4168 = vpop.f32.mrf.mxu0
          %v4169 = vadd.f32 %v4120, %v4168
          %v4170 = vpop.f32.mrf.mxu0
          %v4171 = vadd.f32 %v4122, %v4170
          %4172 = vmatmul.bf16.gmra.mxu0 %v1327
          %v4173 = vpop.f32.mrf.mxu0
          %v4174 = vadd.f32 %v4125, %v4173
          %v4175 = vpop.f32.mrf.mxu0
          %v4176 = vadd.f32 %v4127, %v4175
          %4177 = vmatmul.bf16.gmra.mxu0 %v1331
          %v4178 = vpop.f32.mrf.mxu0
          %v4179 = vadd.f32 %v4130, %v4178
          %v4180 = vpop.f32.mrf.mxu0
          %v4181 = vadd.f32 %v4132, %v4180
          %4182 = vmatmul.bf16.gmra.mxu0 %v1335
          %v4183 = vpop.f32.mrf.mxu0
          %v4184 = vadd.f32 %v4135, %v4183
          %v4185 = vpop.f32.mrf.mxu0
          %v4186 = vadd.f32 %v4137, %v4185
          %4187 = vmatmul.bf16.gmra.mxu0 %v1339
          %v4188 = vpop.f32.mrf.mxu0
          %v4189 = vadd.f32 %v4140, %v4188
          %v4190 = vpop.f32.mrf.mxu0
          %v4191 = vadd.f32 %v4142, %v4190
          %4192 = vmatmul.bf16.gmra.mxu0 %v1343
          %v4193 = vpop.f32.mrf.mxu0
          %v4194 = vadd.f32 %v4145, %v4193
          %v4195 = vpop.f32.mrf.mxu0
          %v4196 = vadd.f32 %v4147, %v4195
          %4197 = vmatmul.bf16.gmra.mxu0 %v1347
          %v4198 = vpop.f32.mrf.mxu0
          %v4199 = vadd.f32 %v4150, %v4198
          %v4200 = vpop.f32.mrf.mxu0
          %v4201 = vadd.f32 %v4152, %v4200
          %4202 = vmatmul.bf16.gmra.mxu0 %v1351
          %v4203 = vpop.f32.mrf.mxu0
          %v4204 = vadd.f32 %v4155, %v4203
          %v4205 = vpop.f32.mrf.mxu0
          %v4206 = vadd.f32 %v4157, %v4205
          %4207 = vdwg.mxu0
          %4208 = vmatpush.bf16.msra.mxu0 %v3734
          %4209 = vmatpush.bf16.msra.mxu0 %v3730
          %4210 = vmatpush.bf16.msra.mxu0 %v3726
          %4211 = vmatpush.bf16.msra.mxu0 %v3722
          %4212 = vmatpush.bf16.msra.mxu0 %v3718
          %4213 = vmatpush.bf16.msra.mxu0 %v3714
          %4214 = vmatpush.bf16.msra.mxu0 %v3710
          %4215 = vmatpush.bf16.msra.mxu0 %v3706
          %4216 = vmatmul.bf16.gmra.mxu0 %v1324
          %v4217 = vpop.f32.mrf.mxu0
          %v4218 = vadd.f32 %v4169, %v4217
          %v4219 = vpop.f32.mrf.mxu0
          %v4220 = vadd.f32 %v4171, %v4219
          %4221 = vmatmul.bf16.gmra.mxu0 %v1328
          %v4222 = vpop.f32.mrf.mxu0
          %v4223 = vadd.f32 %v4174, %v4222
          %v4224 = vpop.f32.mrf.mxu0
          %v4225 = vadd.f32 %v4176, %v4224
          %4226 = vmatmul.bf16.gmra.mxu0 %v1332
          %v4227 = vpop.f32.mrf.mxu0
          %v4228 = vadd.f32 %v4179, %v4227
          %v4229 = vpop.f32.mrf.mxu0
          %v4230 = vadd.f32 %v4181, %v4229
          %4231 = vmatmul.bf16.gmra.mxu0 %v1336
          %v4232 = vpop.f32.mrf.mxu0
          %v4233 = vadd.f32 %v4184, %v4232
          %v4234 = vpop.f32.mrf.mxu0
          %v4235 = vadd.f32 %v4186, %v4234
          %4236 = vmatmul.bf16.gmra.mxu0 %v1340
          %v4237 = vpop.f32.mrf.mxu0
          %v4238 = vadd.f32 %v4189, %v4237
          %v4239 = vpop.f32.mrf.mxu0
          %v4240 = vadd.f32 %v4191, %v4239
          %4241 = vmatmul.bf16.gmra.mxu0 %v1344
          %v4242 = vpop.f32.mrf.mxu0
          %v4243 = vadd.f32 %v4194, %v4242
          %v4244 = vpop.f32.mrf.mxu0
          %v4245 = vadd.f32 %v4196, %v4244
          %4246 = vmatmul.bf16.gmra.mxu0 %v1348
          %v4247 = vpop.f32.mrf.mxu0
          %v4248 = vadd.f32 %v4199, %v4247
          %v4249 = vpop.f32.mrf.mxu0
          %v4250 = vadd.f32 %v4201, %v4249
          %4251 = vmatmul.bf16.gmra.mxu0 %v1352
          %v4252 = vpop.f32.mrf.mxu0
          %v4253 = vadd.f32 %v4204, %v4252
          %v4254 = vpop.f32.mrf.mxu0
          %v4255 = vadd.f32 %v4206, %v4254
          %4256 = vdwg.mxu0
          %4257 = vmatpush.bf16.msra.mxu0 %v3639
          %4258 = vmatpush.bf16.msra.mxu0 %v3635
          %4259 = vmatpush.bf16.msra.mxu0 %v3631
          %4260 = vmatpush.bf16.msra.mxu0 %v3627
          %4261 = vmatpush.bf16.msra.mxu0 %v3623
          %4262 = vmatpush.bf16.msra.mxu0 %v3619
          %4263 = vmatpush.bf16.msra.mxu0 %v3615
          %4264 = vmatpush.bf16.msra.mxu0 %v3611
          %4265 = vmatmul.bf16.gmra.mxu0 %v1321
          %v4266 = vpop.f32.mrf.mxu0
          %v4267 = vadd.f32 %v2990, %v4266
          %v4268 = vpop.f32.mrf.mxu0
          %v4269 = vadd.f32 %v2992, %v4268
          %4270 = vmatmul.bf16.gmra.mxu0 %v1325
          %v4271 = vpop.f32.mrf.mxu0
          %v4272 = vadd.f32 %v2995, %v4271
          %v4273 = vpop.f32.mrf.mxu0
          %v4274 = vadd.f32 %v2997, %v4273
          %4275 = vmatmul.bf16.gmra.mxu0 %v1329
          %v4276 = vpop.f32.mrf.mxu0
          %v4277 = vadd.f32 %v3000, %v4276
          %v4278 = vpop.f32.mrf.mxu0
          %v4279 = vadd.f32 %v3002, %v4278
          %4280 = vmatmul.bf16.gmra.mxu0 %v1333
          %v4281 = vpop.f32.mrf.mxu0
          %v4282 = vadd.f32 %v3005, %v4281
          %v4283 = vpop.f32.mrf.mxu0
          %v4284 = vadd.f32 %v3007, %v4283
          %4285 = vmatmul.bf16.gmra.mxu0 %v1337
          %v4286 = vpop.f32.mrf.mxu0
          %v4287 = vadd.f32 %v3010, %v4286
          %v4288 = vpop.f32.mrf.mxu0
          %v4289 = vadd.f32 %v3012, %v4288
          %4290 = vmatmul.bf16.gmra.mxu0 %v1341
          %v4291 = vpop.f32.mrf.mxu0
          %v4292 = vadd.f32 %v3015, %v4291
          %v4293 = vpop.f32.mrf.mxu0
          %v4294 = vadd.f32 %v3017, %v4293
          %4295 = vmatmul.bf16.gmra.mxu0 %v1345
          %v4296 = vpop.f32.mrf.mxu0
          %v4297 = vadd.f32 %v3020, %v4296
          %v4298 = vpop.f32.mrf.mxu0
          %v4299 = vadd.f32 %v3022, %v4298
          %4300 = vmatmul.bf16.gmra.mxu0 %v1349
          %v4301 = vpop.f32.mrf.mxu0
          %v4302 = vadd.f32 %v3025, %v4301
          %v4303 = vpop.f32.mrf.mxu0
          %v4304 = vadd.f32 %v3027, %v4303
          %4305 = vdwg.mxu0
          %4306 = vmatpush.bf16.msra.mxu0 %v3671
          %4307 = vmatpush.bf16.msra.mxu0 %v3667
          %4308 = vmatpush.bf16.msra.mxu0 %v3663
          %4309 = vmatpush.bf16.msra.mxu0 %v3659
          %4310 = vmatpush.bf16.msra.mxu0 %v3655
          %4311 = vmatpush.bf16.msra.mxu0 %v3651
          %4312 = vmatpush.bf16.msra.mxu0 %v3647
          %4313 = vmatpush.bf16.msra.mxu0 %v3643
          %4314 = vmatmul.bf16.gmra.mxu0 %v1322
          %v4315 = vpop.f32.mrf.mxu0
          %v4316 = vadd.f32 %v4267, %v4315
          %v4317 = vpop.f32.mrf.mxu0
          %v4318 = vadd.f32 %v4269, %v4317
          %4319 = vmatmul.bf16.gmra.mxu0 %v1326
          %v4320 = vpop.f32.mrf.mxu0
          %v4321 = vadd.f32 %v4272, %v4320
          %v4322 = vpop.f32.mrf.mxu0
          %v4323 = vadd.f32 %v4274, %v4322
          %4324 = vmatmul.bf16.gmra.mxu0 %v1330
          %v4325 = vpop.f32.mrf.mxu0
          %v4326 = vadd.f32 %v4277, %v4325
          %v4327 = vpop.f32.mrf.mxu0
          %v4328 = vadd.f32 %v4279, %v4327
          %4329 = vmatmul.bf16.gmra.mxu0 %v1334
          %v4330 = vpop.f32.mrf.mxu0
          %v4331 = vadd.f32 %v4282, %v4330
          %v4332 = vpop.f32.mrf.mxu0
          %v4333 = vadd.f32 %v4284, %v4332
          %4334 = vmatmul.bf16.gmra.mxu0 %v1338
          %v4335 = vpop.f32.mrf.mxu0
          %v4336 = vadd.f32 %v4287, %v4335
          %v4337 = vpop.f32.mrf.mxu0
          %v4338 = vadd.f32 %v4289, %v4337
          %4339 = vmatmul.bf16.gmra.mxu0 %v1342
          %v4340 = vpop.f32.mrf.mxu0
          %v4341 = vadd.f32 %v4292, %v4340
          %v4342 = vpop.f32.mrf.mxu0
          %v4343 = vadd.f32 %v4294, %v4342
          %4344 = vmatmul.bf16.gmra.mxu0 %v1346
          %v4345 = vpop.f32.mrf.mxu0
          %v4346 = vadd.f32 %v4297, %v4345
          %v4347 = vpop.f32.mrf.mxu0
          %v4348 = vadd.f32 %v4299, %v4347
          %4349 = vmatmul.bf16.gmra.mxu0 %v1350
          %v4350 = vpop.f32.mrf.mxu0
          %v4351 = vadd.f32 %v4302, %v4350
          %v4352 = vpop.f32.mrf.mxu0
          %v4353 = vadd.f32 %v4304, %v4352
          %4354 = vdwg.mxu0
          %4355 = vmatpush.bf16.msra.mxu0 %v3703
          %4356 = vmatpush.bf16.msra.mxu0 %v3699
          %4357 = vmatpush.bf16.msra.mxu0 %v3695
          %4358 = vmatpush.bf16.msra.mxu0 %v3691
          %4359 = vmatpush.bf16.msra.mxu0 %v3687
          %4360 = vmatpush.bf16.msra.mxu0 %v3683
          %4361 = vmatpush.bf16.msra.mxu0 %v3679
          %4362 = vmatpush.bf16.msra.mxu0 %v3675
          %4363 = vmatmul.bf16.gmra.mxu0 %v1323
          %v4364 = vpop.f32.mrf.mxu0
          %v4365 = vadd.f32 %v4316, %v4364
          %v4366 = vpop.f32.mrf.mxu0
          %v4367 = vadd.f32 %v4318, %v4366
          %4368 = vmatmul.bf16.gmra.mxu0 %v1327
          %v4369 = vpop.f32.mrf.mxu0
          %v4370 = vadd.f32 %v4321, %v4369
          %v4371 = vpop.f32.mrf.mxu0
          %v4372 = vadd.f32 %v4323, %v4371
          %4373 = vmatmul.bf16.gmra.mxu0 %v1331
          %v4374 = vpop.f32.mrf.mxu0
          %v4375 = vadd.f32 %v4326, %v4374
          %v4376 = vpop.f32.mrf.mxu0
          %v4377 = vadd.f32 %v4328, %v4376
          %4378 = vmatmul.bf16.gmra.mxu0 %v1335
          %v4379 = vpop.f32.mrf.mxu0
          %v4380 = vadd.f32 %v4331, %v4379
          %v4381 = vpop.f32.mrf.mxu0
          %v4382 = vadd.f32 %v4333, %v4381
          %4383 = vmatmul.bf16.gmra.mxu0 %v1339
          %v4384 = vpop.f32.mrf.mxu0
          %v4385 = vadd.f32 %v4336, %v4384
          %v4386 = vpop.f32.mrf.mxu0
          %v4387 = vadd.f32 %v4338, %v4386
          %4388 = vmatmul.bf16.gmra.mxu0 %v1343
          %v4389 = vpop.f32.mrf.mxu0
          %v4390 = vadd.f32 %v4341, %v4389
          %v4391 = vpop.f32.mrf.mxu0
          %v4392 = vadd.f32 %v4343, %v4391
          %4393 = vmatmul.bf16.gmra.mxu0 %v1347
          %v4394 = vpop.f32.mrf.mxu0
          %v4395 = vadd.f32 %v4346, %v4394
          %v4396 = vpop.f32.mrf.mxu0
          %v4397 = vadd.f32 %v4348, %v4396
          %4398 = vmatmul.bf16.gmra.mxu0 %v1351
          %v4399 = vpop.f32.mrf.mxu0
          %v4400 = vadd.f32 %v4351, %v4399
          %v4401 = vpop.f32.mrf.mxu0
          %v4402 = vadd.f32 %v4353, %v4401
          %4403 = vdwg.mxu0
          %4404 = vmatpush.bf16.msra.mxu0 %v3735
          %4405 = vmatpush.bf16.msra.mxu0 %v3731
          %4406 = vmatpush.bf16.msra.mxu0 %v3727
          %4407 = vmatpush.bf16.msra.mxu0 %v3723
          %4408 = vmatpush.bf16.msra.mxu0 %v3719
          %4409 = vmatpush.bf16.msra.mxu0 %v3715
          %4410 = vmatpush.bf16.msra.mxu0 %v3711
          %4411 = vmatpush.bf16.msra.mxu0 %v3707
          %4412 = vmatmul.bf16.gmra.mxu0 %v1324
          %v4413 = vpop.f32.mrf.mxu0
          %v4414 = vadd.f32 %v4365, %v4413
          %v4415 = vpop.f32.mrf.mxu0
          %v4416 = vadd.f32 %v4367, %v4415
          %4417 = vmatmul.bf16.gmra.mxu0 %v1328
          %v4418 = vpop.f32.mrf.mxu0
          %v4419 = vadd.f32 %v4370, %v4418
          %v4420 = vpop.f32.mrf.mxu0
          %v4421 = vadd.f32 %v4372, %v4420
          %4422 = vmatmul.bf16.gmra.mxu0 %v1332
          %v4423 = vpop.f32.mrf.mxu0
          %v4424 = vadd.f32 %v4375, %v4423
          %v4425 = vpop.f32.mrf.mxu0
          %v4426 = vadd.f32 %v4377, %v4425
          %4427 = vmatmul.bf16.gmra.mxu0 %v1336
          %v4428 = vpop.f32.mrf.mxu0
          %v4429 = vadd.f32 %v4380, %v4428
          %v4430 = vpop.f32.mrf.mxu0
          %v4431 = vadd.f32 %v4382, %v4430
          %4432 = vmatmul.bf16.gmra.mxu0 %v1340
          %v4433 = vpop.f32.mrf.mxu0
          %v4434 = vadd.f32 %v4385, %v4433
          %v4435 = vpop.f32.mrf.mxu0
          %v4436 = vadd.f32 %v4387, %v4435
          %4437 = vmatmul.bf16.gmra.mxu0 %v1344
          %v4438 = vpop.f32.mrf.mxu0
          %v4439 = vadd.f32 %v4390, %v4438
          %v4440 = vpop.f32.mrf.mxu0
          %v4441 = vadd.f32 %v4392, %v4440
          %4442 = vmatmul.bf16.gmra.mxu0 %v1348
          %v4443 = vpop.f32.mrf.mxu0
          %v4444 = vadd.f32 %v4395, %v4443
          %v4445 = vpop.f32.mrf.mxu0
          %v4446 = vadd.f32 %v4397, %v4445
          %4447 = vmatmul.bf16.gmra.mxu0 %v1352
          %v4448 = vpop.f32.mrf.mxu0
          %v4449 = vadd.f32 %v4400, %v4448
          %v4450 = vpop.f32.mrf.mxu0
          %v4451 = vadd.f32 %v4402, %v4450
          %4452 = vdwg.mxu0
          %4453 = vmatpush.bf16.msra.mxu0 %v3640
          %4454 = vmatpush.bf16.msra.mxu0 %v3636
          %4455 = vmatpush.bf16.msra.mxu0 %v3632
          %4456 = vmatpush.bf16.msra.mxu0 %v3628
          %4457 = vmatpush.bf16.msra.mxu0 %v3624
          %4458 = vmatpush.bf16.msra.mxu0 %v3620
          %4459 = vmatpush.bf16.msra.mxu0 %v3616
          %4460 = vmatpush.bf16.msra.mxu0 %v3612
          %4461 = vmatmul.bf16.gmra.mxu0 %v1321
          %v4462 = vpop.f32.mrf.mxu0
          %v4463 = vadd.f32 %v3186, %v4462
          %v4464 = vpop.f32.mrf.mxu0
          %v4465 = vadd.f32 %v3188, %v4464
          %4466 = vmatmul.bf16.gmra.mxu0 %v1325
          %v4467 = vpop.f32.mrf.mxu0
          %v4468 = vadd.f32 %v3191, %v4467
          %v4469 = vpop.f32.mrf.mxu0
          %v4470 = vadd.f32 %v3193, %v4469
          %4471 = vmatmul.bf16.gmra.mxu0 %v1329
          %v4472 = vpop.f32.mrf.mxu0
          %v4473 = vadd.f32 %v3196, %v4472
          %v4474 = vpop.f32.mrf.mxu0
          %v4475 = vadd.f32 %v3198, %v4474
          %4476 = vmatmul.bf16.gmra.mxu0 %v1333
          %v4477 = vpop.f32.mrf.mxu0
          %v4478 = vadd.f32 %v3201, %v4477
          %v4479 = vpop.f32.mrf.mxu0
          %v4480 = vadd.f32 %v3203, %v4479
          %4481 = vmatmul.bf16.gmra.mxu0 %v1337
          %v4482 = vpop.f32.mrf.mxu0
          %v4483 = vadd.f32 %v3206, %v4482
          %v4484 = vpop.f32.mrf.mxu0
          %v4485 = vadd.f32 %v3208, %v4484
          %4486 = vmatmul.bf16.gmra.mxu0 %v1341
          %v4487 = vpop.f32.mrf.mxu0
          %v4488 = vadd.f32 %v3211, %v4487
          %v4489 = vpop.f32.mrf.mxu0
          %v4490 = vadd.f32 %v3213, %v4489
          %4491 = vmatmul.bf16.gmra.mxu0 %v1345
          %v4492 = vpop.f32.mrf.mxu0
          %v4493 = vadd.f32 %v3216, %v4492
          %v4494 = vpop.f32.mrf.mxu0
          %v4495 = vadd.f32 %v3218, %v4494
          %4496 = vmatmul.bf16.gmra.mxu0 %v1349
          %v4497 = vpop.f32.mrf.mxu0
          %v4498 = vadd.f32 %v3221, %v4497
          %v4499 = vpop.f32.mrf.mxu0
          %v4500 = vadd.f32 %v3223, %v4499
          %4501 = vdwg.mxu0
          %4502 = vmatpush.bf16.msra.mxu0 %v3672
          %4503 = vmatpush.bf16.msra.mxu0 %v3668
          %4504 = vmatpush.bf16.msra.mxu0 %v3664
          %4505 = vmatpush.bf16.msra.mxu0 %v3660
          %4506 = vmatpush.bf16.msra.mxu0 %v3656
          %4507 = vmatpush.bf16.msra.mxu0 %v3652
          %4508 = vmatpush.bf16.msra.mxu0 %v3648
          %4509 = vmatpush.bf16.msra.mxu0 %v3644
          %4510 = vmatmul.bf16.gmra.mxu0 %v1322
          %v4511 = vpop.f32.mrf.mxu0
          %v4512 = vadd.f32 %v4463, %v4511
          %v4513 = vpop.f32.mrf.mxu0
          %v4514 = vadd.f32 %v4465, %v4513
          %4515 = vmatmul.bf16.gmra.mxu0 %v1326
          %v4516 = vpop.f32.mrf.mxu0
          %v4517 = vadd.f32 %v4468, %v4516
          %v4518 = vpop.f32.mrf.mxu0
          %v4519 = vadd.f32 %v4470, %v4518
          %4520 = vmatmul.bf16.gmra.mxu0 %v1330
          %v4521 = vpop.f32.mrf.mxu0
          %v4522 = vadd.f32 %v4473, %v4521
          %v4523 = vpop.f32.mrf.mxu0
          %v4524 = vadd.f32 %v4475, %v4523
          %4525 = vmatmul.bf16.gmra.mxu0 %v1334
          %v4526 = vpop.f32.mrf.mxu0
          %v4527 = vadd.f32 %v4478, %v4526
          %v4528 = vpop.f32.mrf.mxu0
          %v4529 = vadd.f32 %v4480, %v4528
          %4530 = vmatmul.bf16.gmra.mxu0 %v1338
          %v4531 = vpop.f32.mrf.mxu0
          %v4532 = vadd.f32 %v4483, %v4531
          %v4533 = vpop.f32.mrf.mxu0
          %v4534 = vadd.f32 %v4485, %v4533
          %4535 = vmatmul.bf16.gmra.mxu0 %v1342
          %v4536 = vpop.f32.mrf.mxu0
          %v4537 = vadd.f32 %v4488, %v4536
          %v4538 = vpop.f32.mrf.mxu0
          %v4539 = vadd.f32 %v4490, %v4538
          %4540 = vmatmul.bf16.gmra.mxu0 %v1346
          %v4541 = vpop.f32.mrf.mxu0
          %v4542 = vadd.f32 %v4493, %v4541
          %v4543 = vpop.f32.mrf.mxu0
          %v4544 = vadd.f32 %v4495, %v4543
          %4545 = vmatmul.bf16.gmra.mxu0 %v1350
          %v4546 = vpop.f32.mrf.mxu0
          %v4547 = vadd.f32 %v4498, %v4546
          %v4548 = vpop.f32.mrf.mxu0
          %v4549 = vadd.f32 %v4500, %v4548
          %4550 = vdwg.mxu0
          %4551 = vmatpush.bf16.msra.mxu0 %v3704
          %4552 = vmatpush.bf16.msra.mxu0 %v3700
          %4553 = vmatpush.bf16.msra.mxu0 %v3696
          %4554 = vmatpush.bf16.msra.mxu0 %v3692
          %4555 = vmatpush.bf16.msra.mxu0 %v3688
          %4556 = vmatpush.bf16.msra.mxu0 %v3684
          %4557 = vmatpush.bf16.msra.mxu0 %v3680
          %4558 = vmatpush.bf16.msra.mxu0 %v3676
          %4559 = vmatmul.bf16.gmra.mxu0 %v1323
          %v4560 = vpop.f32.mrf.mxu0
          %v4561 = vadd.f32 %v4512, %v4560
          %v4562 = vpop.f32.mrf.mxu0
          %v4563 = vadd.f32 %v4514, %v4562
          %4564 = vmatmul.bf16.gmra.mxu0 %v1327
          %v4565 = vpop.f32.mrf.mxu0
          %v4566 = vadd.f32 %v4517, %v4565
          %v4567 = vpop.f32.mrf.mxu0
          %v4568 = vadd.f32 %v4519, %v4567
          %4569 = vmatmul.bf16.gmra.mxu0 %v1331
          %v4570 = vpop.f32.mrf.mxu0
          %v4571 = vadd.f32 %v4522, %v4570
          %v4572 = vpop.f32.mrf.mxu0
          %v4573 = vadd.f32 %v4524, %v4572
          %4574 = vmatmul.bf16.gmra.mxu0 %v1335
          %v4575 = vpop.f32.mrf.mxu0
          %v4576 = vadd.f32 %v4527, %v4575
          %v4577 = vpop.f32.mrf.mxu0
          %v4578 = vadd.f32 %v4529, %v4577
          %4579 = vmatmul.bf16.gmra.mxu0 %v1339
          %v4580 = vpop.f32.mrf.mxu0
          %v4581 = vadd.f32 %v4532, %v4580
          %v4582 = vpop.f32.mrf.mxu0
          %v4583 = vadd.f32 %v4534, %v4582
          %4584 = vmatmul.bf16.gmra.mxu0 %v1343
          %v4585 = vpop.f32.mrf.mxu0
          %v4586 = vadd.f32 %v4537, %v4585
          %v4587 = vpop.f32.mrf.mxu0
          %v4588 = vadd.f32 %v4539, %v4587
          %4589 = vmatmul.bf16.gmra.mxu0 %v1347
          %v4590 = vpop.f32.mrf.mxu0
          %v4591 = vadd.f32 %v4542, %v4590
          %v4592 = vpop.f32.mrf.mxu0
          %v4593 = vadd.f32 %v4544, %v4592
          %4594 = vmatmul.bf16.gmra.mxu0 %v1351
          %v4595 = vpop.f32.mrf.mxu0
          %v4596 = vadd.f32 %v4547, %v4595
          %v4597 = vpop.f32.mrf.mxu0
          %v4598 = vadd.f32 %v4549, %v4597
          %4599 = vdwg.mxu0
          %4600 = vmatpush.bf16.msra.mxu0 %v3736
          %4601 = vmatpush.bf16.msra.mxu0 %v3732
          %4602 = vmatpush.bf16.msra.mxu0 %v3728
          %4603 = vmatpush.bf16.msra.mxu0 %v3724
          %4604 = vmatpush.bf16.msra.mxu0 %v3720
          %4605 = vmatpush.bf16.msra.mxu0 %v3716
          %4606 = vmatpush.bf16.msra.mxu0 %v3712
          %4607 = vmatpush.bf16.msra.mxu0 %v3708
          %4608 = vmatmul.bf16.gmra.mxu0 %v1324
          %v4609 = vpop.f32.mrf.mxu0
          %v4610 = vadd.f32 %v4561, %v4609
          %v4611 = vpop.f32.mrf.mxu0
          %v4612 = vadd.f32 %v4563, %v4611
          %4613 = vmatmul.bf16.gmra.mxu0 %v1328
          %v4614 = vpop.f32.mrf.mxu0
          %v4615 = vadd.f32 %v4566, %v4614
          %v4616 = vpop.f32.mrf.mxu0
          %v4617 = vadd.f32 %v4568, %v4616
          %4618 = vmatmul.bf16.gmra.mxu0 %v1332
          %v4619 = vpop.f32.mrf.mxu0
          %v4620 = vadd.f32 %v4571, %v4619
          %v4621 = vpop.f32.mrf.mxu0
          %v4622 = vadd.f32 %v4573, %v4621
          %4623 = vmatmul.bf16.gmra.mxu0 %v1336
          %v4624 = vpop.f32.mrf.mxu0
          %v4625 = vadd.f32 %v4576, %v4624
          %v4626 = vpop.f32.mrf.mxu0
          %v4627 = vadd.f32 %v4578, %v4626
          %4628 = vmatmul.bf16.gmra.mxu0 %v1340
          %v4629 = vpop.f32.mrf.mxu0
          %v4630 = vadd.f32 %v4581, %v4629
          %v4631 = vpop.f32.mrf.mxu0
          %v4632 = vadd.f32 %v4583, %v4631
          %4633 = vmatmul.bf16.gmra.mxu0 %v1344
          %v4634 = vpop.f32.mrf.mxu0
          %v4635 = vadd.f32 %v4586, %v4634
          %v4636 = vpop.f32.mrf.mxu0
          %v4637 = vadd.f32 %v4588, %v4636
          %4638 = vmatmul.bf16.gmra.mxu0 %v1348
          %v4639 = vpop.f32.mrf.mxu0
          %v4640 = vadd.f32 %v4591, %v4639
          %v4641 = vpop.f32.mrf.mxu0
          %v4642 = vadd.f32 %v4593, %v4641
          %4643 = vmatmul.bf16.gmra.mxu0 %v1352
          %v4644 = vpop.f32.mrf.mxu0
          %v4645 = vadd.f32 %v4596, %v4644
          %v4646 = vpop.f32.mrf.mxu0
          %v4647 = vadd.f32 %v4598, %v4646
          %4648 = vdwg.mxu0
          %v4649 = vld [vmem:[%s7] sm:$0xf]
          %v4651 = vperm.slane %v4649, 0
          %v4652 = vperm.slane %v4649, 1
          %v4653 = vperm.slane %v4649, 2
          %v4654 = vperm.slane %v4649, 3
          %v4659 = vadd.f32 %v4022, %v4651
          %v4660 = vadd.f32 %v4218, %v4652
          %v4661 = vadd.f32 %v4414, %v4653
          %v4662 = vadd.f32 %v4610, %v4654
          %v4663 = vadd.f32 %v4024, %v4651
          %v4664 = vadd.f32 %v4220, %v4652
          %v4665 = vadd.f32 %v4416, %v4653
          %v4666 = vadd.f32 %v4612, %v4654
          %v4667 = vadd.f32 %v4027, %v4651
          %v4668 = vadd.f32 %v4223, %v4652
          %v4669 = vadd.f32 %v4419, %v4653
          %v4670 = vadd.f32 %v4615, %v4654
          %v4671 = vadd.f32 %v4029, %v4651
          %v4672 = vadd.f32 %v4225, %v4652
          %v4673 = vadd.f32 %v4421, %v4653
          %v4674 = vadd.f32 %v4617, %v4654
          %v4675 = vadd.f32 %v4032, %v4651
          %v4676 = vadd.f32 %v4228, %v4652
          %v4677 = vadd.f32 %v4424, %v4653
          %v4678 = vadd.f32 %v4620, %v4654
          %v4679 = vadd.f32 %v4034, %v4651
          %v4680 = vadd.f32 %v4230, %v4652
          %v4681 = vadd.f32 %v4426, %v4653
          %v4682 = vadd.f32 %v4622, %v4654
          %v4683 = vadd.f32 %v4037, %v4651
          %v4684 = vadd.f32 %v4233, %v4652
          %v4685 = vadd.f32 %v4429, %v4653
          %v4686 = vadd.f32 %v4625, %v4654
          %v4687 = vadd.f32 %v4039, %v4651
          %v4688 = vadd.f32 %v4235, %v4652
          %v4689 = vadd.f32 %v4431, %v4653
          %v4690 = vadd.f32 %v4627, %v4654
          %v4691 = vadd.f32 %v4042, %v4651
          %v4692 = vadd.f32 %v4238, %v4652
          %v4693 = vadd.f32 %v4434, %v4653
          %v4694 = vadd.f32 %v4630, %v4654
          %v4695 = vadd.f32 %v4044, %v4651
          %v4696 = vadd.f32 %v4240, %v4652
          %v4697 = vadd.f32 %v4436, %v4653
          %v4698 = vadd.f32 %v4632, %v4654
          %v4699 = vadd.f32 %v4047, %v4651
          %v4700 = vadd.f32 %v4243, %v4652
          %v4701 = vadd.f32 %v4439, %v4653
          %v4702 = vadd.f32 %v4635, %v4654
          %v4703 = vadd.f32 %v4049, %v4651
          %v4704 = vadd.f32 %v4245, %v4652
          %v4705 = vadd.f32 %v4441, %v4653
          %v4706 = vadd.f32 %v4637, %v4654
          %v4707 = vadd.f32 %v4052, %v4651
          %v4708 = vadd.f32 %v4248, %v4652
          %v4709 = vadd.f32 %v4444, %v4653
          %v4710 = vadd.f32 %v4640, %v4654
          %v4711 = vadd.f32 %v4054, %v4651
          %v4712 = vadd.f32 %v4250, %v4652
          %v4713 = vadd.f32 %v4446, %v4653
          %v4714 = vadd.f32 %v4642, %v4654
          %v4715 = vadd.f32 %v4057, %v4651
          %v4716 = vadd.f32 %v4253, %v4652
          %v4717 = vadd.f32 %v4449, %v4653
          %v4718 = vadd.f32 %v4645, %v4654
          %v4719 = vadd.f32 %v4059, %v4651
          %v4720 = vadd.f32 %v4255, %v4652
          %v4721 = vadd.f32 %v4451, %v4653
          %v4722 = vadd.f32 %v4647, %v4654
          %v4723 = vtanh.pop %v4659
          %v4724 = vtanh.pop %v4660
          %v4725 = vtanh.pop %v4661
          %v4726 = vtanh.pop %v4662
          %v4727 = vtanh.pop %v4663
          %v4728 = vtanh.pop %v4664
          %v4729 = vtanh.pop %v4665
          %v4730 = vtanh.pop %v4666
          %v4731 = vtanh.pop %v4667
          %v4732 = vtanh.pop %v4668
          %v4733 = vtanh.pop %v4669
          %v4734 = vtanh.pop %v4670
          %v4735 = vtanh.pop %v4671
          %v4736 = vtanh.pop %v4672
          %v4737 = vtanh.pop %v4673
          %v4738 = vtanh.pop %v4674
          %v4739 = vtanh.pop %v4675
          %v4740 = vtanh.pop %v4676
          %v4741 = vtanh.pop %v4677
          %v4742 = vtanh.pop %v4678
          %v4743 = vtanh.pop %v4679
          %v4744 = vtanh.pop %v4680
          %v4745 = vtanh.pop %v4681
          %v4746 = vtanh.pop %v4682
          %v4747 = vtanh.pop %v4683
          %v4748 = vtanh.pop %v4684
          %v4749 = vtanh.pop %v4685
          %v4750 = vtanh.pop %v4686
          %v4751 = vtanh.pop %v4687
          %v4752 = vtanh.pop %v4688
          %v4753 = vtanh.pop %v4689
          %v4754 = vtanh.pop %v4690
          %v4755 = vtanh.pop %v4691
          %v4756 = vtanh.pop %v4692
          %v4757 = vtanh.pop %v4693
          %v4758 = vtanh.pop %v4694
          %v4759 = vtanh.pop %v4695
          %v4760 = vtanh.pop %v4696
          %v4761 = vtanh.pop %v4697
          %v4762 = vtanh.pop %v4698
          %v4763 = vtanh.pop %v4699
          %v4764 = vtanh.pop %v4700
          %v4765 = vtanh.pop %v4701
          %v4766 = vtanh.pop %v4702
          %v4767 = vtanh.pop %v4703
          %v4768 = vtanh.pop %v4704
          %v4769 = vtanh.pop %v4705
          %v4770 = vtanh.pop %v4706
          %v4771 = vtanh.pop %v4707
          %v4772 = vtanh.pop %v4708
          %v4773 = vtanh.pop %v4709
          %v4774 = vtanh.pop %v4710
          %v4775 = vtanh.pop %v4711
          %v4776 = vtanh.pop %v4712
          %v4777 = vtanh.pop %v4713
          %v4778 = vtanh.pop %v4714
          %v4779 = vtanh.pop %v4715
          %v4780 = vtanh.pop %v4716
          %v4781 = vtanh.pop %v4717
          %v4782 = vtanh.pop %v4718
          %v4783 = vtanh.pop %v4719
          %v4784 = vtanh.pop %v4720
          %v4785 = vtanh.pop %v4721
          %v4786 = vtanh.pop %v4722
          %v4787 = vpack.c.bf16 %v4724, %v4723
          %v4788 = vpack.c.bf16 %v4726, %v4725
          %v4789 = vpack.c.bf16 %v4728, %v4727
          %v4790 = vpack.c.bf16 %v4730, %v4729
          %v4791 = vpack.c.bf16 %v4732, %v4731
          %v4792 = vpack.c.bf16 %v4734, %v4733
          %v4793 = vpack.c.bf16 %v4736, %v4735
          %v4794 = vpack.c.bf16 %v4738, %v4737
          %v4795 = vpack.c.bf16 %v4740, %v4739
          %v4796 = vpack.c.bf16 %v4742, %v4741
          %v4797 = vpack.c.bf16 %v4744, %v4743
          %v4798 = vpack.c.bf16 %v4746, %v4745
          %v4799 = vpack.c.bf16 %v4748, %v4747
          %v4800 = vpack.c.bf16 %v4750, %v4749
          %v4801 = vpack.c.bf16 %v4752, %v4751
          %v4802 = vpack.c.bf16 %v4754, %v4753
          %v4803 = vpack.c.bf16 %v4756, %v4755
          %v4804 = vpack.c.bf16 %v4758, %v4757
          %v4805 = vpack.c.bf16 %v4760, %v4759
          %v4806 = vpack.c.bf16 %v4762, %v4761
          %v4807 = vpack.c.bf16 %v4764, %v4763
          %v4808 = vpack.c.bf16 %v4766, %v4765
          %v4809 = vpack.c.bf16 %v4768, %v4767
          %v4810 = vpack.c.bf16 %v4770, %v4769
          %v4811 = vpack.c.bf16 %v4772, %v4771
          %v4812 = vpack.c.bf16 %v4774, %v4773
          %v4813 = vpack.c.bf16 %v4776, %v4775
          %v4814 = vpack.c.bf16 %v4778, %v4777
          %v4815 = vpack.c.bf16 %v4780, %v4779
          %v4816 = vpack.c.bf16 %v4782, %v4781
          %v4817 = vpack.c.bf16 %v4784, %v4783
          %v4818 = vpack.c.bf16 %v4786, %v4785
          %4819 = vst [vmem:[%s527] sm:$0xff] %v4787
          %4820 = vst [vmem:[%s527 + $0x8] sm:$0xff] %v4788
          %4821 = vst [vmem:[%s527 + $0x10] sm:$0xff] %v4789
          %4822 = vst [vmem:[%s527 + $0x18] sm:$0xff] %v4790
          %4823 = vst [vmem:[%s527 + $0x20] sm:$0xff] %v4791
          %4824 = vst [vmem:[%s527 + $0x28] sm:$0xff] %v4792
          %4825 = vst [vmem:[%s527 + $0x30] sm:$0xff] %v4793
          %4826 = vst [vmem:[%s527 + $0x38] sm:$0xff] %v4794
          %4827 = vst [vmem:[%s527 + $0x40] sm:$0xff] %v4795
          %4828 = vst [vmem:[%s527 + $0x48] sm:$0xff] %v4796
          %4829 = vst [vmem:[%s527 + $0x50] sm:$0xff] %v4797
          %4830 = vst [vmem:[%s527 + $0x58] sm:$0xff] %v4798
          %4831 = vst [vmem:[%s527 + $0x60] sm:$0xff] %v4799
          %4832 = vst [vmem:[%s527 + $0x68] sm:$0xff] %v4800
          %4833 = vst [vmem:[%s527 + $0x70] sm:$0xff] %v4801
          %4834 = vst [vmem:[%s527 + $0x78] sm:$0xff] %v4802
          %4835 = vst [vmem:[%s527 + $0x80] sm:$0xff] %v4803
          %4836 = vst [vmem:[%s527 + $0x88] sm:$0xff] %v4804
          %4837 = vst [vmem:[%s527 + $0x90] sm:$0xff] %v4805
          %4838 = vst [vmem:[%s527 + $0x98] sm:$0xff] %v4806
          %4839 = vst [vmem:[%s527 + $0xa0] sm:$0xff] %v4807
          %4840 = vst [vmem:[%s527 + $0xa8] sm:$0xff] %v4808
          %4841 = vst [vmem:[%s527 + $0xb0] sm:$0xff] %v4809
          %4842 = vst [vmem:[%s527 + $0xb8] sm:$0xff] %v4810
          %4843 = vst [vmem:[%s527 + $0xc0] sm:$0xff] %v4811
          %4844 = vst [vmem:[%s527 + $0xc8] sm:$0xff] %v4812
          %4845 = vst [vmem:[%s527 + $0xd0] sm:$0xff] %v4813
          %4846 = vst [vmem:[%s527 + $0xd8] sm:$0xff] %v4814
          %4847 = vst [vmem:[%s527 + $0xe0] sm:$0xff] %v4815
          %4848 = vst [vmem:[%s527 + $0xe8] sm:$0xff] %v4816
          %4849 = vst [vmem:[%s527 + $0xf0] sm:$0xff] %v4817
          %4850 = vst [vmem:[%s527 + $0xf8] sm:$0xff] %v4818
        $region97: #{gnn_forward.5} parent=80 // pred_fallthru
          _
        %s4851 = smul.u32 16, %s36
        %p4852 = scmp.lt.s32.totalorder %s4851, 47
        %s4853 = scalar_select %p4852, %s4851, 47
        %s4854 = smul.addr %s4853, 4
        %s4855 = smul.addr %s4854, 4
        %s4856 = scalar_lea.vmem %s8, %s4855
        // Predicated region
        $region98: #{gnn_forward.5} parent=80 // pred_check
          %p4857 = pneg %p237
        $region99: #{gnn_forward.5} parent=80 // pred_check_branch
          %4859 = sbr.rel (%p4857) target = $region101
        $region100: #{gnn_forward.5} parent=80 // pred_region
          %s4860 = smul.u32 16, %s36
        $region101: #{gnn_forward.5} parent=80 // pred_fallthru
          _
      $region81: #{gnn_forward.5} parent=5 // pred_fallthru
        _
      %p4861 = scmp.le.s32.totalorder 2, %s27
      // Predicated region
      $region102: #{gnn_forward.5} parent=5 // pred_check
        %p4862 = pneg %p4861
      $region103: #{gnn_forward.5} parent=5 // pred_check_branch
        %4864 = sbr.rel (%p4862) target = $region105
      $region104: #{gnn_forward.5} parent=5 // pred_region
        %s4865 = ssub.s32 %s27, 2
        // Predicated region
        $region106: #{gnn_forward.5} parent=104 // pred_check
          %p4866 = pneg %p243
        $region107: #{gnn_forward.5} parent=104 // pred_check_branch
          %4868 = sbr.rel (%p4866) target = $region109
        $region108: #{gnn_forward.5} parent=104 // pred_region
          %s4869 = smul.u32 16, %s38
          %p4870 = scmp.lt.s32.totalorder %s4869, 47
          %s4871 = scalar_select %p4870, %s4869, 47
          %s4872 = smul.addr %s4871, 4
          %s4873 = smul.addr %s4872, 4
          %s4874 = scalar_lea.vmem %s8, %s4873
        $region109: #{gnn_forward.5} parent=104 // pred_fallthru
          _
      $region105: #{gnn_forward.5} parent=5 // pred_fallthru
        _
    $region6: #{gnn_forward.5} parent=1 // loop_footer
      %s31 = sadd.s32 1, %s27
    $region7: #{gnn_forward.5} parent=1 // loop_footer_branch
      %26 = sbr.rel target = $region3
    $region8: #{gnn_forward.5} parent=1 // loop_exit
      _

</llo_original>
